<compile_context>
chip_gen: v5e
topology: v5e:2x2
jax: 0.10.0
libtpu: 0.0.40
codegen_flags: <defaults>
</compile_context>

<pallas_src>
import jax
import jax.numpy as jnp
from jax import lax
from jax.experimental import pallas as pl
from jax.experimental.pallas import tpu as pltpu


# ----------------------------- in-kernel helpers ------------------------------

def _leaky(x, slope=0.1):
    # torch module explicitly uses LeakyReLU(0.1) / F.leaky_relu(..., 0.1)
    return jnp.where(x > 0, x, slope * x)


def _conv1d_same(x, w_flat, k):
    """'same' Conv1d (stride 1, padding K//2, K odd) via im2col + one matmul.

    x: (L, Cin) f32 value.  w_flat: (K*Cin, Cout) with
    w_flat[j*Cin + ci, co] == torch_weight[co, ci, j].
    """
    L, cin = x.shape
    pad = k // 2
    z = jnp.zeros((pad, cin), jnp.float32)
    xpad = jnp.concatenate([z, x, z], axis=0)                             # (L+2p, Cin)
    cols = jnp.concatenate([xpad[j:j + L, :] for j in range(k)], axis=1)  # (L, K*Cin)
    return jnp.dot(cols, w_flat, preferred_element_type=jnp.float32)


# ------------------------------- fused kernel ---------------------------------
# One grid step = one batch element:
#   [conv1(k=3) | 1x1 residual conv] (single im2col matmul) -> BN -> LeakyReLU
#   -> conv2(k=5) -> BN -> LeakyReLU -> + residual(BN)
#   -> biLSTM layer 0 -> biLSTM layer 1 -> fc1 -> LeakyReLU -> fc2 -> LeakyReLU
#   -> output linear -> sigmoid.
# BN (eval) + conv bias are pre-folded to per-channel scale/shift.

def fused_kernel(x_ref,
                 w1_ref, s1_ref, b1_ref,          # conv1+residual fused weight, conv1 BN
                 w2_ref, s2_ref, b2_ref,          # conv2 weight, conv2 BN
                 sr_ref, br_ref,                  # residual BN
                 l0_wi, l0_bias, l0_whf, l0_whb,  # biLSTM layer 0
                 l1_wi, l1_bias, l1_whf, l1_whb,  # biLSTM layer 1
                 wf1_ref, bf1_ref, wf2_ref, bf2_ref, wo_ref, bo_ref,
                 out_ref,
                 xp, hbf, hbb):
    L = x_ref.shape[1]
    F = x_ref.shape[2]
    C1 = s1_ref.shape[1]
    k1 = w1_ref.shape[0] // F                 # conv1 kernel size
    k2 = w2_ref.shape[0] // C1                # conv2 kernel size
    H = l0_whf.shape[0]                       # hidden size (4H == 128 lanes)
    H4 = 4 * H

    # ---------------------------- CNN block -----------------------------------
    x = x_ref[0].astype(jnp.float32)                                     # (L, F)
    # one matmul gives conv1 pre-activation (cols :C1) AND residual 1x1 conv (cols C1:)
    c1r = _conv1d_same(x, w1_ref[...], k1)                               # (L, C1+C2)
    h = _leaky(c1r[:, :C1] * s1_ref[...] + b1_ref[...])                  # (L, C1)
    res = c1r[:, C1:] * sr_ref[...] + br_ref[...]                        # (L, C2)
    h = _leaky(_conv1d_same(h, w2_ref[...], k2) * s2_ref[...] + b2_ref[...])
    feat = h + res                                                       # (L, C2)

    # ----------------- bidirectional LSTM layer (both dirs interleaved) -------
    def bilstm_layer(inp, wi, bias, wh_f, wh_b):
        # Hoist BOTH directions' input projections out of the recurrence with a single
        # (L, Cin) @ (Cin, 8H) matmul; fwd gates in lanes [:4H], bwd gates in [4H:].
        xp[...] = (jnp.dot(inp, wi[...], preferred_element_type=jnp.float32)
                   + bias[...])                                          # (L, 8H)
        whf = wh_f[...]
        whb = wh_b[...]

        def cell(pre, h_prev, c_prev, wh):
            # one (1,H)@(H,4H) matmul per step; gate order i, f, g, o (PyTorch)
            g = pre + jnp.dot(h_prev, wh, preferred_element_type=jnp.float32)
            s_if = jax.nn.sigmoid(g[:, 0:2 * H])          # i and f in one EUP call
            i = s_if[:, 0:H]
            f = s_if[:, H:2 * H]
            gg = jnp.tanh(g[:, 2 * H:3 * H])
            o = jax.nn.sigmoid(g[:, 3 * H:4 * H])
            c_new = f * c_prev + i * gg
            return o * jnp.tanh(c_new), c_new

        def step(t, carry):
            hf, cf, hb, cb = carry
            tr = L - 1 - t
            hf, cf = cell(xp[pl.ds(t, 1), 0:H4], hf, cf, whf)        # forward  @ t
            hb, cb = cell(xp[pl.ds(tr, 1), H4:2 * H4], hb, cb, whb)  # backward @ L-1-t
            hbf[pl.ds(t, 1), :] = hf                                 # buffer in VMEM
            hbb[pl.ds(tr, 1), :] = hb
            return hf, cf, hb, cb

        z = jnp.zeros((1, H), jnp.float32)
        lax.fori_loop(0, L, step, (z, z, z, z), unroll=True)
        return jnp.concatenate([hbf[...], hbb[...]], axis=1)             # (L, 2H)

    y = bilstm_layer(feat, l0_wi, l0_bias, l0_whf, l0_whb)
    y = bilstm_layer(y, l1_wi, l1_bias, l1_whf, l1_whb)

    # ------------------------------ classifier head ---------------------------
    # (torch's attention/context_vector and flat fc1_out never feed `output`)
    h1 = _leaky(jnp.dot(y, wf1_ref[...], preferred_element_type=jnp.float32)
                + bf1_ref[...])                                          # (L, H)
    h2 = _leaky(jnp.dot(h1, wf2_ref[...], preferred_element_type=jnp.float32)
                + bf2_ref[...])                                          # (L, 64)
    # NT matmul: (1,64) x (L,64)^T -> (1, L) lane-dense row of logits
    logit = lax.dot_general(wo_ref[...], h2, (((1,), (1,)), ((), ())),
                            preferred_element_type=jnp.float32) + bo_ref[...]
    out_ref[0] = jax.nn.sigmoid(logit).astype(out_ref.dtype)             # (1, L)


# ------------------------------- forward wrapper ------------------------------

def cnn_lstm_forward(x, p):
    B, L, F = x.shape
    H = p["lstm0_whf"].shape[0]

    full = lambda a: pl.BlockSpec(a.shape, lambda b: (0,) * a.ndim)
    args = (p["conv1res_w"], p["bn1_scale"], p["bn1_shift"],
            p["conv2_w"], p["bn2_scale"], p["bn2_shift"],
            p["resbn_scale"], p["resbn_shift"],
            p["lstm0_wi"], p["lstm0_bias"], p["lstm0_whf"], p["lstm0_whb"],
            p["lstm1_wi"], p["lstm1_bias"], p["lstm1_whf"], p["lstm1_whb"],
            p["fc1_w"], p["fc1_b"], p["fc2_w"], p["fc2_b"],
            p["out_w"], p["out_b"])

    out3 = pl.pallas_call(
        fused_kernel,
        out_shape=jax.ShapeDtypeStruct((B, 1, L), jnp.float32),
        grid=(B,),
        in_specs=[pl.BlockSpec((1, L, F), lambda b: (b, 0, 0))]
                 + [full(a) for a in args],
        out_specs=pl.BlockSpec((1, 1, L), lambda b: (b, 0, 0)),
        scratch_shapes=[pltpu.VMEM((L, 8 * H), jnp.float32),   # fwd|bwd input projections
                        pltpu.VMEM((L, H), jnp.float32),       # fwd hidden outputs
                        pltpu.VMEM((L, H), jnp.float32)],      # bwd hidden outputs
        compiler_params=pltpu.CompilerParams(dimension_semantics=("parallel",)),
    )(x, *args)
    return out3[:, 0, :]                                       # (B, L)


# --------------------------------- parameters ---------------------------------

def init_params(key, input_size, hidden_size, cnn_filters, kernel_sizes,
                num_layers=2):
    assert len(cnn_filters) == 2 and num_layers == 2, "fused kernel is built for 2+2"
    assert all(k % 2 == 1 for k in kernel_sizes), "'same' conv assumes odd kernels"
    keys = iter(jax.random.split(key, 64))

    def nrm(shape, scale=0.1):
        return (scale * jax.random.normal(next(keys), shape)).astype(jnp.float32)

    p = {}
    eps = 1e-5

    def bn_fold(cout, bias):
        gamma = 1.0 + nrm((1, cout), 0.05)
        beta = nrm((1, cout), 0.05)
        mean = nrm((1, cout), 0.05)
        var = 1.0 + jnp.abs(nrm((1, cout), 0.05))
        scale = gamma / jnp.sqrt(var + eps)
        shift = beta - mean * scale + bias * scale           # conv bias folded in
        return scale, shift

    F = input_size
    C1, C2 = cnn_filters
    k1, k2 = kernel_sizes

    # conv1 (im2col layout: w[j*F + ci, co] == torch_weight[co, ci, j]) and the 1x1
    # residual conv fused into ONE weight: columns [:C1] = conv1, columns [C1:] = the
    # residual conv placed at the centre tap rows (those im2col columns equal x itself).
    w1 = nrm((k1 * F, C1))
    wres = nrm((F, C2))
    pad1 = k1 // 2
    w1r = jnp.zeros((k1 * F, C1 + C2), jnp.float32)
    w1r = w1r.at[:, :C1].set(w1)
    w1r = w1r.at[pad1 * F:(pad1 + 1) * F, C1:].set(wres)
    p["conv1res_w"] = w1r
    p["bn1_scale"], p["bn1_shift"] = bn_fold(C1, nrm((1, C1), 0.05))
    p["resbn_scale"], p["resbn_shift"] = bn_fold(C2, nrm((1, C2), 0.05))

    p["conv2_w"] = nrm((k2 * C1, C2))
    p["bn2_scale"], p["bn2_shift"] = bn_fold(C2, nrm((1, C2), 0.05))

    # LSTM: per layer, BOTH directions' input weights stacked along the output dim
    # (lanes [:4H] = forward, [4H:] = backward); within each 4H block the gate order is
    # PyTorch's (i, f, g, o).  Bias = b_ih + b_hh, stacked the same way.
    H = hidden_size
    in_sizes = [C2, 2 * H]
    for layer in range(num_layers):
        cin = in_sizes[layer]
        wi_f, wi_b = nrm((cin, 4 * H)), nrm((cin, 4 * H))
        b_f, b_b = nrm((1, 4 * H), 0.05), nrm((1, 4 * H), 0.05)
        p[f"lstm{layer}_wi"] = jnp.concatenate([wi_f, wi_b], axis=1)     # (cin, 8H)
        p[f"lstm{layer}_bias"] = jnp.concatenate([b_f, b_b], axis=1)     # (1, 8H)
        p[f"lstm{layer}_whf"] = nrm((H, 4 * H))
        p[f"lstm{layer}_whb"] = nrm((H, 4 * H))

    p["fc1_w"] = nrm((2 * H, H))
    p["fc1_b"] = nrm((1, H), 0.05)
    p["fc2_w"] = nrm((H, 64))
    p["fc2_b"] = nrm((1, 64), 0.05)
    p["out_w"] = nrm((1, 64))                                # row layout for NT matmul
    p["out_b"] = nrm((1, 1), 0.05)
    # torch's attention branch, bn1/bn2 and the flat fc1_out path never feed the
    # returned output (dead code) -> intentionally not materialized here.
    return p


if __name__ == "__main__":
    B, L, F = 2, 16, 8            # batch, seq_len, n_features
    HIDDEN = 32                   # 4H = 128 = one vreg lane row
    CNN_FILTERS = [16, 32]
    KERNEL_SIZES = [3, 5]

    key = jax.random.PRNGKey(0)
    kx, kp = jax.random.split(key)
    x = jax.random.normal(kx, (B, L, F), dtype=jnp.float32)
    params = init_params(kp, F, HIDDEN, CNN_FILTERS, KERNEL_SIZES)

    fwd = jax.jit(cnn_lstm_forward)
    out = jax.block_until_ready(fwd(x, params))

    assert out.shape == (B, L), out.shape
    assert bool(jnp.all(jnp.isfinite(out)))
    assert bool(jnp.all((out >= 0.0) & (out <= 1.0)))   # sigmoid output
    print("KERNEL_OK")
</pallas_src>

<mosaic_0001>
module attributes {stable_mosaic.version = 11 : i64} {
  func.func @fused_kernel(%arg0: i32, %arg1: memref<1x16x8xf32, #tpu.memory_space<vmem>>, %arg2: memref<24x48xf32, #tpu.memory_space<vmem>>, %arg3: memref<1x16xf32, #tpu.memory_space<vmem>>, %arg4: memref<1x16xf32, #tpu.memory_space<vmem>>, %arg5: memref<80x32xf32, #tpu.memory_space<vmem>>, %arg6: memref<1x32xf32, #tpu.memory_space<vmem>>, %arg7: memref<1x32xf32, #tpu.memory_space<vmem>>, %arg8: memref<1x32xf32, #tpu.memory_space<vmem>>, %arg9: memref<1x32xf32, #tpu.memory_space<vmem>>, %arg10: memref<32x256xf32, #tpu.memory_space<vmem>>, %arg11: memref<1x256xf32, #tpu.memory_space<vmem>>, %arg12: memref<32x128xf32, #tpu.memory_space<vmem>>, %arg13: memref<32x128xf32, #tpu.memory_space<vmem>>, %arg14: memref<64x256xf32, #tpu.memory_space<vmem>>, %arg15: memref<1x256xf32, #tpu.memory_space<vmem>>, %arg16: memref<32x128xf32, #tpu.memory_space<vmem>>, %arg17: memref<32x128xf32, #tpu.memory_space<vmem>>, %arg18: memref<64x32xf32, #tpu.memory_space<vmem>>, %arg19: memref<1x32xf32, #tpu.memory_space<vmem>>, %arg20: memref<32x64xf32, #tpu.memory_space<vmem>>, %arg21: memref<1x64xf32, #tpu.memory_space<vmem>>, %arg22: memref<1x64xf32, #tpu.memory_space<vmem>>, %arg23: memref<1x1xf32, #tpu.memory_space<vmem>>, %arg24: memref<1x1x16xf32, #tpu.memory_space<vmem>>, %arg25: memref<16x256xf32, #tpu.memory_space<vmem>>, %arg26: memref<16x32xf32, #tpu.memory_space<vmem>>, %arg27: memref<16x32xf32, #tpu.memory_space<vmem>>) attributes {dimension_semantics = [#tpu.dimension_semantics<parallel>], iteration_bounds = array<i64: 2>, scalar_prefetch = 0 : i64, scratch_operands = 3 : i64, tpu.core_type = #tpu.core_type<tc>, window_params = [{transform_indices = @transform_0, window_bounds = array<i64: 1, 16, 8>}, {pipeline_mode = #tpu.pipeline_mode<synchronous>, transform_indices = @transform_1, window_bounds = array<i64: 24, 48>}, {pipeline_mode = #tpu.pipeline_mode<synchronous>, transform_indices = @transform_2, window_bounds = array<i64: 1, 16>}, {pipeline_mode = #tpu.pipeline_mode<synchronous>, transform_indices = @transform_3, window_bounds = array<i64: 1, 16>}, {pipeline_mode = #tpu.pipeline_mode<synchronous>, transform_indices = @transform_4, window_bounds = array<i64: 80, 32>}, {pipeline_mode = #tpu.pipeline_mode<synchronous>, transform_indices = @transform_5, window_bounds = array<i64: 1, 32>}, {pipeline_mode = #tpu.pipeline_mode<synchronous>, transform_indices = @transform_6, window_bounds = array<i64: 1, 32>}, {pipeline_mode = #tpu.pipeline_mode<synchronous>, transform_indices = @transform_7, window_bounds = array<i64: 1, 32>}, {pipeline_mode = #tpu.pipeline_mode<synchronous>, transform_indices = @transform_8, window_bounds = array<i64: 1, 32>}, {pipeline_mode = #tpu.pipeline_mode<synchronous>, transform_indices = @transform_9, window_bounds = array<i64: 32, 256>}, {pipeline_mode = #tpu.pipeline_mode<synchronous>, transform_indices = @transform_10, window_bounds = array<i64: 1, 256>}, {pipeline_mode = #tpu.pipeline_mode<synchronous>, transform_indices = @transform_11, window_bounds = array<i64: 32, 128>}, {pipeline_mode = #tpu.pipeline_mode<synchronous>, transform_indices = @transform_12, window_bounds = array<i64: 32, 128>}, {pipeline_mode = #tpu.pipeline_mode<synchronous>, transform_indices = @transform_13, window_bounds = array<i64: 64, 256>}, {pipeline_mode = #tpu.pipeline_mode<synchronous>, transform_indices = @transform_14, window_bounds = array<i64: 1, 256>}, {pipeline_mode = #tpu.pipeline_mode<synchronous>, transform_indices = @transform_15, window_bounds = array<i64: 32, 128>}, {pipeline_mode = #tpu.pipeline_mode<synchronous>, transform_indices = @transform_16, window_bounds = array<i64: 32, 128>}, {pipeline_mode = #tpu.pipeline_mode<synchronous>, transform_indices = @transform_17, window_bounds = array<i64: 64, 32>}, {pipeline_mode = #tpu.pipeline_mode<synchronous>, transform_indices = @transform_18, window_bounds = array<i64: 1, 32>}, {pipeline_mode = #tpu.pipeline_mode<synchronous>, transform_indices = @transform_19, window_bounds = array<i64: 32, 64>}, {pipeline_mode = #tpu.pipeline_mode<synchronous>, transform_indices = @transform_20, window_bounds = array<i64: 1, 64>}, {pipeline_mode = #tpu.pipeline_mode<synchronous>, transform_indices = @transform_21, window_bounds = array<i64: 1, 64>}, {pipeline_mode = #tpu.pipeline_mode<synchronous>, transform_indices = @transform_22, window_bounds = array<i64: 1, 1>}, {transform_indices = @transform_23, window_bounds = array<i64: 1, 1, 16>}]} {
    %c0 = arith.constant 0 : index
    %c0_0 = arith.constant 0 : index
    %c0_1 = arith.constant 0 : index
    %0 = vector.load %arg1[%c0, %c0_0, %c0_1] : memref<1x16x8xf32, #tpu.memory_space<vmem>>, vector<1x16x8xf32>
    %1 = vector.shape_cast %0 : vector<1x16x8xf32> to vector<16x8xf32>
    %c0_2 = arith.constant 0 : index
    %c0_3 = arith.constant 0 : index
    %2 = vector.load %arg2[%c0_2, %c0_3] : memref<24x48xf32, #tpu.memory_space<vmem>>, vector<24x48xf32>
    %cst = arith.constant 0.000000e+00 : f32
    %3 = vector.broadcast %cst : f32 to vector<1x8xf32>
    %4 = tpu.concatenate %3, %1, %3 in 0 : vector<1x8xf32>, vector<16x8xf32>, vector<1x8xf32> -> vector<18x8xf32>
    %5 = vector.extract_strided_slice %4 {offsets = [0, 0], sizes = [16, 8], strides = [1, 1]} : vector<18x8xf32> to vector<16x8xf32>
    %6 = vector.extract_strided_slice %4 {offsets = [1, 0], sizes = [16, 8], strides = [1, 1]} : vector<18x8xf32> to vector<16x8xf32>
    %7 = vector.extract_strided_slice %4 {offsets = [2, 0], sizes = [16, 8], strides = [1, 1]} : vector<18x8xf32> to vector<16x8xf32>
    %8 = tpu.concatenate %5, %6, %7 in 1 : vector<16x8xf32>, vector<16x8xf32>, vector<16x8xf32> -> vector<16x24xf32>
    %cst_4 = arith.constant dense<0.000000e+00> : vector<16x48xf32>
    %9 = tpu.matmul %8, %2, %cst_4 {dimension_numbers = #tpu.dot_dimension_numbers<[1], [0], [0], [1], [0, 0, 1, 1], [], []>} : vector<16x24xf32>, vector<24x48xf32>, vector<16x48xf32> -> vector<16x48xf32>
    %10 = vector.extract_strided_slice %9 {offsets = [0, 0], sizes = [16, 16], strides = [1, 1]} : vector<16x48xf32> to vector<16x16xf32>
    %c0_5 = arith.constant 0 : index
    %c0_6 = arith.constant 0 : index
    %11 = vector.load %arg3[%c0_5, %c0_6] : memref<1x16xf32, #tpu.memory_space<vmem>>, vector<1x16xf32>
    %12 = vector.broadcast %11 : vector<1x16xf32> to vector<16x16xf32>
    %13 = arith.mulf %10, %12 : vector<16x16xf32>
    %c0_7 = arith.constant 0 : index
    %c0_8 = arith.constant 0 : index
    %14 = vector.load %arg4[%c0_7, %c0_8] : memref<1x16xf32, #tpu.memory_space<vmem>>, vector<1x16xf32>
    %15 = vector.broadcast %14 : vector<1x16xf32> to vector<16x16xf32>
    %16 = arith.addf %13, %15 : vector<16x16xf32>
    %cst_9 = arith.constant 0.000000e+00 : f32
    %17 = vector.broadcast %cst_9 : f32 to vector<16x16xf32>
    %18 = arith.cmpf ogt, %16, %17 : vector<16x16xf32>
    %cst_10 = arith.constant 1.000000e-01 : f32
    %19 = vector.broadcast %cst_10 : f32 to vector<16x16xf32>
    %20 = arith.mulf %19, %16 : vector<16x16xf32>
    %21 = arith.select %18, %16, %20 : vector<16x16xi1>, vector<16x16xf32>
    %22 = vector.extract_strided_slice %9 {offsets = [0, 16], sizes = [16, 32], strides = [1, 1]} : vector<16x48xf32> to vector<16x32xf32>
    %c0_11 = arith.constant 0 : index
    %c0_12 = arith.constant 0 : index
    %23 = vector.load %arg8[%c0_11, %c0_12] : memref<1x32xf32, #tpu.memory_space<vmem>>, vector<1x32xf32>
    %24 = vector.broadcast %23 : vector<1x32xf32> to vector<16x32xf32>
    %25 = arith.mulf %22, %24 : vector<16x32xf32>
    %c0_13 = arith.constant 0 : index
    %c0_14 = arith.constant 0 : index
    %26 = vector.load %arg9[%c0_13, %c0_14] : memref<1x32xf32, #tpu.memory_space<vmem>>, vector<1x32xf32>
    %27 = vector.broadcast %26 : vector<1x32xf32> to vector<16x32xf32>
    %28 = arith.addf %25, %27 : vector<16x32xf32>
    %c0_15 = arith.constant 0 : index
    %c0_16 = arith.constant 0 : index
    %29 = vector.load %arg5[%c0_15, %c0_16] : memref<80x32xf32, #tpu.memory_space<vmem>>, vector<80x32xf32>
    %cst_17 = arith.constant 0.000000e+00 : f32
    %30 = vector.broadcast %cst_17 : f32 to vector<2x16xf32>
    %31 = tpu.concatenate %30, %21, %30 in 0 : vector<2x16xf32>, vector<16x16xf32>, vector<2x16xf32> -> vector<20x16xf32>
    %32 = vector.extract_strided_slice %31 {offsets = [0, 0], sizes = [16, 16], strides = [1, 1]} : vector<20x16xf32> to vector<16x16xf32>
    %33 = vector.extract_strided_slice %31 {offsets = [1, 0], sizes = [16, 16], strides = [1, 1]} : vector<20x16xf32> to vector<16x16xf32>
    %34 = vector.extract_strided_slice %31 {offsets = [2, 0], sizes = [16, 16], strides = [1, 1]} : vector<20x16xf32> to vector<16x16xf32>
    %35 = vector.extract_strided_slice %31 {offsets = [3, 0], sizes = [16, 16], strides = [1, 1]} : vector<20x16xf32> to vector<16x16xf32>
    %36 = vector.extract_strided_slice %31 {offsets = [4, 0], sizes = [16, 16], strides = [1, 1]} : vector<20x16xf32> to vector<16x16xf32>
    %37 = tpu.concatenate %32, %33, %34, %35, %36 in 1 : vector<16x16xf32>, vector<16x16xf32>, vector<16x16xf32>, vector<16x16xf32>, vector<16x16xf32> -> vector<16x80xf32>
    %cst_18 = arith.constant dense<0.000000e+00> : vector<16x32xf32>
    %38 = tpu.matmul %37, %29, %cst_18 {dimension_numbers = #tpu.dot_dimension_numbers<[1], [0], [0], [1], [0, 0, 1, 1], [], []>} : vector<16x80xf32>, vector<80x32xf32>, vector<16x32xf32> -> vector<16x32xf32>
    %c0_19 = arith.constant 0 : index
    %c0_20 = arith.constant 0 : index
    %39 = vector.load %arg6[%c0_19, %c0_20] : memref<1x32xf32, #tpu.memory_space<vmem>>, vector<1x32xf32>
    %40 = vector.broadcast %39 : vector<1x32xf32> to vector<16x32xf32>
    %41 = arith.mulf %38, %40 : vector<16x32xf32>
    %c0_21 = arith.constant 0 : index
    %c0_22 = arith.constant 0 : index
    %42 = vector.load %arg7[%c0_21, %c0_22] : memref<1x32xf32, #tpu.memory_space<vmem>>, vector<1x32xf32>
    %43 = vector.broadcast %42 : vector<1x32xf32> to vector<16x32xf32>
    %44 = arith.addf %41, %43 : vector<16x32xf32>
    %cst_23 = arith.constant 0.000000e+00 : f32
    %45 = vector.broadcast %cst_23 : f32 to vector<16x32xf32>
    %46 = arith.cmpf ogt, %44, %45 : vector<16x32xf32>
    %cst_24 = arith.constant 1.000000e-01 : f32
    %47 = vector.broadcast %cst_24 : f32 to vector<16x32xf32>
    %48 = arith.mulf %47, %44 : vector<16x32xf32>
    %49 = arith.select %46, %44, %48 : vector<16x32xi1>, vector<16x32xf32>
    %50 = arith.addf %49, %28 : vector<16x32xf32>
    %c0_25 = arith.constant 0 : index
    %c0_26 = arith.constant 0 : index
    %51 = vector.load %arg10[%c0_25, %c0_26] : memref<32x256xf32, #tpu.memory_space<vmem>>, vector<32x256xf32>
    %cst_27 = arith.constant dense<0.000000e+00> : vector<16x256xf32>
    %52 = tpu.matmul %50, %51, %cst_27 {dimension_numbers = #tpu.dot_dimension_numbers<[1], [0], [0], [1], [0, 0, 1, 1], [], []>} : vector<16x32xf32>, vector<32x256xf32>, vector<16x256xf32> -> vector<16x256xf32>
    %c0_28 = arith.constant 0 : index
    %c0_29 = arith.constant 0 : index
    %53 = vector.load %arg11[%c0_28, %c0_29] : memref<1x256xf32, #tpu.memory_space<vmem>>, vector<1x256xf32>
    %54 = vector.broadcast %53 : vector<1x256xf32> to vector<16x256xf32>
    %55 = arith.addf %52, %54 : vector<16x256xf32>
    %c0_30 = arith.constant 0 : index
    %c0_31 = arith.constant 0 : index
    %56 = vector.load %arg25[%c0_30, %c0_31] : memref<16x256xf32, #tpu.memory_space<vmem>>, vector<16x256xf32>
    tpu.vector_store %arg25[%c0_30, %c0_31], %55 {strides = array<i32>} : memref<16x256xf32, #tpu.memory_space<vmem>>, vector<16x256xf32>,
    %c0_32 = arith.constant 0 : index
    %c0_33 = arith.constant 0 : index
    %57 = vector.load %arg12[%c0_32, %c0_33] : memref<32x128xf32, #tpu.memory_space<vmem>>, vector<32x128xf32>
    %c0_34 = arith.constant 0 : index
    %c0_35 = arith.constant 0 : index
    %58 = vector.load %arg13[%c0_34, %c0_35] : memref<32x128xf32, #tpu.memory_space<vmem>>, vector<32x128xf32>
    %cst_36 = arith.constant 0.000000e+00 : f32
    %59 = vector.broadcast %cst_36 : f32 to vector<1x32xf32>
    %c0_i32 = arith.constant 0 : i32
    %c15_i32 = arith.constant 15 : i32
    %60 = arith.subi %c15_i32, %c0_i32 : i32
    %61 = arith.index_cast %c0_i32 : i32 to index
    %c0_37 = arith.constant 0 : index
    %62 = vector.load %arg25[%61, %c0_37] : memref<16x256xf32, #tpu.memory_space<vmem>>, vector<1x128xf32>
    %cst_38 = arith.constant dense<0.000000e+00> : vector<1x128xf32>
    %63 = tpu.matmul %59, %57, %cst_38 {dimension_numbers = #tpu.dot_dimension_numbers<[1], [0], [0], [1], [0, 0, 1, 1], [], []>} : vector<1x32xf32>, vector<32x128xf32>, vector<1x128xf32> -> vector<1x128xf32>
    %64 = arith.addf %62, %63 : vector<1x128xf32>
    %65 = vector.extract_strided_slice %64 {offsets = [0, 0], sizes = [1, 64], strides = [1, 1]} : vector<1x128xf32> to vector<1x64xf32>
    %66 = arith.negf %65 : vector<1x64xf32>
    %67 = math.exp %66 : vector<1x64xf32>
    %cst_39 = arith.constant 1.000000e+00 : f32
    %68 = vector.broadcast %cst_39 : f32 to vector<1x64xf32>
    %69 = arith.addf %68, %67 : vector<1x64xf32>
    %70 = arith.divf %68, %69 : vector<1x64xf32>
    %71 = vector.extract_strided_slice %70 {offsets = [0, 0], sizes = [1, 32], strides = [1, 1]} : vector<1x64xf32> to vector<1x32xf32>
    %72 = vector.extract_strided_slice %70 {offsets = [0, 32], sizes = [1, 32], strides = [1, 1]} : vector<1x64xf32> to vector<1x32xf32>
    %73 = vector.extract_strided_slice %64 {offsets = [0, 64], sizes = [1, 32], strides = [1, 1]} : vector<1x128xf32> to vector<1x32xf32>
    %74 = math.tanh %73 : vector<1x32xf32>
    %75 = vector.extract_strided_slice %64 {offsets = [0, 96], sizes = [1, 32], strides = [1, 1]} : vector<1x128xf32> to vector<1x32xf32>
    %76 = arith.negf %75 : vector<1x32xf32>
    %77 = math.exp %76 : vector<1x32xf32>
    %cst_40 = arith.constant 1.000000e+00 : f32
    %78 = vector.broadcast %cst_40 : f32 to vector<1x32xf32>
    %79 = arith.addf %78, %77 : vector<1x32xf32>
    %80 = arith.divf %78, %79 : vector<1x32xf32>
    %81 = arith.mulf %72, %59 : vector<1x32xf32>
    %82 = arith.mulf %71, %74 : vector<1x32xf32>
    %83 = arith.addf %81, %82 : vector<1x32xf32>
    %84 = math.tanh %83 : vector<1x32xf32>
    %85 = arith.mulf %80, %84 : vector<1x32xf32>
    %86 = arith.index_cast %60 : i32 to index
    %c128 = arith.constant 128 : index
    %87 = vector.load %arg25[%86, %c128] : memref<16x256xf32, #tpu.memory_space<vmem>>, vector<1x128xf32>
    %cst_41 = arith.constant dense<0.000000e+00> : vector<1x128xf32>
    %88 = tpu.matmul %59, %58, %cst_41 {dimension_numbers = #tpu.dot_dimension_numbers<[1], [0], [0], [1], [0, 0, 1, 1], [], []>} : vector<1x32xf32>, vector<32x128xf32>, vector<1x128xf32> -> vector<1x128xf32>
    %89 = arith.addf %87, %88 : vector<1x128xf32>
    %90 = vector.extract_strided_slice %89 {offsets = [0, 0], sizes = [1, 64], strides = [1, 1]} : vector<1x128xf32> to vector<1x64xf32>
    %91 = arith.negf %90 : vector<1x64xf32>
    %92 = math.exp %91 : vector<1x64xf32>
    %cst_42 = arith.constant 1.000000e+00 : f32
    %93 = vector.broadcast %cst_42 : f32 to vector<1x64xf32>
    %94 = arith.addf %93, %92 : vector<1x64xf32>
    %95 = arith.divf %93, %94 : vector<1x64xf32>
    %96 = vector.extract_strided_slice %95 {offsets = [0, 0], sizes = [1, 32], strides = [1, 1]} : vector<1x64xf32> to vector<1x32xf32>
    %97 = vector.extract_strided_slice %95 {offsets = [0, 32], sizes = [1, 32], strides = [1, 1]} : vector<1x64xf32> to vector<1x32xf32>
    %98 = vector.extract_strided_slice %89 {offsets = [0, 64], sizes = [1, 32], strides = [1, 1]} : vector<1x128xf32> to vector<1x32xf32>
    %99 = math.tanh %98 : vector<1x32xf32>
    %100 = vector.extract_strided_slice %89 {offsets = [0, 96], sizes = [1, 32], strides = [1, 1]} : vector<1x128xf32> to vector<1x32xf32>
    %101 = arith.negf %100 : vector<1x32xf32>
    %102 = math.exp %101 : vector<1x32xf32>
    %cst_43 = arith.constant 1.000000e+00 : f32
    %103 = vector.broadcast %cst_43 : f32 to vector<1x32xf32>
    %104 = arith.addf %103, %102 : vector<1x32xf32>
    %105 = arith.divf %103, %104 : vector<1x32xf32>
    %106 = arith.mulf %97, %59 : vector<1x32xf32>
    %107 = arith.mulf %96, %99 : vector<1x32xf32>
    %108 = arith.addf %106, %107 : vector<1x32xf32>
    %109 = math.tanh %108 : vector<1x32xf32>
    %110 = arith.mulf %105, %109 : vector<1x32xf32>
    %111 = arith.index_cast %c0_i32 : i32 to index
    %c0_44 = arith.constant 0 : index
    %112 = vector.load %arg26[%111, %c0_44] : memref<16x32xf32, #tpu.memory_space<vmem>>, vector<1x32xf32>
    tpu.vector_store %arg26[%111, %c0_44], %85 {strides = array<i32>} : memref<16x32xf32, #tpu.memory_space<vmem>>, vector<1x32xf32>,
    %113 = arith.index_cast %60 : i32 to index
    %c0_45 = arith.constant 0 : index
    %114 = vector.load %arg27[%113, %c0_45] : memref<16x32xf32, #tpu.memory_space<vmem>>, vector<1x32xf32>
    tpu.vector_store %arg27[%113, %c0_45], %110 {strides = array<i32>} : memref<16x32xf32, #tpu.memory_space<vmem>>, vector<1x32xf32>,
    %c1_i32 = arith.constant 1 : i32
    %c15_i32_46 = arith.constant 15 : i32
    %115 = arith.subi %c15_i32_46, %c1_i32 : i32
    %116 = arith.index_cast %c1_i32 : i32 to index
    %c0_47 = arith.constant 0 : index
    %117 = vector.load %arg25[%116, %c0_47] : memref<16x256xf32, #tpu.memory_space<vmem>>, vector<1x128xf32>
    %cst_48 = arith.constant dense<0.000000e+00> : vector<1x128xf32>
    %118 = tpu.matmul %85, %57, %cst_48 {dimension_numbers = #tpu.dot_dimension_numbers<[1], [0], [0], [1], [0, 0, 1, 1], [], []>} : vector<1x32xf32>, vector<32x128xf32>, vector<1x128xf32> -> vector<1x128xf32>
    %119 = arith.addf %117, %118 : vector<1x128xf32>
    %120 = vector.extract_strided_slice %119 {offsets = [0, 0], sizes = [1, 64], strides = [1, 1]} : vector<1x128xf32> to vector<1x64xf32>
    %121 = arith.negf %120 : vector<1x64xf32>
    %122 = math.exp %121 : vector<1x64xf32>
    %cst_49 = arith.constant 1.000000e+00 : f32
    %123 = vector.broadcast %cst_49 : f32 to vector<1x64xf32>
    %124 = arith.addf %123, %122 : vector<1x64xf32>
    %125 = arith.divf %123, %124 : vector<1x64xf32>
    %126 = vector.extract_strided_slice %125 {offsets = [0, 0], sizes = [1, 32], strides = [1, 1]} : vector<1x64xf32> to vector<1x32xf32>
    %127 = vector.extract_strided_slice %125 {offsets = [0, 32], sizes = [1, 32], strides = [1, 1]} : vector<1x64xf32> to vector<1x32xf32>
    %128 = vector.extract_strided_slice %119 {offsets = [0, 64], sizes = [1, 32], strides = [1, 1]} : vector<1x128xf32> to vector<1x32xf32>
    %129 = math.tanh %128 : vector<1x32xf32>
    %130 = vector.extract_strided_slice %119 {offsets = [0, 96], sizes = [1, 32], strides = [1, 1]} : vector<1x128xf32> to vector<1x32xf32>
    %131 = arith.negf %130 : vector<1x32xf32>
    %132 = math.exp %131 : vector<1x32xf32>
    %cst_50 = arith.constant 1.000000e+00 : f32
    %133 = vector.broadcast %cst_50 : f32 to vector<1x32xf32>
    %134 = arith.addf %133, %132 : vector<1x32xf32>
    %135 = arith.divf %133, %134 : vector<1x32xf32>
    %136 = arith.mulf %127, %83 : vector<1x32xf32>
    %137 = arith.mulf %126, %129 : vector<1x32xf32>
    %138 = arith.addf %136, %137 : vector<1x32xf32>
    %139 = math.tanh %138 : vector<1x32xf32>
    %140 = arith.mulf %135, %139 : vector<1x32xf32>
    %141 = arith.index_cast %115 : i32 to index
    %c128_51 = arith.constant 128 : index
    %142 = vector.load %arg25[%141, %c128_51] : memref<16x256xf32, #tpu.memory_space<vmem>>, vector<1x128xf32>
    %cst_52 = arith.constant dense<0.000000e+00> : vector<1x128xf32>
    %143 = tpu.matmul %110, %58, %cst_52 {dimension_numbers = #tpu.dot_dimension_numbers<[1], [0], [0], [1], [0, 0, 1, 1], [], []>} : vector<1x32xf32>, vector<32x128xf32>, vector<1x128xf32> -> vector<1x128xf32>
    %144 = arith.addf %142, %143 : vector<1x128xf32>
    %145 = vector.extract_strided_slice %144 {offsets = [0, 0], sizes = [1, 64], strides = [1, 1]} : vector<1x128xf32> to vector<1x64xf32>
    %146 = arith.negf %145 : vector<1x64xf32>
    %147 = math.exp %146 : vector<1x64xf32>
    %cst_53 = arith.constant 1.000000e+00 : f32
    %148 = vector.broadcast %cst_53 : f32 to vector<1x64xf32>
    %149 = arith.addf %148, %147 : vector<1x64xf32>
    %150 = arith.divf %148, %149 : vector<1x64xf32>
    %151 = vector.extract_strided_slice %150 {offsets = [0, 0], sizes = [1, 32], strides = [1, 1]} : vector<1x64xf32> to vector<1x32xf32>
    %152 = vector.extract_strided_slice %150 {offsets = [0, 32], sizes = [1, 32], strides = [1, 1]} : vector<1x64xf32> to vector<1x32xf32>
    %153 = vector.extract_strided_slice %144 {offsets = [0, 64], sizes = [1, 32], strides = [1, 1]} : vector<1x128xf32> to vector<1x32xf32>
    %154 = math.tanh %153 : vector<1x32xf32>
    %155 = vector.extract_strided_slice %144 {offsets = [0, 96], sizes = [1, 32], strides = [1, 1]} : vector<1x128xf32> to vector<1x32xf32>
    %156 = arith.negf %155 : vector<1x32xf32>
    %157 = math.exp %156 : vector<1x32xf32>
    %cst_54 = arith.constant 1.000000e+00 : f32
    %158 = vector.broadcast %cst_54 : f32 to vector<1x32xf32>
    %159 = arith.addf %158, %157 : vector<1x32xf32>
    %160 = arith.divf %158, %159 : vector<1x32xf32>
    %161 = arith.mulf %152, %108 : vector<1x32xf32>
    %162 = arith.mulf %151, %154 : vector<1x32xf32>
    %163 = arith.addf %161, %162 : vector<1x32xf32>
    %164 = math.tanh %163 : vector<1x32xf32>
    %165 = arith.mulf %160, %164 : vector<1x32xf32>
    %166 = arith.index_cast %c1_i32 : i32 to index
    %c0_55 = arith.constant 0 : index
    %167 = vector.load %arg26[%166, %c0_55] : memref<16x32xf32, #tpu.memory_space<vmem>>, vector<1x32xf32>
    tpu.vector_store %arg26[%166, %c0_55], %140 {strides = array<i32>} : memref<16x32xf32, #tpu.memory_space<vmem>>, vector<1x32xf32>,
    %168 = arith.index_cast %115 : i32 to index
    %c0_56 = arith.constant 0 : index
    %169 = vector.load %arg27[%168, %c0_56] : memref<16x32xf32, #tpu.memory_space<vmem>>, vector<1x32xf32>
    tpu.vector_store %arg27[%168, %c0_56], %165 {strides = array<i32>} : memref<16x32xf32, #tpu.memory_space<vmem>>, vector<1x32xf32>,
    %c2_i32 = arith.constant 2 : i32
    %c15_i32_57 = arith.constant 15 : i32
    %170 = arith.subi %c15_i32_57, %c2_i32 : i32
    %171 = arith.index_cast %c2_i32 : i32 to index
    %c0_58 = arith.constant 0 : index
    %172 = vector.load %arg25[%171, %c0_58] : memref<16x256xf32, #tpu.memory_space<vmem>>, vector<1x128xf32>
    %cst_59 = arith.constant dense<0.000000e+00> : vector<1x128xf32>
    %173 = tpu.matmul %140, %57, %cst_59 {dimension_numbers = #tpu.dot_dimension_numbers<[1], [0], [0], [1], [0, 0, 1, 1], [], []>} : vector<1x32xf32>, vector<32x128xf32>, vector<1x128xf32> -> vector<1x128xf32>
    %174 = arith.addf %172, %173 : vector<1x128xf32>
    %175 = vector.extract_strided_slice %174 {offsets = [0, 0], sizes = [1, 64], strides = [1, 1]} : vector<1x128xf32> to vector<1x64xf32>
    %176 = arith.negf %175 : vector<1x64xf32>
    %177 = math.exp %176 : vector<1x64xf32>
    %cst_60 = arith.constant 1.000000e+00 : f32
    %178 = vector.broadcast %cst_60 : f32 to vector<1x64xf32>
    %179 = arith.addf %178, %177 : vector<1x64xf32>
    %180 = arith.divf %178, %179 : vector<1x64xf32>
    %181 = vector.extract_strided_slice %180 {offsets = [0, 0], sizes = [1, 32], strides = [1, 1]} : vector<1x64xf32> to vector<1x32xf32>
    %182 = vector.extract_strided_slice %180 {offsets = [0, 32], sizes = [1, 32], strides = [1, 1]} : vector<1x64xf32> to vector<1x32xf32>
    %183 = vector.extract_strided_slice %174 {offsets = [0, 64], sizes = [1, 32], strides = [1, 1]} : vector<1x128xf32> to vector<1x32xf32>
    %184 = math.tanh %183 : vector<1x32xf32>
    %185 = vector.extract_strided_slice %174 {offsets = [0, 96], sizes = [1, 32], strides = [1, 1]} : vector<1x128xf32> to vector<1x32xf32>
    %186 = arith.negf %185 : vector<1x32xf32>
    %187 = math.exp %186 : vector<1x32xf32>
    %cst_61 = arith.constant 1.000000e+00 : f32
    %188 = vector.broadcast %cst_61 : f32 to vector<1x32xf32>
    %189 = arith.addf %188, %187 : vector<1x32xf32>
    %190 = arith.divf %188, %189 : vector<1x32xf32>
    %191 = arith.mulf %182, %138 : vector<1x32xf32>
    %192 = arith.mulf %181, %184 : vector<1x32xf32>
    %193 = arith.addf %191, %192 : vector<1x32xf32>
    %194 = math.tanh %193 : vector<1x32xf32>
    %195 = arith.mulf %190, %194 : vector<1x32xf32>
    %196 = arith.index_cast %170 : i32 to index
    %c128_62 = arith.constant 128 : index
    %197 = vector.load %arg25[%196, %c128_62] : memref<16x256xf32, #tpu.memory_space<vmem>>, vector<1x128xf32>
    %cst_63 = arith.constant dense<0.000000e+00> : vector<1x128xf32>
    %198 = tpu.matmul %165, %58, %cst_63 {dimension_numbers = #tpu.dot_dimension_numbers<[1], [0], [0], [1], [0, 0, 1, 1], [], []>} : vector<1x32xf32>, vector<32x128xf32>, vector<1x128xf32> -> vector<1x128xf32>
    %199 = arith.addf %197, %198 : vector<1x128xf32>
    %200 = vector.extract_strided_slice %199 {offsets = [0, 0], sizes = [1, 64], strides = [1, 1]} : vector<1x128xf32> to vector<1x64xf32>
    %201 = arith.negf %200 : vector<1x64xf32>
    %202 = math.exp %201 : vector<1x64xf32>
    %cst_64 = arith.constant 1.000000e+00 : f32
    %203 = vector.broadcast %cst_64 : f32 to vector<1x64xf32>
    %204 = arith.addf %203, %202 : vector<1x64xf32>
    %205 = arith.divf %203, %204 : vector<1x64xf32>
    %206 = vector.extract_strided_slice %205 {offsets = [0, 0], sizes = [1, 32], strides = [1, 1]} : vector<1x64xf32> to vector<1x32xf32>
    %207 = vector.extract_strided_slice %205 {offsets = [0, 32], sizes = [1, 32], strides = [1, 1]} : vector<1x64xf32> to vector<1x32xf32>
    %208 = vector.extract_strided_slice %199 {offsets = [0, 64], sizes = [1, 32], strides = [1, 1]} : vector<1x128xf32> to vector<1x32xf32>
    %209 = math.tanh %208 : vector<1x32xf32>
    %210 = vector.extract_strided_slice %199 {offsets = [0, 96], sizes = [1, 32], strides = [1, 1]} : vector<1x128xf32> to vector<1x32xf32>
    %211 = arith.negf %210 : vector<1x32xf32>
    %212 = math.exp %211 : vector<1x32xf32>
    %cst_65 = arith.constant 1.000000e+00 : f32
    %213 = vector.broadcast %cst_65 : f32 to vector<1x32xf32>
    %214 = arith.addf %213, %212 : vector<1x32xf32>
    %215 = arith.divf %213, %214 : vector<1x32xf32>
    %216 = arith.mulf %207, %163 : vector<1x32xf32>
    %217 = arith.mulf %206, %209 : vector<1x32xf32>
    %218 = arith.addf %216, %217 : vector<1x32xf32>
    %219 = math.tanh %218 : vector<1x32xf32>
    %220 = arith.mulf %215, %219 : vector<1x32xf32>
    %221 = arith.index_cast %c2_i32 : i32 to index
    %c0_66 = arith.constant 0 : index
    %222 = vector.load %arg26[%221, %c0_66] : memref<16x32xf32, #tpu.memory_space<vmem>>, vector<1x32xf32>
    tpu.vector_store %arg26[%221, %c0_66], %195 {strides = array<i32>} : memref<16x32xf32, #tpu.memory_space<vmem>>, vector<1x32xf32>,
    %223 = arith.index_cast %170 : i32 to index
    %c0_67 = arith.constant 0 : index
    %224 = vector.load %arg27[%223, %c0_67] : memref<16x32xf32, #tpu.memory_space<vmem>>, vector<1x32xf32>
    tpu.vector_store %arg27[%223, %c0_67], %220 {strides = array<i32>} : memref<16x32xf32, #tpu.memory_space<vmem>>, vector<1x32xf32>,
    %c3_i32 = arith.constant 3 : i32
    %c15_i32_68 = arith.constant 15 : i32
    %225 = arith.subi %c15_i32_68, %c3_i32 : i32
    %226 = arith.index_cast %c3_i32 : i32 to index
    %c0_69 = arith.constant 0 : index
    %227 = vector.load %arg25[%226, %c0_69] : memref<16x256xf32, #tpu.memory_space<vmem>>, vector<1x128xf32>
    %cst_70 = arith.constant dense<0.000000e+00> : vector<1x128xf32>
    %228 = tpu.matmul %195, %57, %cst_70 {dimension_numbers = #tpu.dot_dimension_numbers<[1], [0], [0], [1], [0, 0, 1, 1], [], []>} : vector<1x32xf32>, vector<32x128xf32>, vector<1x128xf32> -> vector<1x128xf32>
    %229 = arith.addf %227, %228 : vector<1x128xf32>
    %230 = vector.extract_strided_slice %229 {offsets = [0, 0], sizes = [1, 64], strides = [1, 1]} : vector<1x128xf32> to vector<1x64xf32>
    %231 = arith.negf %230 : vector<1x64xf32>
    %232 = math.exp %231 : vector<1x64xf32>
    %cst_71 = arith.constant 1.000000e+00 : f32
    %233 = vector.broadcast %cst_71 : f32 to vector<1x64xf32>
    %234 = arith.addf %233, %232 : vector<1x64xf32>
    %235 = arith.divf %233, %234 : vector<1x64xf32>
    %236 = vector.extract_strided_slice %235 {offsets = [0, 0], sizes = [1, 32], strides = [1, 1]} : vector<1x64xf32> to vector<1x32xf32>
    %237 = vector.extract_strided_slice %235 {offsets = [0, 32], sizes = [1, 32], strides = [1, 1]} : vector<1x64xf32> to vector<1x32xf32>
    %238 = vector.extract_strided_slice %229 {offsets = [0, 64], sizes = [1, 32], strides = [1, 1]} : vector<1x128xf32> to vector<1x32xf32>
    %239 = math.tanh %238 : vector<1x32xf32>
    %240 = vector.extract_strided_slice %229 {offsets = [0, 96], sizes = [1, 32], strides = [1, 1]} : vector<1x128xf32> to vector<1x32xf32>
    %241 = arith.negf %240 : vector<1x32xf32>
    %242 = math.exp %241 : vector<1x32xf32>
    %cst_72 = arith.constant 1.000000e+00 : f32
    %243 = vector.broadcast %cst_72 : f32 to vector<1x32xf32>
    %244 = arith.addf %243, %242 : vector<1x32xf32>
    %245 = arith.divf %243, %244 : vector<1x32xf32>
    %246 = arith.mulf %237, %193 : vector<1x32xf32>
    %247 = arith.mulf %236, %239 : vector<1x32xf32>
    %248 = arith.addf %246, %247 : vector<1x32xf32>
    %249 = math.tanh %248 : vector<1x32xf32>
    %250 = arith.mulf %245, %249 : vector<1x32xf32>
    %251 = arith.index_cast %225 : i32 to index
    %c128_73 = arith.constant 128 : index
    %252 = vector.load %arg25[%251, %c128_73] : memref<16x256xf32, #tpu.memory_space<vmem>>, vector<1x128xf32>
    %cst_74 = arith.constant dense<0.000000e+00> : vector<1x128xf32>
    %253 = tpu.matmul %220, %58, %cst_74 {dimension_numbers = #tpu.dot_dimension_numbers<[1], [0], [0], [1], [0, 0, 1, 1], [], []>} : vector<1x32xf32>, vector<32x128xf32>, vector<1x128xf32> -> vector<1x128xf32>
    %254 = arith.addf %252, %253 : vector<1x128xf32>
    %255 = vector.extract_strided_slice %254 {offsets = [0, 0], sizes = [1, 64], strides = [1, 1]} : vector<1x128xf32> to vector<1x64xf32>
    %256 = arith.negf %255 : vector<1x64xf32>
    %257 = math.exp %256 : vector<1x64xf32>
    %cst_75 = arith.constant 1.000000e+00 : f32
    %258 = vector.broadcast %cst_75 : f32 to vector<1x64xf32>
    %259 = arith.addf %258, %257 : vector<1x64xf32>
    %260 = arith.divf %258, %259 : vector<1x64xf32>
    %261 = vector.extract_strided_slice %260 {offsets = [0, 0], sizes = [1, 32], strides = [1, 1]} : vector<1x64xf32> to vector<1x32xf32>
    %262 = vector.extract_strided_slice %260 {offsets = [0, 32], sizes = [1, 32], strides = [1, 1]} : vector<1x64xf32> to vector<1x32xf32>
    %263 = vector.extract_strided_slice %254 {offsets = [0, 64], sizes = [1, 32], strides = [1, 1]} : vector<1x128xf32> to vector<1x32xf32>
    %264 = math.tanh %263 : vector<1x32xf32>
    %265 = vector.extract_strided_slice %254 {offsets = [0, 96], sizes = [1, 32], strides = [1, 1]} : vector<1x128xf32> to vector<1x32xf32>
    %266 = arith.negf %265 : vector<1x32xf32>
    %267 = math.exp %266 : vector<1x32xf32>
    %cst_76 = arith.constant 1.000000e+00 : f32
    %268 = vector.broadcast %cst_76 : f32 to vector<1x32xf32>
    %269 = arith.addf %268, %267 : vector<1x32xf32>
    %270 = arith.divf %268, %269 : vector<1x32xf32>
    %271 = arith.mulf %262, %218 : vector<1x32xf32>
    %272 = arith.mulf %261, %264 : vector<1x32xf32>
    %273 = arith.addf %271, %272 : vector<1x32xf32>
    %274 = math.tanh %273 : vector<1x32xf32>
    %275 = arith.mulf %270, %274 : vector<1x32xf32>
    %276 = arith.index_cast %c3_i32 : i32 to index
    %c0_77 = arith.constant 0 : index
    %277 = vector.load %arg26[%276, %c0_77] : memref<16x32xf32, #tpu.memory_space<vmem>>, vector<1x32xf32>
    tpu.vector_store %arg26[%276, %c0_77], %250 {strides = array<i32>} : memref<16x32xf32, #tpu.memory_space<vmem>>, vector<1x32xf32>,
    %278 = arith.index_cast %225 : i32 to index
    %c0_78 = arith.constant 0 : index
    %279 = vector.load %arg27[%278, %c0_78] : memref<16x32xf32, #tpu.memory_space<vmem>>, vector<1x32xf32>
    tpu.vector_store %arg27[%278, %c0_78], %275 {strides = array<i32>} : memref<16x32xf32, #tpu.memory_space<vmem>>, vector<1x32xf32>,
    %c4_i32 = arith.constant 4 : i32
    %c15_i32_79 = arith.constant 15 : i32
    %280 = arith.subi %c15_i32_79, %c4_i32 : i32
    %281 = arith.index_cast %c4_i32 : i32 to index
    %c0_80 = arith.constant 0 : index
    %282 = vector.load %arg25[%281, %c0_80] : memref<16x256xf32, #tpu.memory_space<vmem>>, vector<1x128xf32>
    %cst_81 = arith.constant dense<0.000000e+00> : vector<1x128xf32>
    %283 = tpu.matmul %250, %57, %cst_81 {dimension_numbers = #tpu.dot_dimension_numbers<[1], [0], [0], [1], [0, 0, 1, 1], [], []>} : vector<1x32xf32>, vector<32x128xf32>, vector<1x128xf32> -> vector<1x128xf32>
    %284 = arith.addf %282, %283 : vector<1x128xf32>
    %285 = vector.extract_strided_slice %284 {offsets = [0, 0], sizes = [1, 64], strides = [1, 1]} : vector<1x128xf32> to vector<1x64xf32>
    %286 = arith.negf %285 : vector<1x64xf32>
    %287 = math.exp %286 : vector<1x64xf32>
    %cst_82 = arith.constant 1.000000e+00 : f32
    %288 = vector.broadcast %cst_82 : f32 to vector<1x64xf32>
    %289 = arith.addf %288, %287 : vector<1x64xf32>
    %290 = arith.divf %288, %289 : vector<1x64xf32>
    %291 = vector.extract_strided_slice %290 {offsets = [0, 0], sizes = [1, 32], strides = [1, 1]} : vector<1x64xf32> to vector<1x32xf32>
    %292 = vector.extract_strided_slice %290 {offsets = [0, 32], sizes = [1, 32], strides = [1, 1]} : vector<1x64xf32> to vector<1x32xf32>
    %293 = vector.extract_strided_slice %284 {offsets = [0, 64], sizes = [1, 32], strides = [1, 1]} : vector<1x128xf32> to vector<1x32xf32>
    %294 = math.tanh %293 : vector<1x32xf32>
    %295 = vector.extract_strided_slice %284 {offsets = [0, 96], sizes = [1, 32], strides = [1, 1]} : vector<1x128xf32> to vector<1x32xf32>
    %296 = arith.negf %295 : vector<1x32xf32>
    %297 = math.exp %296 : vector<1x32xf32>
    %cst_83 = arith.constant 1.000000e+00 : f32
    %298 = vector.broadcast %cst_83 : f32 to vector<1x32xf32>
    %299 = arith.addf %298, %297 : vector<1x32xf32>
    %300 = arith.divf %298, %299 : vector<1x32xf32>
    %301 = arith.mulf %292, %248 : vector<1x32xf32>
    %302 = arith.mulf %291, %294 : vector<1x32xf32>
    %303 = arith.addf %301, %302 : vector<1x32xf32>
    %304 = math.tanh %303 : vector<1x32xf32>
    %305 = arith.mulf %300, %304 : vector<1x32xf32>
    %306 = arith.index_cast %280 : i32 to index
    %c128_84 = arith.constant 128 : index
    %307 = vector.load %arg25[%306, %c128_84] : memref<16x256xf32, #tpu.memory_space<vmem>>, vector<1x128xf32>
    %cst_85 = arith.constant dense<0.000000e+00> : vector<1x128xf32>
    %308 = tpu.matmul %275, %58, %cst_85 {dimension_numbers = #tpu.dot_dimension_numbers<[1], [0], [0], [1], [0, 0, 1, 1], [], []>} : vector<1x32xf32>, vector<32x128xf32>, vector<1x128xf32> -> vector<1x128xf32>
    %309 = arith.addf %307, %308 : vector<1x128xf32>
    %310 = vector.extract_strided_slice %309 {offsets = [0, 0], sizes = [1, 64], strides = [1, 1]} : vector<1x128xf32> to vector<1x64xf32>
    %311 = arith.negf %310 : vector<1x64xf32>
    %312 = math.exp %311 : vector<1x64xf32>
    %cst_86 = arith.constant 1.000000e+00 : f32
    %313 = vector.broadcast %cst_86 : f32 to vector<1x64xf32>
    %314 = arith.addf %313, %312 : vector<1x64xf32>
    %315 = arith.divf %313, %314 : vector<1x64xf32>
    %316 = vector.extract_strided_slice %315 {offsets = [0, 0], sizes = [1, 32], strides = [1, 1]} : vector<1x64xf32> to vector<1x32xf32>
    %317 = vector.extract_strided_slice %315 {offsets = [0, 32], sizes = [1, 32], strides = [1, 1]} : vector<1x64xf32> to vector<1x32xf32>
    %318 = vector.extract_strided_slice %309 {offsets = [0, 64], sizes = [1, 32], strides = [1, 1]} : vector<1x128xf32> to vector<1x32xf32>
    %319 = math.tanh %318 : vector<1x32xf32>
    %320 = vector.extract_strided_slice %309 {offsets = [0, 96], sizes = [1, 32], strides = [1, 1]} : vector<1x128xf32> to vector<1x32xf32>
    %321 = arith.negf %320 : vector<1x32xf32>
    %322 = math.exp %321 : vector<1x32xf32>
    %cst_87 = arith.constant 1.000000e+00 : f32
    %323 = vector.broadcast %cst_87 : f32 to vector<1x32xf32>
    %324 = arith.addf %323, %322 : vector<1x32xf32>
    %325 = arith.divf %323, %324 : vector<1x32xf32>
    %326 = arith.mulf %317, %273 : vector<1x32xf32>
    %327 = arith.mulf %316, %319 : vector<1x32xf32>
    %328 = arith.addf %326, %327 : vector<1x32xf32>
    %329 = math.tanh %328 : vector<1x32xf32>
    %330 = arith.mulf %325, %329 : vector<1x32xf32>
    %331 = arith.index_cast %c4_i32 : i32 to index
    %c0_88 = arith.constant 0 : index
    %332 = vector.load %arg26[%331, %c0_88] : memref<16x32xf32, #tpu.memory_space<vmem>>, vector<1x32xf32>
    tpu.vector_store %arg26[%331, %c0_88], %305 {strides = array<i32>} : memref<16x32xf32, #tpu.memory_space<vmem>>, vector<1x32xf32>,
    %333 = arith.index_cast %280 : i32 to index
    %c0_89 = arith.constant 0 : index
    %334 = vector.load %arg27[%333, %c0_89] : memref<16x32xf32, #tpu.memory_space<vmem>>, vector<1x32xf32>
    tpu.vector_store %arg27[%333, %c0_89], %330 {strides = array<i32>} : memref<16x32xf32, #tpu.memory_space<vmem>>, vector<1x32xf32>,
    %c5_i32 = arith.constant 5 : i32
    %c15_i32_90 = arith.constant 15 : i32
    %335 = arith.subi %c15_i32_90, %c5_i32 : i32
    %336 = arith.index_cast %c5_i32 : i32 to index
    %c0_91 = arith.constant 0 : index
    %337 = vector.load %arg25[%336, %c0_91] : memref<16x256xf32, #tpu.memory_space<vmem>>, vector<1x128xf32>
    %cst_92 = arith.constant dense<0.000000e+00> : vector<1x128xf32>
    %338 = tpu.matmul %305, %57, %cst_92 {dimension_numbers = #tpu.dot_dimension_numbers<[1], [0], [0], [1], [0, 0, 1, 1], [], []>} : vector<1x32xf32>, vector<32x128xf32>, vector<1x128xf32> -> vector<1x128xf32>
    %339 = arith.addf %337, %338 : vector<1x128xf32>
    %340 = vector.extract_strided_slice %339 {offsets = [0, 0], sizes = [1, 64], strides = [1, 1]} : vector<1x128xf32> to vector<1x64xf32>
    %341 = arith.negf %340 : vector<1x64xf32>
    %342 = math.exp %341 : vector<1x64xf32>
    %cst_93 = arith.constant 1.000000e+00 : f32
    %343 = vector.broadcast %cst_93 : f32 to vector<1x64xf32>
    %344 = arith.addf %343, %342 : vector<1x64xf32>
    %345 = arith.divf %343, %344 : vector<1x64xf32>
    %346 = vector.extract_strided_slice %345 {offsets = [0, 0], sizes = [1, 32], strides = [1, 1]} : vector<1x64xf32> to vector<1x32xf32>
    %347 = vector.extract_strided_slice %345 {offsets = [0, 32], sizes = [1, 32], strides = [1, 1]} : vector<1x64xf32> to vector<1x32xf32>
    %348 = vector.extract_strided_slice %339 {offsets = [0, 64], sizes = [1, 32], strides = [1, 1]} : vector<1x128xf32> to vector<1x32xf32>
    %349 = math.tanh %348 : vector<1x32xf32>
    %350 = vector.extract_strided_slice %339 {offsets = [0, 96], sizes = [1, 32], strides = [1, 1]} : vector<1x128xf32> to vector<1x32xf32>
    %351 = arith.negf %350 : vector<1x32xf32>
    %352 = math.exp %351 : vector<1x32xf32>
    %cst_94 = arith.constant 1.000000e+00 : f32
    %353 = vector.broadcast %cst_94 : f32 to vector<1x32xf32>
    %354 = arith.addf %353, %352 : vector<1x32xf32>
    %355 = arith.divf %353, %354 : vector<1x32xf32>
    %356 = arith.mulf %347, %303 : vector<1x32xf32>
    %357 = arith.mulf %346, %349 : vector<1x32xf32>
    %358 = arith.addf %356, %357 : vector<1x32xf32>
    %359 = math.tanh %358 : vector<1x32xf32>
    %360 = arith.mulf %355, %359 : vector<1x32xf32>
    %361 = arith.index_cast %335 : i32 to index
    %c128_95 = arith.constant 128 : index
    %362 = vector.load %arg25[%361, %c128_95] : memref<16x256xf32, #tpu.memory_space<vmem>>, vector<1x128xf32>
    %cst_96 = arith.constant dense<0.000000e+00> : vector<1x128xf32>
    %363 = tpu.matmul %330, %58, %cst_96 {dimension_numbers = #tpu.dot_dimension_numbers<[1], [0], [0], [1], [0, 0, 1, 1], [], []>} : vector<1x32xf32>, vector<32x128xf32>, vector<1x128xf32> -> vector<1x128xf32>
    %364 = arith.addf %362, %363 : vector<1x128xf32>
    %365 = vector.extract_strided_slice %364 {offsets = [0, 0], sizes = [1, 64], strides = [1, 1]} : vector<1x128xf32> to vector<1x64xf32>
    %366 = arith.negf %365 : vector<1x64xf32>
    %367 = math.exp %366 : vector<1x64xf32>
    %cst_97 = arith.constant 1.000000e+00 : f32
    %368 = vector.broadcast %cst_97 : f32 to vector<1x64xf32>
    %369 = arith.addf %368, %367 : vector<1x64xf32>
    %370 = arith.divf %368, %369 : vector<1x64xf32>
    %371 = vector.extract_strided_slice %370 {offsets = [0, 0], sizes = [1, 32], strides = [1, 1]} : vector<1x64xf32> to vector<1x32xf32>
    %372 = vector.extract_strided_slice %370 {offsets = [0, 32], sizes = [1, 32], strides = [1, 1]} : vector<1x64xf32> to vector<1x32xf32>
    %373 = vector.extract_strided_slice %364 {offsets = [0, 64], sizes = [1, 32], strides = [1, 1]} : vector<1x128xf32> to vector<1x32xf32>
    %374 = math.tanh %373 : vector<1x32xf32>
    %375 = vector.extract_strided_slice %364 {offsets = [0, 96], sizes = [1, 32], strides = [1, 1]} : vector<1x128xf32> to vector<1x32xf32>
    %376 = arith.negf %375 : vector<1x32xf32>
    %377 = math.exp %376 : vector<1x32xf32>
    %cst_98 = arith.constant 1.000000e+00 : f32
    %378 = vector.broadcast %cst_98 : f32 to vector<1x32xf32>
    %379 = arith.addf %378, %377 : vector<1x32xf32>
    %380 = arith.divf %378, %379 : vector<1x32xf32>
    %381 = arith.mulf %372, %328 : vector<1x32xf32>
    %382 = arith.mulf %371, %374 : vector<1x32xf32>
    %383 = arith.addf %381, %382 : vector<1x32xf32>
    %384 = math.tanh %383 : vector<1x32xf32>
    %385 = arith.mulf %380, %384 : vector<1x32xf32>
    %386 = arith.index_cast %c5_i32 : i32 to index
    %c0_99 = arith.constant 0 : index
    %387 = vector.load %arg26[%386, %c0_99] : memref<16x32xf32, #tpu.memory_space<vmem>>, vector<1x32xf32>
    tpu.vector_store %arg26[%386, %c0_99], %360 {strides = array<i32>} : memref<16x32xf32, #tpu.memory_space<vmem>>, vector<1x32xf32>,
    %388 = arith.index_cast %335 : i32 to index
    %c0_100 = arith.constant 0 : index
    %389 = vector.load %arg27[%388, %c0_100] : memref<16x32xf32, #tpu.memory_space<vmem>>, vector<1x32xf32>
    tpu.vector_store %arg27[%388, %c0_100], %385 {strides = array<i32>} : memref<16x32xf32, #tpu.memory_space<vmem>>, vector<1x32xf32>,
    %c6_i32 = arith.constant 6 : i32
    %c15_i32_101 = arith.constant 15 : i32
    %390 = arith.subi %c15_i32_101, %c6_i32 : i32
    %391 = arith.index_cast %c6_i32 : i32 to index
    %c0_102 = arith.constant 0 : index
    %392 = vector.load %arg25[%391, %c0_102] : memref<16x256xf32, #tpu.memory_space<vmem>>, vector<1x128xf32>
    %cst_103 = arith.constant dense<0.000000e+00> : vector<1x128xf32>
    %393 = tpu.matmul %360, %57, %cst_103 {dimension_numbers = #tpu.dot_dimension_numbers<[1], [0], [0], [1], [0, 0, 1, 1], [], []>} : vector<1x32xf32>, vector<32x128xf32>, vector<1x128xf32> -> vector<1x128xf32>
    %394 = arith.addf %392, %393 : vector<1x128xf32>
    %395 = vector.extract_strided_slice %394 {offsets = [0, 0], sizes = [1, 64], strides = [1, 1]} : vector<1x128xf32> to vector<1x64xf32>
    %396 = arith.negf %395 : vector<1x64xf32>
    %397 = math.exp %396 : vector<1x64xf32>
    %cst_104 = arith.constant 1.000000e+00 : f32
    %398 = vector.broadcast %cst_104 : f32 to vector<1x64xf32>
    %399 = arith.addf %398, %397 : vector<1x64xf32>
    %400 = arith.divf %398, %399 : vector<1x64xf32>
    %401 = vector.extract_strided_slice %400 {offsets = [0, 0], sizes = [1, 32], strides = [1, 1]} : vector<1x64xf32> to vector<1x32xf32>
    %402 = vector.extract_strided_slice %400 {offsets = [0, 32], sizes = [1, 32], strides = [1, 1]} : vector<1x64xf32> to vector<1x32xf32>
    %403 = vector.extract_strided_slice %394 {offsets = [0, 64], sizes = [1, 32], strides = [1, 1]} : vector<1x128xf32> to vector<1x32xf32>
    %404 = math.tanh %403 : vector<1x32xf32>
    %405 = vector.extract_strided_slice %394 {offsets = [0, 96], sizes = [1, 32], strides = [1, 1]} : vector<1x128xf32> to vector<1x32xf32>
    %406 = arith.negf %405 : vector<1x32xf32>
    %407 = math.exp %406 : vector<1x32xf32>
    %cst_105 = arith.constant 1.000000e+00 : f32
    %408 = vector.broadcast %cst_105 : f32 to vector<1x32xf32>
    %409 = arith.addf %408, %407 : vector<1x32xf32>
    %410 = arith.divf %408, %409 : vector<1x32xf32>
    %411 = arith.mulf %402, %358 : vector<1x32xf32>
    %412 = arith.mulf %401, %404 : vector<1x32xf32>
    %413 = arith.addf %411, %412 : vector<1x32xf32>
    %414 = math.tanh %413 : vector<1x32xf32>
    %415 = arith.mulf %410, %414 : vector<1x32xf32>
    %416 = arith.index_cast %390 : i32 to index
    %c128_106 = arith.constant 128 : index
    %417 = vector.load %arg25[%416, %c128_106] : memref<16x256xf32, #tpu.memory_space<vmem>>, vector<1x128xf32>
    %cst_107 = arith.constant dense<0.000000e+00> : vector<1x128xf32>
    %418 = tpu.matmul %385, %58, %cst_107 {dimension_numbers = #tpu.dot_dimension_numbers<[1], [0], [0], [1], [0, 0, 1, 1], [], []>} : vector<1x32xf32>, vector<32x128xf32>, vector<1x128xf32> -> vector<1x128xf32>
    %419 = arith.addf %417, %418 : vector<1x128xf32>
    %420 = vector.extract_strided_slice %419 {offsets = [0, 0], sizes = [1, 64], strides = [1, 1]} : vector<1x128xf32> to vector<1x64xf32>
    %421 = arith.negf %420 : vector<1x64xf32>
    %422 = math.exp %421 : vector<1x64xf32>
    %cst_108 = arith.constant 1.000000e+00 : f32
    %423 = vector.broadcast %cst_108 : f32 to vector<1x64xf32>
    %424 = arith.addf %423, %422 : vector<1x64xf32>
    %425 = arith.divf %423, %424 : vector<1x64xf32>
    %426 = vector.extract_strided_slice %425 {offsets = [0, 0], sizes = [1, 32], strides = [1, 1]} : vector<1x64xf32> to vector<1x32xf32>
    %427 = vector.extract_strided_slice %425 {offsets = [0, 32], sizes = [1, 32], strides = [1, 1]} : vector<1x64xf32> to vector<1x32xf32>
    %428 = vector.extract_strided_slice %419 {offsets = [0, 64], sizes = [1, 32], strides = [1, 1]} : vector<1x128xf32> to vector<1x32xf32>
    %429 = math.tanh %428 : vector<1x32xf32>
    %430 = vector.extract_strided_slice %419 {offsets = [0, 96], sizes = [1, 32], strides = [1, 1]} : vector<1x128xf32> to vector<1x32xf32>
    %431 = arith.negf %430 : vector<1x32xf32>
    %432 = math.exp %431 : vector<1x32xf32>
    %cst_109 = arith.constant 1.000000e+00 : f32
    %433 = vector.broadcast %cst_109 : f32 to vector<1x32xf32>
    %434 = arith.addf %433, %432 : vector<1x32xf32>
    %435 = arith.divf %433, %434 : vector<1x32xf32>
    %436 = arith.mulf %427, %383 : vector<1x32xf32>
    %437 = arith.mulf %426, %429 : vector<1x32xf32>
    %438 = arith.addf %436, %437 : vector<1x32xf32>
    %439 = math.tanh %438 : vector<1x32xf32>
    %440 = arith.mulf %435, %439 : vector<1x32xf32>
    %441 = arith.index_cast %c6_i32 : i32 to index
    %c0_110 = arith.constant 0 : index
    %442 = vector.load %arg26[%441, %c0_110] : memref<16x32xf32, #tpu.memory_space<vmem>>, vector<1x32xf32>
    tpu.vector_store %arg26[%441, %c0_110], %415 {strides = array<i32>} : memref<16x32xf32, #tpu.memory_space<vmem>>, vector<1x32xf32>,
    %443 = arith.index_cast %390 : i32 to index
    %c0_111 = arith.constant 0 : index
    %444 = vector.load %arg27[%443, %c0_111] : memref<16x32xf32, #tpu.memory_space<vmem>>, vector<1x32xf32>
    tpu.vector_store %arg27[%443, %c0_111], %440 {strides = array<i32>} : memref<16x32xf32, #tpu.memory_space<vmem>>, vector<1x32xf32>,
    %c7_i32 = arith.constant 7 : i32
    %c15_i32_112 = arith.constant 15 : i32
    %445 = arith.subi %c15_i32_112, %c7_i32 : i32
    %446 = arith.index_cast %c7_i32 : i32 to index
    %c0_113 = arith.constant 0 : index
    %447 = vector.load %arg25[%446, %c0_113] : memref<16x256xf32, #tpu.memory_space<vmem>>, vector<1x128xf32>
    %cst_114 = arith.constant dense<0.000000e+00> : vector<1x128xf32>
    %448 = tpu.matmul %415, %57, %cst_114 {dimension_numbers = #tpu.dot_dimension_numbers<[1], [0], [0], [1], [0, 0, 1, 1], [], []>} : vector<1x32xf32>, vector<32x128xf32>, vector<1x128xf32> -> vector<1x128xf32>
    %449 = arith.addf %447, %448 : vector<1x128xf32>
    %450 = vector.extract_strided_slice %449 {offsets = [0, 0], sizes = [1, 64], strides = [1, 1]} : vector<1x128xf32> to vector<1x64xf32>
    %451 = arith.negf %450 : vector<1x64xf32>
    %452 = math.exp %451 : vector<1x64xf32>
    %cst_115 = arith.constant 1.000000e+00 : f32
    %453 = vector.broadcast %cst_115 : f32 to vector<1x64xf32>
    %454 = arith.addf %453, %452 : vector<1x64xf32>
    %455 = arith.divf %453, %454 : vector<1x64xf32>
    %456 = vector.extract_strided_slice %455 {offsets = [0, 0], sizes = [1, 32], strides = [1, 1]} : vector<1x64xf32> to vector<1x32xf32>
    %457 = vector.extract_strided_slice %455 {offsets = [0, 32], sizes = [1, 32], strides = [1, 1]} : vector<1x64xf32> to vector<1x32xf32>
    %458 = vector.extract_strided_slice %449 {offsets = [0, 64], sizes = [1, 32], strides = [1, 1]} : vector<1x128xf32> to vector<1x32xf32>
    %459 = math.tanh %458 : vector<1x32xf32>
    %460 = vector.extract_strided_slice %449 {offsets = [0, 96], sizes = [1, 32], strides = [1, 1]} : vector<1x128xf32> to vector<1x32xf32>
    %461 = arith.negf %460 : vector<1x32xf32>
    %462 = math.exp %461 : vector<1x32xf32>
    %cst_116 = arith.constant 1.000000e+00 : f32
    %463 = vector.broadcast %cst_116 : f32 to vector<1x32xf32>
    %464 = arith.addf %463, %462 : vector<1x32xf32>
    %465 = arith.divf %463, %464 : vector<1x32xf32>
    %466 = arith.mulf %457, %413 : vector<1x32xf32>
    %467 = arith.mulf %456, %459 : vector<1x32xf32>
    %468 = arith.addf %466, %467 : vector<1x32xf32>
    %469 = math.tanh %468 : vector<1x32xf32>
    %470 = arith.mulf %465, %469 : vector<1x32xf32>
    %471 = arith.index_cast %445 : i32 to index
    %c128_117 = arith.constant 128 : index
    %472 = vector.load %arg25[%471, %c128_117] : memref<16x256xf32, #tpu.memory_space<vmem>>, vector<1x128xf32>
    %cst_118 = arith.constant dense<0.000000e+00> : vector<1x128xf32>
    %473 = tpu.matmul %440, %58, %cst_118 {dimension_numbers = #tpu.dot_dimension_numbers<[1], [0], [0], [1], [0, 0, 1, 1], [], []>} : vector<1x32xf32>, vector<32x128xf32>, vector<1x128xf32> -> vector<1x128xf32>
    %474 = arith.addf %472, %473 : vector<1x128xf32>
    %475 = vector.extract_strided_slice %474 {offsets = [0, 0], sizes = [1, 64], strides = [1, 1]} : vector<1x128xf32> to vector<1x64xf32>
    %476 = arith.negf %475 : vector<1x64xf32>
    %477 = math.exp %476 : vector<1x64xf32>
    %cst_119 = arith.constant 1.000000e+00 : f32
    %478 = vector.broadcast %cst_119 : f32 to vector<1x64xf32>
    %479 = arith.addf %478, %477 : vector<1x64xf32>
    %480 = arith.divf %478, %479 : vector<1x64xf32>
    %481 = vector.extract_strided_slice %480 {offsets = [0, 0], sizes = [1, 32], strides = [1, 1]} : vector<1x64xf32> to vector<1x32xf32>
    %482 = vector.extract_strided_slice %480 {offsets = [0, 32], sizes = [1, 32], strides = [1, 1]} : vector<1x64xf32> to vector<1x32xf32>
    %483 = vector.extract_strided_slice %474 {offsets = [0, 64], sizes = [1, 32], strides = [1, 1]} : vector<1x128xf32> to vector<1x32xf32>
    %484 = math.tanh %483 : vector<1x32xf32>
    %485 = vector.extract_strided_slice %474 {offsets = [0, 96], sizes = [1, 32], strides = [1, 1]} : vector<1x128xf32> to vector<1x32xf32>
    %486 = arith.negf %485 : vector<1x32xf32>
    %487 = math.exp %486 : vector<1x32xf32>
    %cst_120 = arith.constant 1.000000e+00 : f32
    %488 = vector.broadcast %cst_120 : f32 to vector<1x32xf32>
    %489 = arith.addf %488, %487 : vector<1x32xf32>
    %490 = arith.divf %488, %489 : vector<1x32xf32>
    %491 = arith.mulf %482, %438 : vector<1x32xf32>
    %492 = arith.mulf %481, %484 : vector<1x32xf32>
    %493 = arith.addf %491, %492 : vector<1x32xf32>
    %494 = math.tanh %493 : vector<1x32xf32>
    %495 = arith.mulf %490, %494 : vector<1x32xf32>
    %496 = arith.index_cast %c7_i32 : i32 to index
    %c0_121 = arith.constant 0 : index
    %497 = vector.load %arg26[%496, %c0_121] : memref<16x32xf32, #tpu.memory_space<vmem>>, vector<1x32xf32>
    tpu.vector_store %arg26[%496, %c0_121], %470 {strides = array<i32>} : memref<16x32xf32, #tpu.memory_space<vmem>>, vector<1x32xf32>,
    %498 = arith.index_cast %445 : i32 to index
    %c0_122 = arith.constant 0 : index
    %499 = vector.load %arg27[%498, %c0_122] : memref<16x32xf32, #tpu.memory_space<vmem>>, vector<1x32xf32>
    tpu.vector_store %arg27[%498, %c0_122], %495 {strides = array<i32>} : memref<16x32xf32, #tpu.memory_space<vmem>>, vector<1x32xf32>,
    %c8_i32 = arith.constant 8 : i32
    %c15_i32_123 = arith.constant 15 : i32
    %500 = arith.subi %c15_i32_123, %c8_i32 : i32
    %501 = arith.index_cast %c8_i32 : i32 to index
    %c0_124 = arith.constant 0 : index
    %502 = vector.load %arg25[%501, %c0_124] : memref<16x256xf32, #tpu.memory_space<vmem>>, vector<1x128xf32>
    %cst_125 = arith.constant dense<0.000000e+00> : vector<1x128xf32>
    %503 = tpu.matmul %470, %57, %cst_125 {dimension_numbers = #tpu.dot_dimension_numbers<[1], [0], [0], [1], [0, 0, 1, 1], [], []>} : vector<1x32xf32>, vector<32x128xf32>, vector<1x128xf32> -> vector<1x128xf32>
    %504 = arith.addf %502, %503 : vector<1x128xf32>
    %505 = vector.extract_strided_slice %504 {offsets = [0, 0], sizes = [1, 64], strides = [1, 1]} : vector<1x128xf32> to vector<1x64xf32>
    %506 = arith.negf %505 : vector<1x64xf32>
    %507 = math.exp %506 : vector<1x64xf32>
    %cst_126 = arith.constant 1.000000e+00 : f32
    %508 = vector.broadcast %cst_126 : f32 to vector<1x64xf32>
    %509 = arith.addf %508, %507 : vector<1x64xf32>
    %510 = arith.divf %508, %509 : vector<1x64xf32>
    %511 = vector.extract_strided_slice %510 {offsets = [0, 0], sizes = [1, 32], strides = [1, 1]} : vector<1x64xf32> to vector<1x32xf32>
    %512 = vector.extract_strided_slice %510 {offsets = [0, 32], sizes = [1, 32], strides = [1, 1]} : vector<1x64xf32> to vector<1x32xf32>
    %513 = vector.extract_strided_slice %504 {offsets = [0, 64], sizes = [1, 32], strides = [1, 1]} : vector<1x128xf32> to vector<1x32xf32>
    %514 = math.tanh %513 : vector<1x32xf32>
    %515 = vector.extract_strided_slice %504 {offsets = [0, 96], sizes = [1, 32], strides = [1, 1]} : vector<1x128xf32> to vector<1x32xf32>
    %516 = arith.negf %515 : vector<1x32xf32>
    %517 = math.exp %516 : vector<1x32xf32>
    %cst_127 = arith.constant 1.000000e+00 : f32
    %518 = vector.broadcast %cst_127 : f32 to vector<1x32xf32>
    %519 = arith.addf %518, %517 : vector<1x32xf32>
    %520 = arith.divf %518, %519 : vector<1x32xf32>
    %521 = arith.mulf %512, %468 : vector<1x32xf32>
    %522 = arith.mulf %511, %514 : vector<1x32xf32>
    %523 = arith.addf %521, %522 : vector<1x32xf32>
    %524 = math.tanh %523 : vector<1x32xf32>
    %525 = arith.mulf %520, %524 : vector<1x32xf32>
    %526 = arith.index_cast %500 : i32 to index
    %c128_128 = arith.constant 128 : index
    %527 = vector.load %arg25[%526, %c128_128] : memref<16x256xf32, #tpu.memory_space<vmem>>, vector<1x128xf32>
    %cst_129 = arith.constant dense<0.000000e+00> : vector<1x128xf32>
    %528 = tpu.matmul %495, %58, %cst_129 {dimension_numbers = #tpu.dot_dimension_numbers<[1], [0], [0], [1], [0, 0, 1, 1], [], []>} : vector<1x32xf32>, vector<32x128xf32>, vector<1x128xf32> -> vector<1x128xf32>
    %529 = arith.addf %527, %528 : vector<1x128xf32>
    %530 = vector.extract_strided_slice %529 {offsets = [0, 0], sizes = [1, 64], strides = [1, 1]} : vector<1x128xf32> to vector<1x64xf32>
    %531 = arith.negf %530 : vector<1x64xf32>
    %532 = math.exp %531 : vector<1x64xf32>
    %cst_130 = arith.constant 1.000000e+00 : f32
    %533 = vector.broadcast %cst_130 : f32 to vector<1x64xf32>
    %534 = arith.addf %533, %532 : vector<1x64xf32>
    %535 = arith.divf %533, %534 : vector<1x64xf32>
    %536 = vector.extract_strided_slice %535 {offsets = [0, 0], sizes = [1, 32], strides = [1, 1]} : vector<1x64xf32> to vector<1x32xf32>
    %537 = vector.extract_strided_slice %535 {offsets = [0, 32], sizes = [1, 32], strides = [1, 1]} : vector<1x64xf32> to vector<1x32xf32>
    %538 = vector.extract_strided_slice %529 {offsets = [0, 64], sizes = [1, 32], strides = [1, 1]} : vector<1x128xf32> to vector<1x32xf32>
    %539 = math.tanh %538 : vector<1x32xf32>
    %540 = vector.extract_strided_slice %529 {offsets = [0, 96], sizes = [1, 32], strides = [1, 1]} : vector<1x128xf32> to vector<1x32xf32>
    %541 = arith.negf %540 : vector<1x32xf32>
    %542 = math.exp %541 : vector<1x32xf32>
    %cst_131 = arith.constant 1.000000e+00 : f32
    %543 = vector.broadcast %cst_131 : f32 to vector<1x32xf32>
    %544 = arith.addf %543, %542 : vector<1x32xf32>
    %545 = arith.divf %543, %544 : vector<1x32xf32>
    %546 = arith.mulf %537, %493 : vector<1x32xf32>
    %547 = arith.mulf %536, %539 : vector<1x32xf32>
    %548 = arith.addf %546, %547 : vector<1x32xf32>
    %549 = math.tanh %548 : vector<1x32xf32>
    %550 = arith.mulf %545, %549 : vector<1x32xf32>
    %551 = arith.index_cast %c8_i32 : i32 to index
    %c0_132 = arith.constant 0 : index
    %552 = vector.load %arg26[%551, %c0_132] : memref<16x32xf32, #tpu.memory_space<vmem>>, vector<1x32xf32>
    tpu.vector_store %arg26[%551, %c0_132], %525 {strides = array<i32>} : memref<16x32xf32, #tpu.memory_space<vmem>>, vector<1x32xf32>,
    %553 = arith.index_cast %500 : i32 to index
    %c0_133 = arith.constant 0 : index
    %554 = vector.load %arg27[%553, %c0_133] : memref<16x32xf32, #tpu.memory_space<vmem>>, vector<1x32xf32>
    tpu.vector_store %arg27[%553, %c0_133], %550 {strides = array<i32>} : memref<16x32xf32, #tpu.memory_space<vmem>>, vector<1x32xf32>,
    %c9_i32 = arith.constant 9 : i32
    %c15_i32_134 = arith.constant 15 : i32
    %555 = arith.subi %c15_i32_134, %c9_i32 : i32
    %556 = arith.index_cast %c9_i32 : i32 to index
    %c0_135 = arith.constant 0 : index
    %557 = vector.load %arg25[%556, %c0_135] : memref<16x256xf32, #tpu.memory_space<vmem>>, vector<1x128xf32>
    %cst_136 = arith.constant dense<0.000000e+00> : vector<1x128xf32>
    %558 = tpu.matmul %525, %57, %cst_136 {dimension_numbers = #tpu.dot_dimension_numbers<[1], [0], [0], [1], [0, 0, 1, 1], [], []>} : vector<1x32xf32>, vector<32x128xf32>, vector<1x128xf32> -> vector<1x128xf32>
    %559 = arith.addf %557, %558 : vector<1x128xf32>
    %560 = vector.extract_strided_slice %559 {offsets = [0, 0], sizes = [1, 64], strides = [1, 1]} : vector<1x128xf32> to vector<1x64xf32>
    %561 = arith.negf %560 : vector<1x64xf32>
    %562 = math.exp %561 : vector<1x64xf32>
    %cst_137 = arith.constant 1.000000e+00 : f32
    %563 = vector.broadcast %cst_137 : f32 to vector<1x64xf32>
    %564 = arith.addf %563, %562 : vector<1x64xf32>
    %565 = arith.divf %563, %564 : vector<1x64xf32>
    %566 = vector.extract_strided_slice %565 {offsets = [0, 0], sizes = [1, 32], strides = [1, 1]} : vector<1x64xf32> to vector<1x32xf32>
    %567 = vector.extract_strided_slice %565 {offsets = [0, 32], sizes = [1, 32], strides = [1, 1]} : vector<1x64xf32> to vector<1x32xf32>
    %568 = vector.extract_strided_slice %559 {offsets = [0, 64], sizes = [1, 32], strides = [1, 1]} : vector<1x128xf32> to vector<1x32xf32>
    %569 = math.tanh %568 : vector<1x32xf32>
    %570 = vector.extract_strided_slice %559 {offsets = [0, 96], sizes = [1, 32], strides = [1, 1]} : vector<1x128xf32> to vector<1x32xf32>
    %571 = arith.negf %570 : vector<1x32xf32>
    %572 = math.exp %571 : vector<1x32xf32>
    %cst_138 = arith.constant 1.000000e+00 : f32
    %573 = vector.broadcast %cst_138 : f32 to vector<1x32xf32>
    %574 = arith.addf %573, %572 : vector<1x32xf32>
    %575 = arith.divf %573, %574 : vector<1x32xf32>
    %576 = arith.mulf %567, %523 : vector<1x32xf32>
    %577 = arith.mulf %566, %569 : vector<1x32xf32>
    %578 = arith.addf %576, %577 : vector<1x32xf32>
    %579 = math.tanh %578 : vector<1x32xf32>
    %580 = arith.mulf %575, %579 : vector<1x32xf32>
    %581 = arith.index_cast %555 : i32 to index
    %c128_139 = arith.constant 128 : index
    %582 = vector.load %arg25[%581, %c128_139] : memref<16x256xf32, #tpu.memory_space<vmem>>, vector<1x128xf32>
    %cst_140 = arith.constant dense<0.000000e+00> : vector<1x128xf32>
    %583 = tpu.matmul %550, %58, %cst_140 {dimension_numbers = #tpu.dot_dimension_numbers<[1], [0], [0], [1], [0, 0, 1, 1], [], []>} : vector<1x32xf32>, vector<32x128xf32>, vector<1x128xf32> -> vector<1x128xf32>
    %584 = arith.addf %582, %583 : vector<1x128xf32>
    %585 = vector.extract_strided_slice %584 {offsets = [0, 0], sizes = [1, 64], strides = [1, 1]} : vector<1x128xf32> to vector<1x64xf32>
    %586 = arith.negf %585 : vector<1x64xf32>
    %587 = math.exp %586 : vector<1x64xf32>
    %cst_141 = arith.constant 1.000000e+00 : f32
    %588 = vector.broadcast %cst_141 : f32 to vector<1x64xf32>
    %589 = arith.addf %588, %587 : vector<1x64xf32>
    %590 = arith.divf %588, %589 : vector<1x64xf32>
    %591 = vector.extract_strided_slice %590 {offsets = [0, 0], sizes = [1, 32], strides = [1, 1]} : vector<1x64xf32> to vector<1x32xf32>
    %592 = vector.extract_strided_slice %590 {offsets = [0, 32], sizes = [1, 32], strides = [1, 1]} : vector<1x64xf32> to vector<1x32xf32>
    %593 = vector.extract_strided_slice %584 {offsets = [0, 64], sizes = [1, 32], strides = [1, 1]} : vector<1x128xf32> to vector<1x32xf32>
    %594 = math.tanh %593 : vector<1x32xf32>
    %595 = vector.extract_strided_slice %584 {offsets = [0, 96], sizes = [1, 32], strides = [1, 1]} : vector<1x128xf32> to vector<1x32xf32>
    %596 = arith.negf %595 : vector<1x32xf32>
    %597 = math.exp %596 : vector<1x32xf32>
    %cst_142 = arith.constant 1.000000e+00 : f32
    %598 = vector.broadcast %cst_142 : f32 to vector<1x32xf32>
    %599 = arith.addf %598, %597 : vector<1x32xf32>
    %600 = arith.divf %598, %599 : vector<1x32xf32>
    %601 = arith.mulf %592, %548 : vector<1x32xf32>
    %602 = arith.mulf %591, %594 : vector<1x32xf32>
    %603 = arith.addf %601, %602 : vector<1x32xf32>
    %604 = math.tanh %603 : vector<1x32xf32>
    %605 = arith.mulf %600, %604 : vector<1x32xf32>
    %606 = arith.index_cast %c9_i32 : i32 to index
    %c0_143 = arith.constant 0 : index
    %607 = vector.load %arg26[%606, %c0_143] : memref<16x32xf32, #tpu.memory_space<vmem>>, vector<1x32xf32>
    tpu.vector_store %arg26[%606, %c0_143], %580 {strides = array<i32>} : memref<16x32xf32, #tpu.memory_space<vmem>>, vector<1x32xf32>,
    %608 = arith.index_cast %555 : i32 to index
    %c0_144 = arith.constant 0 : index
    %609 = vector.load %arg27[%608, %c0_144] : memref<16x32xf32, #tpu.memory_space<vmem>>, vector<1x32xf32>
    tpu.vector_store %arg27[%608, %c0_144], %605 {strides = array<i32>} : memref<16x32xf32, #tpu.memory_space<vmem>>, vector<1x32xf32>,
    %c10_i32 = arith.constant 10 : i32
    %c15_i32_145 = arith.constant 15 : i32
    %610 = arith.subi %c15_i32_145, %c10_i32 : i32
    %611 = arith.index_cast %c10_i32 : i32 to index
    %c0_146 = arith.constant 0 : index
    %612 = vector.load %arg25[%611, %c0_146] : memref<16x256xf32, #tpu.memory_space<vmem>>, vector<1x128xf32>
    %cst_147 = arith.constant dense<0.000000e+00> : vector<1x128xf32>
    %613 = tpu.matmul %580, %57, %cst_147 {dimension_numbers = #tpu.dot_dimension_numbers<[1], [0], [0], [1], [0, 0, 1, 1], [], []>} : vector<1x32xf32>, vector<32x128xf32>, vector<1x128xf32> -> vector<1x128xf32>
    %614 = arith.addf %612, %613 : vector<1x128xf32>
    %615 = vector.extract_strided_slice %614 {offsets = [0, 0], sizes = [1, 64], strides = [1, 1]} : vector<1x128xf32> to vector<1x64xf32>
    %616 = arith.negf %615 : vector<1x64xf32>
    %617 = math.exp %616 : vector<1x64xf32>
    %cst_148 = arith.constant 1.000000e+00 : f32
    %618 = vector.broadcast %cst_148 : f32 to vector<1x64xf32>
    %619 = arith.addf %618, %617 : vector<1x64xf32>
    %620 = arith.divf %618, %619 : vector<1x64xf32>
    %621 = vector.extract_strided_slice %620 {offsets = [0, 0], sizes = [1, 32], strides = [1, 1]} : vector<1x64xf32> to vector<1x32xf32>
    %622 = vector.extract_strided_slice %620 {offsets = [0, 32], sizes = [1, 32], strides = [1, 1]} : vector<1x64xf32> to vector<1x32xf32>
    %623 = vector.extract_strided_slice %614 {offsets = [0, 64], sizes = [1, 32], strides = [1, 1]} : vector<1x128xf32> to vector<1x32xf32>
    %624 = math.tanh %623 : vector<1x32xf32>
    %625 = vector.extract_strided_slice %614 {offsets = [0, 96], sizes = [1, 32], strides = [1, 1]} : vector<1x128xf32> to vector<1x32xf32>
    %626 = arith.negf %625 : vector<1x32xf32>
    %627 = math.exp %626 : vector<1x32xf32>
    %cst_149 = arith.constant 1.000000e+00 : f32
    %628 = vector.broadcast %cst_149 : f32 to vector<1x32xf32>
    %629 = arith.addf %628, %627 : vector<1x32xf32>
    %630 = arith.divf %628, %629 : vector<1x32xf32>
    %631 = arith.mulf %622, %578 : vector<1x32xf32>
    %632 = arith.mulf %621, %624 : vector<1x32xf32>
    %633 = arith.addf %631, %632 : vector<1x32xf32>
    %634 = math.tanh %633 : vector<1x32xf32>
    %635 = arith.mulf %630, %634 : vector<1x32xf32>
    %636 = arith.index_cast %610 : i32 to index
    %c128_150 = arith.constant 128 : index
    %637 = vector.load %arg25[%636, %c128_150] : memref<16x256xf32, #tpu.memory_space<vmem>>, vector<1x128xf32>
    %cst_151 = arith.constant dense<0.000000e+00> : vector<1x128xf32>
    %638 = tpu.matmul %605, %58, %cst_151 {dimension_numbers = #tpu.dot_dimension_numbers<[1], [0], [0], [1], [0, 0, 1, 1], [], []>} : vector<1x32xf32>, vector<32x128xf32>, vector<1x128xf32> -> vector<1x128xf32>
    %639 = arith.addf %637, %638 : vector<1x128xf32>
    %640 = vector.extract_strided_slice %639 {offsets = [0, 0], sizes = [1, 64], strides = [1, 1]} : vector<1x128xf32> to vector<1x64xf32>
    %641 = arith.negf %640 : vector<1x64xf32>
    %642 = math.exp %641 : vector<1x64xf32>
    %cst_152 = arith.constant 1.000000e+00 : f32
    %643 = vector.broadcast %cst_152 : f32 to vector<1x64xf32>
    %644 = arith.addf %643, %642 : vector<1x64xf32>
    %645 = arith.divf %643, %644 : vector<1x64xf32>
    %646 = vector.extract_strided_slice %645 {offsets = [0, 0], sizes = [1, 32], strides = [1, 1]} : vector<1x64xf32> to vector<1x32xf32>
    %647 = vector.extract_strided_slice %645 {offsets = [0, 32], sizes = [1, 32], strides = [1, 1]} : vector<1x64xf32> to vector<1x32xf32>
    %648 = vector.extract_strided_slice %639 {offsets = [0, 64], sizes = [1, 32], strides = [1, 1]} : vector<1x128xf32> to vector<1x32xf32>
    %649 = math.tanh %648 : vector<1x32xf32>
    %650 = vector.extract_strided_slice %639 {offsets = [0, 96], sizes = [1, 32], strides = [1, 1]} : vector<1x128xf32> to vector<1x32xf32>
    %651 = arith.negf %650 : vector<1x32xf32>
    %652 = math.exp %651 : vector<1x32xf32>
    %cst_153 = arith.constant 1.000000e+00 : f32
    %653 = vector.broadcast %cst_153 : f32 to vector<1x32xf32>
    %654 = arith.addf %653, %652 : vector<1x32xf32>
    %655 = arith.divf %653, %654 : vector<1x32xf32>
    %656 = arith.mulf %647, %603 : vector<1x32xf32>
    %657 = arith.mulf %646, %649 : vector<1x32xf32>
    %658 = arith.addf %656, %657 : vector<1x32xf32>
    %659 = math.tanh %658 : vector<1x32xf32>
    %660 = arith.mulf %655, %659 : vector<1x32xf32>
    %661 = arith.index_cast %c10_i32 : i32 to index
    %c0_154 = arith.constant 0 : index
    %662 = vector.load %arg26[%661, %c0_154] : memref<16x32xf32, #tpu.memory_space<vmem>>, vector<1x32xf32>
    tpu.vector_store %arg26[%661, %c0_154], %635 {strides = array<i32>} : memref<16x32xf32, #tpu.memory_space<vmem>>, vector<1x32xf32>,
    %663 = arith.index_cast %610 : i32 to index
    %c0_155 = arith.constant 0 : index
    %664 = vector.load %arg27[%663, %c0_155] : memref<16x32xf32, #tpu.memory_space<vmem>>, vector<1x32xf32>
    tpu.vector_store %arg27[%663, %c0_155], %660 {strides = array<i32>} : memref<16x32xf32, #tpu.memory_space<vmem>>, vector<1x32xf32>,
    %c11_i32 = arith.constant 11 : i32
    %c15_i32_156 = arith.constant 15 : i32
    %665 = arith.subi %c15_i32_156, %c11_i32 : i32
    %666 = arith.index_cast %c11_i32 : i32 to index
    %c0_157 = arith.constant 0 : index
    %667 = vector.load %arg25[%666, %c0_157] : memref<16x256xf32, #tpu.memory_space<vmem>>, vector<1x128xf32>
    %cst_158 = arith.constant dense<0.000000e+00> : vector<1x128xf32>
    %668 = tpu.matmul %635, %57, %cst_158 {dimension_numbers = #tpu.dot_dimension_numbers<[1], [0], [0], [1], [0, 0, 1, 1], [], []>} : vector<1x32xf32>, vector<32x128xf32>, vector<1x128xf32> -> vector<1x128xf32>
    %669 = arith.addf %667, %668 : vector<1x128xf32>
    %670 = vector.extract_strided_slice %669 {offsets = [0, 0], sizes = [1, 64], strides = [1, 1]} : vector<1x128xf32> to vector<1x64xf32>
    %671 = arith.negf %670 : vector<1x64xf32>
    %672 = math.exp %671 : vector<1x64xf32>
    %cst_159 = arith.constant 1.000000e+00 : f32
    %673 = vector.broadcast %cst_159 : f32 to vector<1x64xf32>
    %674 = arith.addf %673, %672 : vector<1x64xf32>
    %675 = arith.divf %673, %674 : vector<1x64xf32>
    %676 = vector.extract_strided_slice %675 {offsets = [0, 0], sizes = [1, 32], strides = [1, 1]} : vector<1x64xf32> to vector<1x32xf32>
    %677 = vector.extract_strided_slice %675 {offsets = [0, 32], sizes = [1, 32], strides = [1, 1]} : vector<1x64xf32> to vector<1x32xf32>
    %678 = vector.extract_strided_slice %669 {offsets = [0, 64], sizes = [1, 32], strides = [1, 1]} : vector<1x128xf32> to vector<1x32xf32>
    %679 = math.tanh %678 : vector<1x32xf32>
    %680 = vector.extract_strided_slice %669 {offsets = [0, 96], sizes = [1, 32], strides = [1, 1]} : vector<1x128xf32> to vector<1x32xf32>
    %681 = arith.negf %680 : vector<1x32xf32>
    %682 = math.exp %681 : vector<1x32xf32>
    %cst_160 = arith.constant 1.000000e+00 : f32
    %683 = vector.broadcast %cst_160 : f32 to vector<1x32xf32>
    %684 = arith.addf %683, %682 : vector<1x32xf32>
    %685 = arith.divf %683, %684 : vector<1x32xf32>
    %686 = arith.mulf %677, %633 : vector<1x32xf32>
    %687 = arith.mulf %676, %679 : vector<1x32xf32>
    %688 = arith.addf %686, %687 : vector<1x32xf32>
    %689 = math.tanh %688 : vector<1x32xf32>
    %690 = arith.mulf %685, %689 : vector<1x32xf32>
    %691 = arith.index_cast %665 : i32 to index
    %c128_161 = arith.constant 128 : index
    %692 = vector.load %arg25[%691, %c128_161] : memref<16x256xf32, #tpu.memory_space<vmem>>, vector<1x128xf32>
    %cst_162 = arith.constant dense<0.000000e+00> : vector<1x128xf32>
    %693 = tpu.matmul %660, %58, %cst_162 {dimension_numbers = #tpu.dot_dimension_numbers<[1], [0], [0], [1], [0, 0, 1, 1], [], []>} : vector<1x32xf32>, vector<32x128xf32>, vector<1x128xf32> -> vector<1x128xf32>
    %694 = arith.addf %692, %693 : vector<1x128xf32>
    %695 = vector.extract_strided_slice %694 {offsets = [0, 0], sizes = [1, 64], strides = [1, 1]} : vector<1x128xf32> to vector<1x64xf32>
    %696 = arith.negf %695 : vector<1x64xf32>
    %697 = math.exp %696 : vector<1x64xf32>
    %cst_163 = arith.constant 1.000000e+00 : f32
    %698 = vector.broadcast %cst_163 : f32 to vector<1x64xf32>
    %699 = arith.addf %698, %697 : vector<1x64xf32>
    %700 = arith.divf %698, %699 : vector<1x64xf32>
    %701 = vector.extract_strided_slice %700 {offsets = [0, 0], sizes = [1, 32], strides = [1, 1]} : vector<1x64xf32> to vector<1x32xf32>
    %702 = vector.extract_strided_slice %700 {offsets = [0, 32], sizes = [1, 32], strides = [1, 1]} : vector<1x64xf32> to vector<1x32xf32>
    %703 = vector.extract_strided_slice %694 {offsets = [0, 64], sizes = [1, 32], strides = [1, 1]} : vector<1x128xf32> to vector<1x32xf32>
    %704 = math.tanh %703 : vector<1x32xf32>
    %705 = vector.extract_strided_slice %694 {offsets = [0, 96], sizes = [1, 32], strides = [1, 1]} : vector<1x128xf32> to vector<1x32xf32>
    %706 = arith.negf %705 : vector<1x32xf32>
    %707 = math.exp %706 : vector<1x32xf32>
    %cst_164 = arith.constant 1.000000e+00 : f32
    %708 = vector.broadcast %cst_164 : f32 to vector<1x32xf32>
    %709 = arith.addf %708, %707 : vector<1x32xf32>
    %710 = arith.divf %708, %709 : vector<1x32xf32>
    %711 = arith.mulf %702, %658 : vector<1x32xf32>
    %712 = arith.mulf %701, %704 : vector<1x32xf32>
    %713 = arith.addf %711, %712 : vector<1x32xf32>
    %714 = math.tanh %713 : vector<1x32xf32>
    %715 = arith.mulf %710, %714 : vector<1x32xf32>
    %716 = arith.index_cast %c11_i32 : i32 to index
    %c0_165 = arith.constant 0 : index
    %717 = vector.load %arg26[%716, %c0_165] : memref<16x32xf32, #tpu.memory_space<vmem>>, vector<1x32xf32>
    tpu.vector_store %arg26[%716, %c0_165], %690 {strides = array<i32>} : memref<16x32xf32, #tpu.memory_space<vmem>>, vector<1x32xf32>,
    %718 = arith.index_cast %665 : i32 to index
    %c0_166 = arith.constant 0 : index
    %719 = vector.load %arg27[%718, %c0_166] : memref<16x32xf32, #tpu.memory_space<vmem>>, vector<1x32xf32>
    tpu.vector_store %arg27[%718, %c0_166], %715 {strides = array<i32>} : memref<16x32xf32, #tpu.memory_space<vmem>>, vector<1x32xf32>,
    %c12_i32 = arith.constant 12 : i32
    %c15_i32_167 = arith.constant 15 : i32
    %720 = arith.subi %c15_i32_167, %c12_i32 : i32
    %721 = arith.index_cast %c12_i32 : i32 to index
    %c0_168 = arith.constant 0 : index
    %722 = vector.load %arg25[%721, %c0_168] : memref<16x256xf32, #tpu.memory_space<vmem>>, vector<1x128xf32>
    %cst_169 = arith.constant dense<0.000000e+00> : vector<1x128xf32>
    %723 = tpu.matmul %690, %57, %cst_169 {dimension_numbers = #tpu.dot_dimension_numbers<[1], [0], [0], [1], [0, 0, 1, 1], [], []>} : vector<1x32xf32>, vector<32x128xf32>, vector<1x128xf32> -> vector<1x128xf32>
    %724 = arith.addf %722, %723 : vector<1x128xf32>
    %725 = vector.extract_strided_slice %724 {offsets = [0, 0], sizes = [1, 64], strides = [1, 1]} : vector<1x128xf32> to vector<1x64xf32>
    %726 = arith.negf %725 : vector<1x64xf32>
    %727 = math.exp %726 : vector<1x64xf32>
    %cst_170 = arith.constant 1.000000e+00 : f32
    %728 = vector.broadcast %cst_170 : f32 to vector<1x64xf32>
    %729 = arith.addf %728, %727 : vector<1x64xf32>
    %730 = arith.divf %728, %729 : vector<1x64xf32>
    %731 = vector.extract_strided_slice %730 {offsets = [0, 0], sizes = [1, 32], strides = [1, 1]} : vector<1x64xf32> to vector<1x32xf32>
    %732 = vector.extract_strided_slice %730 {offsets = [0, 32], sizes = [1, 32], strides = [1, 1]} : vector<1x64xf32> to vector<1x32xf32>
    %733 = vector.extract_strided_slice %724 {offsets = [0, 64], sizes = [1, 32], strides = [1, 1]} : vector<1x128xf32> to vector<1x32xf32>
    %734 = math.tanh %733 : vector<1x32xf32>
    %735 = vector.extract_strided_slice %724 {offsets = [0, 96], sizes = [1, 32], strides = [1, 1]} : vector<1x128xf32> to vector<1x32xf32>
    %736 = arith.negf %735 : vector<1x32xf32>
    %737 = math.exp %736 : vector<1x32xf32>
    %cst_171 = arith.constant 1.000000e+00 : f32
    %738 = vector.broadcast %cst_171 : f32 to vector<1x32xf32>
    %739 = arith.addf %738, %737 : vector<1x32xf32>
    %740 = arith.divf %738, %739 : vector<1x32xf32>
    %741 = arith.mulf %732, %688 : vector<1x32xf32>
    %742 = arith.mulf %731, %734 : vector<1x32xf32>
    %743 = arith.addf %741, %742 : vector<1x32xf32>
    %744 = math.tanh %743 : vector<1x32xf32>
    %745 = arith.mulf %740, %744 : vector<1x32xf32>
    %746 = arith.index_cast %720 : i32 to index
    %c128_172 = arith.constant 128 : index
    %747 = vector.load %arg25[%746, %c128_172] : memref<16x256xf32, #tpu.memory_space<vmem>>, vector<1x128xf32>
    %cst_173 = arith.constant dense<0.000000e+00> : vector<1x128xf32>
    %748 = tpu.matmul %715, %58, %cst_173 {dimension_numbers = #tpu.dot_dimension_numbers<[1], [0], [0], [1], [0, 0, 1, 1], [], []>} : vector<1x32xf32>, vector<32x128xf32>, vector<1x128xf32> -> vector<1x128xf32>
    %749 = arith.addf %747, %748 : vector<1x128xf32>
    %750 = vector.extract_strided_slice %749 {offsets = [0, 0], sizes = [1, 64], strides = [1, 1]} : vector<1x128xf32> to vector<1x64xf32>
    %751 = arith.negf %750 : vector<1x64xf32>
    %752 = math.exp %751 : vector<1x64xf32>
    %cst_174 = arith.constant 1.000000e+00 : f32
    %753 = vector.broadcast %cst_174 : f32 to vector<1x64xf32>
    %754 = arith.addf %753, %752 : vector<1x64xf32>
    %755 = arith.divf %753, %754 : vector<1x64xf32>
    %756 = vector.extract_strided_slice %755 {offsets = [0, 0], sizes = [1, 32], strides = [1, 1]} : vector<1x64xf32> to vector<1x32xf32>
    %757 = vector.extract_strided_slice %755 {offsets = [0, 32], sizes = [1, 32], strides = [1, 1]} : vector<1x64xf32> to vector<1x32xf32>
    %758 = vector.extract_strided_slice %749 {offsets = [0, 64], sizes = [1, 32], strides = [1, 1]} : vector<1x128xf32> to vector<1x32xf32>
    %759 = math.tanh %758 : vector<1x32xf32>
    %760 = vector.extract_strided_slice %749 {offsets = [0, 96], sizes = [1, 32], strides = [1, 1]} : vector<1x128xf32> to vector<1x32xf32>
    %761 = arith.negf %760 : vector<1x32xf32>
    %762 = math.exp %761 : vector<1x32xf32>
    %cst_175 = arith.constant 1.000000e+00 : f32
    %763 = vector.broadcast %cst_175 : f32 to vector<1x32xf32>
    %764 = arith.addf %763, %762 : vector<1x32xf32>
    %765 = arith.divf %763, %764 : vector<1x32xf32>
    %766 = arith.mulf %757, %713 : vector<1x32xf32>
    %767 = arith.mulf %756, %759 : vector<1x32xf32>
    %768 = arith.addf %766, %767 : vector<1x32xf32>
    %769 = math.tanh %768 : vector<1x32xf32>
    %770 = arith.mulf %765, %769 : vector<1x32xf32>
    %771 = arith.index_cast %c12_i32 : i32 to index
    %c0_176 = arith.constant 0 : index
    %772 = vector.load %arg26[%771, %c0_176] : memref<16x32xf32, #tpu.memory_space<vmem>>, vector<1x32xf32>
    tpu.vector_store %arg26[%771, %c0_176], %745 {strides = array<i32>} : memref<16x32xf32, #tpu.memory_space<vmem>>, vector<1x32xf32>,
    %773 = arith.index_cast %720 : i32 to index
    %c0_177 = arith.constant 0 : index
    %774 = vector.load %arg27[%773, %c0_177] : memref<16x32xf32, #tpu.memory_space<vmem>>, vector<1x32xf32>
    tpu.vector_store %arg27[%773, %c0_177], %770 {strides = array<i32>} : memref<16x32xf32, #tpu.memory_space<vmem>>, vector<1x32xf32>,
    %c13_i32 = arith.constant 13 : i32
    %c15_i32_178 = arith.constant 15 : i32
    %775 = arith.subi %c15_i32_178, %c13_i32 : i32
    %776 = arith.index_cast %c13_i32 : i32 to index
    %c0_179 = arith.constant 0 : index
    %777 = vector.load %arg25[%776, %c0_179] : memref<16x256xf32, #tpu.memory_space<vmem>>, vector<1x128xf32>
    %cst_180 = arith.constant dense<0.000000e+00> : vector<1x128xf32>
    %778 = tpu.matmul %745, %57, %cst_180 {dimension_numbers = #tpu.dot_dimension_numbers<[1], [0], [0], [1], [0, 0, 1, 1], [], []>} : vector<1x32xf32>, vector<32x128xf32>, vector<1x128xf32> -> vector<1x128xf32>
    %779 = arith.addf %777, %778 : vector<1x128xf32>
    %780 = vector.extract_strided_slice %779 {offsets = [0, 0], sizes = [1, 64], strides = [1, 1]} : vector<1x128xf32> to vector<1x64xf32>
    %781 = arith.negf %780 : vector<1x64xf32>
    %782 = math.exp %781 : vector<1x64xf32>
    %cst_181 = arith.constant 1.000000e+00 : f32
    %783 = vector.broadcast %cst_181 : f32 to vector<1x64xf32>
    %784 = arith.addf %783, %782 : vector<1x64xf32>
    %785 = arith.divf %783, %784 : vector<1x64xf32>
    %786 = vector.extract_strided_slice %785 {offsets = [0, 0], sizes = [1, 32], strides = [1, 1]} : vector<1x64xf32> to vector<1x32xf32>
    %787 = vector.extract_strided_slice %785 {offsets = [0, 32], sizes = [1, 32], strides = [1, 1]} : vector<1x64xf32> to vector<1x32xf32>
    %788 = vector.extract_strided_slice %779 {offsets = [0, 64], sizes = [1, 32], strides = [1, 1]} : vector<1x128xf32> to vector<1x32xf32>
    %789 = math.tanh %788 : vector<1x32xf32>
    %790 = vector.extract_strided_slice %779 {offsets = [0, 96], sizes = [1, 32], strides = [1, 1]} : vector<1x128xf32> to vector<1x32xf32>
    %791 = arith.negf %790 : vector<1x32xf32>
    %792 = math.exp %791 : vector<1x32xf32>
    %cst_182 = arith.constant 1.000000e+00 : f32
    %793 = vector.broadcast %cst_182 : f32 to vector<1x32xf32>
    %794 = arith.addf %793, %792 : vector<1x32xf32>
    %795 = arith.divf %793, %794 : vector<1x32xf32>
    %796 = arith.mulf %787, %743 : vector<1x32xf32>
    %797 = arith.mulf %786, %789 : vector<1x32xf32>
    %798 = arith.addf %796, %797 : vector<1x32xf32>
    %799 = math.tanh %798 : vector<1x32xf32>
    %800 = arith.mulf %795, %799 : vector<1x32xf32>
    %801 = arith.index_cast %775 : i32 to index
    %c128_183 = arith.constant 128 : index
    %802 = vector.load %arg25[%801, %c128_183] : memref<16x256xf32, #tpu.memory_space<vmem>>, vector<1x128xf32>
    %cst_184 = arith.constant dense<0.000000e+00> : vector<1x128xf32>
    %803 = tpu.matmul %770, %58, %cst_184 {dimension_numbers = #tpu.dot_dimension_numbers<[1], [0], [0], [1], [0, 0, 1, 1], [], []>} : vector<1x32xf32>, vector<32x128xf32>, vector<1x128xf32> -> vector<1x128xf32>
    %804 = arith.addf %802, %803 : vector<1x128xf32>
    %805 = vector.extract_strided_slice %804 {offsets = [0, 0], sizes = [1, 64], strides = [1, 1]} : vector<1x128xf32> to vector<1x64xf32>
    %806 = arith.negf %805 : vector<1x64xf32>
    %807 = math.exp %806 : vector<1x64xf32>
    %cst_185 = arith.constant 1.000000e+00 : f32
    %808 = vector.broadcast %cst_185 : f32 to vector<1x64xf32>
    %809 = arith.addf %808, %807 : vector<1x64xf32>
    %810 = arith.divf %808, %809 : vector<1x64xf32>
    %811 = vector.extract_strided_slice %810 {offsets = [0, 0], sizes = [1, 32], strides = [1, 1]} : vector<1x64xf32> to vector<1x32xf32>
    %812 = vector.extract_strided_slice %810 {offsets = [0, 32], sizes = [1, 32], strides = [1, 1]} : vector<1x64xf32> to vector<1x32xf32>
    %813 = vector.extract_strided_slice %804 {offsets = [0, 64], sizes = [1, 32], strides = [1, 1]} : vector<1x128xf32> to vector<1x32xf32>
    %814 = math.tanh %813 : vector<1x32xf32>
    %815 = vector.extract_strided_slice %804 {offsets = [0, 96], sizes = [1, 32], strides = [1, 1]} : vector<1x128xf32> to vector<1x32xf32>
    %816 = arith.negf %815 : vector<1x32xf32>
    %817 = math.exp %816 : vector<1x32xf32>
    %cst_186 = arith.constant 1.000000e+00 : f32
    %818 = vector.broadcast %cst_186 : f32 to vector<1x32xf32>
    %819 = arith.addf %818, %817 : vector<1x32xf32>
    %820 = arith.divf %818, %819 : vector<1x32xf32>
    %821 = arith.mulf %812, %768 : vector<1x32xf32>
    %822 = arith.mulf %811, %814 : vector<1x32xf32>
    %823 = arith.addf %821, %822 : vector<1x32xf32>
    %824 = math.tanh %823 : vector<1x32xf32>
    %825 = arith.mulf %820, %824 : vector<1x32xf32>
    %826 = arith.index_cast %c13_i32 : i32 to index
    %c0_187 = arith.constant 0 : index
    %827 = vector.load %arg26[%826, %c0_187] : memref<16x32xf32, #tpu.memory_space<vmem>>, vector<1x32xf32>
    tpu.vector_store %arg26[%826, %c0_187], %800 {strides = array<i32>} : memref<16x32xf32, #tpu.memory_space<vmem>>, vector<1x32xf32>,
    %828 = arith.index_cast %775 : i32 to index
    %c0_188 = arith.constant 0 : index
    %829 = vector.load %arg27[%828, %c0_188] : memref<16x32xf32, #tpu.memory_space<vmem>>, vector<1x32xf32>
    tpu.vector_store %arg27[%828, %c0_188], %825 {strides = array<i32>} : memref<16x32xf32, #tpu.memory_space<vmem>>, vector<1x32xf32>,
    %c14_i32 = arith.constant 14 : i32
    %c15_i32_189 = arith.constant 15 : i32
    %830 = arith.subi %c15_i32_189, %c14_i32 : i32
    %831 = arith.index_cast %c14_i32 : i32 to index
    %c0_190 = arith.constant 0 : index
    %832 = vector.load %arg25[%831, %c0_190] : memref<16x256xf32, #tpu.memory_space<vmem>>, vector<1x128xf32>
    %cst_191 = arith.constant dense<0.000000e+00> : vector<1x128xf32>
    %833 = tpu.matmul %800, %57, %cst_191 {dimension_numbers = #tpu.dot_dimension_numbers<[1], [0], [0], [1], [0, 0, 1, 1], [], []>} : vector<1x32xf32>, vector<32x128xf32>, vector<1x128xf32> -> vector<1x128xf32>
    %834 = arith.addf %832, %833 : vector<1x128xf32>
    %835 = vector.extract_strided_slice %834 {offsets = [0, 0], sizes = [1, 64], strides = [1, 1]} : vector<1x128xf32> to vector<1x64xf32>
    %836 = arith.negf %835 : vector<1x64xf32>
    %837 = math.exp %836 : vector<1x64xf32>
    %cst_192 = arith.constant 1.000000e+00 : f32
    %838 = vector.broadcast %cst_192 : f32 to vector<1x64xf32>
    %839 = arith.addf %838, %837 : vector<1x64xf32>
    %840 = arith.divf %838, %839 : vector<1x64xf32>
    %841 = vector.extract_strided_slice %840 {offsets = [0, 0], sizes = [1, 32], strides = [1, 1]} : vector<1x64xf32> to vector<1x32xf32>
    %842 = vector.extract_strided_slice %840 {offsets = [0, 32], sizes = [1, 32], strides = [1, 1]} : vector<1x64xf32> to vector<1x32xf32>
    %843 = vector.extract_strided_slice %834 {offsets = [0, 64], sizes = [1, 32], strides = [1, 1]} : vector<1x128xf32> to vector<1x32xf32>
    %844 = math.tanh %843 : vector<1x32xf32>
    %845 = vector.extract_strided_slice %834 {offsets = [0, 96], sizes = [1, 32], strides = [1, 1]} : vector<1x128xf32> to vector<1x32xf32>
    %846 = arith.negf %845 : vector<1x32xf32>
    %847 = math.exp %846 : vector<1x32xf32>
    %cst_193 = arith.constant 1.000000e+00 : f32
    %848 = vector.broadcast %cst_193 : f32 to vector<1x32xf32>
    %849 = arith.addf %848, %847 : vector<1x32xf32>
    %850 = arith.divf %848, %849 : vector<1x32xf32>
    %851 = arith.mulf %842, %798 : vector<1x32xf32>
    %852 = arith.mulf %841, %844 : vector<1x32xf32>
    %853 = arith.addf %851, %852 : vector<1x32xf32>
    %854 = math.tanh %853 : vector<1x32xf32>
    %855 = arith.mulf %850, %854 : vector<1x32xf32>
    %856 = arith.index_cast %830 : i32 to index
    %c128_194 = arith.constant 128 : index
    %857 = vector.load %arg25[%856, %c128_194] : memref<16x256xf32, #tpu.memory_space<vmem>>, vector<1x128xf32>
    %cst_195 = arith.constant dense<0.000000e+00> : vector<1x128xf32>
    %858 = tpu.matmul %825, %58, %cst_195 {dimension_numbers = #tpu.dot_dimension_numbers<[1], [0], [0], [1], [0, 0, 1, 1], [], []>} : vector<1x32xf32>, vector<32x128xf32>, vector<1x128xf32> -> vector<1x128xf32>
    %859 = arith.addf %857, %858 : vector<1x128xf32>
    %860 = vector.extract_strided_slice %859 {offsets = [0, 0], sizes = [1, 64], strides = [1, 1]} : vector<1x128xf32> to vector<1x64xf32>
    %861 = arith.negf %860 : vector<1x64xf32>
    %862 = math.exp %861 : vector<1x64xf32>
    %cst_196 = arith.constant 1.000000e+00 : f32
    %863 = vector.broadcast %cst_196 : f32 to vector<1x64xf32>
    %864 = arith.addf %863, %862 : vector<1x64xf32>
    %865 = arith.divf %863, %864 : vector<1x64xf32>
    %866 = vector.extract_strided_slice %865 {offsets = [0, 0], sizes = [1, 32], strides = [1, 1]} : vector<1x64xf32> to vector<1x32xf32>
    %867 = vector.extract_strided_slice %865 {offsets = [0, 32], sizes = [1, 32], strides = [1, 1]} : vector<1x64xf32> to vector<1x32xf32>
    %868 = vector.extract_strided_slice %859 {offsets = [0, 64], sizes = [1, 32], strides = [1, 1]} : vector<1x128xf32> to vector<1x32xf32>
    %869 = math.tanh %868 : vector<1x32xf32>
    %870 = vector.extract_strided_slice %859 {offsets = [0, 96], sizes = [1, 32], strides = [1, 1]} : vector<1x128xf32> to vector<1x32xf32>
    %871 = arith.negf %870 : vector<1x32xf32>
    %872 = math.exp %871 : vector<1x32xf32>
    %cst_197 = arith.constant 1.000000e+00 : f32
    %873 = vector.broadcast %cst_197 : f32 to vector<1x32xf32>
    %874 = arith.addf %873, %872 : vector<1x32xf32>
    %875 = arith.divf %873, %874 : vector<1x32xf32>
    %876 = arith.mulf %867, %823 : vector<1x32xf32>
    %877 = arith.mulf %866, %869 : vector<1x32xf32>
    %878 = arith.addf %876, %877 : vector<1x32xf32>
    %879 = math.tanh %878 : vector<1x32xf32>
    %880 = arith.mulf %875, %879 : vector<1x32xf32>
    %881 = arith.index_cast %c14_i32 : i32 to index
    %c0_198 = arith.constant 0 : index
    %882 = vector.load %arg26[%881, %c0_198] : memref<16x32xf32, #tpu.memory_space<vmem>>, vector<1x32xf32>
    tpu.vector_store %arg26[%881, %c0_198], %855 {strides = array<i32>} : memref<16x32xf32, #tpu.memory_space<vmem>>, vector<1x32xf32>,
    %883 = arith.index_cast %830 : i32 to index
    %c0_199 = arith.constant 0 : index
    %884 = vector.load %arg27[%883, %c0_199] : memref<16x32xf32, #tpu.memory_space<vmem>>, vector<1x32xf32>
    tpu.vector_store %arg27[%883, %c0_199], %880 {strides = array<i32>} : memref<16x32xf32, #tpu.memory_space<vmem>>, vector<1x32xf32>,
    %c15_i32_200 = arith.constant 15 : i32
    %c15_i32_201 = arith.constant 15 : i32
    %885 = arith.subi %c15_i32_201, %c15_i32_200 : i32
    %886 = arith.index_cast %c15_i32_200 : i32 to index
    %c0_202 = arith.constant 0 : index
    %887 = vector.load %arg25[%886, %c0_202] : memref<16x256xf32, #tpu.memory_space<vmem>>, vector<1x128xf32>
    %cst_203 = arith.constant dense<0.000000e+00> : vector<1x128xf32>
    %888 = tpu.matmul %855, %57, %cst_203 {dimension_numbers = #tpu.dot_dimension_numbers<[1], [0], [0], [1], [0, 0, 1, 1], [], []>} : vector<1x32xf32>, vector<32x128xf32>, vector<1x128xf32> -> vector<1x128xf32>
    %889 = arith.addf %887, %888 : vector<1x128xf32>
    %890 = vector.extract_strided_slice %889 {offsets = [0, 0], sizes = [1, 64], strides = [1, 1]} : vector<1x128xf32> to vector<1x64xf32>
    %891 = arith.negf %890 : vector<1x64xf32>
    %892 = math.exp %891 : vector<1x64xf32>
    %cst_204 = arith.constant 1.000000e+00 : f32
    %893 = vector.broadcast %cst_204 : f32 to vector<1x64xf32>
    %894 = arith.addf %893, %892 : vector<1x64xf32>
    %895 = arith.divf %893, %894 : vector<1x64xf32>
    %896 = vector.extract_strided_slice %895 {offsets = [0, 0], sizes = [1, 32], strides = [1, 1]} : vector<1x64xf32> to vector<1x32xf32>
    %897 = vector.extract_strided_slice %895 {offsets = [0, 32], sizes = [1, 32], strides = [1, 1]} : vector<1x64xf32> to vector<1x32xf32>
    %898 = vector.extract_strided_slice %889 {offsets = [0, 64], sizes = [1, 32], strides = [1, 1]} : vector<1x128xf32> to vector<1x32xf32>
    %899 = math.tanh %898 : vector<1x32xf32>
    %900 = vector.extract_strided_slice %889 {offsets = [0, 96], sizes = [1, 32], strides = [1, 1]} : vector<1x128xf32> to vector<1x32xf32>
    %901 = arith.negf %900 : vector<1x32xf32>
    %902 = math.exp %901 : vector<1x32xf32>
    %cst_205 = arith.constant 1.000000e+00 : f32
    %903 = vector.broadcast %cst_205 : f32 to vector<1x32xf32>
    %904 = arith.addf %903, %902 : vector<1x32xf32>
    %905 = arith.divf %903, %904 : vector<1x32xf32>
    %906 = arith.mulf %897, %853 : vector<1x32xf32>
    %907 = arith.mulf %896, %899 : vector<1x32xf32>
    %908 = arith.addf %906, %907 : vector<1x32xf32>
    %909 = math.tanh %908 : vector<1x32xf32>
    %910 = arith.mulf %905, %909 : vector<1x32xf32>
    %911 = arith.index_cast %885 : i32 to index
    %c128_206 = arith.constant 128 : index
    %912 = vector.load %arg25[%911, %c128_206] : memref<16x256xf32, #tpu.memory_space<vmem>>, vector<1x128xf32>
    %cst_207 = arith.constant dense<0.000000e+00> : vector<1x128xf32>
    %913 = tpu.matmul %880, %58, %cst_207 {dimension_numbers = #tpu.dot_dimension_numbers<[1], [0], [0], [1], [0, 0, 1, 1], [], []>} : vector<1x32xf32>, vector<32x128xf32>, vector<1x128xf32> -> vector<1x128xf32>
    %914 = arith.addf %912, %913 : vector<1x128xf32>
    %915 = vector.extract_strided_slice %914 {offsets = [0, 0], sizes = [1, 64], strides = [1, 1]} : vector<1x128xf32> to vector<1x64xf32>
    %916 = arith.negf %915 : vector<1x64xf32>
    %917 = math.exp %916 : vector<1x64xf32>
    %cst_208 = arith.constant 1.000000e+00 : f32
    %918 = vector.broadcast %cst_208 : f32 to vector<1x64xf32>
    %919 = arith.addf %918, %917 : vector<1x64xf32>
    %920 = arith.divf %918, %919 : vector<1x64xf32>
    %921 = vector.extract_strided_slice %920 {offsets = [0, 0], sizes = [1, 32], strides = [1, 1]} : vector<1x64xf32> to vector<1x32xf32>
    %922 = vector.extract_strided_slice %920 {offsets = [0, 32], sizes = [1, 32], strides = [1, 1]} : vector<1x64xf32> to vector<1x32xf32>
    %923 = vector.extract_strided_slice %914 {offsets = [0, 64], sizes = [1, 32], strides = [1, 1]} : vector<1x128xf32> to vector<1x32xf32>
    %924 = math.tanh %923 : vector<1x32xf32>
    %925 = vector.extract_strided_slice %914 {offsets = [0, 96], sizes = [1, 32], strides = [1, 1]} : vector<1x128xf32> to vector<1x32xf32>
    %926 = arith.negf %925 : vector<1x32xf32>
    %927 = math.exp %926 : vector<1x32xf32>
    %cst_209 = arith.constant 1.000000e+00 : f32
    %928 = vector.broadcast %cst_209 : f32 to vector<1x32xf32>
    %929 = arith.addf %928, %927 : vector<1x32xf32>
    %930 = arith.divf %928, %929 : vector<1x32xf32>
    %931 = arith.mulf %922, %878 : vector<1x32xf32>
    %932 = arith.mulf %921, %924 : vector<1x32xf32>
    %933 = arith.addf %931, %932 : vector<1x32xf32>
    %934 = math.tanh %933 : vector<1x32xf32>
    %935 = arith.mulf %930, %934 : vector<1x32xf32>
    %936 = arith.index_cast %c15_i32_200 : i32 to index
    %c0_210 = arith.constant 0 : index
    %937 = vector.load %arg26[%936, %c0_210] : memref<16x32xf32, #tpu.memory_space<vmem>>, vector<1x32xf32>
    tpu.vector_store %arg26[%936, %c0_210], %910 {strides = array<i32>} : memref<16x32xf32, #tpu.memory_space<vmem>>, vector<1x32xf32>,
    %938 = arith.index_cast %885 : i32 to index
    %c0_211 = arith.constant 0 : index
    %939 = vector.load %arg27[%938, %c0_211] : memref<16x32xf32, #tpu.memory_space<vmem>>, vector<1x32xf32>
    tpu.vector_store %arg27[%938, %c0_211], %935 {strides = array<i32>} : memref<16x32xf32, #tpu.memory_space<vmem>>, vector<1x32xf32>,
    %c16_i32 = arith.constant 16 : i32
    %c0_212 = arith.constant 0 : index
    %c0_213 = arith.constant 0 : index
    %940 = vector.load %arg26[%c0_212, %c0_213] : memref<16x32xf32, #tpu.memory_space<vmem>>, vector<16x32xf32>
    %c0_214 = arith.constant 0 : index
    %c0_215 = arith.constant 0 : index
    %941 = vector.load %arg27[%c0_214, %c0_215] : memref<16x32xf32, #tpu.memory_space<vmem>>, vector<16x32xf32>
    %942 = tpu.concatenate %940, %941 in 1 : vector<16x32xf32>, vector<16x32xf32> -> vector<16x64xf32>
    %c0_216 = arith.constant 0 : index
    %c0_217 = arith.constant 0 : index
    %943 = vector.load %arg14[%c0_216, %c0_217] : memref<64x256xf32, #tpu.memory_space<vmem>>, vector<64x256xf32>
    %cst_218 = arith.constant dense<0.000000e+00> : vector<16x256xf32>
    %944 = tpu.matmul %942, %943, %cst_218 {dimension_numbers = #tpu.dot_dimension_numbers<[1], [0], [0], [1], [0, 0, 1, 1], [], []>} : vector<16x64xf32>, vector<64x256xf32>, vector<16x256xf32> -> vector<16x256xf32>
    %c0_219 = arith.constant 0 : index
    %c0_220 = arith.constant 0 : index
    %945 = vector.load %arg15[%c0_219, %c0_220] : memref<1x256xf32, #tpu.memory_space<vmem>>, vector<1x256xf32>
    %946 = vector.broadcast %945 : vector<1x256xf32> to vector<16x256xf32>
    %947 = arith.addf %944, %946 : vector<16x256xf32>
    %c0_221 = arith.constant 0 : index
    %c0_222 = arith.constant 0 : index
    %948 = vector.load %arg25[%c0_221, %c0_222] : memref<16x256xf32, #tpu.memory_space<vmem>>, vector<16x256xf32>
    tpu.vector_store %arg25[%c0_221, %c0_222], %947 {strides = array<i32>} : memref<16x256xf32, #tpu.memory_space<vmem>>, vector<16x256xf32>,
    %c0_223 = arith.constant 0 : index
    %c0_224 = arith.constant 0 : index
    %949 = vector.load %arg16[%c0_223, %c0_224] : memref<32x128xf32, #tpu.memory_space<vmem>>, vector<32x128xf32>
    %c0_225 = arith.constant 0 : index
    %c0_226 = arith.constant 0 : index
    %950 = vector.load %arg17[%c0_225, %c0_226] : memref<32x128xf32, #tpu.memory_space<vmem>>, vector<32x128xf32>
    %cst_227 = arith.constant 0.000000e+00 : f32
    %951 = vector.broadcast %cst_227 : f32 to vector<1x32xf32>
    %c0_i32_228 = arith.constant 0 : i32
    %c15_i32_229 = arith.constant 15 : i32
    %952 = arith.subi %c15_i32_229, %c0_i32_228 : i32
    %953 = arith.index_cast %c0_i32_228 : i32 to index
    %c0_230 = arith.constant 0 : index
    %954 = vector.load %arg25[%953, %c0_230] : memref<16x256xf32, #tpu.memory_space<vmem>>, vector<1x128xf32>
    %cst_231 = arith.constant dense<0.000000e+00> : vector<1x128xf32>
    %955 = tpu.matmul %951, %949, %cst_231 {dimension_numbers = #tpu.dot_dimension_numbers<[1], [0], [0], [1], [0, 0, 1, 1], [], []>} : vector<1x32xf32>, vector<32x128xf32>, vector<1x128xf32> -> vector<1x128xf32>
    %956 = arith.addf %954, %955 : vector<1x128xf32>
    %957 = vector.extract_strided_slice %956 {offsets = [0, 0], sizes = [1, 64], strides = [1, 1]} : vector<1x128xf32> to vector<1x64xf32>
    %958 = arith.negf %957 : vector<1x64xf32>
    %959 = math.exp %958 : vector<1x64xf32>
    %cst_232 = arith.constant 1.000000e+00 : f32
    %960 = vector.broadcast %cst_232 : f32 to vector<1x64xf32>
    %961 = arith.addf %960, %959 : vector<1x64xf32>
    %962 = arith.divf %960, %961 : vector<1x64xf32>
    %963 = vector.extract_strided_slice %962 {offsets = [0, 0], sizes = [1, 32], strides = [1, 1]} : vector<1x64xf32> to vector<1x32xf32>
    %964 = vector.extract_strided_slice %962 {offsets = [0, 32], sizes = [1, 32], strides = [1, 1]} : vector<1x64xf32> to vector<1x32xf32>
    %965 = vector.extract_strided_slice %956 {offsets = [0, 64], sizes = [1, 32], strides = [1, 1]} : vector<1x128xf32> to vector<1x32xf32>
    %966 = math.tanh %965 : vector<1x32xf32>
    %967 = vector.extract_strided_slice %956 {offsets = [0, 96], sizes = [1, 32], strides = [1, 1]} : vector<1x128xf32> to vector<1x32xf32>
    %968 = arith.negf %967 : vector<1x32xf32>
    %969 = math.exp %968 : vector<1x32xf32>
    %cst_233 = arith.constant 1.000000e+00 : f32
    %970 = vector.broadcast %cst_233 : f32 to vector<1x32xf32>
    %971 = arith.addf %970, %969 : vector<1x32xf32>
    %972 = arith.divf %970, %971 : vector<1x32xf32>
    %973 = arith.mulf %964, %951 : vector<1x32xf32>
    %974 = arith.mulf %963, %966 : vector<1x32xf32>
    %975 = arith.addf %973, %974 : vector<1x32xf32>
    %976 = math.tanh %975 : vector<1x32xf32>
    %977 = arith.mulf %972, %976 : vector<1x32xf32>
    %978 = arith.index_cast %952 : i32 to index
    %c128_234 = arith.constant 128 : index
    %979 = vector.load %arg25[%978, %c128_234] : memref<16x256xf32, #tpu.memory_space<vmem>>, vector<1x128xf32>
    %cst_235 = arith.constant dense<0.000000e+00> : vector<1x128xf32>
    %980 = tpu.matmul %951, %950, %cst_235 {dimension_numbers = #tpu.dot_dimension_numbers<[1], [0], [0], [1], [0, 0, 1, 1], [], []>} : vector<1x32xf32>, vector<32x128xf32>, vector<1x128xf32> -> vector<1x128xf32>
    %981 = arith.addf %979, %980 : vector<1x128xf32>
    %982 = vector.extract_strided_slice %981 {offsets = [0, 0], sizes = [1, 64], strides = [1, 1]} : vector<1x128xf32> to vector<1x64xf32>
    %983 = arith.negf %982 : vector<1x64xf32>
    %984 = math.exp %983 : vector<1x64xf32>
    %cst_236 = arith.constant 1.000000e+00 : f32
    %985 = vector.broadcast %cst_236 : f32 to vector<1x64xf32>
    %986 = arith.addf %985, %984 : vector<1x64xf32>
    %987 = arith.divf %985, %986 : vector<1x64xf32>
    %988 = vector.extract_strided_slice %987 {offsets = [0, 0], sizes = [1, 32], strides = [1, 1]} : vector<1x64xf32> to vector<1x32xf32>
    %989 = vector.extract_strided_slice %987 {offsets = [0, 32], sizes = [1, 32], strides = [1, 1]} : vector<1x64xf32> to vector<1x32xf32>
    %990 = vector.extract_strided_slice %981 {offsets = [0, 64], sizes = [1, 32], strides = [1, 1]} : vector<1x128xf32> to vector<1x32xf32>
    %991 = math.tanh %990 : vector<1x32xf32>
    %992 = vector.extract_strided_slice %981 {offsets = [0, 96], sizes = [1, 32], strides = [1, 1]} : vector<1x128xf32> to vector<1x32xf32>
    %993 = arith.negf %992 : vector<1x32xf32>
    %994 = math.exp %993 : vector<1x32xf32>
    %cst_237 = arith.constant 1.000000e+00 : f32
    %995 = vector.broadcast %cst_237 : f32 to vector<1x32xf32>
    %996 = arith.addf %995, %994 : vector<1x32xf32>
    %997 = arith.divf %995, %996 : vector<1x32xf32>
    %998 = arith.mulf %989, %951 : vector<1x32xf32>
    %999 = arith.mulf %988, %991 : vector<1x32xf32>
    %1000 = arith.addf %998, %999 : vector<1x32xf32>
    %1001 = math.tanh %1000 : vector<1x32xf32>
    %1002 = arith.mulf %997, %1001 : vector<1x32xf32>
    %1003 = arith.index_cast %c0_i32_228 : i32 to index
    %c0_238 = arith.constant 0 : index
    %1004 = vector.load %arg26[%1003, %c0_238] : memref<16x32xf32, #tpu.memory_space<vmem>>, vector<1x32xf32>
    tpu.vector_store %arg26[%1003, %c0_238], %977 {strides = array<i32>} : memref<16x32xf32, #tpu.memory_space<vmem>>, vector<1x32xf32>,
    %1005 = arith.index_cast %952 : i32 to index
    %c0_239 = arith.constant 0 : index
    %1006 = vector.load %arg27[%1005, %c0_239] : memref<16x32xf32, #tpu.memory_space<vmem>>, vector<1x32xf32>
    tpu.vector_store %arg27[%1005, %c0_239], %1002 {strides = array<i32>} : memref<16x32xf32, #tpu.memory_space<vmem>>, vector<1x32xf32>,
    %c1_i32_240 = arith.constant 1 : i32
    %c15_i32_241 = arith.constant 15 : i32
    %1007 = arith.subi %c15_i32_241, %c1_i32_240 : i32
    %1008 = arith.index_cast %c1_i32_240 : i32 to index
    %c0_242 = arith.constant 0 : index
    %1009 = vector.load %arg25[%1008, %c0_242] : memref<16x256xf32, #tpu.memory_space<vmem>>, vector<1x128xf32>
    %cst_243 = arith.constant dense<0.000000e+00> : vector<1x128xf32>
    %1010 = tpu.matmul %977, %949, %cst_243 {dimension_numbers = #tpu.dot_dimension_numbers<[1], [0], [0], [1], [0, 0, 1, 1], [], []>} : vector<1x32xf32>, vector<32x128xf32>, vector<1x128xf32> -> vector<1x128xf32>
    %1011 = arith.addf %1009, %1010 : vector<1x128xf32>
    %1012 = vector.extract_strided_slice %1011 {offsets = [0, 0], sizes = [1, 64], strides = [1, 1]} : vector<1x128xf32> to vector<1x64xf32>
    %1013 = arith.negf %1012 : vector<1x64xf32>
    %1014 = math.exp %1013 : vector<1x64xf32>
    %cst_244 = arith.constant 1.000000e+00 : f32
    %1015 = vector.broadcast %cst_244 : f32 to vector<1x64xf32>
    %1016 = arith.addf %1015, %1014 : vector<1x64xf32>
    %1017 = arith.divf %1015, %1016 : vector<1x64xf32>
    %1018 = vector.extract_strided_slice %1017 {offsets = [0, 0], sizes = [1, 32], strides = [1, 1]} : vector<1x64xf32> to vector<1x32xf32>
    %1019 = vector.extract_strided_slice %1017 {offsets = [0, 32], sizes = [1, 32], strides = [1, 1]} : vector<1x64xf32> to vector<1x32xf32>
    %1020 = vector.extract_strided_slice %1011 {offsets = [0, 64], sizes = [1, 32], strides = [1, 1]} : vector<1x128xf32> to vector<1x32xf32>
    %1021 = math.tanh %1020 : vector<1x32xf32>
    %1022 = vector.extract_strided_slice %1011 {offsets = [0, 96], sizes = [1, 32], strides = [1, 1]} : vector<1x128xf32> to vector<1x32xf32>
    %1023 = arith.negf %1022 : vector<1x32xf32>
    %1024 = math.exp %1023 : vector<1x32xf32>
    %cst_245 = arith.constant 1.000000e+00 : f32
    %1025 = vector.broadcast %cst_245 : f32 to vector<1x32xf32>
    %1026 = arith.addf %1025, %1024 : vector<1x32xf32>
    %1027 = arith.divf %1025, %1026 : vector<1x32xf32>
    %1028 = arith.mulf %1019, %975 : vector<1x32xf32>
    %1029 = arith.mulf %1018, %1021 : vector<1x32xf32>
    %1030 = arith.addf %1028, %1029 : vector<1x32xf32>
    %1031 = math.tanh %1030 : vector<1x32xf32>
    %1032 = arith.mulf %1027, %1031 : vector<1x32xf32>
    %1033 = arith.index_cast %1007 : i32 to index
    %c128_246 = arith.constant 128 : index
    %1034 = vector.load %arg25[%1033, %c128_246] : memref<16x256xf32, #tpu.memory_space<vmem>>, vector<1x128xf32>
    %cst_247 = arith.constant dense<0.000000e+00> : vector<1x128xf32>
    %1035 = tpu.matmul %1002, %950, %cst_247 {dimension_numbers = #tpu.dot_dimension_numbers<[1], [0], [0], [1], [0, 0, 1, 1], [], []>} : vector<1x32xf32>, vector<32x128xf32>, vector<1x128xf32> -> vector<1x128xf32>
    %1036 = arith.addf %1034, %1035 : vector<1x128xf32>
    %1037 = vector.extract_strided_slice %1036 {offsets = [0, 0], sizes = [1, 64], strides = [1, 1]} : vector<1x128xf32> to vector<1x64xf32>
    %1038 = arith.negf %1037 : vector<1x64xf32>
    %1039 = math.exp %1038 : vector<1x64xf32>
    %cst_248 = arith.constant 1.000000e+00 : f32
    %1040 = vector.broadcast %cst_248 : f32 to vector<1x64xf32>
    %1041 = arith.addf %1040, %1039 : vector<1x64xf32>
    %1042 = arith.divf %1040, %1041 : vector<1x64xf32>
    %1043 = vector.extract_strided_slice %1042 {offsets = [0, 0], sizes = [1, 32], strides = [1, 1]} : vector<1x64xf32> to vector<1x32xf32>
    %1044 = vector.extract_strided_slice %1042 {offsets = [0, 32], sizes = [1, 32], strides = [1, 1]} : vector<1x64xf32> to vector<1x32xf32>
    %1045 = vector.extract_strided_slice %1036 {offsets = [0, 64], sizes = [1, 32], strides = [1, 1]} : vector<1x128xf32> to vector<1x32xf32>
    %1046 = math.tanh %1045 : vector<1x32xf32>
    %1047 = vector.extract_strided_slice %1036 {offsets = [0, 96], sizes = [1, 32], strides = [1, 1]} : vector<1x128xf32> to vector<1x32xf32>
    %1048 = arith.negf %1047 : vector<1x32xf32>
    %1049 = math.exp %1048 : vector<1x32xf32>
    %cst_249 = arith.constant 1.000000e+00 : f32
    %1050 = vector.broadcast %cst_249 : f32 to vector<1x32xf32>
    %1051 = arith.addf %1050, %1049 : vector<1x32xf32>
    %1052 = arith.divf %1050, %1051 : vector<1x32xf32>
    %1053 = arith.mulf %1044, %1000 : vector<1x32xf32>
    %1054 = arith.mulf %1043, %1046 : vector<1x32xf32>
    %1055 = arith.addf %1053, %1054 : vector<1x32xf32>
    %1056 = math.tanh %1055 : vector<1x32xf32>
    %1057 = arith.mulf %1052, %1056 : vector<1x32xf32>
    %1058 = arith.index_cast %c1_i32_240 : i32 to index
    %c0_250 = arith.constant 0 : index
    %1059 = vector.load %arg26[%1058, %c0_250] : memref<16x32xf32, #tpu.memory_space<vmem>>, vector<1x32xf32>
    tpu.vector_store %arg26[%1058, %c0_250], %1032 {strides = array<i32>} : memref<16x32xf32, #tpu.memory_space<vmem>>, vector<1x32xf32>,
    %1060 = arith.index_cast %1007 : i32 to index
    %c0_251 = arith.constant 0 : index
    %1061 = vector.load %arg27[%1060, %c0_251] : memref<16x32xf32, #tpu.memory_space<vmem>>, vector<1x32xf32>
    tpu.vector_store %arg27[%1060, %c0_251], %1057 {strides = array<i32>} : memref<16x32xf32, #tpu.memory_space<vmem>>, vector<1x32xf32>,
    %c2_i32_252 = arith.constant 2 : i32
    %c15_i32_253 = arith.constant 15 : i32
    %1062 = arith.subi %c15_i32_253, %c2_i32_252 : i32
    %1063 = arith.index_cast %c2_i32_252 : i32 to index
    %c0_254 = arith.constant 0 : index
    %1064 = vector.load %arg25[%1063, %c0_254] : memref<16x256xf32, #tpu.memory_space<vmem>>, vector<1x128xf32>
    %cst_255 = arith.constant dense<0.000000e+00> : vector<1x128xf32>
    %1065 = tpu.matmul %1032, %949, %cst_255 {dimension_numbers = #tpu.dot_dimension_numbers<[1], [0], [0], [1], [0, 0, 1, 1], [], []>} : vector<1x32xf32>, vector<32x128xf32>, vector<1x128xf32> -> vector<1x128xf32>
    %1066 = arith.addf %1064, %1065 : vector<1x128xf32>
    %1067 = vector.extract_strided_slice %1066 {offsets = [0, 0], sizes = [1, 64], strides = [1, 1]} : vector<1x128xf32> to vector<1x64xf32>
    %1068 = arith.negf %1067 : vector<1x64xf32>
    %1069 = math.exp %1068 : vector<1x64xf32>
    %cst_256 = arith.constant 1.000000e+00 : f32
    %1070 = vector.broadcast %cst_256 : f32 to vector<1x64xf32>
    %1071 = arith.addf %1070, %1069 : vector<1x64xf32>
    %1072 = arith.divf %1070, %1071 : vector<1x64xf32>
    %1073 = vector.extract_strided_slice %1072 {offsets = [0, 0], sizes = [1, 32], strides = [1, 1]} : vector<1x64xf32> to vector<1x32xf32>
    %1074 = vector.extract_strided_slice %1072 {offsets = [0, 32], sizes = [1, 32], strides = [1, 1]} : vector<1x64xf32> to vector<1x32xf32>
    %1075 = vector.extract_strided_slice %1066 {offsets = [0, 64], sizes = [1, 32], strides = [1, 1]} : vector<1x128xf32> to vector<1x32xf32>
    %1076 = math.tanh %1075 : vector<1x32xf32>
    %1077 = vector.extract_strided_slice %1066 {offsets = [0, 96], sizes = [1, 32], strides = [1, 1]} : vector<1x128xf32> to vector<1x32xf32>
    %1078 = arith.negf %1077 : vector<1x32xf32>
    %1079 = math.exp %1078 : vector<1x32xf32>
    %cst_257 = arith.constant 1.000000e+00 : f32
    %1080 = vector.broadcast %cst_257 : f32 to vector<1x32xf32>
    %1081 = arith.addf %1080, %1079 : vector<1x32xf32>
    %1082 = arith.divf %1080, %1081 : vector<1x32xf32>
    %1083 = arith.mulf %1074, %1030 : vector<1x32xf32>
    %1084 = arith.mulf %1073, %1076 : vector<1x32xf32>
    %1085 = arith.addf %1083, %1084 : vector<1x32xf32>
    %1086 = math.tanh %1085 : vector<1x32xf32>
    %1087 = arith.mulf %1082, %1086 : vector<1x32xf32>
    %1088 = arith.index_cast %1062 : i32 to index
    %c128_258 = arith.constant 128 : index
    %1089 = vector.load %arg25[%1088, %c128_258] : memref<16x256xf32, #tpu.memory_space<vmem>>, vector<1x128xf32>
    %cst_259 = arith.constant dense<0.000000e+00> : vector<1x128xf32>
    %1090 = tpu.matmul %1057, %950, %cst_259 {dimension_numbers = #tpu.dot_dimension_numbers<[1], [0], [0], [1], [0, 0, 1, 1], [], []>} : vector<1x32xf32>, vector<32x128xf32>, vector<1x128xf32> -> vector<1x128xf32>
    %1091 = arith.addf %1089, %1090 : vector<1x128xf32>
    %1092 = vector.extract_strided_slice %1091 {offsets = [0, 0], sizes = [1, 64], strides = [1, 1]} : vector<1x128xf32> to vector<1x64xf32>
    %1093 = arith.negf %1092 : vector<1x64xf32>
    %1094 = math.exp %1093 : vector<1x64xf32>
    %cst_260 = arith.constant 1.000000e+00 : f32
    %1095 = vector.broadcast %cst_260 : f32 to vector<1x64xf32>
    %1096 = arith.addf %1095, %1094 : vector<1x64xf32>
    %1097 = arith.divf %1095, %1096 : vector<1x64xf32>
    %1098 = vector.extract_strided_slice %1097 {offsets = [0, 0], sizes = [1, 32], strides = [1, 1]} : vector<1x64xf32> to vector<1x32xf32>
    %1099 = vector.extract_strided_slice %1097 {offsets = [0, 32], sizes = [1, 32], strides = [1, 1]} : vector<1x64xf32> to vector<1x32xf32>
    %1100 = vector.extract_strided_slice %1091 {offsets = [0, 64], sizes = [1, 32], strides = [1, 1]} : vector<1x128xf32> to vector<1x32xf32>
    %1101 = math.tanh %1100 : vector<1x32xf32>
    %1102 = vector.extract_strided_slice %1091 {offsets = [0, 96], sizes = [1, 32], strides = [1, 1]} : vector<1x128xf32> to vector<1x32xf32>
    %1103 = arith.negf %1102 : vector<1x32xf32>
    %1104 = math.exp %1103 : vector<1x32xf32>
    %cst_261 = arith.constant 1.000000e+00 : f32
    %1105 = vector.broadcast %cst_261 : f32 to vector<1x32xf32>
    %1106 = arith.addf %1105, %1104 : vector<1x32xf32>
    %1107 = arith.divf %1105, %1106 : vector<1x32xf32>
    %1108 = arith.mulf %1099, %1055 : vector<1x32xf32>
    %1109 = arith.mulf %1098, %1101 : vector<1x32xf32>
    %1110 = arith.addf %1108, %1109 : vector<1x32xf32>
    %1111 = math.tanh %1110 : vector<1x32xf32>
    %1112 = arith.mulf %1107, %1111 : vector<1x32xf32>
    %1113 = arith.index_cast %c2_i32_252 : i32 to index
    %c0_262 = arith.constant 0 : index
    %1114 = vector.load %arg26[%1113, %c0_262] : memref<16x32xf32, #tpu.memory_space<vmem>>, vector<1x32xf32>
    tpu.vector_store %arg26[%1113, %c0_262], %1087 {strides = array<i32>} : memref<16x32xf32, #tpu.memory_space<vmem>>, vector<1x32xf32>,
    %1115 = arith.index_cast %1062 : i32 to index
    %c0_263 = arith.constant 0 : index
    %1116 = vector.load %arg27[%1115, %c0_263] : memref<16x32xf32, #tpu.memory_space<vmem>>, vector<1x32xf32>
    tpu.vector_store %arg27[%1115, %c0_263], %1112 {strides = array<i32>} : memref<16x32xf32, #tpu.memory_space<vmem>>, vector<1x32xf32>,
    %c3_i32_264 = arith.constant 3 : i32
    %c15_i32_265 = arith.constant 15 : i32
    %1117 = arith.subi %c15_i32_265, %c3_i32_264 : i32
    %1118 = arith.index_cast %c3_i32_264 : i32 to index
    %c0_266 = arith.constant 0 : index
    %1119 = vector.load %arg25[%1118, %c0_266] : memref<16x256xf32, #tpu.memory_space<vmem>>, vector<1x128xf32>
    %cst_267 = arith.constant dense<0.000000e+00> : vector<1x128xf32>
    %1120 = tpu.matmul %1087, %949, %cst_267 {dimension_numbers = #tpu.dot_dimension_numbers<[1], [0], [0], [1], [0, 0, 1, 1], [], []>} : vector<1x32xf32>, vector<32x128xf32>, vector<1x128xf32> -> vector<1x128xf32>
    %1121 = arith.addf %1119, %1120 : vector<1x128xf32>
    %1122 = vector.extract_strided_slice %1121 {offsets = [0, 0], sizes = [1, 64], strides = [1, 1]} : vector<1x128xf32> to vector<1x64xf32>
    %1123 = arith.negf %1122 : vector<1x64xf32>
    %1124 = math.exp %1123 : vector<1x64xf32>
    %cst_268 = arith.constant 1.000000e+00 : f32
    %1125 = vector.broadcast %cst_268 : f32 to vector<1x64xf32>
    %1126 = arith.addf %1125, %1124 : vector<1x64xf32>
    %1127 = arith.divf %1125, %1126 : vector<1x64xf32>
    %1128 = vector.extract_strided_slice %1127 {offsets = [0, 0], sizes = [1, 32], strides = [1, 1]} : vector<1x64xf32> to vector<1x32xf32>
    %1129 = vector.extract_strided_slice %1127 {offsets = [0, 32], sizes = [1, 32], strides = [1, 1]} : vector<1x64xf32> to vector<1x32xf32>
    %1130 = vector.extract_strided_slice %1121 {offsets = [0, 64], sizes = [1, 32], strides = [1, 1]} : vector<1x128xf32> to vector<1x32xf32>
    %1131 = math.tanh %1130 : vector<1x32xf32>
    %1132 = vector.extract_strided_slice %1121 {offsets = [0, 96], sizes = [1, 32], strides = [1, 1]} : vector<1x128xf32> to vector<1x32xf32>
    %1133 = arith.negf %1132 : vector<1x32xf32>
    %1134 = math.exp %1133 : vector<1x32xf32>
    %cst_269 = arith.constant 1.000000e+00 : f32
    %1135 = vector.broadcast %cst_269 : f32 to vector<1x32xf32>
    %1136 = arith.addf %1135, %1134 : vector<1x32xf32>
    %1137 = arith.divf %1135, %1136 : vector<1x32xf32>
    %1138 = arith.mulf %1129, %1085 : vector<1x32xf32>
    %1139 = arith.mulf %1128, %1131 : vector<1x32xf32>
    %1140 = arith.addf %1138, %1139 : vector<1x32xf32>
    %1141 = math.tanh %1140 : vector<1x32xf32>
    %1142 = arith.mulf %1137, %1141 : vector<1x32xf32>
    %1143 = arith.index_cast %1117 : i32 to index
    %c128_270 = arith.constant 128 : index
    %1144 = vector.load %arg25[%1143, %c128_270] : memref<16x256xf32, #tpu.memory_space<vmem>>, vector<1x128xf32>
    %cst_271 = arith.constant dense<0.000000e+00> : vector<1x128xf32>
    %1145 = tpu.matmul %1112, %950, %cst_271 {dimension_numbers = #tpu.dot_dimension_numbers<[1], [0], [0], [1], [0, 0, 1, 1], [], []>} : vector<1x32xf32>, vector<32x128xf32>, vector<1x128xf32> -> vector<1x128xf32>
    %1146 = arith.addf %1144, %1145 : vector<1x128xf32>
    %1147 = vector.extract_strided_slice %1146 {offsets = [0, 0], sizes = [1, 64], strides = [1, 1]} : vector<1x128xf32> to vector<1x64xf32>
    %1148 = arith.negf %1147 : vector<1x64xf32>
    %1149 = math.exp %1148 : vector<1x64xf32>
    %cst_272 = arith.constant 1.000000e+00 : f32
    %1150 = vector.broadcast %cst_272 : f32 to vector<1x64xf32>
    %1151 = arith.addf %1150, %1149 : vector<1x64xf32>
    %1152 = arith.divf %1150, %1151 : vector<1x64xf32>
    %1153 = vector.extract_strided_slice %1152 {offsets = [0, 0], sizes = [1, 32], strides = [1, 1]} : vector<1x64xf32> to vector<1x32xf32>
    %1154 = vector.extract_strided_slice %1152 {offsets = [0, 32], sizes = [1, 32], strides = [1, 1]} : vector<1x64xf32> to vector<1x32xf32>
    %1155 = vector.extract_strided_slice %1146 {offsets = [0, 64], sizes = [1, 32], strides = [1, 1]} : vector<1x128xf32> to vector<1x32xf32>
    %1156 = math.tanh %1155 : vector<1x32xf32>
    %1157 = vector.extract_strided_slice %1146 {offsets = [0, 96], sizes = [1, 32], strides = [1, 1]} : vector<1x128xf32> to vector<1x32xf32>
    %1158 = arith.negf %1157 : vector<1x32xf32>
    %1159 = math.exp %1158 : vector<1x32xf32>
    %cst_273 = arith.constant 1.000000e+00 : f32
    %1160 = vector.broadcast %cst_273 : f32 to vector<1x32xf32>
    %1161 = arith.addf %1160, %1159 : vector<1x32xf32>
    %1162 = arith.divf %1160, %1161 : vector<1x32xf32>
    %1163 = arith.mulf %1154, %1110 : vector<1x32xf32>
    %1164 = arith.mulf %1153, %1156 : vector<1x32xf32>
    %1165 = arith.addf %1163, %1164 : vector<1x32xf32>
    %1166 = math.tanh %1165 : vector<1x32xf32>
    %1167 = arith.mulf %1162, %1166 : vector<1x32xf32>
    %1168 = arith.index_cast %c3_i32_264 : i32 to index
    %c0_274 = arith.constant 0 : index
    %1169 = vector.load %arg26[%1168, %c0_274] : memref<16x32xf32, #tpu.memory_space<vmem>>, vector<1x32xf32>
    tpu.vector_store %arg26[%1168, %c0_274], %1142 {strides = array<i32>} : memref<16x32xf32, #tpu.memory_space<vmem>>, vector<1x32xf32>,
    %1170 = arith.index_cast %1117 : i32 to index
    %c0_275 = arith.constant 0 : index
    %1171 = vector.load %arg27[%1170, %c0_275] : memref<16x32xf32, #tpu.memory_space<vmem>>, vector<1x32xf32>
    tpu.vector_store %arg27[%1170, %c0_275], %1167 {strides = array<i32>} : memref<16x32xf32, #tpu.memory_space<vmem>>, vector<1x32xf32>,
    %c4_i32_276 = arith.constant 4 : i32
    %c15_i32_277 = arith.constant 15 : i32
    %1172 = arith.subi %c15_i32_277, %c4_i32_276 : i32
    %1173 = arith.index_cast %c4_i32_276 : i32 to index
    %c0_278 = arith.constant 0 : index
    %1174 = vector.load %arg25[%1173, %c0_278] : memref<16x256xf32, #tpu.memory_space<vmem>>, vector<1x128xf32>
    %cst_279 = arith.constant dense<0.000000e+00> : vector<1x128xf32>
    %1175 = tpu.matmul %1142, %949, %cst_279 {dimension_numbers = #tpu.dot_dimension_numbers<[1], [0], [0], [1], [0, 0, 1, 1], [], []>} : vector<1x32xf32>, vector<32x128xf32>, vector<1x128xf32> -> vector<1x128xf32>
    %1176 = arith.addf %1174, %1175 : vector<1x128xf32>
    %1177 = vector.extract_strided_slice %1176 {offsets = [0, 0], sizes = [1, 64], strides = [1, 1]} : vector<1x128xf32> to vector<1x64xf32>
    %1178 = arith.negf %1177 : vector<1x64xf32>
    %1179 = math.exp %1178 : vector<1x64xf32>
    %cst_280 = arith.constant 1.000000e+00 : f32
    %1180 = vector.broadcast %cst_280 : f32 to vector<1x64xf32>
    %1181 = arith.addf %1180, %1179 : vector<1x64xf32>
    %1182 = arith.divf %1180, %1181 : vector<1x64xf32>
    %1183 = vector.extract_strided_slice %1182 {offsets = [0, 0], sizes = [1, 32], strides = [1, 1]} : vector<1x64xf32> to vector<1x32xf32>
    %1184 = vector.extract_strided_slice %1182 {offsets = [0, 32], sizes = [1, 32], strides = [1, 1]} : vector<1x64xf32> to vector<1x32xf32>
    %1185 = vector.extract_strided_slice %1176 {offsets = [0, 64], sizes = [1, 32], strides = [1, 1]} : vector<1x128xf32> to vector<1x32xf32>
    %1186 = math.tanh %1185 : vector<1x32xf32>
    %1187 = vector.extract_strided_slice %1176 {offsets = [0, 96], sizes = [1, 32], strides = [1, 1]} : vector<1x128xf32> to vector<1x32xf32>
    %1188 = arith.negf %1187 : vector<1x32xf32>
    %1189 = math.exp %1188 : vector<1x32xf32>
    %cst_281 = arith.constant 1.000000e+00 : f32
    %1190 = vector.broadcast %cst_281 : f32 to vector<1x32xf32>
    %1191 = arith.addf %1190, %1189 : vector<1x32xf32>
    %1192 = arith.divf %1190, %1191 : vector<1x32xf32>
    %1193 = arith.mulf %1184, %1140 : vector<1x32xf32>
    %1194 = arith.mulf %1183, %1186 : vector<1x32xf32>
    %1195 = arith.addf %1193, %1194 : vector<1x32xf32>
    %1196 = math.tanh %1195 : vector<1x32xf32>
    %1197 = arith.mulf %1192, %1196 : vector<1x32xf32>
    %1198 = arith.index_cast %1172 : i32 to index
    %c128_282 = arith.constant 128 : index
    %1199 = vector.load %arg25[%1198, %c128_282] : memref<16x256xf32, #tpu.memory_space<vmem>>, vector<1x128xf32>
    %cst_283 = arith.constant dense<0.000000e+00> : vector<1x128xf32>
    %1200 = tpu.matmul %1167, %950, %cst_283 {dimension_numbers = #tpu.dot_dimension_numbers<[1], [0], [0], [1], [0, 0, 1, 1], [], []>} : vector<1x32xf32>, vector<32x128xf32>, vector<1x128xf32> -> vector<1x128xf32>
    %1201 = arith.addf %1199, %1200 : vector<1x128xf32>
    %1202 = vector.extract_strided_slice %1201 {offsets = [0, 0], sizes = [1, 64], strides = [1, 1]} : vector<1x128xf32> to vector<1x64xf32>
    %1203 = arith.negf %1202 : vector<1x64xf32>
    %1204 = math.exp %1203 : vector<1x64xf32>
    %cst_284 = arith.constant 1.000000e+00 : f32
    %1205 = vector.broadcast %cst_284 : f32 to vector<1x64xf32>
    %1206 = arith.addf %1205, %1204 : vector<1x64xf32>
    %1207 = arith.divf %1205, %1206 : vector<1x64xf32>
    %1208 = vector.extract_strided_slice %1207 {offsets = [0, 0], sizes = [1, 32], strides = [1, 1]} : vector<1x64xf32> to vector<1x32xf32>
    %1209 = vector.extract_strided_slice %1207 {offsets = [0, 32], sizes = [1, 32], strides = [1, 1]} : vector<1x64xf32> to vector<1x32xf32>
    %1210 = vector.extract_strided_slice %1201 {offsets = [0, 64], sizes = [1, 32], strides = [1, 1]} : vector<1x128xf32> to vector<1x32xf32>
    %1211 = math.tanh %1210 : vector<1x32xf32>
    %1212 = vector.extract_strided_slice %1201 {offsets = [0, 96], sizes = [1, 32], strides = [1, 1]} : vector<1x128xf32> to vector<1x32xf32>
    %1213 = arith.negf %1212 : vector<1x32xf32>
    %1214 = math.exp %1213 : vector<1x32xf32>
    %cst_285 = arith.constant 1.000000e+00 : f32
    %1215 = vector.broadcast %cst_285 : f32 to vector<1x32xf32>
    %1216 = arith.addf %1215, %1214 : vector<1x32xf32>
    %1217 = arith.divf %1215, %1216 : vector<1x32xf32>
    %1218 = arith.mulf %1209, %1165 : vector<1x32xf32>
    %1219 = arith.mulf %1208, %1211 : vector<1x32xf32>
    %1220 = arith.addf %1218, %1219 : vector<1x32xf32>
    %1221 = math.tanh %1220 : vector<1x32xf32>
    %1222 = arith.mulf %1217, %1221 : vector<1x32xf32>
    %1223 = arith.index_cast %c4_i32_276 : i32 to index
    %c0_286 = arith.constant 0 : index
    %1224 = vector.load %arg26[%1223, %c0_286] : memref<16x32xf32, #tpu.memory_space<vmem>>, vector<1x32xf32>
    tpu.vector_store %arg26[%1223, %c0_286], %1197 {strides = array<i32>} : memref<16x32xf32, #tpu.memory_space<vmem>>, vector<1x32xf32>,
    %1225 = arith.index_cast %1172 : i32 to index
    %c0_287 = arith.constant 0 : index
    %1226 = vector.load %arg27[%1225, %c0_287] : memref<16x32xf32, #tpu.memory_space<vmem>>, vector<1x32xf32>
    tpu.vector_store %arg27[%1225, %c0_287], %1222 {strides = array<i32>} : memref<16x32xf32, #tpu.memory_space<vmem>>, vector<1x32xf32>,
    %c5_i32_288 = arith.constant 5 : i32
    %c15_i32_289 = arith.constant 15 : i32
    %1227 = arith.subi %c15_i32_289, %c5_i32_288 : i32
    %1228 = arith.index_cast %c5_i32_288 : i32 to index
    %c0_290 = arith.constant 0 : index
    %1229 = vector.load %arg25[%1228, %c0_290] : memref<16x256xf32, #tpu.memory_space<vmem>>, vector<1x128xf32>
    %cst_291 = arith.constant dense<0.000000e+00> : vector<1x128xf32>
    %1230 = tpu.matmul %1197, %949, %cst_291 {dimension_numbers = #tpu.dot_dimension_numbers<[1], [0], [0], [1], [0, 0, 1, 1], [], []>} : vector<1x32xf32>, vector<32x128xf32>, vector<1x128xf32> -> vector<1x128xf32>
    %1231 = arith.addf %1229, %1230 : vector<1x128xf32>
    %1232 = vector.extract_strided_slice %1231 {offsets = [0, 0], sizes = [1, 64], strides = [1, 1]} : vector<1x128xf32> to vector<1x64xf32>
    %1233 = arith.negf %1232 : vector<1x64xf32>
    %1234 = math.exp %1233 : vector<1x64xf32>
    %cst_292 = arith.constant 1.000000e+00 : f32
    %1235 = vector.broadcast %cst_292 : f32 to vector<1x64xf32>
    %1236 = arith.addf %1235, %1234 : vector<1x64xf32>
    %1237 = arith.divf %1235, %1236 : vector<1x64xf32>
    %1238 = vector.extract_strided_slice %1237 {offsets = [0, 0], sizes = [1, 32], strides = [1, 1]} : vector<1x64xf32> to vector<1x32xf32>
    %1239 = vector.extract_strided_slice %1237 {offsets = [0, 32], sizes = [1, 32], strides = [1, 1]} : vector<1x64xf32> to vector<1x32xf32>
    %1240 = vector.extract_strided_slice %1231 {offsets = [0, 64], sizes = [1, 32], strides = [1, 1]} : vector<1x128xf32> to vector<1x32xf32>
    %1241 = math.tanh %1240 : vector<1x32xf32>
    %1242 = vector.extract_strided_slice %1231 {offsets = [0, 96], sizes = [1, 32], strides = [1, 1]} : vector<1x128xf32> to vector<1x32xf32>
    %1243 = arith.negf %1242 : vector<1x32xf32>
    %1244 = math.exp %1243 : vector<1x32xf32>
    %cst_293 = arith.constant 1.000000e+00 : f32
    %1245 = vector.broadcast %cst_293 : f32 to vector<1x32xf32>
    %1246 = arith.addf %1245, %1244 : vector<1x32xf32>
    %1247 = arith.divf %1245, %1246 : vector<1x32xf32>
    %1248 = arith.mulf %1239, %1195 : vector<1x32xf32>
    %1249 = arith.mulf %1238, %1241 : vector<1x32xf32>
    %1250 = arith.addf %1248, %1249 : vector<1x32xf32>
    %1251 = math.tanh %1250 : vector<1x32xf32>
    %1252 = arith.mulf %1247, %1251 : vector<1x32xf32>
    %1253 = arith.index_cast %1227 : i32 to index
    %c128_294 = arith.constant 128 : index
    %1254 = vector.load %arg25[%1253, %c128_294] : memref<16x256xf32, #tpu.memory_space<vmem>>, vector<1x128xf32>
    %cst_295 = arith.constant dense<0.000000e+00> : vector<1x128xf32>
    %1255 = tpu.matmul %1222, %950, %cst_295 {dimension_numbers = #tpu.dot_dimension_numbers<[1], [0], [0], [1], [0, 0, 1, 1], [], []>} : vector<1x32xf32>, vector<32x128xf32>, vector<1x128xf32> -> vector<1x128xf32>
    %1256 = arith.addf %1254, %1255 : vector<1x128xf32>
    %1257 = vector.extract_strided_slice %1256 {offsets = [0, 0], sizes = [1, 64], strides = [1, 1]} : vector<1x128xf32> to vector<1x64xf32>
    %1258 = arith.negf %1257 : vector<1x64xf32>
    %1259 = math.exp %1258 : vector<1x64xf32>
    %cst_296 = arith.constant 1.000000e+00 : f32
    %1260 = vector.broadcast %cst_296 : f32 to vector<1x64xf32>
    %1261 = arith.addf %1260, %1259 : vector<1x64xf32>
    %1262 = arith.divf %1260, %1261 : vector<1x64xf32>
    %1263 = vector.extract_strided_slice %1262 {offsets = [0, 0], sizes = [1, 32], strides = [1, 1]} : vector<1x64xf32> to vector<1x32xf32>
    %1264 = vector.extract_strided_slice %1262 {offsets = [0, 32], sizes = [1, 32], strides = [1, 1]} : vector<1x64xf32> to vector<1x32xf32>
    %1265 = vector.extract_strided_slice %1256 {offsets = [0, 64], sizes = [1, 32], strides = [1, 1]} : vector<1x128xf32> to vector<1x32xf32>
    %1266 = math.tanh %1265 : vector<1x32xf32>
    %1267 = vector.extract_strided_slice %1256 {offsets = [0, 96], sizes = [1, 32], strides = [1, 1]} : vector<1x128xf32> to vector<1x32xf32>
    %1268 = arith.negf %1267 : vector<1x32xf32>
    %1269 = math.exp %1268 : vector<1x32xf32>
    %cst_297 = arith.constant 1.000000e+00 : f32
    %1270 = vector.broadcast %cst_297 : f32 to vector<1x32xf32>
    %1271 = arith.addf %1270, %1269 : vector<1x32xf32>
    %1272 = arith.divf %1270, %1271 : vector<1x32xf32>
    %1273 = arith.mulf %1264, %1220 : vector<1x32xf32>
    %1274 = arith.mulf %1263, %1266 : vector<1x32xf32>
    %1275 = arith.addf %1273, %1274 : vector<1x32xf32>
    %1276 = math.tanh %1275 : vector<1x32xf32>
    %1277 = arith.mulf %1272, %1276 : vector<1x32xf32>
    %1278 = arith.index_cast %c5_i32_288 : i32 to index
    %c0_298 = arith.constant 0 : index
    %1279 = vector.load %arg26[%1278, %c0_298] : memref<16x32xf32, #tpu.memory_space<vmem>>, vector<1x32xf32>
    tpu.vector_store %arg26[%1278, %c0_298], %1252 {strides = array<i32>} : memref<16x32xf32, #tpu.memory_space<vmem>>, vector<1x32xf32>,
    %1280 = arith.index_cast %1227 : i32 to index
    %c0_299 = arith.constant 0 : index
    %1281 = vector.load %arg27[%1280, %c0_299] : memref<16x32xf32, #tpu.memory_space<vmem>>, vector<1x32xf32>
    tpu.vector_store %arg27[%1280, %c0_299], %1277 {strides = array<i32>} : memref<16x32xf32, #tpu.memory_space<vmem>>, vector<1x32xf32>,
    %c6_i32_300 = arith.constant 6 : i32
    %c15_i32_301 = arith.constant 15 : i32
    %1282 = arith.subi %c15_i32_301, %c6_i32_300 : i32
    %1283 = arith.index_cast %c6_i32_300 : i32 to index
    %c0_302 = arith.constant 0 : index
    %1284 = vector.load %arg25[%1283, %c0_302] : memref<16x256xf32, #tpu.memory_space<vmem>>, vector<1x128xf32>
    %cst_303 = arith.constant dense<0.000000e+00> : vector<1x128xf32>
    %1285 = tpu.matmul %1252, %949, %cst_303 {dimension_numbers = #tpu.dot_dimension_numbers<[1], [0], [0], [1], [0, 0, 1, 1], [], []>} : vector<1x32xf32>, vector<32x128xf32>, vector<1x128xf32> -> vector<1x128xf32>
    %1286 = arith.addf %1284, %1285 : vector<1x128xf32>
    %1287 = vector.extract_strided_slice %1286 {offsets = [0, 0], sizes = [1, 64], strides = [1, 1]} : vector<1x128xf32> to vector<1x64xf32>
    %1288 = arith.negf %1287 : vector<1x64xf32>
    %1289 = math.exp %1288 : vector<1x64xf32>
    %cst_304 = arith.constant 1.000000e+00 : f32
    %1290 = vector.broadcast %cst_304 : f32 to vector<1x64xf32>
    %1291 = arith.addf %1290, %1289 : vector<1x64xf32>
    %1292 = arith.divf %1290, %1291 : vector<1x64xf32>
    %1293 = vector.extract_strided_slice %1292 {offsets = [0, 0], sizes = [1, 32], strides = [1, 1]} : vector<1x64xf32> to vector<1x32xf32>
    %1294 = vector.extract_strided_slice %1292 {offsets = [0, 32], sizes = [1, 32], strides = [1, 1]} : vector<1x64xf32> to vector<1x32xf32>
    %1295 = vector.extract_strided_slice %1286 {offsets = [0, 64], sizes = [1, 32], strides = [1, 1]} : vector<1x128xf32> to vector<1x32xf32>
    %1296 = math.tanh %1295 : vector<1x32xf32>
    %1297 = vector.extract_strided_slice %1286 {offsets = [0, 96], sizes = [1, 32], strides = [1, 1]} : vector<1x128xf32> to vector<1x32xf32>
    %1298 = arith.negf %1297 : vector<1x32xf32>
    %1299 = math.exp %1298 : vector<1x32xf32>
    %cst_305 = arith.constant 1.000000e+00 : f32
    %1300 = vector.broadcast %cst_305 : f32 to vector<1x32xf32>
    %1301 = arith.addf %1300, %1299 : vector<1x32xf32>
    %1302 = arith.divf %1300, %1301 : vector<1x32xf32>
    %1303 = arith.mulf %1294, %1250 : vector<1x32xf32>
    %1304 = arith.mulf %1293, %1296 : vector<1x32xf32>
    %1305 = arith.addf %1303, %1304 : vector<1x32xf32>
    %1306 = math.tanh %1305 : vector<1x32xf32>
    %1307 = arith.mulf %1302, %1306 : vector<1x32xf32>
    %1308 = arith.index_cast %1282 : i32 to index
    %c128_306 = arith.constant 128 : index
    %1309 = vector.load %arg25[%1308, %c128_306] : memref<16x256xf32, #tpu.memory_space<vmem>>, vector<1x128xf32>
    %cst_307 = arith.constant dense<0.000000e+00> : vector<1x128xf32>
    %1310 = tpu.matmul %1277, %950, %cst_307 {dimension_numbers = #tpu.dot_dimension_numbers<[1], [0], [0], [1], [0, 0, 1, 1], [], []>} : vector<1x32xf32>, vector<32x128xf32>, vector<1x128xf32> -> vector<1x128xf32>
    %1311 = arith.addf %1309, %1310 : vector<1x128xf32>
    %1312 = vector.extract_strided_slice %1311 {offsets = [0, 0], sizes = [1, 64], strides = [1, 1]} : vector<1x128xf32> to vector<1x64xf32>
    %1313 = arith.negf %1312 : vector<1x64xf32>
    %1314 = math.exp %1313 : vector<1x64xf32>
    %cst_308 = arith.constant 1.000000e+00 : f32
    %1315 = vector.broadcast %cst_308 : f32 to vector<1x64xf32>
    %1316 = arith.addf %1315, %1314 : vector<1x64xf32>
    %1317 = arith.divf %1315, %1316 : vector<1x64xf32>
    %1318 = vector.extract_strided_slice %1317 {offsets = [0, 0], sizes = [1, 32], strides = [1, 1]} : vector<1x64xf32> to vector<1x32xf32>
    %1319 = vector.extract_strided_slice %1317 {offsets = [0, 32], sizes = [1, 32], strides = [1, 1]} : vector<1x64xf32> to vector<1x32xf32>
    %1320 = vector.extract_strided_slice %1311 {offsets = [0, 64], sizes = [1, 32], strides = [1, 1]} : vector<1x128xf32> to vector<1x32xf32>
    %1321 = math.tanh %1320 : vector<1x32xf32>
    %1322 = vector.extract_strided_slice %1311 {offsets = [0, 96], sizes = [1, 32], strides = [1, 1]} : vector<1x128xf32> to vector<1x32xf32>
    %1323 = arith.negf %1322 : vector<1x32xf32>
    %1324 = math.exp %1323 : vector<1x32xf32>
    %cst_309 = arith.constant 1.000000e+00 : f32
    %1325 = vector.broadcast %cst_309 : f32 to vector<1x32xf32>
    %1326 = arith.addf %1325, %1324 : vector<1x32xf32>
    %1327 = arith.divf %1325, %1326 : vector<1x32xf32>
    %1328 = arith.mulf %1319, %1275 : vector<1x32xf32>
    %1329 = arith.mulf %1318, %1321 : vector<1x32xf32>
    %1330 = arith.addf %1328, %1329 : vector<1x32xf32>
    %1331 = math.tanh %1330 : vector<1x32xf32>
    %1332 = arith.mulf %1327, %1331 : vector<1x32xf32>
    %1333 = arith.index_cast %c6_i32_300 : i32 to index
    %c0_310 = arith.constant 0 : index
    %1334 = vector.load %arg26[%1333, %c0_310] : memref<16x32xf32, #tpu.memory_space<vmem>>, vector<1x32xf32>
    tpu.vector_store %arg26[%1333, %c0_310], %1307 {strides = array<i32>} : memref<16x32xf32, #tpu.memory_space<vmem>>, vector<1x32xf32>,
    %1335 = arith.index_cast %1282 : i32 to index
    %c0_311 = arith.constant 0 : index
    %1336 = vector.load %arg27[%1335, %c0_311] : memref<16x32xf32, #tpu.memory_space<vmem>>, vector<1x32xf32>
    tpu.vector_store %arg27[%1335, %c0_311], %1332 {strides = array<i32>} : memref<16x32xf32, #tpu.memory_space<vmem>>, vector<1x32xf32>,
    %c7_i32_312 = arith.constant 7 : i32
    %c15_i32_313 = arith.constant 15 : i32
    %1337 = arith.subi %c15_i32_313, %c7_i32_312 : i32
    %1338 = arith.index_cast %c7_i32_312 : i32 to index
    %c0_314 = arith.constant 0 : index
    %1339 = vector.load %arg25[%1338, %c0_314] : memref<16x256xf32, #tpu.memory_space<vmem>>, vector<1x128xf32>
    %cst_315 = arith.constant dense<0.000000e+00> : vector<1x128xf32>
    %1340 = tpu.matmul %1307, %949, %cst_315 {dimension_numbers = #tpu.dot_dimension_numbers<[1], [0], [0], [1], [0, 0, 1, 1], [], []>} : vector<1x32xf32>, vector<32x128xf32>, vector<1x128xf32> -> vector<1x128xf32>
    %1341 = arith.addf %1339, %1340 : vector<1x128xf32>
    %1342 = vector.extract_strided_slice %1341 {offsets = [0, 0], sizes = [1, 64], strides = [1, 1]} : vector<1x128xf32> to vector<1x64xf32>
    %1343 = arith.negf %1342 : vector<1x64xf32>
    %1344 = math.exp %1343 : vector<1x64xf32>
    %cst_316 = arith.constant 1.000000e+00 : f32
    %1345 = vector.broadcast %cst_316 : f32 to vector<1x64xf32>
    %1346 = arith.addf %1345, %1344 : vector<1x64xf32>
    %1347 = arith.divf %1345, %1346 : vector<1x64xf32>
    %1348 = vector.extract_strided_slice %1347 {offsets = [0, 0], sizes = [1, 32], strides = [1, 1]} : vector<1x64xf32> to vector<1x32xf32>
    %1349 = vector.extract_strided_slice %1347 {offsets = [0, 32], sizes = [1, 32], strides = [1, 1]} : vector<1x64xf32> to vector<1x32xf32>
    %1350 = vector.extract_strided_slice %1341 {offsets = [0, 64], sizes = [1, 32], strides = [1, 1]} : vector<1x128xf32> to vector<1x32xf32>
    %1351 = math.tanh %1350 : vector<1x32xf32>
    %1352 = vector.extract_strided_slice %1341 {offsets = [0, 96], sizes = [1, 32], strides = [1, 1]} : vector<1x128xf32> to vector<1x32xf32>
    %1353 = arith.negf %1352 : vector<1x32xf32>
    %1354 = math.exp %1353 : vector<1x32xf32>
    %cst_317 = arith.constant 1.000000e+00 : f32
    %1355 = vector.broadcast %cst_317 : f32 to vector<1x32xf32>
    %1356 = arith.addf %1355, %1354 : vector<1x32xf32>
    %1357 = arith.divf %1355, %1356 : vector<1x32xf32>
    %1358 = arith.mulf %1349, %1305 : vector<1x32xf32>
    %1359 = arith.mulf %1348, %1351 : vector<1x32xf32>
    %1360 = arith.addf %1358, %1359 : vector<1x32xf32>
    %1361 = math.tanh %1360 : vector<1x32xf32>
    %1362 = arith.mulf %1357, %1361 : vector<1x32xf32>
    %1363 = arith.index_cast %1337 : i32 to index
    %c128_318 = arith.constant 128 : index
    %1364 = vector.load %arg25[%1363, %c128_318] : memref<16x256xf32, #tpu.memory_space<vmem>>, vector<1x128xf32>
    %cst_319 = arith.constant dense<0.000000e+00> : vector<1x128xf32>
    %1365 = tpu.matmul %1332, %950, %cst_319 {dimension_numbers = #tpu.dot_dimension_numbers<[1], [0], [0], [1], [0, 0, 1, 1], [], []>} : vector<1x32xf32>, vector<32x128xf32>, vector<1x128xf32> -> vector<1x128xf32>
    %1366 = arith.addf %1364, %1365 : vector<1x128xf32>
    %1367 = vector.extract_strided_slice %1366 {offsets = [0, 0], sizes = [1, 64], strides = [1, 1]} : vector<1x128xf32> to vector<1x64xf32>
    %1368 = arith.negf %1367 : vector<1x64xf32>
    %1369 = math.exp %1368 : vector<1x64xf32>
    %cst_320 = arith.constant 1.000000e+00 : f32
    %1370 = vector.broadcast %cst_320 : f32 to vector<1x64xf32>
    %1371 = arith.addf %1370, %1369 : vector<1x64xf32>
    %1372 = arith.divf %1370, %1371 : vector<1x64xf32>
    %1373 = vector.extract_strided_slice %1372 {offsets = [0, 0], sizes = [1, 32], strides = [1, 1]} : vector<1x64xf32> to vector<1x32xf32>
    %1374 = vector.extract_strided_slice %1372 {offsets = [0, 32], sizes = [1, 32], strides = [1, 1]} : vector<1x64xf32> to vector<1x32xf32>
    %1375 = vector.extract_strided_slice %1366 {offsets = [0, 64], sizes = [1, 32], strides = [1, 1]} : vector<1x128xf32> to vector<1x32xf32>
    %1376 = math.tanh %1375 : vector<1x32xf32>
    %1377 = vector.extract_strided_slice %1366 {offsets = [0, 96], sizes = [1, 32], strides = [1, 1]} : vector<1x128xf32> to vector<1x32xf32>
    %1378 = arith.negf %1377 : vector<1x32xf32>
    %1379 = math.exp %1378 : vector<1x32xf32>
    %cst_321 = arith.constant 1.000000e+00 : f32
    %1380 = vector.broadcast %cst_321 : f32 to vector<1x32xf32>
    %1381 = arith.addf %1380, %1379 : vector<1x32xf32>
    %1382 = arith.divf %1380, %1381 : vector<1x32xf32>
    %1383 = arith.mulf %1374, %1330 : vector<1x32xf32>
    %1384 = arith.mulf %1373, %1376 : vector<1x32xf32>
    %1385 = arith.addf %1383, %1384 : vector<1x32xf32>
    %1386 = math.tanh %1385 : vector<1x32xf32>
    %1387 = arith.mulf %1382, %1386 : vector<1x32xf32>
    %1388 = arith.index_cast %c7_i32_312 : i32 to index
    %c0_322 = arith.constant 0 : index
    %1389 = vector.load %arg26[%1388, %c0_322] : memref<16x32xf32, #tpu.memory_space<vmem>>, vector<1x32xf32>
    tpu.vector_store %arg26[%1388, %c0_322], %1362 {strides = array<i32>} : memref<16x32xf32, #tpu.memory_space<vmem>>, vector<1x32xf32>,
    %1390 = arith.index_cast %1337 : i32 to index
    %c0_323 = arith.constant 0 : index
    %1391 = vector.load %arg27[%1390, %c0_323] : memref<16x32xf32, #tpu.memory_space<vmem>>, vector<1x32xf32>
    tpu.vector_store %arg27[%1390, %c0_323], %1387 {strides = array<i32>} : memref<16x32xf32, #tpu.memory_space<vmem>>, vector<1x32xf32>,
    %c8_i32_324 = arith.constant 8 : i32
    %c15_i32_325 = arith.constant 15 : i32
    %1392 = arith.subi %c15_i32_325, %c8_i32_324 : i32
    %1393 = arith.index_cast %c8_i32_324 : i32 to index
    %c0_326 = arith.constant 0 : index
    %1394 = vector.load %arg25[%1393, %c0_326] : memref<16x256xf32, #tpu.memory_space<vmem>>, vector<1x128xf32>
    %cst_327 = arith.constant dense<0.000000e+00> : vector<1x128xf32>
    %1395 = tpu.matmul %1362, %949, %cst_327 {dimension_numbers = #tpu.dot_dimension_numbers<[1], [0], [0], [1], [0, 0, 1, 1], [], []>} : vector<1x32xf32>, vector<32x128xf32>, vector<1x128xf32> -> vector<1x128xf32>
    %1396 = arith.addf %1394, %1395 : vector<1x128xf32>
    %1397 = vector.extract_strided_slice %1396 {offsets = [0, 0], sizes = [1, 64], strides = [1, 1]} : vector<1x128xf32> to vector<1x64xf32>
    %1398 = arith.negf %1397 : vector<1x64xf32>
    %1399 = math.exp %1398 : vector<1x64xf32>
    %cst_328 = arith.constant 1.000000e+00 : f32
    %1400 = vector.broadcast %cst_328 : f32 to vector<1x64xf32>
    %1401 = arith.addf %1400, %1399 : vector<1x64xf32>
    %1402 = arith.divf %1400, %1401 : vector<1x64xf32>
    %1403 = vector.extract_strided_slice %1402 {offsets = [0, 0], sizes = [1, 32], strides = [1, 1]} : vector<1x64xf32> to vector<1x32xf32>
    %1404 = vector.extract_strided_slice %1402 {offsets = [0, 32], sizes = [1, 32], strides = [1, 1]} : vector<1x64xf32> to vector<1x32xf32>
    %1405 = vector.extract_strided_slice %1396 {offsets = [0, 64], sizes = [1, 32], strides = [1, 1]} : vector<1x128xf32> to vector<1x32xf32>
    %1406 = math.tanh %1405 : vector<1x32xf32>
    %1407 = vector.extract_strided_slice %1396 {offsets = [0, 96], sizes = [1, 32], strides = [1, 1]} : vector<1x128xf32> to vector<1x32xf32>
    %1408 = arith.negf %1407 : vector<1x32xf32>
    %1409 = math.exp %1408 : vector<1x32xf32>
    %cst_329 = arith.constant 1.000000e+00 : f32
    %1410 = vector.broadcast %cst_329 : f32 to vector<1x32xf32>
    %1411 = arith.addf %1410, %1409 : vector<1x32xf32>
    %1412 = arith.divf %1410, %1411 : vector<1x32xf32>
    %1413 = arith.mulf %1404, %1360 : vector<1x32xf32>
    %1414 = arith.mulf %1403, %1406 : vector<1x32xf32>
    %1415 = arith.addf %1413, %1414 : vector<1x32xf32>
    %1416 = math.tanh %1415 : vector<1x32xf32>
    %1417 = arith.mulf %1412, %1416 : vector<1x32xf32>
    %1418 = arith.index_cast %1392 : i32 to index
    %c128_330 = arith.constant 128 : index
    %1419 = vector.load %arg25[%1418, %c128_330] : memref<16x256xf32, #tpu.memory_space<vmem>>, vector<1x128xf32>
    %cst_331 = arith.constant dense<0.000000e+00> : vector<1x128xf32>
    %1420 = tpu.matmul %1387, %950, %cst_331 {dimension_numbers = #tpu.dot_dimension_numbers<[1], [0], [0], [1], [0, 0, 1, 1], [], []>} : vector<1x32xf32>, vector<32x128xf32>, vector<1x128xf32> -> vector<1x128xf32>
    %1421 = arith.addf %1419, %1420 : vector<1x128xf32>
    %1422 = vector.extract_strided_slice %1421 {offsets = [0, 0], sizes = [1, 64], strides = [1, 1]} : vector<1x128xf32> to vector<1x64xf32>
    %1423 = arith.negf %1422 : vector<1x64xf32>
    %1424 = math.exp %1423 : vector<1x64xf32>
    %cst_332 = arith.constant 1.000000e+00 : f32
    %1425 = vector.broadcast %cst_332 : f32 to vector<1x64xf32>
    %1426 = arith.addf %1425, %1424 : vector<1x64xf32>
    %1427 = arith.divf %1425, %1426 : vector<1x64xf32>
    %1428 = vector.extract_strided_slice %1427 {offsets = [0, 0], sizes = [1, 32], strides = [1, 1]} : vector<1x64xf32> to vector<1x32xf32>
    %1429 = vector.extract_strided_slice %1427 {offsets = [0, 32], sizes = [1, 32], strides = [1, 1]} : vector<1x64xf32> to vector<1x32xf32>
    %1430 = vector.extract_strided_slice %1421 {offsets = [0, 64], sizes = [1, 32], strides = [1, 1]} : vector<1x128xf32> to vector<1x32xf32>
    %1431 = math.tanh %1430 : vector<1x32xf32>
    %1432 = vector.extract_strided_slice %1421 {offsets = [0, 96], sizes = [1, 32], strides = [1, 1]} : vector<1x128xf32> to vector<1x32xf32>
    %1433 = arith.negf %1432 : vector<1x32xf32>
    %1434 = math.exp %1433 : vector<1x32xf32>
    %cst_333 = arith.constant 1.000000e+00 : f32
    %1435 = vector.broadcast %cst_333 : f32 to vector<1x32xf32>
    %1436 = arith.addf %1435, %1434 : vector<1x32xf32>
    %1437 = arith.divf %1435, %1436 : vector<1x32xf32>
    %1438 = arith.mulf %1429, %1385 : vector<1x32xf32>
    %1439 = arith.mulf %1428, %1431 : vector<1x32xf32>
    %1440 = arith.addf %1438, %1439 : vector<1x32xf32>
    %1441 = math.tanh %1440 : vector<1x32xf32>
    %1442 = arith.mulf %1437, %1441 : vector<1x32xf32>
    %1443 = arith.index_cast %c8_i32_324 : i32 to index
    %c0_334 = arith.constant 0 : index
    %1444 = vector.load %arg26[%1443, %c0_334] : memref<16x32xf32, #tpu.memory_space<vmem>>, vector<1x32xf32>
    tpu.vector_store %arg26[%1443, %c0_334], %1417 {strides = array<i32>} : memref<16x32xf32, #tpu.memory_space<vmem>>, vector<1x32xf32>,
    %1445 = arith.index_cast %1392 : i32 to index
    %c0_335 = arith.constant 0 : index
    %1446 = vector.load %arg27[%1445, %c0_335] : memref<16x32xf32, #tpu.memory_space<vmem>>, vector<1x32xf32>
    tpu.vector_store %arg27[%1445, %c0_335], %1442 {strides = array<i32>} : memref<16x32xf32, #tpu.memory_space<vmem>>, vector<1x32xf32>,
    %c9_i32_336 = arith.constant 9 : i32
    %c15_i32_337 = arith.constant 15 : i32
    %1447 = arith.subi %c15_i32_337, %c9_i32_336 : i32
    %1448 = arith.index_cast %c9_i32_336 : i32 to index
    %c0_338 = arith.constant 0 : index
    %1449 = vector.load %arg25[%1448, %c0_338] : memref<16x256xf32, #tpu.memory_space<vmem>>, vector<1x128xf32>
    %cst_339 = arith.constant dense<0.000000e+00> : vector<1x128xf32>
    %1450 = tpu.matmul %1417, %949, %cst_339 {dimension_numbers = #tpu.dot_dimension_numbers<[1], [0], [0], [1], [0, 0, 1, 1], [], []>} : vector<1x32xf32>, vector<32x128xf32>, vector<1x128xf32> -> vector<1x128xf32>
    %1451 = arith.addf %1449, %1450 : vector<1x128xf32>
    %1452 = vector.extract_strided_slice %1451 {offsets = [0, 0], sizes = [1, 64], strides = [1, 1]} : vector<1x128xf32> to vector<1x64xf32>
    %1453 = arith.negf %1452 : vector<1x64xf32>
    %1454 = math.exp %1453 : vector<1x64xf32>
    %cst_340 = arith.constant 1.000000e+00 : f32
    %1455 = vector.broadcast %cst_340 : f32 to vector<1x64xf32>
    %1456 = arith.addf %1455, %1454 : vector<1x64xf32>
    %1457 = arith.divf %1455, %1456 : vector<1x64xf32>
    %1458 = vector.extract_strided_slice %1457 {offsets = [0, 0], sizes = [1, 32], strides = [1, 1]} : vector<1x64xf32> to vector<1x32xf32>
    %1459 = vector.extract_strided_slice %1457 {offsets = [0, 32], sizes = [1, 32], strides = [1, 1]} : vector<1x64xf32> to vector<1x32xf32>
    %1460 = vector.extract_strided_slice %1451 {offsets = [0, 64], sizes = [1, 32], strides = [1, 1]} : vector<1x128xf32> to vector<1x32xf32>
    %1461 = math.tanh %1460 : vector<1x32xf32>
    %1462 = vector.extract_strided_slice %1451 {offsets = [0, 96], sizes = [1, 32], strides = [1, 1]} : vector<1x128xf32> to vector<1x32xf32>
    %1463 = arith.negf %1462 : vector<1x32xf32>
    %1464 = math.exp %1463 : vector<1x32xf32>
    %cst_341 = arith.constant 1.000000e+00 : f32
    %1465 = vector.broadcast %cst_341 : f32 to vector<1x32xf32>
    %1466 = arith.addf %1465, %1464 : vector<1x32xf32>
    %1467 = arith.divf %1465, %1466 : vector<1x32xf32>
    %1468 = arith.mulf %1459, %1415 : vector<1x32xf32>
    %1469 = arith.mulf %1458, %1461 : vector<1x32xf32>
    %1470 = arith.addf %1468, %1469 : vector<1x32xf32>
    %1471 = math.tanh %1470 : vector<1x32xf32>
    %1472 = arith.mulf %1467, %1471 : vector<1x32xf32>
    %1473 = arith.index_cast %1447 : i32 to index
    %c128_342 = arith.constant 128 : index
    %1474 = vector.load %arg25[%1473, %c128_342] : memref<16x256xf32, #tpu.memory_space<vmem>>, vector<1x128xf32>
    %cst_343 = arith.constant dense<0.000000e+00> : vector<1x128xf32>
    %1475 = tpu.matmul %1442, %950, %cst_343 {dimension_numbers = #tpu.dot_dimension_numbers<[1], [0], [0], [1], [0, 0, 1, 1], [], []>} : vector<1x32xf32>, vector<32x128xf32>, vector<1x128xf32> -> vector<1x128xf32>
    %1476 = arith.addf %1474, %1475 : vector<1x128xf32>
    %1477 = vector.extract_strided_slice %1476 {offsets = [0, 0], sizes = [1, 64], strides = [1, 1]} : vector<1x128xf32> to vector<1x64xf32>
    %1478 = arith.negf %1477 : vector<1x64xf32>
    %1479 = math.exp %1478 : vector<1x64xf32>
    %cst_344 = arith.constant 1.000000e+00 : f32
    %1480 = vector.broadcast %cst_344 : f32 to vector<1x64xf32>
    %1481 = arith.addf %1480, %1479 : vector<1x64xf32>
    %1482 = arith.divf %1480, %1481 : vector<1x64xf32>
    %1483 = vector.extract_strided_slice %1482 {offsets = [0, 0], sizes = [1, 32], strides = [1, 1]} : vector<1x64xf32> to vector<1x32xf32>
    %1484 = vector.extract_strided_slice %1482 {offsets = [0, 32], sizes = [1, 32], strides = [1, 1]} : vector<1x64xf32> to vector<1x32xf32>
    %1485 = vector.extract_strided_slice %1476 {offsets = [0, 64], sizes = [1, 32], strides = [1, 1]} : vector<1x128xf32> to vector<1x32xf32>
    %1486 = math.tanh %1485 : vector<1x32xf32>
    %1487 = vector.extract_strided_slice %1476 {offsets = [0, 96], sizes = [1, 32], strides = [1, 1]} : vector<1x128xf32> to vector<1x32xf32>
    %1488 = arith.negf %1487 : vector<1x32xf32>
    %1489 = math.exp %1488 : vector<1x32xf32>
    %cst_345 = arith.constant 1.000000e+00 : f32
    %1490 = vector.broadcast %cst_345 : f32 to vector<1x32xf32>
    %1491 = arith.addf %1490, %1489 : vector<1x32xf32>
    %1492 = arith.divf %1490, %1491 : vector<1x32xf32>
    %1493 = arith.mulf %1484, %1440 : vector<1x32xf32>
    %1494 = arith.mulf %1483, %1486 : vector<1x32xf32>
    %1495 = arith.addf %1493, %1494 : vector<1x32xf32>
    %1496 = math.tanh %1495 : vector<1x32xf32>
    %1497 = arith.mulf %1492, %1496 : vector<1x32xf32>
    %1498 = arith.index_cast %c9_i32_336 : i32 to index
    %c0_346 = arith.constant 0 : index
    %1499 = vector.load %arg26[%1498, %c0_346] : memref<16x32xf32, #tpu.memory_space<vmem>>, vector<1x32xf32>
    tpu.vector_store %arg26[%1498, %c0_346], %1472 {strides = array<i32>} : memref<16x32xf32, #tpu.memory_space<vmem>>, vector<1x32xf32>,
    %1500 = arith.index_cast %1447 : i32 to index
    %c0_347 = arith.constant 0 : index
    %1501 = vector.load %arg27[%1500, %c0_347] : memref<16x32xf32, #tpu.memory_space<vmem>>, vector<1x32xf32>
    tpu.vector_store %arg27[%1500, %c0_347], %1497 {strides = array<i32>} : memref<16x32xf32, #tpu.memory_space<vmem>>, vector<1x32xf32>,
    %c10_i32_348 = arith.constant 10 : i32
    %c15_i32_349 = arith.constant 15 : i32
    %1502 = arith.subi %c15_i32_349, %c10_i32_348 : i32
    %1503 = arith.index_cast %c10_i32_348 : i32 to index
    %c0_350 = arith.constant 0 : index
    %1504 = vector.load %arg25[%1503, %c0_350] : memref<16x256xf32, #tpu.memory_space<vmem>>, vector<1x128xf32>
    %cst_351 = arith.constant dense<0.000000e+00> : vector<1x128xf32>
    %1505 = tpu.matmul %1472, %949, %cst_351 {dimension_numbers = #tpu.dot_dimension_numbers<[1], [0], [0], [1], [0, 0, 1, 1], [], []>} : vector<1x32xf32>, vector<32x128xf32>, vector<1x128xf32> -> vector<1x128xf32>
    %1506 = arith.addf %1504, %1505 : vector<1x128xf32>
    %1507 = vector.extract_strided_slice %1506 {offsets = [0, 0], sizes = [1, 64], strides = [1, 1]} : vector<1x128xf32> to vector<1x64xf32>
    %1508 = arith.negf %1507 : vector<1x64xf32>
    %1509 = math.exp %1508 : vector<1x64xf32>
    %cst_352 = arith.constant 1.000000e+00 : f32
    %1510 = vector.broadcast %cst_352 : f32 to vector<1x64xf32>
    %1511 = arith.addf %1510, %1509 : vector<1x64xf32>
    %1512 = arith.divf %1510, %1511 : vector<1x64xf32>
    %1513 = vector.extract_strided_slice %1512 {offsets = [0, 0], sizes = [1, 32], strides = [1, 1]} : vector<1x64xf32> to vector<1x32xf32>
    %1514 = vector.extract_strided_slice %1512 {offsets = [0, 32], sizes = [1, 32], strides = [1, 1]} : vector<1x64xf32> to vector<1x32xf32>
    %1515 = vector.extract_strided_slice %1506 {offsets = [0, 64], sizes = [1, 32], strides = [1, 1]} : vector<1x128xf32> to vector<1x32xf32>
    %1516 = math.tanh %1515 : vector<1x32xf32>
    %1517 = vector.extract_strided_slice %1506 {offsets = [0, 96], sizes = [1, 32], strides = [1, 1]} : vector<1x128xf32> to vector<1x32xf32>
    %1518 = arith.negf %1517 : vector<1x32xf32>
    %1519 = math.exp %1518 : vector<1x32xf32>
    %cst_353 = arith.constant 1.000000e+00 : f32
    %1520 = vector.broadcast %cst_353 : f32 to vector<1x32xf32>
    %1521 = arith.addf %1520, %1519 : vector<1x32xf32>
    %1522 = arith.divf %1520, %1521 : vector<1x32xf32>
    %1523 = arith.mulf %1514, %1470 : vector<1x32xf32>
    %1524 = arith.mulf %1513, %1516 : vector<1x32xf32>
    %1525 = arith.addf %1523, %1524 : vector<1x32xf32>
    %1526 = math.tanh %1525 : vector<1x32xf32>
    %1527 = arith.mulf %1522, %1526 : vector<1x32xf32>
    %1528 = arith.index_cast %1502 : i32 to index
    %c128_354 = arith.constant 128 : index
    %1529 = vector.load %arg25[%1528, %c128_354] : memref<16x256xf32, #tpu.memory_space<vmem>>, vector<1x128xf32>
    %cst_355 = arith.constant dense<0.000000e+00> : vector<1x128xf32>
    %1530 = tpu.matmul %1497, %950, %cst_355 {dimension_numbers = #tpu.dot_dimension_numbers<[1], [0], [0], [1], [0, 0, 1, 1], [], []>} : vector<1x32xf32>, vector<32x128xf32>, vector<1x128xf32> -> vector<1x128xf32>
    %1531 = arith.addf %1529, %1530 : vector<1x128xf32>
    %1532 = vector.extract_strided_slice %1531 {offsets = [0, 0], sizes = [1, 64], strides = [1, 1]} : vector<1x128xf32> to vector<1x64xf32>
    %1533 = arith.negf %1532 : vector<1x64xf32>
    %1534 = math.exp %1533 : vector<1x64xf32>
    %cst_356 = arith.constant 1.000000e+00 : f32
    %1535 = vector.broadcast %cst_356 : f32 to vector<1x64xf32>
    %1536 = arith.addf %1535, %1534 : vector<1x64xf32>
    %1537 = arith.divf %1535, %1536 : vector<1x64xf32>
    %1538 = vector.extract_strided_slice %1537 {offsets = [0, 0], sizes = [1, 32], strides = [1, 1]} : vector<1x64xf32> to vector<1x32xf32>
    %1539 = vector.extract_strided_slice %1537 {offsets = [0, 32], sizes = [1, 32], strides = [1, 1]} : vector<1x64xf32> to vector<1x32xf32>
    %1540 = vector.extract_strided_slice %1531 {offsets = [0, 64], sizes = [1, 32], strides = [1, 1]} : vector<1x128xf32> to vector<1x32xf32>
    %1541 = math.tanh %1540 : vector<1x32xf32>
    %1542 = vector.extract_strided_slice %1531 {offsets = [0, 96], sizes = [1, 32], strides = [1, 1]} : vector<1x128xf32> to vector<1x32xf32>
    %1543 = arith.negf %1542 : vector<1x32xf32>
    %1544 = math.exp %1543 : vector<1x32xf32>
    %cst_357 = arith.constant 1.000000e+00 : f32
    %1545 = vector.broadcast %cst_357 : f32 to vector<1x32xf32>
    %1546 = arith.addf %1545, %1544 : vector<1x32xf32>
    %1547 = arith.divf %1545, %1546 : vector<1x32xf32>
    %1548 = arith.mulf %1539, %1495 : vector<1x32xf32>
    %1549 = arith.mulf %1538, %1541 : vector<1x32xf32>
    %1550 = arith.addf %1548, %1549 : vector<1x32xf32>
    %1551 = math.tanh %1550 : vector<1x32xf32>
    %1552 = arith.mulf %1547, %1551 : vector<1x32xf32>
    %1553 = arith.index_cast %c10_i32_348 : i32 to index
    %c0_358 = arith.constant 0 : index
    %1554 = vector.load %arg26[%1553, %c0_358] : memref<16x32xf32, #tpu.memory_space<vmem>>, vector<1x32xf32>
    tpu.vector_store %arg26[%1553, %c0_358], %1527 {strides = array<i32>} : memref<16x32xf32, #tpu.memory_space<vmem>>, vector<1x32xf32>,
    %1555 = arith.index_cast %1502 : i32 to index
    %c0_359 = arith.constant 0 : index
    %1556 = vector.load %arg27[%1555, %c0_359] : memref<16x32xf32, #tpu.memory_space<vmem>>, vector<1x32xf32>
    tpu.vector_store %arg27[%1555, %c0_359], %1552 {strides = array<i32>} : memref<16x32xf32, #tpu.memory_space<vmem>>, vector<1x32xf32>,
    %c11_i32_360 = arith.constant 11 : i32
    %c15_i32_361 = arith.constant 15 : i32
    %1557 = arith.subi %c15_i32_361, %c11_i32_360 : i32
    %1558 = arith.index_cast %c11_i32_360 : i32 to index
    %c0_362 = arith.constant 0 : index
    %1559 = vector.load %arg25[%1558, %c0_362] : memref<16x256xf32, #tpu.memory_space<vmem>>, vector<1x128xf32>
    %cst_363 = arith.constant dense<0.000000e+00> : vector<1x128xf32>
    %1560 = tpu.matmul %1527, %949, %cst_363 {dimension_numbers = #tpu.dot_dimension_numbers<[1], [0], [0], [1], [0, 0, 1, 1], [], []>} : vector<1x32xf32>, vector<32x128xf32>, vector<1x128xf32> -> vector<1x128xf32>
    %1561 = arith.addf %1559, %1560 : vector<1x128xf32>
    %1562 = vector.extract_strided_slice %1561 {offsets = [0, 0], sizes = [1, 64], strides = [1, 1]} : vector<1x128xf32> to vector<1x64xf32>
    %1563 = arith.negf %1562 : vector<1x64xf32>
    %1564 = math.exp %1563 : vector<1x64xf32>
    %cst_364 = arith.constant 1.000000e+00 : f32
    %1565 = vector.broadcast %cst_364 : f32 to vector<1x64xf32>
    %1566 = arith.addf %1565, %1564 : vector<1x64xf32>
    %1567 = arith.divf %1565, %1566 : vector<1x64xf32>
    %1568 = vector.extract_strided_slice %1567 {offsets = [0, 0], sizes = [1, 32], strides = [1, 1]} : vector<1x64xf32> to vector<1x32xf32>
    %1569 = vector.extract_strided_slice %1567 {offsets = [0, 32], sizes = [1, 32], strides = [1, 1]} : vector<1x64xf32> to vector<1x32xf32>
    %1570 = vector.extract_strided_slice %1561 {offsets = [0, 64], sizes = [1, 32], strides = [1, 1]} : vector<1x128xf32> to vector<1x32xf32>
    %1571 = math.tanh %1570 : vector<1x32xf32>
    %1572 = vector.extract_strided_slice %1561 {offsets = [0, 96], sizes = [1, 32], strides = [1, 1]} : vector<1x128xf32> to vector<1x32xf32>
    %1573 = arith.negf %1572 : vector<1x32xf32>
    %1574 = math.exp %1573 : vector<1x32xf32>
    %cst_365 = arith.constant 1.000000e+00 : f32
    %1575 = vector.broadcast %cst_365 : f32 to vector<1x32xf32>
    %1576 = arith.addf %1575, %1574 : vector<1x32xf32>
    %1577 = arith.divf %1575, %1576 : vector<1x32xf32>
    %1578 = arith.mulf %1569, %1525 : vector<1x32xf32>
    %1579 = arith.mulf %1568, %1571 : vector<1x32xf32>
    %1580 = arith.addf %1578, %1579 : vector<1x32xf32>
    %1581 = math.tanh %1580 : vector<1x32xf32>
    %1582 = arith.mulf %1577, %1581 : vector<1x32xf32>
    %1583 = arith.index_cast %1557 : i32 to index
    %c128_366 = arith.constant 128 : index
    %1584 = vector.load %arg25[%1583, %c128_366] : memref<16x256xf32, #tpu.memory_space<vmem>>, vector<1x128xf32>
    %cst_367 = arith.constant dense<0.000000e+00> : vector<1x128xf32>
    %1585 = tpu.matmul %1552, %950, %cst_367 {dimension_numbers = #tpu.dot_dimension_numbers<[1], [0], [0], [1], [0, 0, 1, 1], [], []>} : vector<1x32xf32>, vector<32x128xf32>, vector<1x128xf32> -> vector<1x128xf32>
    %1586 = arith.addf %1584, %1585 : vector<1x128xf32>
    %1587 = vector.extract_strided_slice %1586 {offsets = [0, 0], sizes = [1, 64], strides = [1, 1]} : vector<1x128xf32> to vector<1x64xf32>
    %1588 = arith.negf %1587 : vector<1x64xf32>
    %1589 = math.exp %1588 : vector<1x64xf32>
    %cst_368 = arith.constant 1.000000e+00 : f32
    %1590 = vector.broadcast %cst_368 : f32 to vector<1x64xf32>
    %1591 = arith.addf %1590, %1589 : vector<1x64xf32>
    %1592 = arith.divf %1590, %1591 : vector<1x64xf32>
    %1593 = vector.extract_strided_slice %1592 {offsets = [0, 0], sizes = [1, 32], strides = [1, 1]} : vector<1x64xf32> to vector<1x32xf32>
    %1594 = vector.extract_strided_slice %1592 {offsets = [0, 32], sizes = [1, 32], strides = [1, 1]} : vector<1x64xf32> to vector<1x32xf32>
    %1595 = vector.extract_strided_slice %1586 {offsets = [0, 64], sizes = [1, 32], strides = [1, 1]} : vector<1x128xf32> to vector<1x32xf32>
    %1596 = math.tanh %1595 : vector<1x32xf32>
    %1597 = vector.extract_strided_slice %1586 {offsets = [0, 96], sizes = [1, 32], strides = [1, 1]} : vector<1x128xf32> to vector<1x32xf32>
    %1598 = arith.negf %1597 : vector<1x32xf32>
    %1599 = math.exp %1598 : vector<1x32xf32>
    %cst_369 = arith.constant 1.000000e+00 : f32
    %1600 = vector.broadcast %cst_369 : f32 to vector<1x32xf32>
    %1601 = arith.addf %1600, %1599 : vector<1x32xf32>
    %1602 = arith.divf %1600, %1601 : vector<1x32xf32>
    %1603 = arith.mulf %1594, %1550 : vector<1x32xf32>
    %1604 = arith.mulf %1593, %1596 : vector<1x32xf32>
    %1605 = arith.addf %1603, %1604 : vector<1x32xf32>
    %1606 = math.tanh %1605 : vector<1x32xf32>
    %1607 = arith.mulf %1602, %1606 : vector<1x32xf32>
    %1608 = arith.index_cast %c11_i32_360 : i32 to index
    %c0_370 = arith.constant 0 : index
    %1609 = vector.load %arg26[%1608, %c0_370] : memref<16x32xf32, #tpu.memory_space<vmem>>, vector<1x32xf32>
    tpu.vector_store %arg26[%1608, %c0_370], %1582 {strides = array<i32>} : memref<16x32xf32, #tpu.memory_space<vmem>>, vector<1x32xf32>,
    %1610 = arith.index_cast %1557 : i32 to index
    %c0_371 = arith.constant 0 : index
    %1611 = vector.load %arg27[%1610, %c0_371] : memref<16x32xf32, #tpu.memory_space<vmem>>, vector<1x32xf32>
    tpu.vector_store %arg27[%1610, %c0_371], %1607 {strides = array<i32>} : memref<16x32xf32, #tpu.memory_space<vmem>>, vector<1x32xf32>,
    %c12_i32_372 = arith.constant 12 : i32
    %c15_i32_373 = arith.constant 15 : i32
    %1612 = arith.subi %c15_i32_373, %c12_i32_372 : i32
    %1613 = arith.index_cast %c12_i32_372 : i32 to index
    %c0_374 = arith.constant 0 : index
    %1614 = vector.load %arg25[%1613, %c0_374] : memref<16x256xf32, #tpu.memory_space<vmem>>, vector<1x128xf32>
    %cst_375 = arith.constant dense<0.000000e+00> : vector<1x128xf32>
    %1615 = tpu.matmul %1582, %949, %cst_375 {dimension_numbers = #tpu.dot_dimension_numbers<[1], [0], [0], [1], [0, 0, 1, 1], [], []>} : vector<1x32xf32>, vector<32x128xf32>, vector<1x128xf32> -> vector<1x128xf32>
    %1616 = arith.addf %1614, %1615 : vector<1x128xf32>
    %1617 = vector.extract_strided_slice %1616 {offsets = [0, 0], sizes = [1, 64], strides = [1, 1]} : vector<1x128xf32> to vector<1x64xf32>
    %1618 = arith.negf %1617 : vector<1x64xf32>
    %1619 = math.exp %1618 : vector<1x64xf32>
    %cst_376 = arith.constant 1.000000e+00 : f32
    %1620 = vector.broadcast %cst_376 : f32 to vector<1x64xf32>
    %1621 = arith.addf %1620, %1619 : vector<1x64xf32>
    %1622 = arith.divf %1620, %1621 : vector<1x64xf32>
    %1623 = vector.extract_strided_slice %1622 {offsets = [0, 0], sizes = [1, 32], strides = [1, 1]} : vector<1x64xf32> to vector<1x32xf32>
    %1624 = vector.extract_strided_slice %1622 {offsets = [0, 32], sizes = [1, 32], strides = [1, 1]} : vector<1x64xf32> to vector<1x32xf32>
    %1625 = vector.extract_strided_slice %1616 {offsets = [0, 64], sizes = [1, 32], strides = [1, 1]} : vector<1x128xf32> to vector<1x32xf32>
    %1626 = math.tanh %1625 : vector<1x32xf32>
    %1627 = vector.extract_strided_slice %1616 {offsets = [0, 96], sizes = [1, 32], strides = [1, 1]} : vector<1x128xf32> to vector<1x32xf32>
    %1628 = arith.negf %1627 : vector<1x32xf32>
    %1629 = math.exp %1628 : vector<1x32xf32>
    %cst_377 = arith.constant 1.000000e+00 : f32
    %1630 = vector.broadcast %cst_377 : f32 to vector<1x32xf32>
    %1631 = arith.addf %1630, %1629 : vector<1x32xf32>
    %1632 = arith.divf %1630, %1631 : vector<1x32xf32>
    %1633 = arith.mulf %1624, %1580 : vector<1x32xf32>
    %1634 = arith.mulf %1623, %1626 : vector<1x32xf32>
    %1635 = arith.addf %1633, %1634 : vector<1x32xf32>
    %1636 = math.tanh %1635 : vector<1x32xf32>
    %1637 = arith.mulf %1632, %1636 : vector<1x32xf32>
    %1638 = arith.index_cast %1612 : i32 to index
    %c128_378 = arith.constant 128 : index
    %1639 = vector.load %arg25[%1638, %c128_378] : memref<16x256xf32, #tpu.memory_space<vmem>>, vector<1x128xf32>
    %cst_379 = arith.constant dense<0.000000e+00> : vector<1x128xf32>
    %1640 = tpu.matmul %1607, %950, %cst_379 {dimension_numbers = #tpu.dot_dimension_numbers<[1], [0], [0], [1], [0, 0, 1, 1], [], []>} : vector<1x32xf32>, vector<32x128xf32>, vector<1x128xf32> -> vector<1x128xf32>
    %1641 = arith.addf %1639, %1640 : vector<1x128xf32>
    %1642 = vector.extract_strided_slice %1641 {offsets = [0, 0], sizes = [1, 64], strides = [1, 1]} : vector<1x128xf32> to vector<1x64xf32>
    %1643 = arith.negf %1642 : vector<1x64xf32>
    %1644 = math.exp %1643 : vector<1x64xf32>
    %cst_380 = arith.constant 1.000000e+00 : f32
    %1645 = vector.broadcast %cst_380 : f32 to vector<1x64xf32>
    %1646 = arith.addf %1645, %1644 : vector<1x64xf32>
    %1647 = arith.divf %1645, %1646 : vector<1x64xf32>
    %1648 = vector.extract_strided_slice %1647 {offsets = [0, 0], sizes = [1, 32], strides = [1, 1]} : vector<1x64xf32> to vector<1x32xf32>
    %1649 = vector.extract_strided_slice %1647 {offsets = [0, 32], sizes = [1, 32], strides = [1, 1]} : vector<1x64xf32> to vector<1x32xf32>
    %1650 = vector.extract_strided_slice %1641 {offsets = [0, 64], sizes = [1, 32], strides = [1, 1]} : vector<1x128xf32> to vector<1x32xf32>
    %1651 = math.tanh %1650 : vector<1x32xf32>
    %1652 = vector.extract_strided_slice %1641 {offsets = [0, 96], sizes = [1, 32], strides = [1, 1]} : vector<1x128xf32> to vector<1x32xf32>
    %1653 = arith.negf %1652 : vector<1x32xf32>
    %1654 = math.exp %1653 : vector<1x32xf32>
    %cst_381 = arith.constant 1.000000e+00 : f32
    %1655 = vector.broadcast %cst_381 : f32 to vector<1x32xf32>
    %1656 = arith.addf %1655, %1654 : vector<1x32xf32>
    %1657 = arith.divf %1655, %1656 : vector<1x32xf32>
    %1658 = arith.mulf %1649, %1605 : vector<1x32xf32>
    %1659 = arith.mulf %1648, %1651 : vector<1x32xf32>
    %1660 = arith.addf %1658, %1659 : vector<1x32xf32>
    %1661 = math.tanh %1660 : vector<1x32xf32>
    %1662 = arith.mulf %1657, %1661 : vector<1x32xf32>
    %1663 = arith.index_cast %c12_i32_372 : i32 to index
    %c0_382 = arith.constant 0 : index
    %1664 = vector.load %arg26[%1663, %c0_382] : memref<16x32xf32, #tpu.memory_space<vmem>>, vector<1x32xf32>
    tpu.vector_store %arg26[%1663, %c0_382], %1637 {strides = array<i32>} : memref<16x32xf32, #tpu.memory_space<vmem>>, vector<1x32xf32>,
    %1665 = arith.index_cast %1612 : i32 to index
    %c0_383 = arith.constant 0 : index
    %1666 = vector.load %arg27[%1665, %c0_383] : memref<16x32xf32, #tpu.memory_space<vmem>>, vector<1x32xf32>
    tpu.vector_store %arg27[%1665, %c0_383], %1662 {strides = array<i32>} : memref<16x32xf32, #tpu.memory_space<vmem>>, vector<1x32xf32>,
    %c13_i32_384 = arith.constant 13 : i32
    %c15_i32_385 = arith.constant 15 : i32
    %1667 = arith.subi %c15_i32_385, %c13_i32_384 : i32
    %1668 = arith.index_cast %c13_i32_384 : i32 to index
    %c0_386 = arith.constant 0 : index
    %1669 = vector.load %arg25[%1668, %c0_386] : memref<16x256xf32, #tpu.memory_space<vmem>>, vector<1x128xf32>
    %cst_387 = arith.constant dense<0.000000e+00> : vector<1x128xf32>
    %1670 = tpu.matmul %1637, %949, %cst_387 {dimension_numbers = #tpu.dot_dimension_numbers<[1], [0], [0], [1], [0, 0, 1, 1], [], []>} : vector<1x32xf32>, vector<32x128xf32>, vector<1x128xf32> -> vector<1x128xf32>
    %1671 = arith.addf %1669, %1670 : vector<1x128xf32>
    %1672 = vector.extract_strided_slice %1671 {offsets = [0, 0], sizes = [1, 64], strides = [1, 1]} : vector<1x128xf32> to vector<1x64xf32>
    %1673 = arith.negf %1672 : vector<1x64xf32>
    %1674 = math.exp %1673 : vector<1x64xf32>
    %cst_388 = arith.constant 1.000000e+00 : f32
    %1675 = vector.broadcast %cst_388 : f32 to vector<1x64xf32>
    %1676 = arith.addf %1675, %1674 : vector<1x64xf32>
    %1677 = arith.divf %1675, %1676 : vector<1x64xf32>
    %1678 = vector.extract_strided_slice %1677 {offsets = [0, 0], sizes = [1, 32], strides = [1, 1]} : vector<1x64xf32> to vector<1x32xf32>
    %1679 = vector.extract_strided_slice %1677 {offsets = [0, 32], sizes = [1, 32], strides = [1, 1]} : vector<1x64xf32> to vector<1x32xf32>
    %1680 = vector.extract_strided_slice %1671 {offsets = [0, 64], sizes = [1, 32], strides = [1, 1]} : vector<1x128xf32> to vector<1x32xf32>
    %1681 = math.tanh %1680 : vector<1x32xf32>
    %1682 = vector.extract_strided_slice %1671 {offsets = [0, 96], sizes = [1, 32], strides = [1, 1]} : vector<1x128xf32> to vector<1x32xf32>
    %1683 = arith.negf %1682 : vector<1x32xf32>
    %1684 = math.exp %1683 : vector<1x32xf32>
    %cst_389 = arith.constant 1.000000e+00 : f32
    %1685 = vector.broadcast %cst_389 : f32 to vector<1x32xf32>
    %1686 = arith.addf %1685, %1684 : vector<1x32xf32>
    %1687 = arith.divf %1685, %1686 : vector<1x32xf32>
    %1688 = arith.mulf %1679, %1635 : vector<1x32xf32>
    %1689 = arith.mulf %1678, %1681 : vector<1x32xf32>
    %1690 = arith.addf %1688, %1689 : vector<1x32xf32>
    %1691 = math.tanh %1690 : vector<1x32xf32>
    %1692 = arith.mulf %1687, %1691 : vector<1x32xf32>
    %1693 = arith.index_cast %1667 : i32 to index
    %c128_390 = arith.constant 128 : index
    %1694 = vector.load %arg25[%1693, %c128_390] : memref<16x256xf32, #tpu.memory_space<vmem>>, vector<1x128xf32>
    %cst_391 = arith.constant dense<0.000000e+00> : vector<1x128xf32>
    %1695 = tpu.matmul %1662, %950, %cst_391 {dimension_numbers = #tpu.dot_dimension_numbers<[1], [0], [0], [1], [0, 0, 1, 1], [], []>} : vector<1x32xf32>, vector<32x128xf32>, vector<1x128xf32> -> vector<1x128xf32>
    %1696 = arith.addf %1694, %1695 : vector<1x128xf32>
    %1697 = vector.extract_strided_slice %1696 {offsets = [0, 0], sizes = [1, 64], strides = [1, 1]} : vector<1x128xf32> to vector<1x64xf32>
    %1698 = arith.negf %1697 : vector<1x64xf32>
    %1699 = math.exp %1698 : vector<1x64xf32>
    %cst_392 = arith.constant 1.000000e+00 : f32
    %1700 = vector.broadcast %cst_392 : f32 to vector<1x64xf32>
    %1701 = arith.addf %1700, %1699 : vector<1x64xf32>
    %1702 = arith.divf %1700, %1701 : vector<1x64xf32>
    %1703 = vector.extract_strided_slice %1702 {offsets = [0, 0], sizes = [1, 32], strides = [1, 1]} : vector<1x64xf32> to vector<1x32xf32>
    %1704 = vector.extract_strided_slice %1702 {offsets = [0, 32], sizes = [1, 32], strides = [1, 1]} : vector<1x64xf32> to vector<1x32xf32>
    %1705 = vector.extract_strided_slice %1696 {offsets = [0, 64], sizes = [1, 32], strides = [1, 1]} : vector<1x128xf32> to vector<1x32xf32>
    %1706 = math.tanh %1705 : vector<1x32xf32>
    %1707 = vector.extract_strided_slice %1696 {offsets = [0, 96], sizes = [1, 32], strides = [1, 1]} : vector<1x128xf32> to vector<1x32xf32>
    %1708 = arith.negf %1707 : vector<1x32xf32>
    %1709 = math.exp %1708 : vector<1x32xf32>
    %cst_393 = arith.constant 1.000000e+00 : f32
    %1710 = vector.broadcast %cst_393 : f32 to vector<1x32xf32>
    %1711 = arith.addf %1710, %1709 : vector<1x32xf32>
    %1712 = arith.divf %1710, %1711 : vector<1x32xf32>
    %1713 = arith.mulf %1704, %1660 : vector<1x32xf32>
    %1714 = arith.mulf %1703, %1706 : vector<1x32xf32>
    %1715 = arith.addf %1713, %1714 : vector<1x32xf32>
    %1716 = math.tanh %1715 : vector<1x32xf32>
    %1717 = arith.mulf %1712, %1716 : vector<1x32xf32>
    %1718 = arith.index_cast %c13_i32_384 : i32 to index
    %c0_394 = arith.constant 0 : index
    %1719 = vector.load %arg26[%1718, %c0_394] : memref<16x32xf32, #tpu.memory_space<vmem>>, vector<1x32xf32>
    tpu.vector_store %arg26[%1718, %c0_394], %1692 {strides = array<i32>} : memref<16x32xf32, #tpu.memory_space<vmem>>, vector<1x32xf32>,
    %1720 = arith.index_cast %1667 : i32 to index
    %c0_395 = arith.constant 0 : index
    %1721 = vector.load %arg27[%1720, %c0_395] : memref<16x32xf32, #tpu.memory_space<vmem>>, vector<1x32xf32>
    tpu.vector_store %arg27[%1720, %c0_395], %1717 {strides = array<i32>} : memref<16x32xf32, #tpu.memory_space<vmem>>, vector<1x32xf32>,
    %c14_i32_396 = arith.constant 14 : i32
    %c15_i32_397 = arith.constant 15 : i32
    %1722 = arith.subi %c15_i32_397, %c14_i32_396 : i32
    %1723 = arith.index_cast %c14_i32_396 : i32 to index
    %c0_398 = arith.constant 0 : index
    %1724 = vector.load %arg25[%1723, %c0_398] : memref<16x256xf32, #tpu.memory_space<vmem>>, vector<1x128xf32>
    %cst_399 = arith.constant dense<0.000000e+00> : vector<1x128xf32>
    %1725 = tpu.matmul %1692, %949, %cst_399 {dimension_numbers = #tpu.dot_dimension_numbers<[1], [0], [0], [1], [0, 0, 1, 1], [], []>} : vector<1x32xf32>, vector<32x128xf32>, vector<1x128xf32> -> vector<1x128xf32>
    %1726 = arith.addf %1724, %1725 : vector<1x128xf32>
    %1727 = vector.extract_strided_slice %1726 {offsets = [0, 0], sizes = [1, 64], strides = [1, 1]} : vector<1x128xf32> to vector<1x64xf32>
    %1728 = arith.negf %1727 : vector<1x64xf32>
    %1729 = math.exp %1728 : vector<1x64xf32>
    %cst_400 = arith.constant 1.000000e+00 : f32
    %1730 = vector.broadcast %cst_400 : f32 to vector<1x64xf32>
    %1731 = arith.addf %1730, %1729 : vector<1x64xf32>
    %1732 = arith.divf %1730, %1731 : vector<1x64xf32>
    %1733 = vector.extract_strided_slice %1732 {offsets = [0, 0], sizes = [1, 32], strides = [1, 1]} : vector<1x64xf32> to vector<1x32xf32>
    %1734 = vector.extract_strided_slice %1732 {offsets = [0, 32], sizes = [1, 32], strides = [1, 1]} : vector<1x64xf32> to vector<1x32xf32>
    %1735 = vector.extract_strided_slice %1726 {offsets = [0, 64], sizes = [1, 32], strides = [1, 1]} : vector<1x128xf32> to vector<1x32xf32>
    %1736 = math.tanh %1735 : vector<1x32xf32>
    %1737 = vector.extract_strided_slice %1726 {offsets = [0, 96], sizes = [1, 32], strides = [1, 1]} : vector<1x128xf32> to vector<1x32xf32>
    %1738 = arith.negf %1737 : vector<1x32xf32>
    %1739 = math.exp %1738 : vector<1x32xf32>
    %cst_401 = arith.constant 1.000000e+00 : f32
    %1740 = vector.broadcast %cst_401 : f32 to vector<1x32xf32>
    %1741 = arith.addf %1740, %1739 : vector<1x32xf32>
    %1742 = arith.divf %1740, %1741 : vector<1x32xf32>
    %1743 = arith.mulf %1734, %1690 : vector<1x32xf32>
    %1744 = arith.mulf %1733, %1736 : vector<1x32xf32>
    %1745 = arith.addf %1743, %1744 : vector<1x32xf32>
    %1746 = math.tanh %1745 : vector<1x32xf32>
    %1747 = arith.mulf %1742, %1746 : vector<1x32xf32>
    %1748 = arith.index_cast %1722 : i32 to index
    %c128_402 = arith.constant 128 : index
    %1749 = vector.load %arg25[%1748, %c128_402] : memref<16x256xf32, #tpu.memory_space<vmem>>, vector<1x128xf32>
    %cst_403 = arith.constant dense<0.000000e+00> : vector<1x128xf32>
    %1750 = tpu.matmul %1717, %950, %cst_403 {dimension_numbers = #tpu.dot_dimension_numbers<[1], [0], [0], [1], [0, 0, 1, 1], [], []>} : vector<1x32xf32>, vector<32x128xf32>, vector<1x128xf32> -> vector<1x128xf32>
    %1751 = arith.addf %1749, %1750 : vector<1x128xf32>
    %1752 = vector.extract_strided_slice %1751 {offsets = [0, 0], sizes = [1, 64], strides = [1, 1]} : vector<1x128xf32> to vector<1x64xf32>
    %1753 = arith.negf %1752 : vector<1x64xf32>
    %1754 = math.exp %1753 : vector<1x64xf32>
    %cst_404 = arith.constant 1.000000e+00 : f32
    %1755 = vector.broadcast %cst_404 : f32 to vector<1x64xf32>
    %1756 = arith.addf %1755, %1754 : vector<1x64xf32>
    %1757 = arith.divf %1755, %1756 : vector<1x64xf32>
    %1758 = vector.extract_strided_slice %1757 {offsets = [0, 0], sizes = [1, 32], strides = [1, 1]} : vector<1x64xf32> to vector<1x32xf32>
    %1759 = vector.extract_strided_slice %1757 {offsets = [0, 32], sizes = [1, 32], strides = [1, 1]} : vector<1x64xf32> to vector<1x32xf32>
    %1760 = vector.extract_strided_slice %1751 {offsets = [0, 64], sizes = [1, 32], strides = [1, 1]} : vector<1x128xf32> to vector<1x32xf32>
    %1761 = math.tanh %1760 : vector<1x32xf32>
    %1762 = vector.extract_strided_slice %1751 {offsets = [0, 96], sizes = [1, 32], strides = [1, 1]} : vector<1x128xf32> to vector<1x32xf32>
    %1763 = arith.negf %1762 : vector<1x32xf32>
    %1764 = math.exp %1763 : vector<1x32xf32>
    %cst_405 = arith.constant 1.000000e+00 : f32
    %1765 = vector.broadcast %cst_405 : f32 to vector<1x32xf32>
    %1766 = arith.addf %1765, %1764 : vector<1x32xf32>
    %1767 = arith.divf %1765, %1766 : vector<1x32xf32>
    %1768 = arith.mulf %1759, %1715 : vector<1x32xf32>
    %1769 = arith.mulf %1758, %1761 : vector<1x32xf32>
    %1770 = arith.addf %1768, %1769 : vector<1x32xf32>
    %1771 = math.tanh %1770 : vector<1x32xf32>
    %1772 = arith.mulf %1767, %1771 : vector<1x32xf32>
    %1773 = arith.index_cast %c14_i32_396 : i32 to index
    %c0_406 = arith.constant 0 : index
    %1774 = vector.load %arg26[%1773, %c0_406] : memref<16x32xf32, #tpu.memory_space<vmem>>, vector<1x32xf32>
    tpu.vector_store %arg26[%1773, %c0_406], %1747 {strides = array<i32>} : memref<16x32xf32, #tpu.memory_space<vmem>>, vector<1x32xf32>,
    %1775 = arith.index_cast %1722 : i32 to index
    %c0_407 = arith.constant 0 : index
    %1776 = vector.load %arg27[%1775, %c0_407] : memref<16x32xf32, #tpu.memory_space<vmem>>, vector<1x32xf32>
    tpu.vector_store %arg27[%1775, %c0_407], %1772 {strides = array<i32>} : memref<16x32xf32, #tpu.memory_space<vmem>>, vector<1x32xf32>,
    %c15_i32_408 = arith.constant 15 : i32
    %c15_i32_409 = arith.constant 15 : i32
    %1777 = arith.subi %c15_i32_409, %c15_i32_408 : i32
    %1778 = arith.index_cast %c15_i32_408 : i32 to index
    %c0_410 = arith.constant 0 : index
    %1779 = vector.load %arg25[%1778, %c0_410] : memref<16x256xf32, #tpu.memory_space<vmem>>, vector<1x128xf32>
    %cst_411 = arith.constant dense<0.000000e+00> : vector<1x128xf32>
    %1780 = tpu.matmul %1747, %949, %cst_411 {dimension_numbers = #tpu.dot_dimension_numbers<[1], [0], [0], [1], [0, 0, 1, 1], [], []>} : vector<1x32xf32>, vector<32x128xf32>, vector<1x128xf32> -> vector<1x128xf32>
    %1781 = arith.addf %1779, %1780 : vector<1x128xf32>
    %1782 = vector.extract_strided_slice %1781 {offsets = [0, 0], sizes = [1, 64], strides = [1, 1]} : vector<1x128xf32> to vector<1x64xf32>
    %1783 = arith.negf %1782 : vector<1x64xf32>
    %1784 = math.exp %1783 : vector<1x64xf32>
    %cst_412 = arith.constant 1.000000e+00 : f32
    %1785 = vector.broadcast %cst_412 : f32 to vector<1x64xf32>
    %1786 = arith.addf %1785, %1784 : vector<1x64xf32>
    %1787 = arith.divf %1785, %1786 : vector<1x64xf32>
    %1788 = vector.extract_strided_slice %1787 {offsets = [0, 0], sizes = [1, 32], strides = [1, 1]} : vector<1x64xf32> to vector<1x32xf32>
    %1789 = vector.extract_strided_slice %1787 {offsets = [0, 32], sizes = [1, 32], strides = [1, 1]} : vector<1x64xf32> to vector<1x32xf32>
    %1790 = vector.extract_strided_slice %1781 {offsets = [0, 64], sizes = [1, 32], strides = [1, 1]} : vector<1x128xf32> to vector<1x32xf32>
    %1791 = math.tanh %1790 : vector<1x32xf32>
    %1792 = vector.extract_strided_slice %1781 {offsets = [0, 96], sizes = [1, 32], strides = [1, 1]} : vector<1x128xf32> to vector<1x32xf32>
    %1793 = arith.negf %1792 : vector<1x32xf32>
    %1794 = math.exp %1793 : vector<1x32xf32>
    %cst_413 = arith.constant 1.000000e+00 : f32
    %1795 = vector.broadcast %cst_413 : f32 to vector<1x32xf32>
    %1796 = arith.addf %1795, %1794 : vector<1x32xf32>
    %1797 = arith.divf %1795, %1796 : vector<1x32xf32>
    %1798 = arith.mulf %1789, %1745 : vector<1x32xf32>
    %1799 = arith.mulf %1788, %1791 : vector<1x32xf32>
    %1800 = arith.addf %1798, %1799 : vector<1x32xf32>
    %1801 = math.tanh %1800 : vector<1x32xf32>
    %1802 = arith.mulf %1797, %1801 : vector<1x32xf32>
    %1803 = arith.index_cast %1777 : i32 to index
    %c128_414 = arith.constant 128 : index
    %1804 = vector.load %arg25[%1803, %c128_414] : memref<16x256xf32, #tpu.memory_space<vmem>>, vector<1x128xf32>
    %cst_415 = arith.constant dense<0.000000e+00> : vector<1x128xf32>
    %1805 = tpu.matmul %1772, %950, %cst_415 {dimension_numbers = #tpu.dot_dimension_numbers<[1], [0], [0], [1], [0, 0, 1, 1], [], []>} : vector<1x32xf32>, vector<32x128xf32>, vector<1x128xf32> -> vector<1x128xf32>
    %1806 = arith.addf %1804, %1805 : vector<1x128xf32>
    %1807 = vector.extract_strided_slice %1806 {offsets = [0, 0], sizes = [1, 64], strides = [1, 1]} : vector<1x128xf32> to vector<1x64xf32>
    %1808 = arith.negf %1807 : vector<1x64xf32>
    %1809 = math.exp %1808 : vector<1x64xf32>
    %cst_416 = arith.constant 1.000000e+00 : f32
    %1810 = vector.broadcast %cst_416 : f32 to vector<1x64xf32>
    %1811 = arith.addf %1810, %1809 : vector<1x64xf32>
    %1812 = arith.divf %1810, %1811 : vector<1x64xf32>
    %1813 = vector.extract_strided_slice %1812 {offsets = [0, 0], sizes = [1, 32], strides = [1, 1]} : vector<1x64xf32> to vector<1x32xf32>
    %1814 = vector.extract_strided_slice %1812 {offsets = [0, 32], sizes = [1, 32], strides = [1, 1]} : vector<1x64xf32> to vector<1x32xf32>
    %1815 = vector.extract_strided_slice %1806 {offsets = [0, 64], sizes = [1, 32], strides = [1, 1]} : vector<1x128xf32> to vector<1x32xf32>
    %1816 = math.tanh %1815 : vector<1x32xf32>
    %1817 = vector.extract_strided_slice %1806 {offsets = [0, 96], sizes = [1, 32], strides = [1, 1]} : vector<1x128xf32> to vector<1x32xf32>
    %1818 = arith.negf %1817 : vector<1x32xf32>
    %1819 = math.exp %1818 : vector<1x32xf32>
    %cst_417 = arith.constant 1.000000e+00 : f32
    %1820 = vector.broadcast %cst_417 : f32 to vector<1x32xf32>
    %1821 = arith.addf %1820, %1819 : vector<1x32xf32>
    %1822 = arith.divf %1820, %1821 : vector<1x32xf32>
    %1823 = arith.mulf %1814, %1770 : vector<1x32xf32>
    %1824 = arith.mulf %1813, %1816 : vector<1x32xf32>
    %1825 = arith.addf %1823, %1824 : vector<1x32xf32>
    %1826 = math.tanh %1825 : vector<1x32xf32>
    %1827 = arith.mulf %1822, %1826 : vector<1x32xf32>
    %1828 = arith.index_cast %c15_i32_408 : i32 to index
    %c0_418 = arith.constant 0 : index
    %1829 = vector.load %arg26[%1828, %c0_418] : memref<16x32xf32, #tpu.memory_space<vmem>>, vector<1x32xf32>
    tpu.vector_store %arg26[%1828, %c0_418], %1802 {strides = array<i32>} : memref<16x32xf32, #tpu.memory_space<vmem>>, vector<1x32xf32>,
    %1830 = arith.index_cast %1777 : i32 to index
    %c0_419 = arith.constant 0 : index
    %1831 = vector.load %arg27[%1830, %c0_419] : memref<16x32xf32, #tpu.memory_space<vmem>>, vector<1x32xf32>
    tpu.vector_store %arg27[%1830, %c0_419], %1827 {strides = array<i32>} : memref<16x32xf32, #tpu.memory_space<vmem>>, vector<1x32xf32>,
    %c16_i32_420 = arith.constant 16 : i32
    %c0_421 = arith.constant 0 : index
    %c0_422 = arith.constant 0 : index
    %1832 = vector.load %arg26[%c0_421, %c0_422] : memref<16x32xf32, #tpu.memory_space<vmem>>, vector<16x32xf32>
    %c0_423 = arith.constant 0 : index
    %c0_424 = arith.constant 0 : index
    %1833 = vector.load %arg27[%c0_423, %c0_424] : memref<16x32xf32, #tpu.memory_space<vmem>>, vector<16x32xf32>
    %1834 = tpu.concatenate %1832, %1833 in 1 : vector<16x32xf32>, vector<16x32xf32> -> vector<16x64xf32>
    %c0_425 = arith.constant 0 : index
    %c0_426 = arith.constant 0 : index
    %1835 = vector.load %arg18[%c0_425, %c0_426] : memref<64x32xf32, #tpu.memory_space<vmem>>, vector<64x32xf32>
    %cst_427 = arith.constant dense<0.000000e+00> : vector<16x32xf32>
    %1836 = tpu.matmul %1834, %1835, %cst_427 {dimension_numbers = #tpu.dot_dimension_numbers<[1], [0], [0], [1], [0, 0, 1, 1], [], []>} : vector<16x64xf32>, vector<64x32xf32>, vector<16x32xf32> -> vector<16x32xf32>
    %c0_428 = arith.constant 0 : index
    %c0_429 = arith.constant 0 : index
    %1837 = vector.load %arg19[%c0_428, %c0_429] : memref<1x32xf32, #tpu.memory_space<vmem>>, vector<1x32xf32>
    %1838 = vector.broadcast %1837 : vector<1x32xf32> to vector<16x32xf32>
    %1839 = arith.addf %1836, %1838 : vector<16x32xf32>
    %cst_430 = arith.constant 0.000000e+00 : f32
    %1840 = vector.broadcast %cst_430 : f32 to vector<16x32xf32>
    %1841 = arith.cmpf ogt, %1839, %1840 : vector<16x32xf32>
    %cst_431 = arith.constant 1.000000e-01 : f32
    %1842 = vector.broadcast %cst_431 : f32 to vector<16x32xf32>
    %1843 = arith.mulf %1842, %1839 : vector<16x32xf32>
    %1844 = arith.select %1841, %1839, %1843 : vector<16x32xi1>, vector<16x32xf32>
    %c0_432 = arith.constant 0 : index
    %c0_433 = arith.constant 0 : index
    %1845 = vector.load %arg20[%c0_432, %c0_433] : memref<32x64xf32, #tpu.memory_space<vmem>>, vector<32x64xf32>
    %cst_434 = arith.constant dense<0.000000e+00> : vector<16x64xf32>
    %1846 = tpu.matmul %1844, %1845, %cst_434 {dimension_numbers = #tpu.dot_dimension_numbers<[1], [0], [0], [1], [0, 0, 1, 1], [], []>} : vector<16x32xf32>, vector<32x64xf32>, vector<16x64xf32> -> vector<16x64xf32>
    %c0_435 = arith.constant 0 : index
    %c0_436 = arith.constant 0 : index
    %1847 = vector.load %arg21[%c0_435, %c0_436] : memref<1x64xf32, #tpu.memory_space<vmem>>, vector<1x64xf32>
    %1848 = vector.broadcast %1847 : vector<1x64xf32> to vector<16x64xf32>
    %1849 = arith.addf %1846, %1848 : vector<16x64xf32>
    %cst_437 = arith.constant 0.000000e+00 : f32
    %1850 = vector.broadcast %cst_437 : f32 to vector<16x64xf32>
    %1851 = arith.cmpf ogt, %1849, %1850 : vector<16x64xf32>
    %cst_438 = arith.constant 1.000000e-01 : f32
    %1852 = vector.broadcast %cst_438 : f32 to vector<16x64xf32>
    %1853 = arith.mulf %1852, %1849 : vector<16x64xf32>
    %1854 = arith.select %1851, %1849, %1853 : vector<16x64xi1>, vector<16x64xf32>
    %c0_439 = arith.constant 0 : index
    %c0_440 = arith.constant 0 : index
    %1855 = vector.load %arg22[%c0_439, %c0_440] : memref<1x64xf32, #tpu.memory_space<vmem>>, vector<1x64xf32>
    %cst_441 = arith.constant dense<0.000000e+00> : vector<1x16xf32>
    %1856 = tpu.matmul %1855, %1854, %cst_441 {dimension_numbers = #tpu.dot_dimension_numbers<[1], [1], [0], [0], [0, 0, 1, 0], [], []>} : vector<1x64xf32>, vector<16x64xf32>, vector<1x16xf32> -> vector<1x16xf32>
    %c0_442 = arith.constant 0 : index
    %c0_443 = arith.constant 0 : index
    %1857 = vector.load %arg23[%c0_442, %c0_443] : memref<1x1xf32, #tpu.memory_space<vmem>>, vector<1x1xf32>
    %1858 = vector.broadcast %1857 : vector<1x1xf32> to vector<1x16xf32>
    %1859 = arith.addf %1856, %1858 : vector<1x16xf32>
    %1860 = arith.negf %1859 : vector<1x16xf32>
    %1861 = math.exp %1860 : vector<1x16xf32>
    %cst_444 = arith.constant 1.000000e+00 : f32
    %1862 = vector.broadcast %cst_444 : f32 to vector<1x16xf32>
    %1863 = arith.addf %1862, %1861 : vector<1x16xf32>
    %1864 = arith.divf %1862, %1863 : vector<1x16xf32>
    %c0_445 = arith.constant 0 : index
    %c0_446 = arith.constant 0 : index
    %c0_447 = arith.constant 0 : index
    %1865 = vector.load %arg24[%c0_445, %c0_446, %c0_447] : memref<1x1x16xf32, #tpu.memory_space<vmem>>, vector<1x1x16xf32>
    %1866 = vector.shape_cast %1865 : vector<1x1x16xf32> to vector<1x16xf32>
    %1867 = vector.shape_cast %1864 : vector<1x16xf32> to vector<1x1x16xf32>
    tpu.vector_store %arg24[%c0_445, %c0_446, %c0_447], %1867 {strides = array<i32>} : memref<1x1x16xf32, #tpu.memory_space<vmem>>, vector<1x1x16xf32>,
    return
  }
  func.func @transform_0(%arg0: i32) -> (i32, i32, i32) {
    %c0_i32 = arith.constant 0 : i32
    %c0_i32_0 = arith.constant 0 : i32
    %c0_i32_1 = arith.constant 0 : i32
    return %arg0, %c0_i32, %c0_i32_0 : i32, i32, i32
  }
  func.func @transform_1(%arg0: i32) -> (i32, i32) {
    %c0_i32 = arith.constant 0 : i32
    %c0_i32_0 = arith.constant 0 : i32
    %c0_i32_1 = arith.constant 0 : i32
    return %c0_i32, %c0_i32_0 : i32, i32
  }
  func.func @transform_2(%arg0: i32) -> (i32, i32) {
    %c0_i32 = arith.constant 0 : i32
    %c0_i32_0 = arith.constant 0 : i32
    %c0_i32_1 = arith.constant 0 : i32
    return %c0_i32, %c0_i32_0 : i32, i32
  }
  func.func @transform_3(%arg0: i32) -> (i32, i32) {
    %c0_i32 = arith.constant 0 : i32
    %c0_i32_0 = arith.constant 0 : i32
    %c0_i32_1 = arith.constant 0 : i32
    return %c0_i32, %c0_i32_0 : i32, i32
  }
  func.func @transform_4(%arg0: i32) -> (i32, i32) {
    %c0_i32 = arith.constant 0 : i32
    %c0_i32_0 = arith.constant 0 : i32
    %c0_i32_1 = arith.constant 0 : i32
    return %c0_i32, %c0_i32_0 : i32, i32
  }
  func.func @transform_5(%arg0: i32) -> (i32, i32) {
    %c0_i32 = arith.constant 0 : i32
    %c0_i32_0 = arith.constant 0 : i32
    %c0_i32_1 = arith.constant 0 : i32
    return %c0_i32, %c0_i32_0 : i32, i32
  }
  func.func @transform_6(%arg0: i32) -> (i32, i32) {
    %c0_i32 = arith.constant 0 : i32
    %c0_i32_0 = arith.constant 0 : i32
    %c0_i32_1 = arith.constant 0 : i32
    return %c0_i32, %c0_i32_0 : i32, i32
  }
  func.func @transform_7(%arg0: i32) -> (i32, i32) {
    %c0_i32 = arith.constant 0 : i32
    %c0_i32_0 = arith.constant 0 : i32
    %c0_i32_1 = arith.constant 0 : i32
    return %c0_i32, %c0_i32_0 : i32, i32
  }
  func.func @transform_8(%arg0: i32) -> (i32, i32) {
    %c0_i32 = arith.constant 0 : i32
    %c0_i32_0 = arith.constant 0 : i32
    %c0_i32_1 = arith.constant 0 : i32
    return %c0_i32, %c0_i32_0 : i32, i32
  }
  func.func @transform_9(%arg0: i32) -> (i32, i32) {
    %c0_i32 = arith.constant 0 : i32
    %c0_i32_0 = arith.constant 0 : i32
    %c0_i32_1 = arith.constant 0 : i32
    return %c0_i32, %c0_i32_0 : i32, i32
  }
  func.func @transform_10(%arg0: i32) -> (i32, i32) {
    %c0_i32 = arith.constant 0 : i32
    %c0_i32_0 = arith.constant 0 : i32
    %c0_i32_1 = arith.constant 0 : i32
    return %c0_i32, %c0_i32_0 : i32, i32
  }
  func.func @transform_11(%arg0: i32) -> (i32, i32) {
    %c0_i32 = arith.constant 0 : i32
    %c0_i32_0 = arith.constant 0 : i32
    %c0_i32_1 = arith.constant 0 : i32
    return %c0_i32, %c0_i32_0 : i32, i32
  }
  func.func @transform_12(%arg0: i32) -> (i32, i32) {
    %c0_i32 = arith.constant 0 : i32
    %c0_i32_0 = arith.constant 0 : i32
    %c0_i32_1 = arith.constant 0 : i32
    return %c0_i32, %c0_i32_0 : i32, i32
  }
  func.func @transform_13(%arg0: i32) -> (i32, i32) {
    %c0_i32 = arith.constant 0 : i32
    %c0_i32_0 = arith.constant 0 : i32
    %c0_i32_1 = arith.constant 0 : i32
    return %c0_i32, %c0_i32_0 : i32, i32
  }
  func.func @transform_14(%arg0: i32) -> (i32, i32) {
    %c0_i32 = arith.constant 0 : i32
    %c0_i32_0 = arith.constant 0 : i32
    %c0_i32_1 = arith.constant 0 : i32
    return %c0_i32, %c0_i32_0 : i32, i32
  }
  func.func @transform_15(%arg0: i32) -> (i32, i32) {
    %c0_i32 = arith.constant 0 : i32
    %c0_i32_0 = arith.constant 0 : i32
    %c0_i32_1 = arith.constant 0 : i32
    return %c0_i32, %c0_i32_0 : i32, i32
  }
  func.func @transform_16(%arg0: i32) -> (i32, i32) {
    %c0_i32 = arith.constant 0 : i32
    %c0_i32_0 = arith.constant 0 : i32
    %c0_i32_1 = arith.constant 0 : i32
    return %c0_i32, %c0_i32_0 : i32, i32
  }
  func.func @transform_17(%arg0: i32) -> (i32, i32) {
    %c0_i32 = arith.constant 0 : i32
    %c0_i32_0 = arith.constant 0 : i32
    %c0_i32_1 = arith.constant 0 : i32
    return %c0_i32, %c0_i32_0 : i32, i32
  }
  func.func @transform_18(%arg0: i32) -> (i32, i32) {
    %c0_i32 = arith.constant 0 : i32
    %c0_i32_0 = arith.constant 0 : i32
    %c0_i32_1 = arith.constant 0 : i32
    return %c0_i32, %c0_i32_0 : i32, i32
  }
  func.func @transform_19(%arg0: i32) -> (i32, i32) {
    %c0_i32 = arith.constant 0 : i32
    %c0_i32_0 = arith.constant 0 : i32
    %c0_i32_1 = arith.constant 0 : i32
    return %c0_i32, %c0_i32_0 : i32, i32
  }
  func.func @transform_20(%arg0: i32) -> (i32, i32) {
    %c0_i32 = arith.constant 0 : i32
    %c0_i32_0 = arith.constant 0 : i32
    %c0_i32_1 = arith.constant 0 : i32
    return %c0_i32, %c0_i32_0 : i32, i32
  }
  func.func @transform_21(%arg0: i32) -> (i32, i32) {
    %c0_i32 = arith.constant 0 : i32
    %c0_i32_0 = arith.constant 0 : i32
    %c0_i32_1 = arith.constant 0 : i32
    return %c0_i32, %c0_i32_0 : i32, i32
  }
  func.func @transform_22(%arg0: i32) -> (i32, i32) {
    %c0_i32 = arith.constant 0 : i32
    %c0_i32_0 = arith.constant 0 : i32
    %c0_i32_1 = arith.constant 0 : i32
    return %c0_i32, %c0_i32_0 : i32, i32
  }
  func.func @transform_23(%arg0: i32) -> (i32, i32, i32) {
    %c0_i32 = arith.constant 0 : i32
    %c0_i32_0 = arith.constant 0 : i32
    %c0_i32_1 = arith.constant 0 : i32
    return %arg0, %c0_i32, %c0_i32_0 : i32, i32, i32
  }
}

</mosaic_0001>

<llo_original>
// kernel: cnn_lstm_forward.1
$region0: #{cnn_lstm_forward.1}
  #allocation0 [shape = 'u32[]', space=smem, size = 0x4, offset = 0x4, fixed_abs, tag = 'smem constant byte address 0x4 - core index']
  #allocation1 [shape = 'u32[72,128]{1,0:T(1,128)}', space=vmem, size = 0x9000, scoped, tag = 'internal scratch']
  #allocation2 [shape = 'f32[16,256]{1,0:T(8,128)}', space=vmem, size = 0x4000, scoped, tag = 'scratch operand']
  #allocation3 [shape = 'f32[16,32]{1,0:T(8,128)}', space=vmem, size = 0x2000, scoped, tag = 'scratch operand']
  #allocation4 [shape = 'f32[16,32]{1,0:T(8,128)}', space=vmem, size = 0x2000, scoped, tag = 'scratch operand']
  #allocation5 [shape = 'f32[1,1]{1,0:T(1,128)S(1)}', space=vmem, size = 0x200, scoped, tag = 'scoped memory for cnn_lstm_forward.1']
  %s0 = inlined_call_operand.vmem [shape: f32[2,16,8], index: 0, kind: input, shape index: {}]
  %s1 = inlined_call_operand.hbm [shape: f32[24,48], index: 1, kind: input, shape index: {}]
  %s2 = inlined_call_operand.vmem [shape: f32[1,16], index: 2, kind: input, shape index: {}]
  %s3 = inlined_call_operand.vmem [shape: f32[1,16], index: 3, kind: input, shape index: {}]
  %s4 = inlined_call_operand.vmem [shape: f32[80,32], index: 4, kind: input, shape index: {}]
  %s5 = inlined_call_operand.vmem [shape: f32[1,32], index: 5, kind: input, shape index: {}]
  %s6 = inlined_call_operand.vmem [shape: f32[1,32], index: 6, kind: input, shape index: {}]
  %s7 = inlined_call_operand.vmem [shape: f32[1,32], index: 7, kind: input, shape index: {}]
  %s8 = inlined_call_operand.vmem [shape: f32[1,32], index: 8, kind: input, shape index: {}]
  %s9 = inlined_call_operand.vmem [shape: f32[32,256], index: 9, kind: input, shape index: {}]
  %s10 = inlined_call_operand.vmem [shape: f32[1,256], index: 10, kind: input, shape index: {}]
  %s11 = inlined_call_operand.hbm [shape: f32[32,128], index: 11, kind: input, shape index: {}]
  %s12 = inlined_call_operand.hbm [shape: f32[32,128], index: 12, kind: input, shape index: {}]
  %s13 = inlined_call_operand.vmem [shape: f32[64,256], index: 13, kind: input, shape index: {}]
  %s14 = inlined_call_operand.vmem [shape: f32[1,256], index: 14, kind: input, shape index: {}]
  %s15 = inlined_call_operand.hbm [shape: f32[32,128], index: 15, kind: input, shape index: {}]
  %s16 = inlined_call_operand.hbm [shape: f32[32,128], index: 16, kind: input, shape index: {}]
  %s17 = inlined_call_operand.vmem [shape: f32[64,32], index: 17, kind: input, shape index: {}]
  %s18 = inlined_call_operand.hbm [shape: f32[1,32], index: 18, kind: input, shape index: {}]
  %s19 = inlined_call_operand.hbm [shape: f32[32,64], index: 19, kind: input, shape index: {}]
  %s20 = inlined_call_operand.hbm [shape: f32[1,64], index: 20, kind: input, shape index: {}]
  %s21 = inlined_call_operand.vmem [shape: f32[1,64], index: 21, kind: input, shape index: {}]
  %s22 = inlined_call_operand.<no memory space> [shape: f32[1,1], index: 22, kind: input, shape index: {}]
  %s23 = inlined_call_operand.hbm [shape: f32[2,1,16], index: 23, kind: output, shape index: {}]
  %s24 = sld [smem:[#allocation0]]
  $region157: #{cnn_lstm_forward.1} parent=0
    _
  %s26 = ssub.s32 1, %s24
  %s27 = scalar_select 0, %s26, %s24
  %v28 = vstv %s22
  %29 = vst [vmem:[#allocation5] sm:$0x1] %v28
  $region1: #{cnn_lstm_forward.1} parent=0
    #allocation6 [shape = 'u8[12288]{0}', space=vmem, size = 0x3000, scoped, tag = 'input window, operand 1, single buffered']
    #allocation7 [shape = 's32[2]{0}', space=sflag, size = 0x8, scoped, tag = 'scoped memory for cnn_lstm_forward.1']
    #allocation8 [shape = 's32[2]{0}', space=sflag, size = 0x8, scoped, tag = 'scoped memory for cnn_lstm_forward.1']
    #allocation9 [shape = 'u8[16384]{0}', space=vmem, size = 0x4000, scoped, tag = 'input window, operand 11, single buffered']
    #allocation10 [shape = 's32[1]{0}', space=sflag, size = 0x4, scoped, tag = 'scoped memory for cnn_lstm_forward.1']
    #allocation11 [shape = 'u8[16384]{0}', space=vmem, size = 0x4000, scoped, tag = 'input window, operand 12, single buffered']
    #allocation12 [shape = 'u8[16384]{0}', space=vmem, size = 0x4000, scoped, tag = 'input window, operand 15, single buffered']
    #allocation13 [shape = 's32[1]{0}', space=sflag, size = 0x4, scoped, tag = 'scoped memory for cnn_lstm_forward.1']
    #allocation14 [shape = 'u8[16384]{0}', space=vmem, size = 0x4000, scoped, tag = 'input window, operand 16, single buffered']
    #allocation15 [shape = 'u8[512]{0}', space=vmem, size = 0x400, scoped, tag = 'input window, operand 18, single buffered']
    #allocation16 [shape = 's32[1]{0}', space=sflag, size = 0x4, scoped, tag = 'scoped memory for cnn_lstm_forward.1']
    #allocation17 [shape = 'u8[16384]{0}', space=vmem, size = 0x4000, scoped, tag = 'input window, operand 19, single buffered']
    #allocation18 [shape = 'u8[512]{0}', space=vmem, size = 0x400, scoped, tag = 'input window, operand 20, single buffered']
    #allocation19 [shape = 's32[1]{0}', space=sflag, size = 0x4, scoped, tag = 'scoped memory for cnn_lstm_forward.1']
    #allocation20 [shape = 'u8[1024]{0}', space=vmem, size = 0x400, scoped, tag = 'output window, operand 0']
    %30 = vsyncpa [#allocation7], 0
    %31 = vsyncpa [#allocation10], 0
    %32 = vsyncpa [#allocation13], 0
    %33 = vsyncpa [#allocation16], 0
    %34 = vsyncpa [#allocation19], 0
    %35 = vsyncpa [#allocation8], 0
    %s36 = scalar_lea.sflag [#allocation8], 1
    %37 = vsyncpa %s36, 0
    loop: start=0, step=1, limit=4
    $region2: #{cnn_lstm_forward.1} parent=1 // loop_pre_header
      _
    $region3: #{cnn_lstm_forward.1} parent=1 // loop_header
      %s39 = sphi 0, %s43
      %p40 = scmp.ge.s32.totalorder %s39, 4
      %s49 = sphi 0, %s51
      %s52 = sphi 0, %s49
      %s53 = sphi 0, %s52
      %s69 = sphi 0, %s53
      %s73 = sphi 0, %s73
      %s75 = sphi 0, %s73
      %s76 = sphi 0, %s75
      %s90 = sphi 0, %s76
      %s94 = sphi 0, %s94
      %s96 = sphi 0, %s94
      %s97 = sphi 0, %s96
      %s111 = sphi 0, %s97
      %s115 = sphi 0, %s115
      %s117 = sphi 0, %s115
      %s118 = sphi 0, %s117
      %s132 = sphi 0, %s118
      %s136 = sphi 0, %s136
      %s138 = sphi 0, %s136
      %s139 = sphi 0, %s138
      %s153 = sphi 0, %s139
      %s157 = sphi 0, %s157
      %s159 = sphi 0, %s157
      %s160 = sphi 0, %s159
      %s174 = sphi 0, %s160
      %s178 = sphi 0, %s178
      %s180 = sphi 0, %s178
      %s181 = sphi 0, %s180
      %s195 = sphi 0, %s181
      %s199 = sphi 0, %s199
      %s201 = sphi 0, %s199
      %s202 = sphi 0, %s201
      %s216 = sphi 0, %s202
      %s220 = sphi 0, %s220
      %s222 = sphi 0, %s220
      %s223 = sphi 0, %s222
      %s237 = sphi 0, %s223
      %s241 = sphi 0, %s241
      %s243 = sphi 0, %s241
      %s244 = sphi 0, %s243
      %s258 = sphi 0, %s244
      %s262 = sphi 0, %s262
      %s264 = sphi 0, %s262
      %s265 = sphi 0, %s264
      %s279 = sphi 0, %s265
      %s283 = sphi 0, %s283
      %s285 = sphi 0, %s283
      %s286 = sphi 0, %s285
      %s300 = sphi 0, %s286
      %s304 = sphi 0, %s304
      %s306 = sphi 0, %s304
      %s307 = sphi 0, %s306
      %s321 = sphi 0, %s307
      %s325 = sphi 0, %s325
      %s327 = sphi 0, %s325
      %s328 = sphi 0, %s327
      %s342 = sphi 0, %s328
      %s346 = sphi 0, %s346
      %s348 = sphi 0, %s346
      %s349 = sphi 0, %s348
      %s363 = sphi 0, %s349
      %s367 = sphi 0, %s367
      %s369 = sphi 0, %s367
      %s370 = sphi 0, %s369
      %s384 = sphi 0, %s370
      %s388 = sphi 0, %s388
      %s390 = sphi 0, %s388
      %s391 = sphi 0, %s390
      %s405 = sphi 0, %s391
      %s409 = sphi 0, %s409
      %s411 = sphi 0, %s409
      %s412 = sphi 0, %s411
      %s426 = sphi 0, %s412
      %s430 = sphi 0, %s430
      %s432 = sphi 0, %s430
      %s433 = sphi 0, %s432
      %s447 = sphi 0, %s433
      %s451 = sphi 0, %s451
      %s453 = sphi 0, %s451
      %s454 = sphi 0, %s453
      %s468 = sphi 0, %s454
      %s472 = sphi 0, %s472
      %s474 = sphi 0, %s472
      %s475 = sphi 0, %s474
      %s489 = sphi 0, %s475
      %s493 = sphi 0, %s493
      %s495 = sphi 0, %s493
      %s496 = sphi 0, %s495
      %s510 = sphi 0, %s496
      %s514 = sphi 0, %s514
      %s516 = sphi 0, %s514
      %s517 = sphi 0, %s516
      %s531 = sphi 0, %s517
      %s537 = sphi 0, %s539
      %s540 = sphi 0, %s537
      %s541 = sphi 0, %s540
      %s557 = sphi 0, %s541
    $region4: #{cnn_lstm_forward.1} parent=1 // loop_header_branch
      %42 = sbr.rel (%p40) target = $region8
    $region5: #{cnn_lstm_forward.1} parent=1 // loop_body
      %s44 = ssub.s32 %s39, 1
      %s45 = ssub.s32 %s39, 2
      %s46 = sadd.s32 %s39, 1
      %s47 = ssub.s32 %s39, %s46
      %p48 = scmp.eq.s32.totalorder %s47, 0
      %s50 = sadd.s32 %s49, 1
      %s51 = scalar_select %p48, %s49, %s50
      %p54 = pneg %p48
      %p55 = scmp.eq.s32.totalorder %s39, 1
      %p56 = por %p54, %p55
      %p57 = scmp.ne.s32.totalorder %s49, %s52
      %p58 = scmp.eq.s32.totalorder %s39, 0
      %p59 = por %p57, %p58
      %p60 = scmp.ne.s32.totalorder %s49, %s52
      %p61 = scmp.eq.s32.totalorder %s44, 1
      %p62 = por %p60, %p61
      %p63 = scmp.ne.s32.totalorder %s52, %s53
      %p64 = scmp.eq.s32.totalorder %s44, 0
      %p65 = por %p63, %p64
      %p66 = scmp.ne.s32.totalorder %s52, %s53
      %p67 = scmp.eq.s32.totalorder %s45, 1
      %p68 = por %p66, %p67
      %p70 = scmp.ne.s32.totalorder %s53, %s69
      %p71 = scmp.eq.s32.totalorder %s45, 0
      %p72 = por %p70, %p71
      %s74 = sadd.s32 %s73, 1
      %p77 = scmp.eq.s32.totalorder %s39, 1
      %p78 = scmp.ne.s32.totalorder %s73, %s75
      %p79 = scmp.eq.s32.totalorder %s39, 0
      %p80 = por %p78, %p79
      %p81 = scmp.ne.s32.totalorder %s73, %s75
      %p82 = scmp.eq.s32.totalorder %s44, 1
      %p83 = por %p81, %p82
      %p84 = scmp.ne.s32.totalorder %s75, %s76
      %p85 = scmp.eq.s32.totalorder %s44, 0
      %p86 = por %p84, %p85
      %p87 = scmp.ne.s32.totalorder %s75, %s76
      %p88 = scmp.eq.s32.totalorder %s45, 1
      %p89 = por %p87, %p88
      %p91 = scmp.ne.s32.totalorder %s76, %s90
      %p92 = scmp.eq.s32.totalorder %s45, 0
      %p93 = por %p91, %p92
      %s95 = sadd.s32 %s94, 1
      %p98 = scmp.eq.s32.totalorder %s39, 1
      %p99 = scmp.ne.s32.totalorder %s94, %s96
      %p100 = scmp.eq.s32.totalorder %s39, 0
      %p101 = por %p99, %p100
      %p102 = scmp.ne.s32.totalorder %s94, %s96
      %p103 = scmp.eq.s32.totalorder %s44, 1
      %p104 = por %p102, %p103
      %p105 = scmp.ne.s32.totalorder %s96, %s97
      %p106 = scmp.eq.s32.totalorder %s44, 0
      %p107 = por %p105, %p106
      %p108 = scmp.ne.s32.totalorder %s96, %s97
      %p109 = scmp.eq.s32.totalorder %s45, 1
      %p110 = por %p108, %p109
      %p112 = scmp.ne.s32.totalorder %s97, %s111
      %p113 = scmp.eq.s32.totalorder %s45, 0
      %p114 = por %p112, %p113
      %s116 = sadd.s32 %s115, 1
      %p119 = scmp.eq.s32.totalorder %s39, 1
      %p120 = scmp.ne.s32.totalorder %s115, %s117
      %p121 = scmp.eq.s32.totalorder %s39, 0
      %p122 = por %p120, %p121
      %p123 = scmp.ne.s32.totalorder %s115, %s117
      %p124 = scmp.eq.s32.totalorder %s44, 1
      %p125 = por %p123, %p124
      %p126 = scmp.ne.s32.totalorder %s117, %s118
      %p127 = scmp.eq.s32.totalorder %s44, 0
      %p128 = por %p126, %p127
      %p129 = scmp.ne.s32.totalorder %s117, %s118
      %p130 = scmp.eq.s32.totalorder %s45, 1
      %p131 = por %p129, %p130
      %p133 = scmp.ne.s32.totalorder %s118, %s132
      %p134 = scmp.eq.s32.totalorder %s45, 0
      %p135 = por %p133, %p134
      %s137 = sadd.s32 %s136, 1
      %p140 = scmp.eq.s32.totalorder %s39, 1
      %p141 = scmp.ne.s32.totalorder %s136, %s138
      %p142 = scmp.eq.s32.totalorder %s39, 0
      %p143 = por %p141, %p142
      %p144 = scmp.ne.s32.totalorder %s136, %s138
      %p145 = scmp.eq.s32.totalorder %s44, 1
      %p146 = por %p144, %p145
      %p147 = scmp.ne.s32.totalorder %s138, %s139
      %p148 = scmp.eq.s32.totalorder %s44, 0
      %p149 = por %p147, %p148
      %p150 = scmp.ne.s32.totalorder %s138, %s139
      %p151 = scmp.eq.s32.totalorder %s45, 1
      %p152 = por %p150, %p151
      %p154 = scmp.ne.s32.totalorder %s139, %s153
      %p155 = scmp.eq.s32.totalorder %s45, 0
      %p156 = por %p154, %p155
      %s158 = sadd.s32 %s157, 1
      %p161 = scmp.eq.s32.totalorder %s39, 1
      %p162 = scmp.ne.s32.totalorder %s157, %s159
      %p163 = scmp.eq.s32.totalorder %s39, 0
      %p164 = por %p162, %p163
      %p165 = scmp.ne.s32.totalorder %s157, %s159
      %p166 = scmp.eq.s32.totalorder %s44, 1
      %p167 = por %p165, %p166
      %p168 = scmp.ne.s32.totalorder %s159, %s160
      %p169 = scmp.eq.s32.totalorder %s44, 0
      %p170 = por %p168, %p169
      %p171 = scmp.ne.s32.totalorder %s159, %s160
      %p172 = scmp.eq.s32.totalorder %s45, 1
      %p173 = por %p171, %p172
      %p175 = scmp.ne.s32.totalorder %s160, %s174
      %p176 = scmp.eq.s32.totalorder %s45, 0
      %p177 = por %p175, %p176
      %s179 = sadd.s32 %s178, 1
      %p182 = scmp.eq.s32.totalorder %s39, 1
      %p183 = scmp.ne.s32.totalorder %s178, %s180
      %p184 = scmp.eq.s32.totalorder %s39, 0
      %p185 = por %p183, %p184
      %p186 = scmp.ne.s32.totalorder %s178, %s180
      %p187 = scmp.eq.s32.totalorder %s44, 1
      %p188 = por %p186, %p187
      %p189 = scmp.ne.s32.totalorder %s180, %s181
      %p190 = scmp.eq.s32.totalorder %s44, 0
      %p191 = por %p189, %p190
      %p192 = scmp.ne.s32.totalorder %s180, %s181
      %p193 = scmp.eq.s32.totalorder %s45, 1
      %p194 = por %p192, %p193
      %p196 = scmp.ne.s32.totalorder %s181, %s195
      %p197 = scmp.eq.s32.totalorder %s45, 0
      %p198 = por %p196, %p197
      %s200 = sadd.s32 %s199, 1
      %p203 = scmp.eq.s32.totalorder %s39, 1
      %p204 = scmp.ne.s32.totalorder %s199, %s201
      %p205 = scmp.eq.s32.totalorder %s39, 0
      %p206 = por %p204, %p205
      %p207 = scmp.ne.s32.totalorder %s199, %s201
      %p208 = scmp.eq.s32.totalorder %s44, 1
      %p209 = por %p207, %p208
      %p210 = scmp.ne.s32.totalorder %s201, %s202
      %p211 = scmp.eq.s32.totalorder %s44, 0
      %p212 = por %p210, %p211
      %p213 = scmp.ne.s32.totalorder %s201, %s202
      %p214 = scmp.eq.s32.totalorder %s45, 1
      %p215 = por %p213, %p214
      %p217 = scmp.ne.s32.totalorder %s202, %s216
      %p218 = scmp.eq.s32.totalorder %s45, 0
      %p219 = por %p217, %p218
      %s221 = sadd.s32 %s220, 1
      %p224 = scmp.eq.s32.totalorder %s39, 1
      %p225 = scmp.ne.s32.totalorder %s220, %s222
      %p226 = scmp.eq.s32.totalorder %s39, 0
      %p227 = por %p225, %p226
      %p228 = scmp.ne.s32.totalorder %s220, %s222
      %p229 = scmp.eq.s32.totalorder %s44, 1
      %p230 = por %p228, %p229
      %p231 = scmp.ne.s32.totalorder %s222, %s223
      %p232 = scmp.eq.s32.totalorder %s44, 0
      %p233 = por %p231, %p232
      %p234 = scmp.ne.s32.totalorder %s222, %s223
      %p235 = scmp.eq.s32.totalorder %s45, 1
      %p236 = por %p234, %p235
      %p238 = scmp.ne.s32.totalorder %s223, %s237
      %p239 = scmp.eq.s32.totalorder %s45, 0
      %p240 = por %p238, %p239
      %s242 = sadd.s32 %s241, 1
      %p245 = scmp.eq.s32.totalorder %s39, 1
      %p246 = scmp.ne.s32.totalorder %s241, %s243
      %p247 = scmp.eq.s32.totalorder %s39, 0
      %p248 = por %p246, %p247
      %p249 = scmp.ne.s32.totalorder %s241, %s243
      %p250 = scmp.eq.s32.totalorder %s44, 1
      %p251 = por %p249, %p250
      %p252 = scmp.ne.s32.totalorder %s243, %s244
      %p253 = scmp.eq.s32.totalorder %s44, 0
      %p254 = por %p252, %p253
      %p255 = scmp.ne.s32.totalorder %s243, %s244
      %p256 = scmp.eq.s32.totalorder %s45, 1
      %p257 = por %p255, %p256
      %p259 = scmp.ne.s32.totalorder %s244, %s258
      %p260 = scmp.eq.s32.totalorder %s45, 0
      %p261 = por %p259, %p260
      %s263 = sadd.s32 %s262, 1
      %p266 = scmp.eq.s32.totalorder %s39, 1
      %p267 = scmp.ne.s32.totalorder %s262, %s264
      %p268 = scmp.eq.s32.totalorder %s39, 0
      %p269 = por %p267, %p268
      %p270 = scmp.ne.s32.totalorder %s262, %s264
      %p271 = scmp.eq.s32.totalorder %s44, 1
      %p272 = por %p270, %p271
      %p273 = scmp.ne.s32.totalorder %s264, %s265
      %p274 = scmp.eq.s32.totalorder %s44, 0
      %p275 = por %p273, %p274
      %p276 = scmp.ne.s32.totalorder %s264, %s265
      %p277 = scmp.eq.s32.totalorder %s45, 1
      %p278 = por %p276, %p277
      %p280 = scmp.ne.s32.totalorder %s265, %s279
      %p281 = scmp.eq.s32.totalorder %s45, 0
      %p282 = por %p280, %p281
      %s284 = sadd.s32 %s283, 1
      %p287 = scmp.eq.s32.totalorder %s39, 1
      %p288 = scmp.ne.s32.totalorder %s283, %s285
      %p289 = scmp.eq.s32.totalorder %s39, 0
      %p290 = por %p288, %p289
      %p291 = scmp.ne.s32.totalorder %s283, %s285
      %p292 = scmp.eq.s32.totalorder %s44, 1
      %p293 = por %p291, %p292
      %p294 = scmp.ne.s32.totalorder %s285, %s286
      %p295 = scmp.eq.s32.totalorder %s44, 0
      %p296 = por %p294, %p295
      %p297 = scmp.ne.s32.totalorder %s285, %s286
      %p298 = scmp.eq.s32.totalorder %s45, 1
      %p299 = por %p297, %p298
      %p301 = scmp.ne.s32.totalorder %s286, %s300
      %p302 = scmp.eq.s32.totalorder %s45, 0
      %p303 = por %p301, %p302
      %s305 = sadd.s32 %s304, 1
      %p308 = scmp.eq.s32.totalorder %s39, 1
      %p309 = scmp.ne.s32.totalorder %s304, %s306
      %p310 = scmp.eq.s32.totalorder %s39, 0
      %p311 = por %p309, %p310
      %p312 = scmp.ne.s32.totalorder %s304, %s306
      %p313 = scmp.eq.s32.totalorder %s44, 1
      %p314 = por %p312, %p313
      %p315 = scmp.ne.s32.totalorder %s306, %s307
      %p316 = scmp.eq.s32.totalorder %s44, 0
      %p317 = por %p315, %p316
      %p318 = scmp.ne.s32.totalorder %s306, %s307
      %p319 = scmp.eq.s32.totalorder %s45, 1
      %p320 = por %p318, %p319
      %p322 = scmp.ne.s32.totalorder %s307, %s321
      %p323 = scmp.eq.s32.totalorder %s45, 0
      %p324 = por %p322, %p323
      %s326 = sadd.s32 %s325, 1
      %p329 = scmp.eq.s32.totalorder %s39, 1
      %p330 = scmp.ne.s32.totalorder %s325, %s327
      %p331 = scmp.eq.s32.totalorder %s39, 0
      %p332 = por %p330, %p331
      %p333 = scmp.ne.s32.totalorder %s325, %s327
      %p334 = scmp.eq.s32.totalorder %s44, 1
      %p335 = por %p333, %p334
      %p336 = scmp.ne.s32.totalorder %s327, %s328
      %p337 = scmp.eq.s32.totalorder %s44, 0
      %p338 = por %p336, %p337
      %p339 = scmp.ne.s32.totalorder %s327, %s328
      %p340 = scmp.eq.s32.totalorder %s45, 1
      %p341 = por %p339, %p340
      %p343 = scmp.ne.s32.totalorder %s328, %s342
      %p344 = scmp.eq.s32.totalorder %s45, 0
      %p345 = por %p343, %p344
      %s347 = sadd.s32 %s346, 1
      %p350 = scmp.eq.s32.totalorder %s39, 1
      %p351 = scmp.ne.s32.totalorder %s346, %s348
      %p352 = scmp.eq.s32.totalorder %s39, 0
      %p353 = por %p351, %p352
      %p354 = scmp.ne.s32.totalorder %s346, %s348
      %p355 = scmp.eq.s32.totalorder %s44, 1
      %p356 = por %p354, %p355
      %p357 = scmp.ne.s32.totalorder %s348, %s349
      %p358 = scmp.eq.s32.totalorder %s44, 0
      %p359 = por %p357, %p358
      %p360 = scmp.ne.s32.totalorder %s348, %s349
      %p361 = scmp.eq.s32.totalorder %s45, 1
      %p362 = por %p360, %p361
      %p364 = scmp.ne.s32.totalorder %s349, %s363
      %p365 = scmp.eq.s32.totalorder %s45, 0
      %p366 = por %p364, %p365
      %s368 = sadd.s32 %s367, 1
      %p371 = scmp.eq.s32.totalorder %s39, 1
      %p372 = scmp.ne.s32.totalorder %s367, %s369
      %p373 = scmp.eq.s32.totalorder %s39, 0
      %p374 = por %p372, %p373
      %p375 = scmp.ne.s32.totalorder %s367, %s369
      %p376 = scmp.eq.s32.totalorder %s44, 1
      %p377 = por %p375, %p376
      %p378 = scmp.ne.s32.totalorder %s369, %s370
      %p379 = scmp.eq.s32.totalorder %s44, 0
      %p380 = por %p378, %p379
      %p381 = scmp.ne.s32.totalorder %s369, %s370
      %p382 = scmp.eq.s32.totalorder %s45, 1
      %p383 = por %p381, %p382
      %p385 = scmp.ne.s32.totalorder %s370, %s384
      %p386 = scmp.eq.s32.totalorder %s45, 0
      %p387 = por %p385, %p386
      %s389 = sadd.s32 %s388, 1
      %p392 = scmp.eq.s32.totalorder %s39, 1
      %p393 = scmp.ne.s32.totalorder %s388, %s390
      %p394 = scmp.eq.s32.totalorder %s39, 0
      %p395 = por %p393, %p394
      %p396 = scmp.ne.s32.totalorder %s388, %s390
      %p397 = scmp.eq.s32.totalorder %s44, 1
      %p398 = por %p396, %p397
      %p399 = scmp.ne.s32.totalorder %s390, %s391
      %p400 = scmp.eq.s32.totalorder %s44, 0
      %p401 = por %p399, %p400
      %p402 = scmp.ne.s32.totalorder %s390, %s391
      %p403 = scmp.eq.s32.totalorder %s45, 1
      %p404 = por %p402, %p403
      %p406 = scmp.ne.s32.totalorder %s391, %s405
      %p407 = scmp.eq.s32.totalorder %s45, 0
      %p408 = por %p406, %p407
      %s410 = sadd.s32 %s409, 1
      %p413 = scmp.eq.s32.totalorder %s39, 1
      %p414 = scmp.ne.s32.totalorder %s409, %s411
      %p415 = scmp.eq.s32.totalorder %s39, 0
      %p416 = por %p414, %p415
      %p417 = scmp.ne.s32.totalorder %s409, %s411
      %p418 = scmp.eq.s32.totalorder %s44, 1
      %p419 = por %p417, %p418
      %p420 = scmp.ne.s32.totalorder %s411, %s412
      %p421 = scmp.eq.s32.totalorder %s44, 0
      %p422 = por %p420, %p421
      %p423 = scmp.ne.s32.totalorder %s411, %s412
      %p424 = scmp.eq.s32.totalorder %s45, 1
      %p425 = por %p423, %p424
      %p427 = scmp.ne.s32.totalorder %s412, %s426
      %p428 = scmp.eq.s32.totalorder %s45, 0
      %p429 = por %p427, %p428
      %s431 = sadd.s32 %s430, 1
      %p434 = scmp.eq.s32.totalorder %s39, 1
      %p435 = scmp.ne.s32.totalorder %s430, %s432
      %p436 = scmp.eq.s32.totalorder %s39, 0
      %p437 = por %p435, %p436
      %p438 = scmp.ne.s32.totalorder %s430, %s432
      %p439 = scmp.eq.s32.totalorder %s44, 1
      %p440 = por %p438, %p439
      %p441 = scmp.ne.s32.totalorder %s432, %s433
      %p442 = scmp.eq.s32.totalorder %s44, 0
      %p443 = por %p441, %p442
      %p444 = scmp.ne.s32.totalorder %s432, %s433
      %p445 = scmp.eq.s32.totalorder %s45, 1
      %p446 = por %p444, %p445
      %p448 = scmp.ne.s32.totalorder %s433, %s447
      %p449 = scmp.eq.s32.totalorder %s45, 0
      %p450 = por %p448, %p449
      %s452 = sadd.s32 %s451, 1
      %p455 = scmp.eq.s32.totalorder %s39, 1
      %p456 = scmp.ne.s32.totalorder %s451, %s453
      %p457 = scmp.eq.s32.totalorder %s39, 0
      %p458 = por %p456, %p457
      %p459 = scmp.ne.s32.totalorder %s451, %s453
      %p460 = scmp.eq.s32.totalorder %s44, 1
      %p461 = por %p459, %p460
      %p462 = scmp.ne.s32.totalorder %s453, %s454
      %p463 = scmp.eq.s32.totalorder %s44, 0
      %p464 = por %p462, %p463
      %p465 = scmp.ne.s32.totalorder %s453, %s454
      %p466 = scmp.eq.s32.totalorder %s45, 1
      %p467 = por %p465, %p466
      %p469 = scmp.ne.s32.totalorder %s454, %s468
      %p470 = scmp.eq.s32.totalorder %s45, 0
      %p471 = por %p469, %p470
      %s473 = sadd.s32 %s472, 1
      %p476 = scmp.eq.s32.totalorder %s39, 1
      %p477 = scmp.ne.s32.totalorder %s472, %s474
      %p478 = scmp.eq.s32.totalorder %s39, 0
      %p479 = por %p477, %p478
      %p480 = scmp.ne.s32.totalorder %s472, %s474
      %p481 = scmp.eq.s32.totalorder %s44, 1
      %p482 = por %p480, %p481
      %p483 = scmp.ne.s32.totalorder %s474, %s475
      %p484 = scmp.eq.s32.totalorder %s44, 0
      %p485 = por %p483, %p484
      %p486 = scmp.ne.s32.totalorder %s474, %s475
      %p487 = scmp.eq.s32.totalorder %s45, 1
      %p488 = por %p486, %p487
      %p490 = scmp.ne.s32.totalorder %s475, %s489
      %p491 = scmp.eq.s32.totalorder %s45, 0
      %p492 = por %p490, %p491
      %s494 = sadd.s32 %s493, 1
      %p497 = scmp.eq.s32.totalorder %s39, 1
      %p498 = scmp.ne.s32.totalorder %s493, %s495
      %p499 = scmp.eq.s32.totalorder %s39, 0
      %p500 = por %p498, %p499
      %p501 = scmp.ne.s32.totalorder %s493, %s495
      %p502 = scmp.eq.s32.totalorder %s44, 1
      %p503 = por %p501, %p502
      %p504 = scmp.ne.s32.totalorder %s495, %s496
      %p505 = scmp.eq.s32.totalorder %s44, 0
      %p506 = por %p504, %p505
      %p507 = scmp.ne.s32.totalorder %s495, %s496
      %p508 = scmp.eq.s32.totalorder %s45, 1
      %p509 = por %p507, %p508
      %p511 = scmp.ne.s32.totalorder %s496, %s510
      %p512 = scmp.eq.s32.totalorder %s45, 0
      %p513 = por %p511, %p512
      %s515 = sadd.s32 %s514, 1
      %p518 = scmp.eq.s32.totalorder %s39, 1
      %p519 = scmp.ne.s32.totalorder %s514, %s516
      %p520 = scmp.eq.s32.totalorder %s39, 0
      %p521 = por %p519, %p520
      %p522 = scmp.ne.s32.totalorder %s514, %s516
      %p523 = scmp.eq.s32.totalorder %s44, 1
      %p524 = por %p522, %p523
      %p525 = scmp.ne.s32.totalorder %s516, %s517
      %p526 = scmp.eq.s32.totalorder %s44, 0
      %p527 = por %p525, %p526
      %p528 = scmp.ne.s32.totalorder %s516, %s517
      %p529 = scmp.eq.s32.totalorder %s45, 1
      %p530 = por %p528, %p529
      %p532 = scmp.ne.s32.totalorder %s517, %s531
      %p533 = scmp.eq.s32.totalorder %s45, 0
      %p534 = por %p532, %p533
      %s535 = ssub.s32 %s39, %s46
      %p536 = scmp.eq.s32.totalorder %s535, 0
      %s538 = sadd.s32 %s537, 1
      %s539 = scalar_select %p536, %s537, %s538
      %p542 = pneg %p536
      %p543 = scmp.eq.s32.totalorder %s39, 1
      %p544 = por %p542, %p543
      %p545 = scmp.ne.s32.totalorder %s537, %s540
      %p546 = scmp.eq.s32.totalorder %s39, 0
      %p547 = por %p545, %p546
      %p548 = scmp.ne.s32.totalorder %s537, %s540
      %p549 = scmp.eq.s32.totalorder %s44, 1
      %p550 = por %p548, %p549
      %p551 = scmp.ne.s32.totalorder %s540, %s541
      %p552 = scmp.eq.s32.totalorder %s44, 0
      %p553 = por %p551, %p552
      %p554 = scmp.ne.s32.totalorder %s540, %s541
      %p555 = scmp.eq.s32.totalorder %s45, 1
      %p556 = por %p554, %p555
      %p558 = scmp.ne.s32.totalorder %s541, %s557
      %p559 = scmp.eq.s32.totalorder %s45, 0
      %p560 = por %p558, %p559
      %p561 = scmp.le.s32.totalorder 1, %s39
      %p562 = scmp.lt.s32.totalorder %s39, 3
      %p563 = pnand %p561, %p562
      %p564 = pneg %p563
      // Predicated region
      $region9: #{cnn_lstm_forward.1} parent=5 // pred_check
        _
      $region10: #{cnn_lstm_forward.1} parent=5 // pred_check_branch
        %566 = sbr.rel (%p563) target = $region12
      $region11: #{cnn_lstm_forward.1} parent=5 // pred_region
        %s567 = ssub.s32 %s39, 1
        // Predicated region
        $region13: #{cnn_lstm_forward.1} parent=11 // pred_check
          %p568 = pneg %p86
        $region14: #{cnn_lstm_forward.1} parent=11 // pred_check_branch
          %570 = sbr.rel (%p568) target = $region16
        $region15: #{cnn_lstm_forward.1} parent=11 // pred_region
          %572 = vsyncadd [#allocation7], 0
          %s573 = sshll.u32 %s1, 4
          %s574 = int_to_ptr.hbm [resolvable:$true] %s573
          %s575 = sshll.u32 [#allocation6], 4
          %s576 = int_to_ptr.vmem [resolvable:$true] %s575
          %581 = dma.hbm_to_vmem [thread:$0]  %s574, 384, %s576, [#allocation7], 128, 128, 8
        $region16: #{cnn_lstm_forward.1} parent=11 // pred_fallthru
          _
        // Predicated region
        $region17: #{cnn_lstm_forward.1} parent=11 // pred_check
          %p582 = pneg %p107
        $region18: #{cnn_lstm_forward.1} parent=11 // pred_check_branch
          %584 = sbr.rel (%p582) target = $region20
        $region19: #{cnn_lstm_forward.1} parent=11 // pred_region
          _
        $region20: #{cnn_lstm_forward.1} parent=11 // pred_fallthru
          _
        // Predicated region
        $region21: #{cnn_lstm_forward.1} parent=11 // pred_check
          %p585 = pneg %p128
        $region22: #{cnn_lstm_forward.1} parent=11 // pred_check_branch
          %587 = sbr.rel (%p585) target = $region24
        $region23: #{cnn_lstm_forward.1} parent=11 // pred_region
          _
        $region24: #{cnn_lstm_forward.1} parent=11 // pred_fallthru
          _
        // Predicated region
        $region25: #{cnn_lstm_forward.1} parent=11 // pred_check
          %p588 = pneg %p149
        $region26: #{cnn_lstm_forward.1} parent=11 // pred_check_branch
          %590 = sbr.rel (%p588) target = $region28
        $region27: #{cnn_lstm_forward.1} parent=11 // pred_region
          _
        $region28: #{cnn_lstm_forward.1} parent=11 // pred_fallthru
          _
        // Predicated region
        $region29: #{cnn_lstm_forward.1} parent=11 // pred_check
          %p591 = pneg %p170
        $region30: #{cnn_lstm_forward.1} parent=11 // pred_check_branch
          %593 = sbr.rel (%p591) target = $region32
        $region31: #{cnn_lstm_forward.1} parent=11 // pred_region
          _
        $region32: #{cnn_lstm_forward.1} parent=11 // pred_fallthru
          _
        // Predicated region
        $region33: #{cnn_lstm_forward.1} parent=11 // pred_check
          %p594 = pneg %p191
        $region34: #{cnn_lstm_forward.1} parent=11 // pred_check_branch
          %596 = sbr.rel (%p594) target = $region36
        $region35: #{cnn_lstm_forward.1} parent=11 // pred_region
          _
        $region36: #{cnn_lstm_forward.1} parent=11 // pred_fallthru
          _
        // Predicated region
        $region37: #{cnn_lstm_forward.1} parent=11 // pred_check
          %p597 = pneg %p212
        $region38: #{cnn_lstm_forward.1} parent=11 // pred_check_branch
          %599 = sbr.rel (%p597) target = $region40
        $region39: #{cnn_lstm_forward.1} parent=11 // pred_region
          _
        $region40: #{cnn_lstm_forward.1} parent=11 // pred_fallthru
          _
        // Predicated region
        $region41: #{cnn_lstm_forward.1} parent=11 // pred_check
          %p600 = pneg %p233
        $region42: #{cnn_lstm_forward.1} parent=11 // pred_check_branch
          %602 = sbr.rel (%p600) target = $region44
        $region43: #{cnn_lstm_forward.1} parent=11 // pred_region
          _
        $region44: #{cnn_lstm_forward.1} parent=11 // pred_fallthru
          _
        // Predicated region
        $region45: #{cnn_lstm_forward.1} parent=11 // pred_check
          %p603 = pneg %p254
        $region46: #{cnn_lstm_forward.1} parent=11 // pred_check_branch
          %605 = sbr.rel (%p603) target = $region48
        $region47: #{cnn_lstm_forward.1} parent=11 // pred_region
          _
        $region48: #{cnn_lstm_forward.1} parent=11 // pred_fallthru
          _
        // Predicated region
        $region49: #{cnn_lstm_forward.1} parent=11 // pred_check
          %p606 = pneg %p275
        $region50: #{cnn_lstm_forward.1} parent=11 // pred_check_branch
          %608 = sbr.rel (%p606) target = $region52
        $region51: #{cnn_lstm_forward.1} parent=11 // pred_region
          _
        $region52: #{cnn_lstm_forward.1} parent=11 // pred_fallthru
          _
        // Predicated region
        $region53: #{cnn_lstm_forward.1} parent=11 // pred_check
          %p609 = pneg %p296
        $region54: #{cnn_lstm_forward.1} parent=11 // pred_check_branch
          %611 = sbr.rel (%p609) target = $region56
        $region55: #{cnn_lstm_forward.1} parent=11 // pred_region
          %613 = vsyncadd [#allocation10], 0
          %s614 = sshll.u32 %s11, 4
          %s615 = int_to_ptr.hbm [resolvable:$true] %s614
          %s616 = sshll.u32 [#allocation9], 4
          %s617 = int_to_ptr.vmem [resolvable:$true] %s616
          %622 = dma.hbm_to_vmem [thread:$0]  %s615, 512, %s617, [#allocation10], 128, 128, 8
        $region56: #{cnn_lstm_forward.1} parent=11 // pred_fallthru
          _
        // Predicated region
        $region57: #{cnn_lstm_forward.1} parent=11 // pred_check
          %p623 = pneg %p317
        $region58: #{cnn_lstm_forward.1} parent=11 // pred_check_branch
          %625 = sbr.rel (%p623) target = $region60
        $region59: #{cnn_lstm_forward.1} parent=11 // pred_region
          %627 = vsyncadd [#allocation10], 0
          %s628 = sshll.u32 %s12, 4
          %s629 = int_to_ptr.hbm [resolvable:$true] %s628
          %s630 = sshll.u32 [#allocation11], 4
          %s631 = int_to_ptr.vmem [resolvable:$true] %s630
          %636 = dma.hbm_to_vmem [thread:$0]  %s629, 512, %s631, [#allocation10], 128, 128, 8
        $region60: #{cnn_lstm_forward.1} parent=11 // pred_fallthru
          _
        // Predicated region
        $region61: #{cnn_lstm_forward.1} parent=11 // pred_check
          %p637 = pneg %p338
        $region62: #{cnn_lstm_forward.1} parent=11 // pred_check_branch
          %639 = sbr.rel (%p637) target = $region64
        $region63: #{cnn_lstm_forward.1} parent=11 // pred_region
          _
        $region64: #{cnn_lstm_forward.1} parent=11 // pred_fallthru
          _
        // Predicated region
        $region65: #{cnn_lstm_forward.1} parent=11 // pred_check
          %p640 = pneg %p359
        $region66: #{cnn_lstm_forward.1} parent=11 // pred_check_branch
          %642 = sbr.rel (%p640) target = $region68
        $region67: #{cnn_lstm_forward.1} parent=11 // pred_region
          _
        $region68: #{cnn_lstm_forward.1} parent=11 // pred_fallthru
          _
        // Predicated region
        $region69: #{cnn_lstm_forward.1} parent=11 // pred_check
          %p643 = pneg %p380
        $region70: #{cnn_lstm_forward.1} parent=11 // pred_check_branch
          %645 = sbr.rel (%p643) target = $region72
        $region71: #{cnn_lstm_forward.1} parent=11 // pred_region
          %647 = vsyncadd [#allocation13], 0
          %s648 = sshll.u32 %s15, 4
          %s649 = int_to_ptr.hbm [resolvable:$true] %s648
          %s650 = sshll.u32 [#allocation12], 4
          %s651 = int_to_ptr.vmem [resolvable:$true] %s650
          %656 = dma.hbm_to_vmem [thread:$0]  %s649, 512, %s651, [#allocation13], 128, 128, 8
        $region72: #{cnn_lstm_forward.1} parent=11 // pred_fallthru
          _
        // Predicated region
        $region73: #{cnn_lstm_forward.1} parent=11 // pred_check
          %p657 = pneg %p401
        $region74: #{cnn_lstm_forward.1} parent=11 // pred_check_branch
          %659 = sbr.rel (%p657) target = $region76
        $region75: #{cnn_lstm_forward.1} parent=11 // pred_region
          %661 = vsyncadd [#allocation13], 0
          %s662 = sshll.u32 %s16, 4
          %s663 = int_to_ptr.hbm [resolvable:$true] %s662
          %s664 = sshll.u32 [#allocation14], 4
          %s665 = int_to_ptr.vmem [resolvable:$true] %s664
          %670 = dma.hbm_to_vmem [thread:$0]  %s663, 512, %s665, [#allocation13], 128, 128, 8
        $region76: #{cnn_lstm_forward.1} parent=11 // pred_fallthru
          _
        // Predicated region
        $region77: #{cnn_lstm_forward.1} parent=11 // pred_check
          %p671 = pneg %p422
        $region78: #{cnn_lstm_forward.1} parent=11 // pred_check_branch
          %673 = sbr.rel (%p671) target = $region80
        $region79: #{cnn_lstm_forward.1} parent=11 // pred_region
          _
        $region80: #{cnn_lstm_forward.1} parent=11 // pred_fallthru
          _
        // Predicated region
        $region81: #{cnn_lstm_forward.1} parent=11 // pred_check
          %p674 = pneg %p443
        $region82: #{cnn_lstm_forward.1} parent=11 // pred_check_branch
          %676 = sbr.rel (%p674) target = $region84
        $region83: #{cnn_lstm_forward.1} parent=11 // pred_region
          %678 = vsyncadd [#allocation16], 0
          %s680 = sshll.u32 %s18, 4
          %s681 = int_to_ptr.hbm [resolvable:$true] %s680
          %s682 = sshll.u32 [#allocation15], 4
          %s683 = int_to_ptr.vmem [resolvable:$true] %s682
          %685 = dma.hbm_to_vmem [thread:$0]  %s681, 16, %s683, [#allocation16]
        $region84: #{cnn_lstm_forward.1} parent=11 // pred_fallthru
          _
        // Predicated region
        $region85: #{cnn_lstm_forward.1} parent=11 // pred_check
          %p686 = pneg %p464
        $region86: #{cnn_lstm_forward.1} parent=11 // pred_check_branch
          %688 = sbr.rel (%p686) target = $region88
        $region87: #{cnn_lstm_forward.1} parent=11 // pred_region
          %690 = vsyncadd [#allocation16], 0
          %s691 = sshll.u32 %s19, 4
          %s692 = int_to_ptr.hbm [resolvable:$true] %s691
          %s693 = sshll.u32 [#allocation17], 4
          %s694 = int_to_ptr.vmem [resolvable:$true] %s693
          %699 = dma.hbm_to_vmem [thread:$0]  %s692, 512, %s694, [#allocation16], 128, 128, 8
        $region88: #{cnn_lstm_forward.1} parent=11 // pred_fallthru
          _
        // Predicated region
        $region89: #{cnn_lstm_forward.1} parent=11 // pred_check
          %p700 = pneg %p485
        $region90: #{cnn_lstm_forward.1} parent=11 // pred_check_branch
          %702 = sbr.rel (%p700) target = $region92
        $region91: #{cnn_lstm_forward.1} parent=11 // pred_region
          %704 = vsyncadd [#allocation19], 0
          %s706 = sshll.u32 %s20, 4
          %s707 = int_to_ptr.hbm [resolvable:$true] %s706
          %s708 = sshll.u32 [#allocation18], 4
          %s709 = int_to_ptr.vmem [resolvable:$true] %s708
          %711 = dma.hbm_to_vmem [thread:$0]  %s707, 16, %s709, [#allocation19]
        $region92: #{cnn_lstm_forward.1} parent=11 // pred_fallthru
          _
        // Predicated region
        $region93: #{cnn_lstm_forward.1} parent=11 // pred_check
          %p712 = pneg %p506
        $region94: #{cnn_lstm_forward.1} parent=11 // pred_check_branch
          %714 = sbr.rel (%p712) target = $region96
        $region95: #{cnn_lstm_forward.1} parent=11 // pred_region
          _
        $region96: #{cnn_lstm_forward.1} parent=11 // pred_fallthru
          _
        // Predicated region
        $region97: #{cnn_lstm_forward.1} parent=11 // pred_check
          %p715 = pneg %p527
        $region98: #{cnn_lstm_forward.1} parent=11 // pred_check_branch
          %717 = sbr.rel (%p715) target = $region100
        $region99: #{cnn_lstm_forward.1} parent=11 // pred_region
          _
        $region100: #{cnn_lstm_forward.1} parent=11 // pred_fallthru
          _
      $region12: #{cnn_lstm_forward.1} parent=5 // pred_fallthru
        _
      %p718 = scmp.lt.s32.totalorder %s39, 2
      // Predicated region
      $region101: #{cnn_lstm_forward.1} parent=5 // pred_check
        %p719 = pneg %p718
      $region102: #{cnn_lstm_forward.1} parent=5 // pred_check_branch
        %721 = sbr.rel (%p719) target = $region104
      $region103: #{cnn_lstm_forward.1} parent=5 // pred_region
        // Predicated region
        $region105: #{cnn_lstm_forward.1} parent=103 // pred_check
          %p722 = pneg %p59
        $region106: #{cnn_lstm_forward.1} parent=103 // pred_check_branch
          %724 = sbr.rel (%p722) target = $region108
        $region107: #{cnn_lstm_forward.1} parent=103 // pred_region
          %p725 = scmp.lt.s32.totalorder %s39, 1
          %s726 = scalar_select %p725, %s39, 1
          %s727 = smul.addr %s726, 2
          %s728 = smul.addr %s727, 8
          %s729 = scalar_lea.vmem %s0, %s728
        $region108: #{cnn_lstm_forward.1} parent=103 // pred_fallthru
          _
      $region104: #{cnn_lstm_forward.1} parent=5 // pred_fallthru
        _
      %p730 = scmp.le.s32.totalorder 1, %s39
      %p731 = scmp.lt.s32.totalorder %s39, 3
      %p732 = pnand %p730, %p731
      %p733 = pneg %p732
      // Predicated region
      $region109: #{cnn_lstm_forward.1} parent=5 // pred_check
        _
      $region110: #{cnn_lstm_forward.1} parent=5 // pred_check_branch
        %735 = sbr.rel (%p732) target = $region112
      $region111: #{cnn_lstm_forward.1} parent=5 // pred_region
        %s736 = ssub.s32 %s39, 1
        // Predicated region
        $region113: #{cnn_lstm_forward.1} parent=111 // pred_check
          %p737 = pneg %p86
        $region114: #{cnn_lstm_forward.1} parent=111 // pred_check_branch
          %739 = sbr.rel (%p737) target = $region116
        $region115: #{cnn_lstm_forward.1} parent=111 // pred_region
          %741 = dma.done [#allocation7], 384
        $region116: #{cnn_lstm_forward.1} parent=111 // pred_fallthru
          _
        // Predicated region
        $region117: #{cnn_lstm_forward.1} parent=111 // pred_check
          %p742 = pneg %p296
        $region118: #{cnn_lstm_forward.1} parent=111 // pred_check_branch
          %744 = sbr.rel (%p742) target = $region120
        $region119: #{cnn_lstm_forward.1} parent=111 // pred_region
          %746 = dma.done [#allocation10], 512
        $region120: #{cnn_lstm_forward.1} parent=111 // pred_fallthru
          _
        // Predicated region
        $region121: #{cnn_lstm_forward.1} parent=111 // pred_check
          %p747 = pneg %p317
        $region122: #{cnn_lstm_forward.1} parent=111 // pred_check_branch
          %749 = sbr.rel (%p747) target = $region124
        $region123: #{cnn_lstm_forward.1} parent=111 // pred_region
          %751 = dma.done [#allocation10], 512
        $region124: #{cnn_lstm_forward.1} parent=111 // pred_fallthru
          _
        // Predicated region
        $region125: #{cnn_lstm_forward.1} parent=111 // pred_check
          %p752 = pneg %p380
        $region126: #{cnn_lstm_forward.1} parent=111 // pred_check_branch
          %754 = sbr.rel (%p752) target = $region128
        $region127: #{cnn_lstm_forward.1} parent=111 // pred_region
          %756 = dma.done [#allocation13], 512
        $region128: #{cnn_lstm_forward.1} parent=111 // pred_fallthru
          _
        // Predicated region
        $region129: #{cnn_lstm_forward.1} parent=111 // pred_check
          %p757 = pneg %p401
        $region130: #{cnn_lstm_forward.1} parent=111 // pred_check_branch
          %759 = sbr.rel (%p757) target = $region132
        $region131: #{cnn_lstm_forward.1} parent=111 // pred_region
          %761 = dma.done [#allocation13], 512
        $region132: #{cnn_lstm_forward.1} parent=111 // pred_fallthru
          _
        // Predicated region
        $region133: #{cnn_lstm_forward.1} parent=111 // pred_check
          %p762 = pneg %p443
        $region134: #{cnn_lstm_forward.1} parent=111 // pred_check_branch
          %764 = sbr.rel (%p762) target = $region136
        $region135: #{cnn_lstm_forward.1} parent=111 // pred_region
          %766 = dma.done [#allocation16], 16
        $region136: #{cnn_lstm_forward.1} parent=111 // pred_fallthru
          _
        // Predicated region
        $region137: #{cnn_lstm_forward.1} parent=111 // pred_check
          %p767 = pneg %p464
        $region138: #{cnn_lstm_forward.1} parent=111 // pred_check_branch
          %769 = sbr.rel (%p767) target = $region140
        $region139: #{cnn_lstm_forward.1} parent=111 // pred_region
          %771 = dma.done [#allocation16], 512
        $region140: #{cnn_lstm_forward.1} parent=111 // pred_fallthru
          _
        // Predicated region
        $region141: #{cnn_lstm_forward.1} parent=111 // pred_check
          %p772 = pneg %p485
        $region142: #{cnn_lstm_forward.1} parent=111 // pred_check_branch
          %774 = sbr.rel (%p772) target = $region144
        $region143: #{cnn_lstm_forward.1} parent=111 // pred_region
          %776 = dma.done [#allocation19], 16
        $region144: #{cnn_lstm_forward.1} parent=111 // pred_fallthru
          _
        %p777 = scmp.lt.s32.totalorder %s44, 1
        %s778 = scalar_select %p777, %s44, 1
        %s779 = smul.addr %s778, 2
        %s780 = smul.addr %s779, 8
        %s781 = scalar_lea.vmem %s0, %s780
        %p782 = pneg %p65
        %p783 = pneg %p62
        %p784 = pneg %p86
        %p785 = pneg %p83
        %p786 = pneg %p107
        %p787 = pneg %p104
        %p788 = pneg %p128
        %p789 = pneg %p125
        %p790 = pneg %p149
        %p791 = pneg %p146
        %p792 = pneg %p170
        %p793 = pneg %p167
        %p794 = pneg %p191
        %p795 = pneg %p188
        %p796 = pneg %p212
        %p797 = pneg %p209
        %p798 = pneg %p233
        %p799 = pneg %p230
        %p800 = pneg %p254
        %p801 = pneg %p251
        %p802 = pneg %p275
        %p803 = pneg %p272
        %p804 = pneg %p296
        %p805 = pneg %p293
        %p806 = pneg %p317
        %p807 = pneg %p314
        %p808 = pneg %p338
        %p809 = pneg %p335
        %p810 = pneg %p359
        %p811 = pneg %p356
        %p812 = pneg %p380
        %p813 = pneg %p377
        %p814 = pneg %p401
        %p815 = pneg %p398
        %p816 = pneg %p422
        %p817 = pneg %p419
        %p818 = pneg %p443
        %p819 = pneg %p440
        %p820 = pneg %p464
        %p821 = pneg %p461
        %p822 = pneg %p485
        %p823 = pneg %p482
        %p824 = pneg %p506
        %p825 = pneg %p503
        %p826 = pneg %p527
        %p827 = pneg %p524
        %p828 = pneg %p553
        %p829 = pneg %p550
        %s830 = sand.u32 %s540, 1
        %s831 = scalar_lea.sflag [#allocation8], %s830
        %s832 = sand.u32 %s540, 1
        %s833 = scalar_lea.vmem [#allocation20], %s832
        %p834 = scmp.lt.s32.totalorder %s44, 1
        %s835 = scalar_select %p834, %s44, 1
        %s836 = smul.addr %s835, 2
        %s837 = smul.addr %s836, 8
        %s838 = scalar_lea.vmem %s0, %s837
        %v839 = vld [vmem:[%s838] sm:$0xff]
        %v840 = vld [vmem:[%s838 + $0x8] sm:$0xff]
        %v841 = vld [vmem:[#allocation6] sm:$0xff]
        %v842 = vld [vmem:[#allocation6 + $0x8] sm:$0xff]
        %v843 = vld [vmem:[#allocation6 + $0x10] sm:$0xff]
        %vm846 = vcmask 1040384
        %v847 = vrot.slane %v839, 7
        %v848 = vrot.slane %v840, 7
        %v849 = vsel %vm846, %v847, %v848
        %v853 = vsel %vm846, 0.0, %v847
        %v854 = vsel %vm846, %v848, 0.0
        %vm857 = vcmask 1046528
        %v858 = vrot.slane %v853, 1
        %v859 = vrot.slane %v849, 1
        %v860 = vsel %vm857, %v858, %v859
        %v861 = vrot.slane %v854, 1
        %v862 = vsel %vm857, %v859, %v861
        %863 = vrot.lane.b32.xlu0 %v860, 8
        %v864 = vpop.permute.xlu0 %863
        %865 = vrot.lane.b32.xlu0 %v862, 8
        %v866 = vpop.permute.xlu0 %865
        %vm869 = vcmask 1045504
        %v870 = vrot.slane %v853, 2
        %v871 = vrot.slane %v849, 2
        %v872 = vsel %vm869, %v870, %v871
        %v873 = vrot.slane %v854, 2
        %v874 = vsel %vm869, %v871, %v873
        %875 = vrot.lane.b32.xlu0 %v872, 16
        %v876 = vpop.permute.xlu0 %875
        %877 = vrot.lane.b32.xlu0 %v874, 16
        %v878 = vpop.permute.xlu0 %877
        %vm881 = vcmask 64512
        %v882 = vsel %vm881, %v853, %v864
        %v883 = vsel %vm881, %v849, %v866
        %vm884 = vcmask 130048
        %v885 = vsel %vm884, %v882, %v876
        %v886 = vsel %vm884, %v883, %v878
        %vm887 = vcmask 195584
        %v889 = vsel %vm887, %v885, 0
        %v892 = vsel %vm887, %v886, 0
        %894 = vmatpush.msra.mxu0 0.0
        %895 = vmatpush.msra.mxu0 0.0
        %896 = vmatpush.msra.mxu0 0.0
        %897 = vmatpush.msra.mxu0 0.0
        %898 = vmatpush.msra.mxu0 0.0
        %899 = vmatpush.msra.mxu0 0.0
        %900 = vmatpush.msra.mxu0 0.0
        %901 = vmatpush.msra.mxu0 0.0
        %902 = vmatpush.msra.mxu0 0.0
        %903 = vmatpush.msra.mxu0 0.0
        %904 = vmatpush.msra.mxu0 0.0
        %905 = vmatpush.msra.mxu0 0.0
        %906 = vmatpush.msra.mxu0 0.0
        %907 = vmatpush.msra.mxu0 %v843
        %908 = vmatpush.msra.mxu0 %v842
        %909 = vmatpush.msra.mxu0 %v841
        %910 = vmatmul.f32.gmra.mxu0 %v889
        %v911 = vpop.f32.mrf.mxu0
        %v912 = vadd.f32 0.0, %v911
        %913 = vmatmul.f32.gmra.mxu0 %v892
        %v914 = vpop.f32.mrf.mxu0
        %v915 = vadd.f32 0.0, %v914
        %916 = vdwg.mxu0
        %v917 = vld [vmem:[%s2] sm:$0x1]
        %v919 = vperm.slane %v917, 0
        %v921 = vmul.f32 %v912, %v919
        %v922 = vmul.f32 %v915, %v919
        %v923 = vld [vmem:[%s3] sm:$0x1]
        %v925 = vperm.slane %v923, 0
        %v927 = vadd.f32 %v921, %v925
        %v928 = vadd.f32 %v922, %v925
        %vm929 = vcmp.gt.f32.partialorder %v927, 0.0
        %vm930 = vcmp.gt.f32.partialorder %v928, 0.0
        %v931 = vmul.f32 %v927, 0.1
        %v932 = vmul.f32 %v928, 0.1
        %v933 = vsel %vm929, %v927, %v931
        %v934 = vsel %vm930, %v928, %v932
        %v935 = vld [vmem:[%s7] sm:$0x1]
        %v937 = vperm.slane %v935, 0
        %938 = vrot.lane.b32.xlu0 %v937, 16
        %v939 = vpop.permute.xlu0 %938
        %v941 = vmul.f32 %v912, %v939
        %v942 = vmul.f32 %v915, %v939
        %v943 = vld [vmem:[%s8] sm:$0x1]
        %v945 = vperm.slane %v943, 0
        %946 = vrot.lane.b32.xlu0 %v945, 16
        %v947 = vpop.permute.xlu0 %946
        %v949 = vadd.f32 %v941, %v947
        %v950 = vadd.f32 %v942, %v947
        %v951 = vld [vmem:[%s4] sm:$0xff]
        %v952 = vld [vmem:[%s4 + $0x8] sm:$0xff]
        %v953 = vld [vmem:[%s4 + $0x10] sm:$0xff]
        %v954 = vld [vmem:[%s4 + $0x18] sm:$0xff]
        %v955 = vld [vmem:[%s4 + $0x20] sm:$0xff]
        %v956 = vld [vmem:[%s4 + $0x28] sm:$0xff]
        %v957 = vld [vmem:[%s4 + $0x30] sm:$0xff]
        %v958 = vld [vmem:[%s4 + $0x38] sm:$0xff]
        %v959 = vld [vmem:[%s4 + $0x40] sm:$0xff]
        %v960 = vld [vmem:[%s4 + $0x48] sm:$0xff]
        %vm963 = vcmask 1041408
        %v964 = vrot.slane %v933, 6
        %v965 = vrot.slane %v934, 6
        %v966 = vsel %vm963, %v964, %v965
        %v970 = vsel %vm963, 0.0, %v964
        %v971 = vsel %vm963, %v965, 0.0
        %v974 = vrot.slane %v970, 1
        %v975 = vrot.slane %v966, 1
        %v976 = vsel %vm857, %v974, %v975
        %v977 = vrot.slane %v971, 1
        %v978 = vsel %vm857, %v975, %v977
        %979 = vrot.lane.b32.xlu0 %v976, 16
        %v980 = vpop.permute.xlu0 %979
        %981 = vrot.lane.b32.xlu0 %v978, 16
        %v982 = vpop.permute.xlu0 %981
        %v985 = vrot.slane %v970, 2
        %v986 = vrot.slane %v966, 2
        %v987 = vsel %vm869, %v985, %v986
        %v988 = vrot.slane %v971, 2
        %v989 = vsel %vm869, %v986, %v988
        %990 = vrot.lane.b32.xlu0 %v987, 32
        %v991 = vpop.permute.xlu0 %990
        %992 = vrot.lane.b32.xlu0 %v989, 32
        %v993 = vpop.permute.xlu0 %992
        %vm996 = vcmask 1044480
        %v997 = vrot.slane %v970, 3
        %v998 = vrot.slane %v966, 3
        %v999 = vsel %vm996, %v997, %v998
        %v1000 = vrot.slane %v971, 3
        %v1001 = vsel %vm996, %v998, %v1000
        %1002 = vrot.lane.b32.xlu0 %v999, 48
        %v1003 = vpop.permute.xlu0 %1002
        %1004 = vrot.lane.b32.xlu0 %v1001, 48
        %v1005 = vpop.permute.xlu0 %1004
        %vm1008 = vcmask 1043456
        %v1009 = vrot.slane %v970, 4
        %v1010 = vrot.slane %v966, 4
        %v1011 = vsel %vm1008, %v1009, %v1010
        %v1012 = vrot.slane %v971, 4
        %v1013 = vsel %vm1008, %v1010, %v1012
        %1014 = vrot.lane.b32.xlu0 %v1011, 64
        %v1015 = vpop.permute.xlu0 %1014
        %1016 = vrot.lane.b32.xlu0 %v1013, 64
        %v1017 = vpop.permute.xlu0 %1016
        %v1020 = vsel %vm884, %v970, %v980
        %v1021 = vsel %vm884, %v966, %v982
        %vm1022 = vcmask 261120
        %v1023 = vsel %vm1022, %v1020, %v991
        %v1024 = vsel %vm1022, %v1021, %v993
        %vm1025 = vcmask 392192
        %v1026 = vsel %vm1025, %v1023, %v1003
        %v1027 = vsel %vm1025, %v1024, %v1005
        %vm1028 = vcmask 523264
        %v1029 = vsel %vm1028, %v1026, %v1015
        %v1030 = vsel %vm1028, %v1027, %v1017
        %vm1031 = vcmask 654336
        %v1033 = vsel %vm1031, %v1029, 0
        %v1036 = vsel %vm1031, %v1030, 0
        %1038 = vmatpush.msra.mxu0 0.0
        %1039 = vmatpush.msra.mxu0 0.0
        %1040 = vmatpush.msra.mxu0 0.0
        %1041 = vmatpush.msra.mxu0 0.0
        %1042 = vmatpush.msra.mxu0 0.0
        %1043 = vmatpush.msra.mxu0 0.0
        %1044 = vmatpush.msra.mxu0 %v960
        %1045 = vmatpush.msra.mxu0 %v959
        %1046 = vmatpush.msra.mxu0 %v958
        %1047 = vmatpush.msra.mxu0 %v957
        %1048 = vmatpush.msra.mxu0 %v956
        %1049 = vmatpush.msra.mxu0 %v955
        %1050 = vmatpush.msra.mxu0 %v954
        %1051 = vmatpush.msra.mxu0 %v953
        %1052 = vmatpush.msra.mxu0 %v952
        %1053 = vmatpush.msra.mxu0 %v951
        %1054 = vmatmul.f32.gmra.mxu0 %v1033
        %v1055 = vpop.f32.mrf.mxu0
        %v1056 = vadd.f32 0.0, %v1055
        %1057 = vmatmul.f32.gmra.mxu0 %v1036
        %v1058 = vpop.f32.mrf.mxu0
        %v1059 = vadd.f32 0.0, %v1058
        %1060 = vdwg.mxu0
        %v1061 = vld [vmem:[%s5] sm:$0x1]
        %v1063 = vperm.slane %v1061, 0
        %v1065 = vmul.f32 %v1056, %v1063
        %v1066 = vmul.f32 %v1059, %v1063
        %v1067 = vld [vmem:[%s6] sm:$0x1]
        %v1069 = vperm.slane %v1067, 0
        %v1071 = vadd.f32 %v1065, %v1069
        %v1072 = vadd.f32 %v1066, %v1069
        %vm1073 = vcmp.gt.f32.partialorder %v1071, 0.0
        %vm1074 = vcmp.gt.f32.partialorder %v1072, 0.0
        %v1075 = vmul.f32 %v1071, 0.1
        %v1076 = vmul.f32 %v1072, 0.1
        %v1077 = vsel %vm1073, %v1071, %v1075
        %v1078 = vsel %vm1074, %v1072, %v1076
        %1081 = vrot.lane.b32.xlu0 %v949, 112
        %v1082 = vpop.permute.xlu0 %1081
        %1083 = vrot.lane.b32.xlu0 %v950, 112
        %v1084 = vpop.permute.xlu0 %1083
        %v1087 = vadd.f32 %v1077, %v1082
        %v1088 = vadd.f32 %v1078, %v1084
        %v1089 = vld [vmem:[%s9] sm:$0xff]
        %v1090 = vld [vmem:[%s9 + $0x8] sm:$0xff]
        %v1091 = vld [vmem:[%s9 + $0x10] sm:$0xff]
        %v1092 = vld [vmem:[%s9 + $0x18] sm:$0xff]
        %v1093 = vld [vmem:[%s9 + $0x20] sm:$0xff]
        %v1094 = vld [vmem:[%s9 + $0x28] sm:$0xff]
        %v1095 = vld [vmem:[%s9 + $0x30] sm:$0xff]
        %v1096 = vld [vmem:[%s9 + $0x38] sm:$0xff]
        %v1097 = vld [vmem:[%s10] sm:$0x3]
        %v1099 = vperm.slane %v1097, 0
        %v1100 = vperm.slane %v1097, 1
        %v1104 = vsel %vm1022, %v1087, 0
        %v1107 = vsel %vm1022, %v1088, 0
        %1109 = vmatpush.msra.mxu0 0.0
        %1110 = vmatpush.msra.mxu0 0.0
        %1111 = vmatpush.msra.mxu0 0.0
        %1112 = vmatpush.msra.mxu0 0.0
        %1113 = vmatpush.msra.mxu0 0.0
        %1114 = vmatpush.msra.mxu0 0.0
        %1115 = vmatpush.msra.mxu0 0.0
        %1116 = vmatpush.msra.mxu0 0.0
        %1117 = vmatpush.msra.mxu0 0.0
        %1118 = vmatpush.msra.mxu0 0.0
        %1119 = vmatpush.msra.mxu0 0.0
        %1120 = vmatpush.msra.mxu0 0.0
        %1121 = vmatpush.msra.mxu0 %v1095
        %1122 = vmatpush.msra.mxu0 %v1093
        %1123 = vmatpush.msra.mxu0 %v1091
        %1124 = vmatpush.msra.mxu0 %v1089
        %1125 = vmatmul.f32.gmra.mxu0 %v1104
        %v1126 = vpop.f32.mrf.mxu0
        %v1127 = vadd.f32 %v1099, %v1126
        %1128 = vmatmul.f32.gmra.mxu0 %v1107
        %v1129 = vpop.f32.mrf.mxu0
        %v1130 = vadd.f32 %v1099, %v1129
        %1131 = vdwg.mxu0
        %1132 = vmatpush.msra.mxu0 0.0
        %1133 = vmatpush.msra.mxu0 0.0
        %1134 = vmatpush.msra.mxu0 0.0
        %1135 = vmatpush.msra.mxu0 0.0
        %1136 = vmatpush.msra.mxu0 0.0
        %1137 = vmatpush.msra.mxu0 0.0
        %1138 = vmatpush.msra.mxu0 0.0
        %1139 = vmatpush.msra.mxu0 0.0
        %1140 = vmatpush.msra.mxu0 0.0
        %1141 = vmatpush.msra.mxu0 0.0
        %1142 = vmatpush.msra.mxu0 0.0
        %1143 = vmatpush.msra.mxu0 0.0
        %1144 = vmatpush.msra.mxu0 %v1096
        %1145 = vmatpush.msra.mxu0 %v1094
        %1146 = vmatpush.msra.mxu0 %v1092
        %1147 = vmatpush.msra.mxu0 %v1090
        %1148 = vmatmul.f32.gmra.mxu0 %v1104
        %v1149 = vpop.f32.mrf.mxu0
        %v1150 = vadd.f32 %v1100, %v1149
        %1151 = vmatmul.f32.gmra.mxu0 %v1107
        %v1152 = vpop.f32.mrf.mxu0
        %v1153 = vadd.f32 %v1100, %v1152
        %1154 = vdwg.mxu0
        %1155 = vst [vmem:[#allocation2] sm:$0xff] %v1127
        %1156 = vst [vmem:[#allocation2 + $0x8] sm:$0xff] %v1150
        %1157 = vst [vmem:[#allocation2 + $0x10] sm:$0xff] %v1130
        %1158 = vst [vmem:[#allocation2 + $0x18] sm:$0xff] %v1153
        %v1159 = vld [vmem:[#allocation9] sm:$0xff]
        %v1160 = vld [vmem:[#allocation9 + $0x8] sm:$0xff]
        %v1161 = vld [vmem:[#allocation9 + $0x10] sm:$0xff]
        %v1162 = vld [vmem:[#allocation9 + $0x18] sm:$0xff]
        %v1163 = vld [vmem:[#allocation11] sm:$0xff]
        %v1164 = vld [vmem:[#allocation11 + $0x8] sm:$0xff]
        %v1165 = vld [vmem:[#allocation11 + $0x10] sm:$0xff]
        %v1166 = vld [vmem:[#allocation11 + $0x18] sm:$0xff]
        %v1167 = vld [vmem:[#allocation2] ss:$0 sm:$0xff]
        %v1169 = vsel %vm1022, 0.0, 0
        %1171 = vmatpush.msra.mxu0 0.0
        %1172 = vmatpush.msra.mxu0 0.0
        %1173 = vmatpush.msra.mxu0 0.0
        %1174 = vmatpush.msra.mxu0 0.0
        %1175 = vmatpush.msra.mxu0 0.0
        %1176 = vmatpush.msra.mxu0 0.0
        %1177 = vmatpush.msra.mxu0 0.0
        %1178 = vmatpush.msra.mxu0 0.0
        %1179 = vmatpush.msra.mxu0 0.0
        %1180 = vmatpush.msra.mxu0 0.0
        %1181 = vmatpush.msra.mxu0 0.0
        %1182 = vmatpush.msra.mxu0 0.0
        %1183 = vmatpush.msra.mxu0 %v1162
        %1184 = vmatpush.msra.mxu0 %v1161
        %1185 = vmatpush.msra.mxu0 %v1160
        %1186 = vmatpush.msra.mxu0 %v1159
        %1187 = vmatmul.f32.gmra.mxu0 %v1169
        %v1188 = vpop.f32.mrf.mxu0
        %v1189 = vadd.f32 0.0, %v1188
        %1190 = vdwg.mxu0
        %v1191 = vadd.f32 %v1167, %v1189
        %v1192 = vxor.u32 %v1191, 2147483648
        %v1193 = vmul.f32 %v1192, 1.442695
        %v1194 = vpow.pop %v1193
        %v1195 = vadd.f32 %v1194, 1.0
        %v1196 = vrcp.pop %v1195
        %v1197 = vmul.f32 %v1195, %v1196
        %v1198 = vsub.f32 1.0, %v1197
        %v1199 = vmul.f32 %v1196, %v1198
        %v1200 = vadd.f32 %v1196, %v1199
        %vm1201 = vweird.f32 %v1195
        %vm1202 = vweird.f32 %v1196
        %vm1203 = vmor %vm1201, %vm1202
        %v1204 = vsel %vm1203, %v1196, %v1200
        %v1205 = vand.u32 2147483647, %v1195
        %vm1206 = vcmp.eq.f32.partialorder %v1205, 8.507059e+37
        %v1207 = vand.u32 %v1195, 2147483648
        %v1208 = vor.u32 1.1754944e-38, %v1207
        %v1209 = vsel %vm1206, %v1208, %v1204
        %v1210 = vmul.f32 1.0, %v1209
        %v1211 = vtanh.pop %v1191
        %v1212 = vmul.f32 %v1210, 0.0
        %1214 = vrot.lane.b32.xlu0 %v1211, 64
        %v1215 = vpop.permute.xlu0 %1214
        %v1217 = vmul.f32 %v1210, %v1215
        %1219 = vrot.lane.b32.xlu0 %v1217, 32
        %v1220 = vpop.permute.xlu0 %1219
        %v1222 = vadd.f32 %v1212, %v1220
        %v1223 = vtanh.pop %v1222
        %1225 = vrot.lane.b32.xlu0 %v1223, 64
        %v1226 = vpop.permute.xlu0 %1225
        %v1228 = vmul.f32 %v1210, %v1226
        %v1229 = vld [vmem:[#allocation2 + $0x1f] ss:$0 sm:$0xff]
        %1230 = vmatpush.msra.mxu0 0.0
        %1231 = vmatpush.msra.mxu0 0.0
        %1232 = vmatpush.msra.mxu0 0.0
        %1233 = vmatpush.msra.mxu0 0.0
        %1234 = vmatpush.msra.mxu0 0.0
        %1235 = vmatpush.msra.mxu0 0.0
        %1236 = vmatpush.msra.mxu0 0.0
        %1237 = vmatpush.msra.mxu0 0.0
        %1238 = vmatpush.msra.mxu0 0.0
        %1239 = vmatpush.msra.mxu0 0.0
        %1240 = vmatpush.msra.mxu0 0.0
        %1241 = vmatpush.msra.mxu0 0.0
        %1242 = vmatpush.msra.mxu0 %v1166
        %1243 = vmatpush.msra.mxu0 %v1165
        %1244 = vmatpush.msra.mxu0 %v1164
        %1245 = vmatpush.msra.mxu0 %v1163
        %1246 = vmatmul.f32.gmra.mxu0 %v1169
        %v1247 = vpop.f32.mrf.mxu0
        %v1248 = vadd.f32 0.0, %v1247
        %1249 = vdwg.mxu0
        %v1250 = vadd.f32 %v1229, %v1248
        %v1251 = vxor.u32 %v1250, 2147483648
        %v1252 = vmul.f32 %v1251, 1.442695
        %v1253 = vpow.pop %v1252
        %v1254 = vadd.f32 %v1253, 1.0
        %v1255 = vrcp.pop %v1254
        %v1256 = vmul.f32 %v1254, %v1255
        %v1257 = vsub.f32 1.0, %v1256
        %v1258 = vmul.f32 %v1255, %v1257
        %v1259 = vadd.f32 %v1255, %v1258
        %vm1260 = vweird.f32 %v1254
        %vm1261 = vweird.f32 %v1255
        %vm1262 = vmor %vm1260, %vm1261
        %v1263 = vsel %vm1262, %v1255, %v1259
        %v1264 = vand.u32 2147483647, %v1254
        %vm1265 = vcmp.eq.f32.partialorder %v1264, 8.507059e+37
        %v1266 = vand.u32 %v1254, 2147483648
        %v1267 = vor.u32 1.1754944e-38, %v1266
        %v1268 = vsel %vm1265, %v1267, %v1263
        %v1269 = vmul.f32 1.0, %v1268
        %v1270 = vtanh.pop %v1250
        %v1271 = vmul.f32 %v1269, 0.0
        %1273 = vrot.lane.b32.xlu0 %v1270, 64
        %v1274 = vpop.permute.xlu0 %1273
        %v1276 = vmul.f32 %v1269, %v1274
        %1278 = vrot.lane.b32.xlu0 %v1276, 32
        %v1279 = vpop.permute.xlu0 %1278
        %v1281 = vadd.f32 %v1271, %v1279
        %v1282 = vtanh.pop %v1281
        %1284 = vrot.lane.b32.xlu0 %v1282, 64
        %v1285 = vpop.permute.xlu0 %1284
        %v1287 = vmul.f32 %v1269, %v1285
        %1289 = vrot.lane.b32.xlu0 %v1228, 32
        %v1290 = vpop.permute.xlu0 %1289
        %vm1292 = vcmask 253952
        %1293 = vst.msk [vmem:[#allocation3] sm:$0x1] %vm1292, %v1290
        %1295 = vrot.lane.b32.xlu0 %v1287, 32
        %v1296 = vpop.permute.xlu0 %1295
        %1298 = vst.msk [vmem:[#allocation4 + $0xf] sm:$0x1] %vm1292, %v1296
        %v1299 = vld [vmem:[#allocation2 + $0x1] ss:$0 sm:$0xff]
        %v1300 = vsel %vm1022, %v1290, 0
        %1302 = vmatpush.msra.mxu0 0.0
        %1303 = vmatpush.msra.mxu0 0.0
        %1304 = vmatpush.msra.mxu0 0.0
        %1305 = vmatpush.msra.mxu0 0.0
        %1306 = vmatpush.msra.mxu0 0.0
        %1307 = vmatpush.msra.mxu0 0.0
        %1308 = vmatpush.msra.mxu0 0.0
        %1309 = vmatpush.msra.mxu0 0.0
        %1310 = vmatpush.msra.mxu0 0.0
        %1311 = vmatpush.msra.mxu0 0.0
        %1312 = vmatpush.msra.mxu0 0.0
        %1313 = vmatpush.msra.mxu0 0.0
        %1314 = vmatpush.msra.mxu0 %v1162
        %1315 = vmatpush.msra.mxu0 %v1161
        %1316 = vmatpush.msra.mxu0 %v1160
        %1317 = vmatpush.msra.mxu0 %v1159
        %1318 = vmatmul.f32.gmra.mxu0 %v1300
        %v1319 = vpop.f32.mrf.mxu0
        %v1320 = vadd.f32 0.0, %v1319
        %1321 = vdwg.mxu0
        %v1322 = vadd.f32 %v1299, %v1320
        %v1323 = vxor.u32 %v1322, 2147483648
        %v1324 = vmul.f32 %v1323, 1.442695
        %v1325 = vpow.pop %v1324
        %v1326 = vadd.f32 %v1325, 1.0
        %v1327 = vrcp.pop %v1326
        %v1328 = vmul.f32 %v1326, %v1327
        %v1329 = vsub.f32 1.0, %v1328
        %v1330 = vmul.f32 %v1327, %v1329
        %v1331 = vadd.f32 %v1327, %v1330
        %vm1332 = vweird.f32 %v1326
        %vm1333 = vweird.f32 %v1327
        %vm1334 = vmor %vm1332, %vm1333
        %v1335 = vsel %vm1334, %v1327, %v1331
        %v1336 = vand.u32 2147483647, %v1326
        %vm1337 = vcmp.eq.f32.partialorder %v1336, 8.507059e+37
        %v1338 = vand.u32 %v1326, 2147483648
        %v1339 = vor.u32 1.1754944e-38, %v1338
        %v1340 = vsel %vm1337, %v1339, %v1335
        %v1341 = vmul.f32 1.0, %v1340
        %v1342 = vtanh.pop %v1322
        %v1343 = vmul.f32 %v1341, %v1222
        %1345 = vrot.lane.b32.xlu0 %v1342, 64
        %v1346 = vpop.permute.xlu0 %1345
        %v1348 = vmul.f32 %v1341, %v1346
        %1350 = vrot.lane.b32.xlu0 %v1348, 32
        %v1351 = vpop.permute.xlu0 %1350
        %v1353 = vadd.f32 %v1343, %v1351
        %v1354 = vtanh.pop %v1353
        %1356 = vrot.lane.b32.xlu0 %v1354, 64
        %v1357 = vpop.permute.xlu0 %1356
        %v1359 = vmul.f32 %v1341, %v1357
        %v1360 = vld [vmem:[#allocation2 + $0x1e] ss:$0 sm:$0xff]
        %v1361 = vsel %vm1022, %v1296, 0
        %1363 = vmatpush.msra.mxu0 0.0
        %1364 = vmatpush.msra.mxu0 0.0
        %1365 = vmatpush.msra.mxu0 0.0
        %1366 = vmatpush.msra.mxu0 0.0
        %1367 = vmatpush.msra.mxu0 0.0
        %1368 = vmatpush.msra.mxu0 0.0
        %1369 = vmatpush.msra.mxu0 0.0
        %1370 = vmatpush.msra.mxu0 0.0
        %1371 = vmatpush.msra.mxu0 0.0
        %1372 = vmatpush.msra.mxu0 0.0
        %1373 = vmatpush.msra.mxu0 0.0
        %1374 = vmatpush.msra.mxu0 0.0
        %1375 = vmatpush.msra.mxu0 %v1166
        %1376 = vmatpush.msra.mxu0 %v1165
        %1377 = vmatpush.msra.mxu0 %v1164
        %1378 = vmatpush.msra.mxu0 %v1163
        %1379 = vmatmul.f32.gmra.mxu0 %v1361
        %v1380 = vpop.f32.mrf.mxu0
        %v1381 = vadd.f32 0.0, %v1380
        %1382 = vdwg.mxu0
        %v1383 = vadd.f32 %v1360, %v1381
        %v1384 = vxor.u32 %v1383, 2147483648
        %v1385 = vmul.f32 %v1384, 1.442695
        %v1386 = vpow.pop %v1385
        %v1387 = vadd.f32 %v1386, 1.0
        %v1388 = vrcp.pop %v1387
        %v1389 = vmul.f32 %v1387, %v1388
        %v1390 = vsub.f32 1.0, %v1389
        %v1391 = vmul.f32 %v1388, %v1390
        %v1392 = vadd.f32 %v1388, %v1391
        %vm1393 = vweird.f32 %v1387
        %vm1394 = vweird.f32 %v1388
        %vm1395 = vmor %vm1393, %vm1394
        %v1396 = vsel %vm1395, %v1388, %v1392
        %v1397 = vand.u32 2147483647, %v1387
        %vm1398 = vcmp.eq.f32.partialorder %v1397, 8.507059e+37
        %v1399 = vand.u32 %v1387, 2147483648
        %v1400 = vor.u32 1.1754944e-38, %v1399
        %v1401 = vsel %vm1398, %v1400, %v1396
        %v1402 = vmul.f32 1.0, %v1401
        %v1403 = vtanh.pop %v1383
        %v1404 = vmul.f32 %v1402, %v1281
        %1406 = vrot.lane.b32.xlu0 %v1403, 64
        %v1407 = vpop.permute.xlu0 %1406
        %v1409 = vmul.f32 %v1402, %v1407
        %1411 = vrot.lane.b32.xlu0 %v1409, 32
        %v1412 = vpop.permute.xlu0 %1411
        %v1414 = vadd.f32 %v1404, %v1412
        %v1415 = vtanh.pop %v1414
        %1417 = vrot.lane.b32.xlu0 %v1415, 64
        %v1418 = vpop.permute.xlu0 %1417
        %v1420 = vmul.f32 %v1402, %v1418
        %1422 = vrot.lane.b32.xlu0 %v1359, 32
        %v1423 = vpop.permute.xlu0 %1422
        %1425 = vst.msk [vmem:[#allocation3 + $0x1] sm:$0x1] %vm1292, %v1423
        %1427 = vrot.lane.b32.xlu0 %v1420, 32
        %v1428 = vpop.permute.xlu0 %1427
        %1430 = vst.msk [vmem:[#allocation4 + $0xe] sm:$0x1] %vm1292, %v1428
        %v1431 = vld [vmem:[#allocation2 + $0x2] ss:$0 sm:$0xff]
        %v1432 = vsel %vm1022, %v1423, 0
        %1434 = vmatpush.msra.mxu0 0.0
        %1435 = vmatpush.msra.mxu0 0.0
        %1436 = vmatpush.msra.mxu0 0.0
        %1437 = vmatpush.msra.mxu0 0.0
        %1438 = vmatpush.msra.mxu0 0.0
        %1439 = vmatpush.msra.mxu0 0.0
        %1440 = vmatpush.msra.mxu0 0.0
        %1441 = vmatpush.msra.mxu0 0.0
        %1442 = vmatpush.msra.mxu0 0.0
        %1443 = vmatpush.msra.mxu0 0.0
        %1444 = vmatpush.msra.mxu0 0.0
        %1445 = vmatpush.msra.mxu0 0.0
        %1446 = vmatpush.msra.mxu0 %v1162
        %1447 = vmatpush.msra.mxu0 %v1161
        %1448 = vmatpush.msra.mxu0 %v1160
        %1449 = vmatpush.msra.mxu0 %v1159
        %1450 = vmatmul.f32.gmra.mxu0 %v1432
        %v1451 = vpop.f32.mrf.mxu0
        %v1452 = vadd.f32 0.0, %v1451
        %1453 = vdwg.mxu0
        %v1454 = vadd.f32 %v1431, %v1452
        %v1455 = vxor.u32 %v1454, 2147483648
        %v1456 = vmul.f32 %v1455, 1.442695
        %v1457 = vpow.pop %v1456
        %v1458 = vadd.f32 %v1457, 1.0
        %v1459 = vrcp.pop %v1458
        %v1460 = vmul.f32 %v1458, %v1459
        %v1461 = vsub.f32 1.0, %v1460
        %v1462 = vmul.f32 %v1459, %v1461
        %v1463 = vadd.f32 %v1459, %v1462
        %vm1464 = vweird.f32 %v1458
        %vm1465 = vweird.f32 %v1459
        %vm1466 = vmor %vm1464, %vm1465
        %v1467 = vsel %vm1466, %v1459, %v1463
        %v1468 = vand.u32 2147483647, %v1458
        %vm1469 = vcmp.eq.f32.partialorder %v1468, 8.507059e+37
        %v1470 = vand.u32 %v1458, 2147483648
        %v1471 = vor.u32 1.1754944e-38, %v1470
        %v1472 = vsel %vm1469, %v1471, %v1467
        %v1473 = vmul.f32 1.0, %v1472
        %v1474 = vtanh.pop %v1454
        %v1475 = vmul.f32 %v1473, %v1353
        %1477 = vrot.lane.b32.xlu0 %v1474, 64
        %v1478 = vpop.permute.xlu0 %1477
        %v1480 = vmul.f32 %v1473, %v1478
        %1482 = vrot.lane.b32.xlu0 %v1480, 32
        %v1483 = vpop.permute.xlu0 %1482
        %v1485 = vadd.f32 %v1475, %v1483
        %v1486 = vtanh.pop %v1485
        %1488 = vrot.lane.b32.xlu0 %v1486, 64
        %v1489 = vpop.permute.xlu0 %1488
        %v1491 = vmul.f32 %v1473, %v1489
        %v1492 = vld [vmem:[#allocation2 + $0x1d] ss:$0 sm:$0xff]
        %v1493 = vsel %vm1022, %v1428, 0
        %1495 = vmatpush.msra.mxu0 0.0
        %1496 = vmatpush.msra.mxu0 0.0
        %1497 = vmatpush.msra.mxu0 0.0
        %1498 = vmatpush.msra.mxu0 0.0
        %1499 = vmatpush.msra.mxu0 0.0
        %1500 = vmatpush.msra.mxu0 0.0
        %1501 = vmatpush.msra.mxu0 0.0
        %1502 = vmatpush.msra.mxu0 0.0
        %1503 = vmatpush.msra.mxu0 0.0
        %1504 = vmatpush.msra.mxu0 0.0
        %1505 = vmatpush.msra.mxu0 0.0
        %1506 = vmatpush.msra.mxu0 0.0
        %1507 = vmatpush.msra.mxu0 %v1166
        %1508 = vmatpush.msra.mxu0 %v1165
        %1509 = vmatpush.msra.mxu0 %v1164
        %1510 = vmatpush.msra.mxu0 %v1163
        %1511 = vmatmul.f32.gmra.mxu0 %v1493
        %v1512 = vpop.f32.mrf.mxu0
        %v1513 = vadd.f32 0.0, %v1512
        %1514 = vdwg.mxu0
        %v1515 = vadd.f32 %v1492, %v1513
        %v1516 = vxor.u32 %v1515, 2147483648
        %v1517 = vmul.f32 %v1516, 1.442695
        %v1518 = vpow.pop %v1517
        %v1519 = vadd.f32 %v1518, 1.0
        %v1520 = vrcp.pop %v1519
        %v1521 = vmul.f32 %v1519, %v1520
        %v1522 = vsub.f32 1.0, %v1521
        %v1523 = vmul.f32 %v1520, %v1522
        %v1524 = vadd.f32 %v1520, %v1523
        %vm1525 = vweird.f32 %v1519
        %vm1526 = vweird.f32 %v1520
        %vm1527 = vmor %vm1525, %vm1526
        %v1528 = vsel %vm1527, %v1520, %v1524
        %v1529 = vand.u32 2147483647, %v1519
        %vm1530 = vcmp.eq.f32.partialorder %v1529, 8.507059e+37
        %v1531 = vand.u32 %v1519, 2147483648
        %v1532 = vor.u32 1.1754944e-38, %v1531
        %v1533 = vsel %vm1530, %v1532, %v1528
        %v1534 = vmul.f32 1.0, %v1533
        %v1535 = vtanh.pop %v1515
        %v1536 = vmul.f32 %v1534, %v1414
        %1538 = vrot.lane.b32.xlu0 %v1535, 64
        %v1539 = vpop.permute.xlu0 %1538
        %v1541 = vmul.f32 %v1534, %v1539
        %1543 = vrot.lane.b32.xlu0 %v1541, 32
        %v1544 = vpop.permute.xlu0 %1543
        %v1546 = vadd.f32 %v1536, %v1544
        %v1547 = vtanh.pop %v1546
        %1549 = vrot.lane.b32.xlu0 %v1547, 64
        %v1550 = vpop.permute.xlu0 %1549
        %v1552 = vmul.f32 %v1534, %v1550
        %1554 = vrot.lane.b32.xlu0 %v1491, 32
        %v1555 = vpop.permute.xlu0 %1554
        %1557 = vst.msk [vmem:[#allocation3 + $0x2] sm:$0x1] %vm1292, %v1555
        %1559 = vrot.lane.b32.xlu0 %v1552, 32
        %v1560 = vpop.permute.xlu0 %1559
        %1562 = vst.msk [vmem:[#allocation4 + $0xd] sm:$0x1] %vm1292, %v1560
        %v1563 = vld [vmem:[#allocation2 + $0x3] ss:$0 sm:$0xff]
        %v1564 = vsel %vm1022, %v1555, 0
        %1566 = vmatpush.msra.mxu0 0.0
        %1567 = vmatpush.msra.mxu0 0.0
        %1568 = vmatpush.msra.mxu0 0.0
        %1569 = vmatpush.msra.mxu0 0.0
        %1570 = vmatpush.msra.mxu0 0.0
        %1571 = vmatpush.msra.mxu0 0.0
        %1572 = vmatpush.msra.mxu0 0.0
        %1573 = vmatpush.msra.mxu0 0.0
        %1574 = vmatpush.msra.mxu0 0.0
        %1575 = vmatpush.msra.mxu0 0.0
        %1576 = vmatpush.msra.mxu0 0.0
        %1577 = vmatpush.msra.mxu0 0.0
        %1578 = vmatpush.msra.mxu0 %v1162
        %1579 = vmatpush.msra.mxu0 %v1161
        %1580 = vmatpush.msra.mxu0 %v1160
        %1581 = vmatpush.msra.mxu0 %v1159
        %1582 = vmatmul.f32.gmra.mxu0 %v1564
        %v1583 = vpop.f32.mrf.mxu0
        %v1584 = vadd.f32 0.0, %v1583
        %1585 = vdwg.mxu0
        %v1586 = vadd.f32 %v1563, %v1584
        %v1587 = vxor.u32 %v1586, 2147483648
        %v1588 = vmul.f32 %v1587, 1.442695
        %v1589 = vpow.pop %v1588
        %v1590 = vadd.f32 %v1589, 1.0
        %v1591 = vrcp.pop %v1590
        %v1592 = vmul.f32 %v1590, %v1591
        %v1593 = vsub.f32 1.0, %v1592
        %v1594 = vmul.f32 %v1591, %v1593
        %v1595 = vadd.f32 %v1591, %v1594
        %vm1596 = vweird.f32 %v1590
        %vm1597 = vweird.f32 %v1591
        %vm1598 = vmor %vm1596, %vm1597
        %v1599 = vsel %vm1598, %v1591, %v1595
        %v1600 = vand.u32 2147483647, %v1590
        %vm1601 = vcmp.eq.f32.partialorder %v1600, 8.507059e+37
        %v1602 = vand.u32 %v1590, 2147483648
        %v1603 = vor.u32 1.1754944e-38, %v1602
        %v1604 = vsel %vm1601, %v1603, %v1599
        %v1605 = vmul.f32 1.0, %v1604
        %v1606 = vtanh.pop %v1586
        %v1607 = vmul.f32 %v1605, %v1485
        %1609 = vrot.lane.b32.xlu0 %v1606, 64
        %v1610 = vpop.permute.xlu0 %1609
        %v1612 = vmul.f32 %v1605, %v1610
        %1614 = vrot.lane.b32.xlu0 %v1612, 32
        %v1615 = vpop.permute.xlu0 %1614
        %v1617 = vadd.f32 %v1607, %v1615
        %v1618 = vtanh.pop %v1617
        %1620 = vrot.lane.b32.xlu0 %v1618, 64
        %v1621 = vpop.permute.xlu0 %1620
        %v1623 = vmul.f32 %v1605, %v1621
        %v1624 = vld [vmem:[#allocation2 + $0x1c] ss:$0 sm:$0xff]
        %v1625 = vsel %vm1022, %v1560, 0
        %1627 = vmatpush.msra.mxu0 0.0
        %1628 = vmatpush.msra.mxu0 0.0
        %1629 = vmatpush.msra.mxu0 0.0
        %1630 = vmatpush.msra.mxu0 0.0
        %1631 = vmatpush.msra.mxu0 0.0
        %1632 = vmatpush.msra.mxu0 0.0
        %1633 = vmatpush.msra.mxu0 0.0
        %1634 = vmatpush.msra.mxu0 0.0
        %1635 = vmatpush.msra.mxu0 0.0
        %1636 = vmatpush.msra.mxu0 0.0
        %1637 = vmatpush.msra.mxu0 0.0
        %1638 = vmatpush.msra.mxu0 0.0
        %1639 = vmatpush.msra.mxu0 %v1166
        %1640 = vmatpush.msra.mxu0 %v1165
        %1641 = vmatpush.msra.mxu0 %v1164
        %1642 = vmatpush.msra.mxu0 %v1163
        %1643 = vmatmul.f32.gmra.mxu0 %v1625
        %v1644 = vpop.f32.mrf.mxu0
        %v1645 = vadd.f32 0.0, %v1644
        %1646 = vdwg.mxu0
        %v1647 = vadd.f32 %v1624, %v1645
        %v1648 = vxor.u32 %v1647, 2147483648
        %v1649 = vmul.f32 %v1648, 1.442695
        %v1650 = vpow.pop %v1649
        %v1651 = vadd.f32 %v1650, 1.0
        %v1652 = vrcp.pop %v1651
        %v1653 = vmul.f32 %v1651, %v1652
        %v1654 = vsub.f32 1.0, %v1653
        %v1655 = vmul.f32 %v1652, %v1654
        %v1656 = vadd.f32 %v1652, %v1655
        %vm1657 = vweird.f32 %v1651
        %vm1658 = vweird.f32 %v1652
        %vm1659 = vmor %vm1657, %vm1658
        %v1660 = vsel %vm1659, %v1652, %v1656
        %v1661 = vand.u32 2147483647, %v1651
        %vm1662 = vcmp.eq.f32.partialorder %v1661, 8.507059e+37
        %v1663 = vand.u32 %v1651, 2147483648
        %v1664 = vor.u32 1.1754944e-38, %v1663
        %v1665 = vsel %vm1662, %v1664, %v1660
        %v1666 = vmul.f32 1.0, %v1665
        %v1667 = vtanh.pop %v1647
        %v1668 = vmul.f32 %v1666, %v1546
        %1670 = vrot.lane.b32.xlu0 %v1667, 64
        %v1671 = vpop.permute.xlu0 %1670
        %v1673 = vmul.f32 %v1666, %v1671
        %1675 = vrot.lane.b32.xlu0 %v1673, 32
        %v1676 = vpop.permute.xlu0 %1675
        %v1678 = vadd.f32 %v1668, %v1676
        %v1679 = vtanh.pop %v1678
        %1681 = vrot.lane.b32.xlu0 %v1679, 64
        %v1682 = vpop.permute.xlu0 %1681
        %v1684 = vmul.f32 %v1666, %v1682
        %1686 = vrot.lane.b32.xlu0 %v1623, 32
        %v1687 = vpop.permute.xlu0 %1686
        %1689 = vst.msk [vmem:[#allocation3 + $0x3] sm:$0x1] %vm1292, %v1687
        %1691 = vrot.lane.b32.xlu0 %v1684, 32
        %v1692 = vpop.permute.xlu0 %1691
        %1694 = vst.msk [vmem:[#allocation4 + $0xc] sm:$0x1] %vm1292, %v1692
        %v1695 = vld [vmem:[#allocation2 + $0x4] ss:$0 sm:$0xff]
        %v1696 = vsel %vm1022, %v1687, 0
        %1698 = vmatpush.msra.mxu0 0.0
        %1699 = vmatpush.msra.mxu0 0.0
        %1700 = vmatpush.msra.mxu0 0.0
        %1701 = vmatpush.msra.mxu0 0.0
        %1702 = vmatpush.msra.mxu0 0.0
        %1703 = vmatpush.msra.mxu0 0.0
        %1704 = vmatpush.msra.mxu0 0.0
        %1705 = vmatpush.msra.mxu0 0.0
        %1706 = vmatpush.msra.mxu0 0.0
        %1707 = vmatpush.msra.mxu0 0.0
        %1708 = vmatpush.msra.mxu0 0.0
        %1709 = vmatpush.msra.mxu0 0.0
        %1710 = vmatpush.msra.mxu0 %v1162
        %1711 = vmatpush.msra.mxu0 %v1161
        %1712 = vmatpush.msra.mxu0 %v1160
        %1713 = vmatpush.msra.mxu0 %v1159
        %1714 = vmatmul.f32.gmra.mxu0 %v1696
        %v1715 = vpop.f32.mrf.mxu0
        %v1716 = vadd.f32 0.0, %v1715
        %1717 = vdwg.mxu0
        %v1718 = vadd.f32 %v1695, %v1716
        %v1719 = vxor.u32 %v1718, 2147483648
        %v1720 = vmul.f32 %v1719, 1.442695
        %v1721 = vpow.pop %v1720
        %v1722 = vadd.f32 %v1721, 1.0
        %v1723 = vrcp.pop %v1722
        %v1724 = vmul.f32 %v1722, %v1723
        %v1725 = vsub.f32 1.0, %v1724
        %v1726 = vmul.f32 %v1723, %v1725
        %v1727 = vadd.f32 %v1723, %v1726
        %vm1728 = vweird.f32 %v1722
        %vm1729 = vweird.f32 %v1723
        %vm1730 = vmor %vm1728, %vm1729
        %v1731 = vsel %vm1730, %v1723, %v1727
        %v1732 = vand.u32 2147483647, %v1722
        %vm1733 = vcmp.eq.f32.partialorder %v1732, 8.507059e+37
        %v1734 = vand.u32 %v1722, 2147483648
        %v1735 = vor.u32 1.1754944e-38, %v1734
        %v1736 = vsel %vm1733, %v1735, %v1731
        %v1737 = vmul.f32 1.0, %v1736
        %v1738 = vtanh.pop %v1718
        %v1739 = vmul.f32 %v1737, %v1617
        %1741 = vrot.lane.b32.xlu0 %v1738, 64
        %v1742 = vpop.permute.xlu0 %1741
        %v1744 = vmul.f32 %v1737, %v1742
        %1746 = vrot.lane.b32.xlu0 %v1744, 32
        %v1747 = vpop.permute.xlu0 %1746
        %v1749 = vadd.f32 %v1739, %v1747
        %v1750 = vtanh.pop %v1749
        %1752 = vrot.lane.b32.xlu0 %v1750, 64
        %v1753 = vpop.permute.xlu0 %1752
        %v1755 = vmul.f32 %v1737, %v1753
        %v1756 = vld [vmem:[#allocation2 + $0x1b] ss:$0 sm:$0xff]
        %v1757 = vsel %vm1022, %v1692, 0
        %1759 = vmatpush.msra.mxu0 0.0
        %1760 = vmatpush.msra.mxu0 0.0
        %1761 = vmatpush.msra.mxu0 0.0
        %1762 = vmatpush.msra.mxu0 0.0
        %1763 = vmatpush.msra.mxu0 0.0
        %1764 = vmatpush.msra.mxu0 0.0
        %1765 = vmatpush.msra.mxu0 0.0
        %1766 = vmatpush.msra.mxu0 0.0
        %1767 = vmatpush.msra.mxu0 0.0
        %1768 = vmatpush.msra.mxu0 0.0
        %1769 = vmatpush.msra.mxu0 0.0
        %1770 = vmatpush.msra.mxu0 0.0
        %1771 = vmatpush.msra.mxu0 %v1166
        %1772 = vmatpush.msra.mxu0 %v1165
        %1773 = vmatpush.msra.mxu0 %v1164
        %1774 = vmatpush.msra.mxu0 %v1163
        %1775 = vmatmul.f32.gmra.mxu0 %v1757
        %v1776 = vpop.f32.mrf.mxu0
        %v1777 = vadd.f32 0.0, %v1776
        %1778 = vdwg.mxu0
        %v1779 = vadd.f32 %v1756, %v1777
        %v1780 = vxor.u32 %v1779, 2147483648
        %v1781 = vmul.f32 %v1780, 1.442695
        %v1782 = vpow.pop %v1781
        %v1783 = vadd.f32 %v1782, 1.0
        %v1784 = vrcp.pop %v1783
        %v1785 = vmul.f32 %v1783, %v1784
        %v1786 = vsub.f32 1.0, %v1785
        %v1787 = vmul.f32 %v1784, %v1786
        %v1788 = vadd.f32 %v1784, %v1787
        %vm1789 = vweird.f32 %v1783
        %vm1790 = vweird.f32 %v1784
        %vm1791 = vmor %vm1789, %vm1790
        %v1792 = vsel %vm1791, %v1784, %v1788
        %v1793 = vand.u32 2147483647, %v1783
        %vm1794 = vcmp.eq.f32.partialorder %v1793, 8.507059e+37
        %v1795 = vand.u32 %v1783, 2147483648
        %v1796 = vor.u32 1.1754944e-38, %v1795
        %v1797 = vsel %vm1794, %v1796, %v1792
        %v1798 = vmul.f32 1.0, %v1797
        %v1799 = vtanh.pop %v1779
        %v1800 = vmul.f32 %v1798, %v1678
        %1802 = vrot.lane.b32.xlu0 %v1799, 64
        %v1803 = vpop.permute.xlu0 %1802
        %v1805 = vmul.f32 %v1798, %v1803
        %1807 = vrot.lane.b32.xlu0 %v1805, 32
        %v1808 = vpop.permute.xlu0 %1807
        %v1810 = vadd.f32 %v1800, %v1808
        %v1811 = vtanh.pop %v1810
        %1813 = vrot.lane.b32.xlu0 %v1811, 64
        %v1814 = vpop.permute.xlu0 %1813
        %v1816 = vmul.f32 %v1798, %v1814
        %1818 = vrot.lane.b32.xlu0 %v1755, 32
        %v1819 = vpop.permute.xlu0 %1818
        %1821 = vst.msk [vmem:[#allocation3 + $0x4] sm:$0x1] %vm1292, %v1819
        %1823 = vrot.lane.b32.xlu0 %v1816, 32
        %v1824 = vpop.permute.xlu0 %1823
        %1826 = vst.msk [vmem:[#allocation4 + $0xb] sm:$0x1] %vm1292, %v1824
        %v1827 = vld [vmem:[#allocation2 + $0x5] ss:$0 sm:$0xff]
        %v1828 = vsel %vm1022, %v1819, 0
        %1830 = vmatpush.msra.mxu0 0.0
        %1831 = vmatpush.msra.mxu0 0.0
        %1832 = vmatpush.msra.mxu0 0.0
        %1833 = vmatpush.msra.mxu0 0.0
        %1834 = vmatpush.msra.mxu0 0.0
        %1835 = vmatpush.msra.mxu0 0.0
        %1836 = vmatpush.msra.mxu0 0.0
        %1837 = vmatpush.msra.mxu0 0.0
        %1838 = vmatpush.msra.mxu0 0.0
        %1839 = vmatpush.msra.mxu0 0.0
        %1840 = vmatpush.msra.mxu0 0.0
        %1841 = vmatpush.msra.mxu0 0.0
        %1842 = vmatpush.msra.mxu0 %v1162
        %1843 = vmatpush.msra.mxu0 %v1161
        %1844 = vmatpush.msra.mxu0 %v1160
        %1845 = vmatpush.msra.mxu0 %v1159
        %1846 = vmatmul.f32.gmra.mxu0 %v1828
        %v1847 = vpop.f32.mrf.mxu0
        %v1848 = vadd.f32 0.0, %v1847
        %1849 = vdwg.mxu0
        %v1850 = vadd.f32 %v1827, %v1848
        %v1851 = vxor.u32 %v1850, 2147483648
        %v1852 = vmul.f32 %v1851, 1.442695
        %v1853 = vpow.pop %v1852
        %v1854 = vadd.f32 %v1853, 1.0
        %v1855 = vrcp.pop %v1854
        %v1856 = vmul.f32 %v1854, %v1855
        %v1857 = vsub.f32 1.0, %v1856
        %v1858 = vmul.f32 %v1855, %v1857
        %v1859 = vadd.f32 %v1855, %v1858
        %vm1860 = vweird.f32 %v1854
        %vm1861 = vweird.f32 %v1855
        %vm1862 = vmor %vm1860, %vm1861
        %v1863 = vsel %vm1862, %v1855, %v1859
        %v1864 = vand.u32 2147483647, %v1854
        %vm1865 = vcmp.eq.f32.partialorder %v1864, 8.507059e+37
        %v1866 = vand.u32 %v1854, 2147483648
        %v1867 = vor.u32 1.1754944e-38, %v1866
        %v1868 = vsel %vm1865, %v1867, %v1863
        %v1869 = vmul.f32 1.0, %v1868
        %v1870 = vtanh.pop %v1850
        %v1871 = vmul.f32 %v1869, %v1749
        %1873 = vrot.lane.b32.xlu0 %v1870, 64
        %v1874 = vpop.permute.xlu0 %1873
        %v1876 = vmul.f32 %v1869, %v1874
        %1878 = vrot.lane.b32.xlu0 %v1876, 32
        %v1879 = vpop.permute.xlu0 %1878
        %v1881 = vadd.f32 %v1871, %v1879
        %v1882 = vtanh.pop %v1881
        %1884 = vrot.lane.b32.xlu0 %v1882, 64
        %v1885 = vpop.permute.xlu0 %1884
        %v1887 = vmul.f32 %v1869, %v1885
        %v1888 = vld [vmem:[#allocation2 + $0x1a] ss:$0 sm:$0xff]
        %v1889 = vsel %vm1022, %v1824, 0
        %1891 = vmatpush.msra.mxu0 0.0
        %1892 = vmatpush.msra.mxu0 0.0
        %1893 = vmatpush.msra.mxu0 0.0
        %1894 = vmatpush.msra.mxu0 0.0
        %1895 = vmatpush.msra.mxu0 0.0
        %1896 = vmatpush.msra.mxu0 0.0
        %1897 = vmatpush.msra.mxu0 0.0
        %1898 = vmatpush.msra.mxu0 0.0
        %1899 = vmatpush.msra.mxu0 0.0
        %1900 = vmatpush.msra.mxu0 0.0
        %1901 = vmatpush.msra.mxu0 0.0
        %1902 = vmatpush.msra.mxu0 0.0
        %1903 = vmatpush.msra.mxu0 %v1166
        %1904 = vmatpush.msra.mxu0 %v1165
        %1905 = vmatpush.msra.mxu0 %v1164
        %1906 = vmatpush.msra.mxu0 %v1163
        %1907 = vmatmul.f32.gmra.mxu0 %v1889
        %v1908 = vpop.f32.mrf.mxu0
        %v1909 = vadd.f32 0.0, %v1908
        %1910 = vdwg.mxu0
        %v1911 = vadd.f32 %v1888, %v1909
        %v1912 = vxor.u32 %v1911, 2147483648
        %v1913 = vmul.f32 %v1912, 1.442695
        %v1914 = vpow.pop %v1913
        %v1915 = vadd.f32 %v1914, 1.0
        %v1916 = vrcp.pop %v1915
        %v1917 = vmul.f32 %v1915, %v1916
        %v1918 = vsub.f32 1.0, %v1917
        %v1919 = vmul.f32 %v1916, %v1918
        %v1920 = vadd.f32 %v1916, %v1919
        %vm1921 = vweird.f32 %v1915
        %vm1922 = vweird.f32 %v1916
        %vm1923 = vmor %vm1921, %vm1922
        %v1924 = vsel %vm1923, %v1916, %v1920
        %v1925 = vand.u32 2147483647, %v1915
        %vm1926 = vcmp.eq.f32.partialorder %v1925, 8.507059e+37
        %v1927 = vand.u32 %v1915, 2147483648
        %v1928 = vor.u32 1.1754944e-38, %v1927
        %v1929 = vsel %vm1926, %v1928, %v1924
        %v1930 = vmul.f32 1.0, %v1929
        %v1931 = vtanh.pop %v1911
        %v1932 = vmul.f32 %v1930, %v1810
        %1934 = vrot.lane.b32.xlu0 %v1931, 64
        %v1935 = vpop.permute.xlu0 %1934
        %v1937 = vmul.f32 %v1930, %v1935
        %1939 = vrot.lane.b32.xlu0 %v1937, 32
        %v1940 = vpop.permute.xlu0 %1939
        %v1942 = vadd.f32 %v1932, %v1940
        %v1943 = vtanh.pop %v1942
        %1945 = vrot.lane.b32.xlu0 %v1943, 64
        %v1946 = vpop.permute.xlu0 %1945
        %v1948 = vmul.f32 %v1930, %v1946
        %1950 = vrot.lane.b32.xlu0 %v1887, 32
        %v1951 = vpop.permute.xlu0 %1950
        %1953 = vst.msk [vmem:[#allocation3 + $0x5] sm:$0x1] %vm1292, %v1951
        %1955 = vrot.lane.b32.xlu0 %v1948, 32
        %v1956 = vpop.permute.xlu0 %1955
        %1958 = vst.msk [vmem:[#allocation4 + $0xa] sm:$0x1] %vm1292, %v1956
        %v1959 = vld [vmem:[#allocation2 + $0x6] ss:$0 sm:$0xff]
        %v1960 = vsel %vm1022, %v1951, 0
        %1962 = vmatpush.msra.mxu0 0.0
        %1963 = vmatpush.msra.mxu0 0.0
        %1964 = vmatpush.msra.mxu0 0.0
        %1965 = vmatpush.msra.mxu0 0.0
        %1966 = vmatpush.msra.mxu0 0.0
        %1967 = vmatpush.msra.mxu0 0.0
        %1968 = vmatpush.msra.mxu0 0.0
        %1969 = vmatpush.msra.mxu0 0.0
        %1970 = vmatpush.msra.mxu0 0.0
        %1971 = vmatpush.msra.mxu0 0.0
        %1972 = vmatpush.msra.mxu0 0.0
        %1973 = vmatpush.msra.mxu0 0.0
        %1974 = vmatpush.msra.mxu0 %v1162
        %1975 = vmatpush.msra.mxu0 %v1161
        %1976 = vmatpush.msra.mxu0 %v1160
        %1977 = vmatpush.msra.mxu0 %v1159
        %1978 = vmatmul.f32.gmra.mxu0 %v1960
        %v1979 = vpop.f32.mrf.mxu0
        %v1980 = vadd.f32 0.0, %v1979
        %1981 = vdwg.mxu0
        %v1982 = vadd.f32 %v1959, %v1980
        %v1983 = vxor.u32 %v1982, 2147483648
        %v1984 = vmul.f32 %v1983, 1.442695
        %v1985 = vpow.pop %v1984
        %v1986 = vadd.f32 %v1985, 1.0
        %v1987 = vrcp.pop %v1986
        %v1988 = vmul.f32 %v1986, %v1987
        %v1989 = vsub.f32 1.0, %v1988
        %v1990 = vmul.f32 %v1987, %v1989
        %v1991 = vadd.f32 %v1987, %v1990
        %vm1992 = vweird.f32 %v1986
        %vm1993 = vweird.f32 %v1987
        %vm1994 = vmor %vm1992, %vm1993
        %v1995 = vsel %vm1994, %v1987, %v1991
        %v1996 = vand.u32 2147483647, %v1986
        %vm1997 = vcmp.eq.f32.partialorder %v1996, 8.507059e+37
        %v1998 = vand.u32 %v1986, 2147483648
        %v1999 = vor.u32 1.1754944e-38, %v1998
        %v2000 = vsel %vm1997, %v1999, %v1995
        %v2001 = vmul.f32 1.0, %v2000
        %v2002 = vtanh.pop %v1982
        %v2003 = vmul.f32 %v2001, %v1881
        %2005 = vrot.lane.b32.xlu0 %v2002, 64
        %v2006 = vpop.permute.xlu0 %2005
        %v2008 = vmul.f32 %v2001, %v2006
        %2010 = vrot.lane.b32.xlu0 %v2008, 32
        %v2011 = vpop.permute.xlu0 %2010
        %v2013 = vadd.f32 %v2003, %v2011
        %v2014 = vtanh.pop %v2013
        %2016 = vrot.lane.b32.xlu0 %v2014, 64
        %v2017 = vpop.permute.xlu0 %2016
        %v2019 = vmul.f32 %v2001, %v2017
        %v2020 = vld [vmem:[#allocation2 + $0x19] ss:$0 sm:$0xff]
        %v2021 = vsel %vm1022, %v1956, 0
        %2023 = vmatpush.msra.mxu0 0.0
        %2024 = vmatpush.msra.mxu0 0.0
        %2025 = vmatpush.msra.mxu0 0.0
        %2026 = vmatpush.msra.mxu0 0.0
        %2027 = vmatpush.msra.mxu0 0.0
        %2028 = vmatpush.msra.mxu0 0.0
        %2029 = vmatpush.msra.mxu0 0.0
        %2030 = vmatpush.msra.mxu0 0.0
        %2031 = vmatpush.msra.mxu0 0.0
        %2032 = vmatpush.msra.mxu0 0.0
        %2033 = vmatpush.msra.mxu0 0.0
        %2034 = vmatpush.msra.mxu0 0.0
        %2035 = vmatpush.msra.mxu0 %v1166
        %2036 = vmatpush.msra.mxu0 %v1165
        %2037 = vmatpush.msra.mxu0 %v1164
        %2038 = vmatpush.msra.mxu0 %v1163
        %2039 = vmatmul.f32.gmra.mxu0 %v2021
        %v2040 = vpop.f32.mrf.mxu0
        %v2041 = vadd.f32 0.0, %v2040
        %2042 = vdwg.mxu0
        %v2043 = vadd.f32 %v2020, %v2041
        %v2044 = vxor.u32 %v2043, 2147483648
        %v2045 = vmul.f32 %v2044, 1.442695
        %v2046 = vpow.pop %v2045
        %v2047 = vadd.f32 %v2046, 1.0
        %v2048 = vrcp.pop %v2047
        %v2049 = vmul.f32 %v2047, %v2048
        %v2050 = vsub.f32 1.0, %v2049
        %v2051 = vmul.f32 %v2048, %v2050
        %v2052 = vadd.f32 %v2048, %v2051
        %vm2053 = vweird.f32 %v2047
        %vm2054 = vweird.f32 %v2048
        %vm2055 = vmor %vm2053, %vm2054
        %v2056 = vsel %vm2055, %v2048, %v2052
        %v2057 = vand.u32 2147483647, %v2047
        %vm2058 = vcmp.eq.f32.partialorder %v2057, 8.507059e+37
        %v2059 = vand.u32 %v2047, 2147483648
        %v2060 = vor.u32 1.1754944e-38, %v2059
        %v2061 = vsel %vm2058, %v2060, %v2056
        %v2062 = vmul.f32 1.0, %v2061
        %v2063 = vtanh.pop %v2043
        %v2064 = vmul.f32 %v2062, %v1942
        %2066 = vrot.lane.b32.xlu0 %v2063, 64
        %v2067 = vpop.permute.xlu0 %2066
        %v2069 = vmul.f32 %v2062, %v2067
        %2071 = vrot.lane.b32.xlu0 %v2069, 32
        %v2072 = vpop.permute.xlu0 %2071
        %v2074 = vadd.f32 %v2064, %v2072
        %v2075 = vtanh.pop %v2074
        %2077 = vrot.lane.b32.xlu0 %v2075, 64
        %v2078 = vpop.permute.xlu0 %2077
        %v2080 = vmul.f32 %v2062, %v2078
        %2082 = vrot.lane.b32.xlu0 %v2019, 32
        %v2083 = vpop.permute.xlu0 %2082
        %2085 = vst.msk [vmem:[#allocation3 + $0x6] sm:$0x1] %vm1292, %v2083
        %2087 = vrot.lane.b32.xlu0 %v2080, 32
        %v2088 = vpop.permute.xlu0 %2087
        %2090 = vst.msk [vmem:[#allocation4 + $0x9] sm:$0x1] %vm1292, %v2088
        %v2091 = vld [vmem:[#allocation2 + $0x7] ss:$0 sm:$0xff]
        %v2092 = vsel %vm1022, %v2083, 0
        %2094 = vmatpush.msra.mxu0 0.0
        %2095 = vmatpush.msra.mxu0 0.0
        %2096 = vmatpush.msra.mxu0 0.0
        %2097 = vmatpush.msra.mxu0 0.0
        %2098 = vmatpush.msra.mxu0 0.0
        %2099 = vmatpush.msra.mxu0 0.0
        %2100 = vmatpush.msra.mxu0 0.0
        %2101 = vmatpush.msra.mxu0 0.0
        %2102 = vmatpush.msra.mxu0 0.0
        %2103 = vmatpush.msra.mxu0 0.0
        %2104 = vmatpush.msra.mxu0 0.0
        %2105 = vmatpush.msra.mxu0 0.0
        %2106 = vmatpush.msra.mxu0 %v1162
        %2107 = vmatpush.msra.mxu0 %v1161
        %2108 = vmatpush.msra.mxu0 %v1160
        %2109 = vmatpush.msra.mxu0 %v1159
        %2110 = vmatmul.f32.gmra.mxu0 %v2092
        %v2111 = vpop.f32.mrf.mxu0
        %v2112 = vadd.f32 0.0, %v2111
        %2113 = vdwg.mxu0
        %v2114 = vadd.f32 %v2091, %v2112
        %v2115 = vxor.u32 %v2114, 2147483648
        %v2116 = vmul.f32 %v2115, 1.442695
        %v2117 = vpow.pop %v2116
        %v2118 = vadd.f32 %v2117, 1.0
        %v2119 = vrcp.pop %v2118
        %v2120 = vmul.f32 %v2118, %v2119
        %v2121 = vsub.f32 1.0, %v2120
        %v2122 = vmul.f32 %v2119, %v2121
        %v2123 = vadd.f32 %v2119, %v2122
        %vm2124 = vweird.f32 %v2118
        %vm2125 = vweird.f32 %v2119
        %vm2126 = vmor %vm2124, %vm2125
        %v2127 = vsel %vm2126, %v2119, %v2123
        %v2128 = vand.u32 2147483647, %v2118
        %vm2129 = vcmp.eq.f32.partialorder %v2128, 8.507059e+37
        %v2130 = vand.u32 %v2118, 2147483648
        %v2131 = vor.u32 1.1754944e-38, %v2130
        %v2132 = vsel %vm2129, %v2131, %v2127
        %v2133 = vmul.f32 1.0, %v2132
        %v2134 = vtanh.pop %v2114
        %v2135 = vmul.f32 %v2133, %v2013
        %2137 = vrot.lane.b32.xlu0 %v2134, 64
        %v2138 = vpop.permute.xlu0 %2137
        %v2140 = vmul.f32 %v2133, %v2138
        %2142 = vrot.lane.b32.xlu0 %v2140, 32
        %v2143 = vpop.permute.xlu0 %2142
        %v2145 = vadd.f32 %v2135, %v2143
        %v2146 = vtanh.pop %v2145
        %2148 = vrot.lane.b32.xlu0 %v2146, 64
        %v2149 = vpop.permute.xlu0 %2148
        %v2151 = vmul.f32 %v2133, %v2149
        %v2152 = vld [vmem:[#allocation2 + $0x18] ss:$0 sm:$0xff]
        %v2153 = vsel %vm1022, %v2088, 0
        %2155 = vmatpush.msra.mxu0 0.0
        %2156 = vmatpush.msra.mxu0 0.0
        %2157 = vmatpush.msra.mxu0 0.0
        %2158 = vmatpush.msra.mxu0 0.0
        %2159 = vmatpush.msra.mxu0 0.0
        %2160 = vmatpush.msra.mxu0 0.0
        %2161 = vmatpush.msra.mxu0 0.0
        %2162 = vmatpush.msra.mxu0 0.0
        %2163 = vmatpush.msra.mxu0 0.0
        %2164 = vmatpush.msra.mxu0 0.0
        %2165 = vmatpush.msra.mxu0 0.0
        %2166 = vmatpush.msra.mxu0 0.0
        %2167 = vmatpush.msra.mxu0 %v1166
        %2168 = vmatpush.msra.mxu0 %v1165
        %2169 = vmatpush.msra.mxu0 %v1164
        %2170 = vmatpush.msra.mxu0 %v1163
        %2171 = vmatmul.f32.gmra.mxu0 %v2153
        %v2172 = vpop.f32.mrf.mxu0
        %v2173 = vadd.f32 0.0, %v2172
        %2174 = vdwg.mxu0
        %v2175 = vadd.f32 %v2152, %v2173
        %v2176 = vxor.u32 %v2175, 2147483648
        %v2177 = vmul.f32 %v2176, 1.442695
        %v2178 = vpow.pop %v2177
        %v2179 = vadd.f32 %v2178, 1.0
        %v2180 = vrcp.pop %v2179
        %v2181 = vmul.f32 %v2179, %v2180
        %v2182 = vsub.f32 1.0, %v2181
        %v2183 = vmul.f32 %v2180, %v2182
        %v2184 = vadd.f32 %v2180, %v2183
        %vm2185 = vweird.f32 %v2179
        %vm2186 = vweird.f32 %v2180
        %vm2187 = vmor %vm2185, %vm2186
        %v2188 = vsel %vm2187, %v2180, %v2184
        %v2189 = vand.u32 2147483647, %v2179
        %vm2190 = vcmp.eq.f32.partialorder %v2189, 8.507059e+37
        %v2191 = vand.u32 %v2179, 2147483648
        %v2192 = vor.u32 1.1754944e-38, %v2191
        %v2193 = vsel %vm2190, %v2192, %v2188
        %v2194 = vmul.f32 1.0, %v2193
        %v2195 = vtanh.pop %v2175
        %v2196 = vmul.f32 %v2194, %v2074
        %2198 = vrot.lane.b32.xlu0 %v2195, 64
        %v2199 = vpop.permute.xlu0 %2198
        %v2201 = vmul.f32 %v2194, %v2199
        %2203 = vrot.lane.b32.xlu0 %v2201, 32
        %v2204 = vpop.permute.xlu0 %2203
        %v2206 = vadd.f32 %v2196, %v2204
        %v2207 = vtanh.pop %v2206
        %2209 = vrot.lane.b32.xlu0 %v2207, 64
        %v2210 = vpop.permute.xlu0 %2209
        %v2212 = vmul.f32 %v2194, %v2210
        %2214 = vrot.lane.b32.xlu0 %v2151, 32
        %v2215 = vpop.permute.xlu0 %2214
        %2217 = vst.msk [vmem:[#allocation3 + $0x7] sm:$0x1] %vm1292, %v2215
        %2219 = vrot.lane.b32.xlu0 %v2212, 32
        %v2220 = vpop.permute.xlu0 %2219
        %2222 = vst.msk [vmem:[#allocation4 + $0x8] sm:$0x1] %vm1292, %v2220
        %v2223 = vld [vmem:[#allocation2 + $0x10] ss:$0 sm:$0xff]
        %v2224 = vsel %vm1022, %v2215, 0
        %2226 = vmatpush.msra.mxu0 0.0
        %2227 = vmatpush.msra.mxu0 0.0
        %2228 = vmatpush.msra.mxu0 0.0
        %2229 = vmatpush.msra.mxu0 0.0
        %2230 = vmatpush.msra.mxu0 0.0
        %2231 = vmatpush.msra.mxu0 0.0
        %2232 = vmatpush.msra.mxu0 0.0
        %2233 = vmatpush.msra.mxu0 0.0
        %2234 = vmatpush.msra.mxu0 0.0
        %2235 = vmatpush.msra.mxu0 0.0
        %2236 = vmatpush.msra.mxu0 0.0
        %2237 = vmatpush.msra.mxu0 0.0
        %2238 = vmatpush.msra.mxu0 %v1162
        %2239 = vmatpush.msra.mxu0 %v1161
        %2240 = vmatpush.msra.mxu0 %v1160
        %2241 = vmatpush.msra.mxu0 %v1159
        %2242 = vmatmul.f32.gmra.mxu0 %v2224
        %v2243 = vpop.f32.mrf.mxu0
        %v2244 = vadd.f32 0.0, %v2243
        %2245 = vdwg.mxu0
        %v2246 = vadd.f32 %v2223, %v2244
        %v2247 = vxor.u32 %v2246, 2147483648
        %v2248 = vmul.f32 %v2247, 1.442695
        %v2249 = vpow.pop %v2248
        %v2250 = vadd.f32 %v2249, 1.0
        %v2251 = vrcp.pop %v2250
        %v2252 = vmul.f32 %v2250, %v2251
        %v2253 = vsub.f32 1.0, %v2252
        %v2254 = vmul.f32 %v2251, %v2253
        %v2255 = vadd.f32 %v2251, %v2254
        %vm2256 = vweird.f32 %v2250
        %vm2257 = vweird.f32 %v2251
        %vm2258 = vmor %vm2256, %vm2257
        %v2259 = vsel %vm2258, %v2251, %v2255
        %v2260 = vand.u32 2147483647, %v2250
        %vm2261 = vcmp.eq.f32.partialorder %v2260, 8.507059e+37
        %v2262 = vand.u32 %v2250, 2147483648
        %v2263 = vor.u32 1.1754944e-38, %v2262
        %v2264 = vsel %vm2261, %v2263, %v2259
        %v2265 = vmul.f32 1.0, %v2264
        %v2266 = vtanh.pop %v2246
        %v2267 = vmul.f32 %v2265, %v2145
        %2269 = vrot.lane.b32.xlu0 %v2266, 64
        %v2270 = vpop.permute.xlu0 %2269
        %v2272 = vmul.f32 %v2265, %v2270
        %2274 = vrot.lane.b32.xlu0 %v2272, 32
        %v2275 = vpop.permute.xlu0 %2274
        %v2277 = vadd.f32 %v2267, %v2275
        %v2278 = vtanh.pop %v2277
        %2280 = vrot.lane.b32.xlu0 %v2278, 64
        %v2281 = vpop.permute.xlu0 %2280
        %v2283 = vmul.f32 %v2265, %v2281
        %v2284 = vld [vmem:[#allocation2 + $0xf] ss:$0 sm:$0xff]
        %v2285 = vsel %vm1022, %v2220, 0
        %2287 = vmatpush.msra.mxu0 0.0
        %2288 = vmatpush.msra.mxu0 0.0
        %2289 = vmatpush.msra.mxu0 0.0
        %2290 = vmatpush.msra.mxu0 0.0
        %2291 = vmatpush.msra.mxu0 0.0
        %2292 = vmatpush.msra.mxu0 0.0
        %2293 = vmatpush.msra.mxu0 0.0
        %2294 = vmatpush.msra.mxu0 0.0
        %2295 = vmatpush.msra.mxu0 0.0
        %2296 = vmatpush.msra.mxu0 0.0
        %2297 = vmatpush.msra.mxu0 0.0
        %2298 = vmatpush.msra.mxu0 0.0
        %2299 = vmatpush.msra.mxu0 %v1166
        %2300 = vmatpush.msra.mxu0 %v1165
        %2301 = vmatpush.msra.mxu0 %v1164
        %2302 = vmatpush.msra.mxu0 %v1163
        %2303 = vmatmul.f32.gmra.mxu0 %v2285
        %v2304 = vpop.f32.mrf.mxu0
        %v2305 = vadd.f32 0.0, %v2304
        %2306 = vdwg.mxu0
        %v2307 = vadd.f32 %v2284, %v2305
        %v2308 = vxor.u32 %v2307, 2147483648
        %v2309 = vmul.f32 %v2308, 1.442695
        %v2310 = vpow.pop %v2309
        %v2311 = vadd.f32 %v2310, 1.0
        %v2312 = vrcp.pop %v2311
        %v2313 = vmul.f32 %v2311, %v2312
        %v2314 = vsub.f32 1.0, %v2313
        %v2315 = vmul.f32 %v2312, %v2314
        %v2316 = vadd.f32 %v2312, %v2315
        %vm2317 = vweird.f32 %v2311
        %vm2318 = vweird.f32 %v2312
        %vm2319 = vmor %vm2317, %vm2318
        %v2320 = vsel %vm2319, %v2312, %v2316
        %v2321 = vand.u32 2147483647, %v2311
        %vm2322 = vcmp.eq.f32.partialorder %v2321, 8.507059e+37
        %v2323 = vand.u32 %v2311, 2147483648
        %v2324 = vor.u32 1.1754944e-38, %v2323
        %v2325 = vsel %vm2322, %v2324, %v2320
        %v2326 = vmul.f32 1.0, %v2325
        %v2327 = vtanh.pop %v2307
        %v2328 = vmul.f32 %v2326, %v2206
        %2330 = vrot.lane.b32.xlu0 %v2327, 64
        %v2331 = vpop.permute.xlu0 %2330
        %v2333 = vmul.f32 %v2326, %v2331
        %2335 = vrot.lane.b32.xlu0 %v2333, 32
        %v2336 = vpop.permute.xlu0 %2335
        %v2338 = vadd.f32 %v2328, %v2336
        %v2339 = vtanh.pop %v2338
        %2341 = vrot.lane.b32.xlu0 %v2339, 64
        %v2342 = vpop.permute.xlu0 %2341
        %v2344 = vmul.f32 %v2326, %v2342
        %2346 = vrot.lane.b32.xlu0 %v2283, 32
        %v2347 = vpop.permute.xlu0 %2346
        %2349 = vst.msk [vmem:[#allocation3 + $0x8] sm:$0x1] %vm1292, %v2347
        %2351 = vrot.lane.b32.xlu0 %v2344, 32
        %v2352 = vpop.permute.xlu0 %2351
        %2354 = vst.msk [vmem:[#allocation4 + $0x7] sm:$0x1] %vm1292, %v2352
        %v2355 = vld [vmem:[#allocation2 + $0x11] ss:$0 sm:$0xff]
        %v2356 = vsel %vm1022, %v2347, 0
        %2358 = vmatpush.msra.mxu0 0.0
        %2359 = vmatpush.msra.mxu0 0.0
        %2360 = vmatpush.msra.mxu0 0.0
        %2361 = vmatpush.msra.mxu0 0.0
        %2362 = vmatpush.msra.mxu0 0.0
        %2363 = vmatpush.msra.mxu0 0.0
        %2364 = vmatpush.msra.mxu0 0.0
        %2365 = vmatpush.msra.mxu0 0.0
        %2366 = vmatpush.msra.mxu0 0.0
        %2367 = vmatpush.msra.mxu0 0.0
        %2368 = vmatpush.msra.mxu0 0.0
        %2369 = vmatpush.msra.mxu0 0.0
        %2370 = vmatpush.msra.mxu0 %v1162
        %2371 = vmatpush.msra.mxu0 %v1161
        %2372 = vmatpush.msra.mxu0 %v1160
        %2373 = vmatpush.msra.mxu0 %v1159
        %2374 = vmatmul.f32.gmra.mxu0 %v2356
        %v2375 = vpop.f32.mrf.mxu0
        %v2376 = vadd.f32 0.0, %v2375
        %2377 = vdwg.mxu0
        %v2378 = vadd.f32 %v2355, %v2376
        %v2379 = vxor.u32 %v2378, 2147483648
        %v2380 = vmul.f32 %v2379, 1.442695
        %v2381 = vpow.pop %v2380
        %v2382 = vadd.f32 %v2381, 1.0
        %v2383 = vrcp.pop %v2382
        %v2384 = vmul.f32 %v2382, %v2383
        %v2385 = vsub.f32 1.0, %v2384
        %v2386 = vmul.f32 %v2383, %v2385
        %v2387 = vadd.f32 %v2383, %v2386
        %vm2388 = vweird.f32 %v2382
        %vm2389 = vweird.f32 %v2383
        %vm2390 = vmor %vm2388, %vm2389
        %v2391 = vsel %vm2390, %v2383, %v2387
        %v2392 = vand.u32 2147483647, %v2382
        %vm2393 = vcmp.eq.f32.partialorder %v2392, 8.507059e+37
        %v2394 = vand.u32 %v2382, 2147483648
        %v2395 = vor.u32 1.1754944e-38, %v2394
        %v2396 = vsel %vm2393, %v2395, %v2391
        %v2397 = vmul.f32 1.0, %v2396
        %v2398 = vtanh.pop %v2378
        %v2399 = vmul.f32 %v2397, %v2277
        %2401 = vrot.lane.b32.xlu0 %v2398, 64
        %v2402 = vpop.permute.xlu0 %2401
        %v2404 = vmul.f32 %v2397, %v2402
        %2406 = vrot.lane.b32.xlu0 %v2404, 32
        %v2407 = vpop.permute.xlu0 %2406
        %v2409 = vadd.f32 %v2399, %v2407
        %v2410 = vtanh.pop %v2409
        %2412 = vrot.lane.b32.xlu0 %v2410, 64
        %v2413 = vpop.permute.xlu0 %2412
        %v2415 = vmul.f32 %v2397, %v2413
        %v2416 = vld [vmem:[#allocation2 + $0xe] ss:$0 sm:$0xff]
        %v2417 = vsel %vm1022, %v2352, 0
        %2419 = vmatpush.msra.mxu0 0.0
        %2420 = vmatpush.msra.mxu0 0.0
        %2421 = vmatpush.msra.mxu0 0.0
        %2422 = vmatpush.msra.mxu0 0.0
        %2423 = vmatpush.msra.mxu0 0.0
        %2424 = vmatpush.msra.mxu0 0.0
        %2425 = vmatpush.msra.mxu0 0.0
        %2426 = vmatpush.msra.mxu0 0.0
        %2427 = vmatpush.msra.mxu0 0.0
        %2428 = vmatpush.msra.mxu0 0.0
        %2429 = vmatpush.msra.mxu0 0.0
        %2430 = vmatpush.msra.mxu0 0.0
        %2431 = vmatpush.msra.mxu0 %v1166
        %2432 = vmatpush.msra.mxu0 %v1165
        %2433 = vmatpush.msra.mxu0 %v1164
        %2434 = vmatpush.msra.mxu0 %v1163
        %2435 = vmatmul.f32.gmra.mxu0 %v2417
        %v2436 = vpop.f32.mrf.mxu0
        %v2437 = vadd.f32 0.0, %v2436
        %2438 = vdwg.mxu0
        %v2439 = vadd.f32 %v2416, %v2437
        %v2440 = vxor.u32 %v2439, 2147483648
        %v2441 = vmul.f32 %v2440, 1.442695
        %v2442 = vpow.pop %v2441
        %v2443 = vadd.f32 %v2442, 1.0
        %v2444 = vrcp.pop %v2443
        %v2445 = vmul.f32 %v2443, %v2444
        %v2446 = vsub.f32 1.0, %v2445
        %v2447 = vmul.f32 %v2444, %v2446
        %v2448 = vadd.f32 %v2444, %v2447
        %vm2449 = vweird.f32 %v2443
        %vm2450 = vweird.f32 %v2444
        %vm2451 = vmor %vm2449, %vm2450
        %v2452 = vsel %vm2451, %v2444, %v2448
        %v2453 = vand.u32 2147483647, %v2443
        %vm2454 = vcmp.eq.f32.partialorder %v2453, 8.507059e+37
        %v2455 = vand.u32 %v2443, 2147483648
        %v2456 = vor.u32 1.1754944e-38, %v2455
        %v2457 = vsel %vm2454, %v2456, %v2452
        %v2458 = vmul.f32 1.0, %v2457
        %v2459 = vtanh.pop %v2439
        %v2460 = vmul.f32 %v2458, %v2338
        %2462 = vrot.lane.b32.xlu0 %v2459, 64
        %v2463 = vpop.permute.xlu0 %2462
        %v2465 = vmul.f32 %v2458, %v2463
        %2467 = vrot.lane.b32.xlu0 %v2465, 32
        %v2468 = vpop.permute.xlu0 %2467
        %v2470 = vadd.f32 %v2460, %v2468
        %v2471 = vtanh.pop %v2470
        %2473 = vrot.lane.b32.xlu0 %v2471, 64
        %v2474 = vpop.permute.xlu0 %2473
        %v2476 = vmul.f32 %v2458, %v2474
        %2478 = vrot.lane.b32.xlu0 %v2415, 32
        %v2479 = vpop.permute.xlu0 %2478
        %2481 = vst.msk [vmem:[#allocation3 + $0x9] sm:$0x1] %vm1292, %v2479
        %2483 = vrot.lane.b32.xlu0 %v2476, 32
        %v2484 = vpop.permute.xlu0 %2483
        %2486 = vst.msk [vmem:[#allocation4 + $0x6] sm:$0x1] %vm1292, %v2484
        %v2487 = vld [vmem:[#allocation2 + $0x12] ss:$0 sm:$0xff]
        %v2488 = vsel %vm1022, %v2479, 0
        %2490 = vmatpush.msra.mxu0 0.0
        %2491 = vmatpush.msra.mxu0 0.0
        %2492 = vmatpush.msra.mxu0 0.0
        %2493 = vmatpush.msra.mxu0 0.0
        %2494 = vmatpush.msra.mxu0 0.0
        %2495 = vmatpush.msra.mxu0 0.0
        %2496 = vmatpush.msra.mxu0 0.0
        %2497 = vmatpush.msra.mxu0 0.0
        %2498 = vmatpush.msra.mxu0 0.0
        %2499 = vmatpush.msra.mxu0 0.0
        %2500 = vmatpush.msra.mxu0 0.0
        %2501 = vmatpush.msra.mxu0 0.0
        %2502 = vmatpush.msra.mxu0 %v1162
        %2503 = vmatpush.msra.mxu0 %v1161
        %2504 = vmatpush.msra.mxu0 %v1160
        %2505 = vmatpush.msra.mxu0 %v1159
        %2506 = vmatmul.f32.gmra.mxu0 %v2488
        %v2507 = vpop.f32.mrf.mxu0
        %v2508 = vadd.f32 0.0, %v2507
        %2509 = vdwg.mxu0
        %v2510 = vadd.f32 %v2487, %v2508
        %v2511 = vxor.u32 %v2510, 2147483648
        %v2512 = vmul.f32 %v2511, 1.442695
        %v2513 = vpow.pop %v2512
        %v2514 = vadd.f32 %v2513, 1.0
        %v2515 = vrcp.pop %v2514
        %v2516 = vmul.f32 %v2514, %v2515
        %v2517 = vsub.f32 1.0, %v2516
        %v2518 = vmul.f32 %v2515, %v2517
        %v2519 = vadd.f32 %v2515, %v2518
        %vm2520 = vweird.f32 %v2514
        %vm2521 = vweird.f32 %v2515
        %vm2522 = vmor %vm2520, %vm2521
        %v2523 = vsel %vm2522, %v2515, %v2519
        %v2524 = vand.u32 2147483647, %v2514
        %vm2525 = vcmp.eq.f32.partialorder %v2524, 8.507059e+37
        %v2526 = vand.u32 %v2514, 2147483648
        %v2527 = vor.u32 1.1754944e-38, %v2526
        %v2528 = vsel %vm2525, %v2527, %v2523
        %v2529 = vmul.f32 1.0, %v2528
        %v2530 = vtanh.pop %v2510
        %v2531 = vmul.f32 %v2529, %v2409
        %2533 = vrot.lane.b32.xlu0 %v2530, 64
        %v2534 = vpop.permute.xlu0 %2533
        %v2536 = vmul.f32 %v2529, %v2534
        %2538 = vrot.lane.b32.xlu0 %v2536, 32
        %v2539 = vpop.permute.xlu0 %2538
        %v2541 = vadd.f32 %v2531, %v2539
        %v2542 = vtanh.pop %v2541
        %2544 = vrot.lane.b32.xlu0 %v2542, 64
        %v2545 = vpop.permute.xlu0 %2544
        %v2547 = vmul.f32 %v2529, %v2545
        %v2548 = vld [vmem:[#allocation2 + $0xd] ss:$0 sm:$0xff]
        %v2549 = vsel %vm1022, %v2484, 0
        %2551 = vmatpush.msra.mxu0 0.0
        %2552 = vmatpush.msra.mxu0 0.0
        %2553 = vmatpush.msra.mxu0 0.0
        %2554 = vmatpush.msra.mxu0 0.0
        %2555 = vmatpush.msra.mxu0 0.0
        %2556 = vmatpush.msra.mxu0 0.0
        %2557 = vmatpush.msra.mxu0 0.0
        %2558 = vmatpush.msra.mxu0 0.0
        %2559 = vmatpush.msra.mxu0 0.0
        %2560 = vmatpush.msra.mxu0 0.0
        %2561 = vmatpush.msra.mxu0 0.0
        %2562 = vmatpush.msra.mxu0 0.0
        %2563 = vmatpush.msra.mxu0 %v1166
        %2564 = vmatpush.msra.mxu0 %v1165
        %2565 = vmatpush.msra.mxu0 %v1164
        %2566 = vmatpush.msra.mxu0 %v1163
        %2567 = vmatmul.f32.gmra.mxu0 %v2549
        %v2568 = vpop.f32.mrf.mxu0
        %v2569 = vadd.f32 0.0, %v2568
        %2570 = vdwg.mxu0
        %v2571 = vadd.f32 %v2548, %v2569
        %v2572 = vxor.u32 %v2571, 2147483648
        %v2573 = vmul.f32 %v2572, 1.442695
        %v2574 = vpow.pop %v2573
        %v2575 = vadd.f32 %v2574, 1.0
        %v2576 = vrcp.pop %v2575
        %v2577 = vmul.f32 %v2575, %v2576
        %v2578 = vsub.f32 1.0, %v2577
        %v2579 = vmul.f32 %v2576, %v2578
        %v2580 = vadd.f32 %v2576, %v2579
        %vm2581 = vweird.f32 %v2575
        %vm2582 = vweird.f32 %v2576
        %vm2583 = vmor %vm2581, %vm2582
        %v2584 = vsel %vm2583, %v2576, %v2580
        %v2585 = vand.u32 2147483647, %v2575
        %vm2586 = vcmp.eq.f32.partialorder %v2585, 8.507059e+37
        %v2587 = vand.u32 %v2575, 2147483648
        %v2588 = vor.u32 1.1754944e-38, %v2587
        %v2589 = vsel %vm2586, %v2588, %v2584
        %v2590 = vmul.f32 1.0, %v2589
        %v2591 = vtanh.pop %v2571
        %v2592 = vmul.f32 %v2590, %v2470
        %2594 = vrot.lane.b32.xlu0 %v2591, 64
        %v2595 = vpop.permute.xlu0 %2594
        %v2597 = vmul.f32 %v2590, %v2595
        %2599 = vrot.lane.b32.xlu0 %v2597, 32
        %v2600 = vpop.permute.xlu0 %2599
        %v2602 = vadd.f32 %v2592, %v2600
        %v2603 = vtanh.pop %v2602
        %2605 = vrot.lane.b32.xlu0 %v2603, 64
        %v2606 = vpop.permute.xlu0 %2605
        %v2608 = vmul.f32 %v2590, %v2606
        %2610 = vrot.lane.b32.xlu0 %v2547, 32
        %v2611 = vpop.permute.xlu0 %2610
        %2613 = vst.msk [vmem:[#allocation3 + $0xa] sm:$0x1] %vm1292, %v2611
        %2615 = vrot.lane.b32.xlu0 %v2608, 32
        %v2616 = vpop.permute.xlu0 %2615
        %2618 = vst.msk [vmem:[#allocation4 + $0x5] sm:$0x1] %vm1292, %v2616
        %v2619 = vld [vmem:[#allocation2 + $0x13] ss:$0 sm:$0xff]
        %v2620 = vsel %vm1022, %v2611, 0
        %2622 = vmatpush.msra.mxu0 0.0
        %2623 = vmatpush.msra.mxu0 0.0
        %2624 = vmatpush.msra.mxu0 0.0
        %2625 = vmatpush.msra.mxu0 0.0
        %2626 = vmatpush.msra.mxu0 0.0
        %2627 = vmatpush.msra.mxu0 0.0
        %2628 = vmatpush.msra.mxu0 0.0
        %2629 = vmatpush.msra.mxu0 0.0
        %2630 = vmatpush.msra.mxu0 0.0
        %2631 = vmatpush.msra.mxu0 0.0
        %2632 = vmatpush.msra.mxu0 0.0
        %2633 = vmatpush.msra.mxu0 0.0
        %2634 = vmatpush.msra.mxu0 %v1162
        %2635 = vmatpush.msra.mxu0 %v1161
        %2636 = vmatpush.msra.mxu0 %v1160
        %2637 = vmatpush.msra.mxu0 %v1159
        %2638 = vmatmul.f32.gmra.mxu0 %v2620
        %v2639 = vpop.f32.mrf.mxu0
        %v2640 = vadd.f32 0.0, %v2639
        %2641 = vdwg.mxu0
        %v2642 = vadd.f32 %v2619, %v2640
        %v2643 = vxor.u32 %v2642, 2147483648
        %v2644 = vmul.f32 %v2643, 1.442695
        %v2645 = vpow.pop %v2644
        %v2646 = vadd.f32 %v2645, 1.0
        %v2647 = vrcp.pop %v2646
        %v2648 = vmul.f32 %v2646, %v2647
        %v2649 = vsub.f32 1.0, %v2648
        %v2650 = vmul.f32 %v2647, %v2649
        %v2651 = vadd.f32 %v2647, %v2650
        %vm2652 = vweird.f32 %v2646
        %vm2653 = vweird.f32 %v2647
        %vm2654 = vmor %vm2652, %vm2653
        %v2655 = vsel %vm2654, %v2647, %v2651
        %v2656 = vand.u32 2147483647, %v2646
        %vm2657 = vcmp.eq.f32.partialorder %v2656, 8.507059e+37
        %v2658 = vand.u32 %v2646, 2147483648
        %v2659 = vor.u32 1.1754944e-38, %v2658
        %v2660 = vsel %vm2657, %v2659, %v2655
        %v2661 = vmul.f32 1.0, %v2660
        %v2662 = vtanh.pop %v2642
        %v2663 = vmul.f32 %v2661, %v2541
        %2665 = vrot.lane.b32.xlu0 %v2662, 64
        %v2666 = vpop.permute.xlu0 %2665
        %v2668 = vmul.f32 %v2661, %v2666
        %2670 = vrot.lane.b32.xlu0 %v2668, 32
        %v2671 = vpop.permute.xlu0 %2670
        %v2673 = vadd.f32 %v2663, %v2671
        %v2674 = vtanh.pop %v2673
        %2676 = vrot.lane.b32.xlu0 %v2674, 64
        %v2677 = vpop.permute.xlu0 %2676
        %v2679 = vmul.f32 %v2661, %v2677
        %v2680 = vld [vmem:[#allocation2 + $0xc] ss:$0 sm:$0xff]
        %v2681 = vsel %vm1022, %v2616, 0
        %2683 = vmatpush.msra.mxu0 0.0
        %2684 = vmatpush.msra.mxu0 0.0
        %2685 = vmatpush.msra.mxu0 0.0
        %2686 = vmatpush.msra.mxu0 0.0
        %2687 = vmatpush.msra.mxu0 0.0
        %2688 = vmatpush.msra.mxu0 0.0
        %2689 = vmatpush.msra.mxu0 0.0
        %2690 = vmatpush.msra.mxu0 0.0
        %2691 = vmatpush.msra.mxu0 0.0
        %2692 = vmatpush.msra.mxu0 0.0
        %2693 = vmatpush.msra.mxu0 0.0
        %2694 = vmatpush.msra.mxu0 0.0
        %2695 = vmatpush.msra.mxu0 %v1166
        %2696 = vmatpush.msra.mxu0 %v1165
        %2697 = vmatpush.msra.mxu0 %v1164
        %2698 = vmatpush.msra.mxu0 %v1163
        %2699 = vmatmul.f32.gmra.mxu0 %v2681
        %v2700 = vpop.f32.mrf.mxu0
        %v2701 = vadd.f32 0.0, %v2700
        %2702 = vdwg.mxu0
        %v2703 = vadd.f32 %v2680, %v2701
        %v2704 = vxor.u32 %v2703, 2147483648
        %v2705 = vmul.f32 %v2704, 1.442695
        %v2706 = vpow.pop %v2705
        %v2707 = vadd.f32 %v2706, 1.0
        %v2708 = vrcp.pop %v2707
        %v2709 = vmul.f32 %v2707, %v2708
        %v2710 = vsub.f32 1.0, %v2709
        %v2711 = vmul.f32 %v2708, %v2710
        %v2712 = vadd.f32 %v2708, %v2711
        %vm2713 = vweird.f32 %v2707
        %vm2714 = vweird.f32 %v2708
        %vm2715 = vmor %vm2713, %vm2714
        %v2716 = vsel %vm2715, %v2708, %v2712
        %v2717 = vand.u32 2147483647, %v2707
        %vm2718 = vcmp.eq.f32.partialorder %v2717, 8.507059e+37
        %v2719 = vand.u32 %v2707, 2147483648
        %v2720 = vor.u32 1.1754944e-38, %v2719
        %v2721 = vsel %vm2718, %v2720, %v2716
        %v2722 = vmul.f32 1.0, %v2721
        %v2723 = vtanh.pop %v2703
        %v2724 = vmul.f32 %v2722, %v2602
        %2726 = vrot.lane.b32.xlu0 %v2723, 64
        %v2727 = vpop.permute.xlu0 %2726
        %v2729 = vmul.f32 %v2722, %v2727
        %2731 = vrot.lane.b32.xlu0 %v2729, 32
        %v2732 = vpop.permute.xlu0 %2731
        %v2734 = vadd.f32 %v2724, %v2732
        %v2735 = vtanh.pop %v2734
        %2737 = vrot.lane.b32.xlu0 %v2735, 64
        %v2738 = vpop.permute.xlu0 %2737
        %v2740 = vmul.f32 %v2722, %v2738
        %2742 = vrot.lane.b32.xlu0 %v2679, 32
        %v2743 = vpop.permute.xlu0 %2742
        %2745 = vst.msk [vmem:[#allocation3 + $0xb] sm:$0x1] %vm1292, %v2743
        %2747 = vrot.lane.b32.xlu0 %v2740, 32
        %v2748 = vpop.permute.xlu0 %2747
        %2750 = vst.msk [vmem:[#allocation4 + $0x4] sm:$0x1] %vm1292, %v2748
        %v2751 = vld [vmem:[#allocation2 + $0x14] ss:$0 sm:$0xff]
        %v2752 = vsel %vm1022, %v2743, 0
        %2754 = vmatpush.msra.mxu0 0.0
        %2755 = vmatpush.msra.mxu0 0.0
        %2756 = vmatpush.msra.mxu0 0.0
        %2757 = vmatpush.msra.mxu0 0.0
        %2758 = vmatpush.msra.mxu0 0.0
        %2759 = vmatpush.msra.mxu0 0.0
        %2760 = vmatpush.msra.mxu0 0.0
        %2761 = vmatpush.msra.mxu0 0.0
        %2762 = vmatpush.msra.mxu0 0.0
        %2763 = vmatpush.msra.mxu0 0.0
        %2764 = vmatpush.msra.mxu0 0.0
        %2765 = vmatpush.msra.mxu0 0.0
        %2766 = vmatpush.msra.mxu0 %v1162
        %2767 = vmatpush.msra.mxu0 %v1161
        %2768 = vmatpush.msra.mxu0 %v1160
        %2769 = vmatpush.msra.mxu0 %v1159
        %2770 = vmatmul.f32.gmra.mxu0 %v2752
        %v2771 = vpop.f32.mrf.mxu0
        %v2772 = vadd.f32 0.0, %v2771
        %2773 = vdwg.mxu0
        %v2774 = vadd.f32 %v2751, %v2772
        %v2775 = vxor.u32 %v2774, 2147483648
        %v2776 = vmul.f32 %v2775, 1.442695
        %v2777 = vpow.pop %v2776
        %v2778 = vadd.f32 %v2777, 1.0
        %v2779 = vrcp.pop %v2778
        %v2780 = vmul.f32 %v2778, %v2779
        %v2781 = vsub.f32 1.0, %v2780
        %v2782 = vmul.f32 %v2779, %v2781
        %v2783 = vadd.f32 %v2779, %v2782
        %vm2784 = vweird.f32 %v2778
        %vm2785 = vweird.f32 %v2779
        %vm2786 = vmor %vm2784, %vm2785
        %v2787 = vsel %vm2786, %v2779, %v2783
        %v2788 = vand.u32 2147483647, %v2778
        %vm2789 = vcmp.eq.f32.partialorder %v2788, 8.507059e+37
        %v2790 = vand.u32 %v2778, 2147483648
        %v2791 = vor.u32 1.1754944e-38, %v2790
        %v2792 = vsel %vm2789, %v2791, %v2787
        %v2793 = vmul.f32 1.0, %v2792
        %v2794 = vtanh.pop %v2774
        %v2795 = vmul.f32 %v2793, %v2673
        %2797 = vrot.lane.b32.xlu0 %v2794, 64
        %v2798 = vpop.permute.xlu0 %2797
        %v2800 = vmul.f32 %v2793, %v2798
        %2802 = vrot.lane.b32.xlu0 %v2800, 32
        %v2803 = vpop.permute.xlu0 %2802
        %v2805 = vadd.f32 %v2795, %v2803
        %v2806 = vtanh.pop %v2805
        %2808 = vrot.lane.b32.xlu0 %v2806, 64
        %v2809 = vpop.permute.xlu0 %2808
        %v2811 = vmul.f32 %v2793, %v2809
        %v2812 = vld [vmem:[#allocation2 + $0xb] ss:$0 sm:$0xff]
        %v2813 = vsel %vm1022, %v2748, 0
        %2815 = vmatpush.msra.mxu0 0.0
        %2816 = vmatpush.msra.mxu0 0.0
        %2817 = vmatpush.msra.mxu0 0.0
        %2818 = vmatpush.msra.mxu0 0.0
        %2819 = vmatpush.msra.mxu0 0.0
        %2820 = vmatpush.msra.mxu0 0.0
        %2821 = vmatpush.msra.mxu0 0.0
        %2822 = vmatpush.msra.mxu0 0.0
        %2823 = vmatpush.msra.mxu0 0.0
        %2824 = vmatpush.msra.mxu0 0.0
        %2825 = vmatpush.msra.mxu0 0.0
        %2826 = vmatpush.msra.mxu0 0.0
        %2827 = vmatpush.msra.mxu0 %v1166
        %2828 = vmatpush.msra.mxu0 %v1165
        %2829 = vmatpush.msra.mxu0 %v1164
        %2830 = vmatpush.msra.mxu0 %v1163
        %2831 = vmatmul.f32.gmra.mxu0 %v2813
        %v2832 = vpop.f32.mrf.mxu0
        %v2833 = vadd.f32 0.0, %v2832
        %2834 = vdwg.mxu0
        %v2835 = vadd.f32 %v2812, %v2833
        %v2836 = vxor.u32 %v2835, 2147483648
        %v2837 = vmul.f32 %v2836, 1.442695
        %v2838 = vpow.pop %v2837
        %v2839 = vadd.f32 %v2838, 1.0
        %v2840 = vrcp.pop %v2839
        %v2841 = vmul.f32 %v2839, %v2840
        %v2842 = vsub.f32 1.0, %v2841
        %v2843 = vmul.f32 %v2840, %v2842
        %v2844 = vadd.f32 %v2840, %v2843
        %vm2845 = vweird.f32 %v2839
        %vm2846 = vweird.f32 %v2840
        %vm2847 = vmor %vm2845, %vm2846
        %v2848 = vsel %vm2847, %v2840, %v2844
        %v2849 = vand.u32 2147483647, %v2839
        %vm2850 = vcmp.eq.f32.partialorder %v2849, 8.507059e+37
        %v2851 = vand.u32 %v2839, 2147483648
        %v2852 = vor.u32 1.1754944e-38, %v2851
        %v2853 = vsel %vm2850, %v2852, %v2848
        %v2854 = vmul.f32 1.0, %v2853
        %v2855 = vtanh.pop %v2835
        %v2856 = vmul.f32 %v2854, %v2734
        %2858 = vrot.lane.b32.xlu0 %v2855, 64
        %v2859 = vpop.permute.xlu0 %2858
        %v2861 = vmul.f32 %v2854, %v2859
        %2863 = vrot.lane.b32.xlu0 %v2861, 32
        %v2864 = vpop.permute.xlu0 %2863
        %v2866 = vadd.f32 %v2856, %v2864
        %v2867 = vtanh.pop %v2866
        %2869 = vrot.lane.b32.xlu0 %v2867, 64
        %v2870 = vpop.permute.xlu0 %2869
        %v2872 = vmul.f32 %v2854, %v2870
        %2874 = vrot.lane.b32.xlu0 %v2811, 32
        %v2875 = vpop.permute.xlu0 %2874
        %2877 = vst.msk [vmem:[#allocation3 + $0xc] sm:$0x1] %vm1292, %v2875
        %2879 = vrot.lane.b32.xlu0 %v2872, 32
        %v2880 = vpop.permute.xlu0 %2879
        %2882 = vst.msk [vmem:[#allocation4 + $0x3] sm:$0x1] %vm1292, %v2880
        %v2883 = vld [vmem:[#allocation2 + $0x15] ss:$0 sm:$0xff]
        %v2884 = vsel %vm1022, %v2875, 0
        %2886 = vmatpush.msra.mxu0 0.0
        %2887 = vmatpush.msra.mxu0 0.0
        %2888 = vmatpush.msra.mxu0 0.0
        %2889 = vmatpush.msra.mxu0 0.0
        %2890 = vmatpush.msra.mxu0 0.0
        %2891 = vmatpush.msra.mxu0 0.0
        %2892 = vmatpush.msra.mxu0 0.0
        %2893 = vmatpush.msra.mxu0 0.0
        %2894 = vmatpush.msra.mxu0 0.0
        %2895 = vmatpush.msra.mxu0 0.0
        %2896 = vmatpush.msra.mxu0 0.0
        %2897 = vmatpush.msra.mxu0 0.0
        %2898 = vmatpush.msra.mxu0 %v1162
        %2899 = vmatpush.msra.mxu0 %v1161
        %2900 = vmatpush.msra.mxu0 %v1160
        %2901 = vmatpush.msra.mxu0 %v1159
        %2902 = vmatmul.f32.gmra.mxu0 %v2884
        %v2903 = vpop.f32.mrf.mxu0
        %v2904 = vadd.f32 0.0, %v2903
        %2905 = vdwg.mxu0
        %v2906 = vadd.f32 %v2883, %v2904
        %v2907 = vxor.u32 %v2906, 2147483648
        %v2908 = vmul.f32 %v2907, 1.442695
        %v2909 = vpow.pop %v2908
        %v2910 = vadd.f32 %v2909, 1.0
        %v2911 = vrcp.pop %v2910
        %v2912 = vmul.f32 %v2910, %v2911
        %v2913 = vsub.f32 1.0, %v2912
        %v2914 = vmul.f32 %v2911, %v2913
        %v2915 = vadd.f32 %v2911, %v2914
        %vm2916 = vweird.f32 %v2910
        %vm2917 = vweird.f32 %v2911
        %vm2918 = vmor %vm2916, %vm2917
        %v2919 = vsel %vm2918, %v2911, %v2915
        %v2920 = vand.u32 2147483647, %v2910
        %vm2921 = vcmp.eq.f32.partialorder %v2920, 8.507059e+37
        %v2922 = vand.u32 %v2910, 2147483648
        %v2923 = vor.u32 1.1754944e-38, %v2922
        %v2924 = vsel %vm2921, %v2923, %v2919
        %v2925 = vmul.f32 1.0, %v2924
        %v2926 = vtanh.pop %v2906
        %v2927 = vmul.f32 %v2925, %v2805
        %2929 = vrot.lane.b32.xlu0 %v2926, 64
        %v2930 = vpop.permute.xlu0 %2929
        %v2932 = vmul.f32 %v2925, %v2930
        %2934 = vrot.lane.b32.xlu0 %v2932, 32
        %v2935 = vpop.permute.xlu0 %2934
        %v2937 = vadd.f32 %v2927, %v2935
        %v2938 = vtanh.pop %v2937
        %2940 = vrot.lane.b32.xlu0 %v2938, 64
        %v2941 = vpop.permute.xlu0 %2940
        %v2943 = vmul.f32 %v2925, %v2941
        %v2944 = vld [vmem:[#allocation2 + $0xa] ss:$0 sm:$0xff]
        %v2945 = vsel %vm1022, %v2880, 0
        %2947 = vmatpush.msra.mxu0 0.0
        %2948 = vmatpush.msra.mxu0 0.0
        %2949 = vmatpush.msra.mxu0 0.0
        %2950 = vmatpush.msra.mxu0 0.0
        %2951 = vmatpush.msra.mxu0 0.0
        %2952 = vmatpush.msra.mxu0 0.0
        %2953 = vmatpush.msra.mxu0 0.0
        %2954 = vmatpush.msra.mxu0 0.0
        %2955 = vmatpush.msra.mxu0 0.0
        %2956 = vmatpush.msra.mxu0 0.0
        %2957 = vmatpush.msra.mxu0 0.0
        %2958 = vmatpush.msra.mxu0 0.0
        %2959 = vmatpush.msra.mxu0 %v1166
        %2960 = vmatpush.msra.mxu0 %v1165
        %2961 = vmatpush.msra.mxu0 %v1164
        %2962 = vmatpush.msra.mxu0 %v1163
        %2963 = vmatmul.f32.gmra.mxu0 %v2945
        %v2964 = vpop.f32.mrf.mxu0
        %v2965 = vadd.f32 0.0, %v2964
        %2966 = vdwg.mxu0
        %v2967 = vadd.f32 %v2944, %v2965
        %v2968 = vxor.u32 %v2967, 2147483648
        %v2969 = vmul.f32 %v2968, 1.442695
        %v2970 = vpow.pop %v2969
        %v2971 = vadd.f32 %v2970, 1.0
        %v2972 = vrcp.pop %v2971
        %v2973 = vmul.f32 %v2971, %v2972
        %v2974 = vsub.f32 1.0, %v2973
        %v2975 = vmul.f32 %v2972, %v2974
        %v2976 = vadd.f32 %v2972, %v2975
        %vm2977 = vweird.f32 %v2971
        %vm2978 = vweird.f32 %v2972
        %vm2979 = vmor %vm2977, %vm2978
        %v2980 = vsel %vm2979, %v2972, %v2976
        %v2981 = vand.u32 2147483647, %v2971
        %vm2982 = vcmp.eq.f32.partialorder %v2981, 8.507059e+37
        %v2983 = vand.u32 %v2971, 2147483648
        %v2984 = vor.u32 1.1754944e-38, %v2983
        %v2985 = vsel %vm2982, %v2984, %v2980
        %v2986 = vmul.f32 1.0, %v2985
        %v2987 = vtanh.pop %v2967
        %v2988 = vmul.f32 %v2986, %v2866
        %2990 = vrot.lane.b32.xlu0 %v2987, 64
        %v2991 = vpop.permute.xlu0 %2990
        %v2993 = vmul.f32 %v2986, %v2991
        %2995 = vrot.lane.b32.xlu0 %v2993, 32
        %v2996 = vpop.permute.xlu0 %2995
        %v2998 = vadd.f32 %v2988, %v2996
        %v2999 = vtanh.pop %v2998
        %3001 = vrot.lane.b32.xlu0 %v2999, 64
        %v3002 = vpop.permute.xlu0 %3001
        %v3004 = vmul.f32 %v2986, %v3002
        %3006 = vrot.lane.b32.xlu0 %v2943, 32
        %v3007 = vpop.permute.xlu0 %3006
        %3009 = vst.msk [vmem:[#allocation3 + $0xd] sm:$0x1] %vm1292, %v3007
        %3011 = vrot.lane.b32.xlu0 %v3004, 32
        %v3012 = vpop.permute.xlu0 %3011
        %3014 = vst.msk [vmem:[#allocation4 + $0x2] sm:$0x1] %vm1292, %v3012
        %v3015 = vld [vmem:[#allocation2 + $0x16] ss:$0 sm:$0xff]
        %v3016 = vsel %vm1022, %v3007, 0
        %3018 = vmatpush.msra.mxu0 0.0
        %3019 = vmatpush.msra.mxu0 0.0
        %3020 = vmatpush.msra.mxu0 0.0
        %3021 = vmatpush.msra.mxu0 0.0
        %3022 = vmatpush.msra.mxu0 0.0
        %3023 = vmatpush.msra.mxu0 0.0
        %3024 = vmatpush.msra.mxu0 0.0
        %3025 = vmatpush.msra.mxu0 0.0
        %3026 = vmatpush.msra.mxu0 0.0
        %3027 = vmatpush.msra.mxu0 0.0
        %3028 = vmatpush.msra.mxu0 0.0
        %3029 = vmatpush.msra.mxu0 0.0
        %3030 = vmatpush.msra.mxu0 %v1162
        %3031 = vmatpush.msra.mxu0 %v1161
        %3032 = vmatpush.msra.mxu0 %v1160
        %3033 = vmatpush.msra.mxu0 %v1159
        %3034 = vmatmul.f32.gmra.mxu0 %v3016
        %v3035 = vpop.f32.mrf.mxu0
        %v3036 = vadd.f32 0.0, %v3035
        %3037 = vdwg.mxu0
        %v3038 = vadd.f32 %v3015, %v3036
        %v3039 = vxor.u32 %v3038, 2147483648
        %v3040 = vmul.f32 %v3039, 1.442695
        %v3041 = vpow.pop %v3040
        %v3042 = vadd.f32 %v3041, 1.0
        %v3043 = vrcp.pop %v3042
        %v3044 = vmul.f32 %v3042, %v3043
        %v3045 = vsub.f32 1.0, %v3044
        %v3046 = vmul.f32 %v3043, %v3045
        %v3047 = vadd.f32 %v3043, %v3046
        %vm3048 = vweird.f32 %v3042
        %vm3049 = vweird.f32 %v3043
        %vm3050 = vmor %vm3048, %vm3049
        %v3051 = vsel %vm3050, %v3043, %v3047
        %v3052 = vand.u32 2147483647, %v3042
        %vm3053 = vcmp.eq.f32.partialorder %v3052, 8.507059e+37
        %v3054 = vand.u32 %v3042, 2147483648
        %v3055 = vor.u32 1.1754944e-38, %v3054
        %v3056 = vsel %vm3053, %v3055, %v3051
        %v3057 = vmul.f32 1.0, %v3056
        %v3058 = vtanh.pop %v3038
        %v3059 = vmul.f32 %v3057, %v2937
        %3061 = vrot.lane.b32.xlu0 %v3058, 64
        %v3062 = vpop.permute.xlu0 %3061
        %v3064 = vmul.f32 %v3057, %v3062
        %3066 = vrot.lane.b32.xlu0 %v3064, 32
        %v3067 = vpop.permute.xlu0 %3066
        %v3069 = vadd.f32 %v3059, %v3067
        %v3070 = vtanh.pop %v3069
        %3072 = vrot.lane.b32.xlu0 %v3070, 64
        %v3073 = vpop.permute.xlu0 %3072
        %v3075 = vmul.f32 %v3057, %v3073
        %v3076 = vld [vmem:[#allocation2 + $0x9] ss:$0 sm:$0xff]
        %v3077 = vsel %vm1022, %v3012, 0
        %3079 = vmatpush.msra.mxu0 0.0
        %3080 = vmatpush.msra.mxu0 0.0
        %3081 = vmatpush.msra.mxu0 0.0
        %3082 = vmatpush.msra.mxu0 0.0
        %3083 = vmatpush.msra.mxu0 0.0
        %3084 = vmatpush.msra.mxu0 0.0
        %3085 = vmatpush.msra.mxu0 0.0
        %3086 = vmatpush.msra.mxu0 0.0
        %3087 = vmatpush.msra.mxu0 0.0
        %3088 = vmatpush.msra.mxu0 0.0
        %3089 = vmatpush.msra.mxu0 0.0
        %3090 = vmatpush.msra.mxu0 0.0
        %3091 = vmatpush.msra.mxu0 %v1166
        %3092 = vmatpush.msra.mxu0 %v1165
        %3093 = vmatpush.msra.mxu0 %v1164
        %3094 = vmatpush.msra.mxu0 %v1163
        %3095 = vmatmul.f32.gmra.mxu0 %v3077
        %v3096 = vpop.f32.mrf.mxu0
        %v3097 = vadd.f32 0.0, %v3096
        %3098 = vdwg.mxu0
        %v3099 = vadd.f32 %v3076, %v3097
        %v3100 = vxor.u32 %v3099, 2147483648
        %v3101 = vmul.f32 %v3100, 1.442695
        %v3102 = vpow.pop %v3101
        %v3103 = vadd.f32 %v3102, 1.0
        %v3104 = vrcp.pop %v3103
        %v3105 = vmul.f32 %v3103, %v3104
        %v3106 = vsub.f32 1.0, %v3105
        %v3107 = vmul.f32 %v3104, %v3106
        %v3108 = vadd.f32 %v3104, %v3107
        %vm3109 = vweird.f32 %v3103
        %vm3110 = vweird.f32 %v3104
        %vm3111 = vmor %vm3109, %vm3110
        %v3112 = vsel %vm3111, %v3104, %v3108
        %v3113 = vand.u32 2147483647, %v3103
        %vm3114 = vcmp.eq.f32.partialorder %v3113, 8.507059e+37
        %v3115 = vand.u32 %v3103, 2147483648
        %v3116 = vor.u32 1.1754944e-38, %v3115
        %v3117 = vsel %vm3114, %v3116, %v3112
        %v3118 = vmul.f32 1.0, %v3117
        %v3119 = vtanh.pop %v3099
        %v3120 = vmul.f32 %v3118, %v2998
        %3122 = vrot.lane.b32.xlu0 %v3119, 64
        %v3123 = vpop.permute.xlu0 %3122
        %v3125 = vmul.f32 %v3118, %v3123
        %3127 = vrot.lane.b32.xlu0 %v3125, 32
        %v3128 = vpop.permute.xlu0 %3127
        %v3130 = vadd.f32 %v3120, %v3128
        %v3131 = vtanh.pop %v3130
        %3133 = vrot.lane.b32.xlu0 %v3131, 64
        %v3134 = vpop.permute.xlu0 %3133
        %v3136 = vmul.f32 %v3118, %v3134
        %3138 = vrot.lane.b32.xlu0 %v3075, 32
        %v3139 = vpop.permute.xlu0 %3138
        %3141 = vst.msk [vmem:[#allocation3 + $0xe] sm:$0x1] %vm1292, %v3139
        %3143 = vrot.lane.b32.xlu0 %v3136, 32
        %v3144 = vpop.permute.xlu0 %3143
        %3146 = vst.msk [vmem:[#allocation4 + $0x1] sm:$0x1] %vm1292, %v3144
        %v3147 = vld [vmem:[#allocation2 + $0x17] ss:$0 sm:$0xff]
        %v3148 = vsel %vm1022, %v3139, 0
        %3150 = vmatpush.msra.mxu0 0.0
        %3151 = vmatpush.msra.mxu0 0.0
        %3152 = vmatpush.msra.mxu0 0.0
        %3153 = vmatpush.msra.mxu0 0.0
        %3154 = vmatpush.msra.mxu0 0.0
        %3155 = vmatpush.msra.mxu0 0.0
        %3156 = vmatpush.msra.mxu0 0.0
        %3157 = vmatpush.msra.mxu0 0.0
        %3158 = vmatpush.msra.mxu0 0.0
        %3159 = vmatpush.msra.mxu0 0.0
        %3160 = vmatpush.msra.mxu0 0.0
        %3161 = vmatpush.msra.mxu0 0.0
        %3162 = vmatpush.msra.mxu0 %v1162
        %3163 = vmatpush.msra.mxu0 %v1161
        %3164 = vmatpush.msra.mxu0 %v1160
        %3165 = vmatpush.msra.mxu0 %v1159
        %3166 = vmatmul.f32.gmra.mxu0 %v3148
        %v3167 = vpop.f32.mrf.mxu0
        %v3168 = vadd.f32 0.0, %v3167
        %3169 = vdwg.mxu0
        %v3170 = vadd.f32 %v3147, %v3168
        %v3171 = vxor.u32 %v3170, 2147483648
        %v3172 = vmul.f32 %v3171, 1.442695
        %v3173 = vpow.pop %v3172
        %v3174 = vadd.f32 %v3173, 1.0
        %v3175 = vrcp.pop %v3174
        %v3176 = vmul.f32 %v3174, %v3175
        %v3177 = vsub.f32 1.0, %v3176
        %v3178 = vmul.f32 %v3175, %v3177
        %v3179 = vadd.f32 %v3175, %v3178
        %vm3180 = vweird.f32 %v3174
        %vm3181 = vweird.f32 %v3175
        %vm3182 = vmor %vm3180, %vm3181
        %v3183 = vsel %vm3182, %v3175, %v3179
        %v3184 = vand.u32 2147483647, %v3174
        %vm3185 = vcmp.eq.f32.partialorder %v3184, 8.507059e+37
        %v3186 = vand.u32 %v3174, 2147483648
        %v3187 = vor.u32 1.1754944e-38, %v3186
        %v3188 = vsel %vm3185, %v3187, %v3183
        %v3189 = vmul.f32 1.0, %v3188
        %v3190 = vtanh.pop %v3170
        %v3191 = vmul.f32 %v3189, %v3069
        %3193 = vrot.lane.b32.xlu0 %v3190, 64
        %v3194 = vpop.permute.xlu0 %3193
        %v3196 = vmul.f32 %v3189, %v3194
        %3198 = vrot.lane.b32.xlu0 %v3196, 32
        %v3199 = vpop.permute.xlu0 %3198
        %v3201 = vadd.f32 %v3191, %v3199
        %v3202 = vtanh.pop %v3201
        %3204 = vrot.lane.b32.xlu0 %v3202, 64
        %v3205 = vpop.permute.xlu0 %3204
        %v3207 = vmul.f32 %v3189, %v3205
        %v3208 = vld [vmem:[#allocation2 + $0x8] ss:$0 sm:$0xff]
        %v3209 = vsel %vm1022, %v3144, 0
        %3211 = vmatpush.msra.mxu0 0.0
        %3212 = vmatpush.msra.mxu0 0.0
        %3213 = vmatpush.msra.mxu0 0.0
        %3214 = vmatpush.msra.mxu0 0.0
        %3215 = vmatpush.msra.mxu0 0.0
        %3216 = vmatpush.msra.mxu0 0.0
        %3217 = vmatpush.msra.mxu0 0.0
        %3218 = vmatpush.msra.mxu0 0.0
        %3219 = vmatpush.msra.mxu0 0.0
        %3220 = vmatpush.msra.mxu0 0.0
        %3221 = vmatpush.msra.mxu0 0.0
        %3222 = vmatpush.msra.mxu0 0.0
        %3223 = vmatpush.msra.mxu0 %v1166
        %3224 = vmatpush.msra.mxu0 %v1165
        %3225 = vmatpush.msra.mxu0 %v1164
        %3226 = vmatpush.msra.mxu0 %v1163
        %3227 = vmatmul.f32.gmra.mxu0 %v3209
        %v3228 = vpop.f32.mrf.mxu0
        %v3229 = vadd.f32 0.0, %v3228
        %3230 = vdwg.mxu0
        %v3231 = vadd.f32 %v3208, %v3229
        %v3232 = vxor.u32 %v3231, 2147483648
        %v3233 = vmul.f32 %v3232, 1.442695
        %v3234 = vpow.pop %v3233
        %v3235 = vadd.f32 %v3234, 1.0
        %v3236 = vrcp.pop %v3235
        %v3237 = vmul.f32 %v3235, %v3236
        %v3238 = vsub.f32 1.0, %v3237
        %v3239 = vmul.f32 %v3236, %v3238
        %v3240 = vadd.f32 %v3236, %v3239
        %vm3241 = vweird.f32 %v3235
        %vm3242 = vweird.f32 %v3236
        %vm3243 = vmor %vm3241, %vm3242
        %v3244 = vsel %vm3243, %v3236, %v3240
        %v3245 = vand.u32 2147483647, %v3235
        %vm3246 = vcmp.eq.f32.partialorder %v3245, 8.507059e+37
        %v3247 = vand.u32 %v3235, 2147483648
        %v3248 = vor.u32 1.1754944e-38, %v3247
        %v3249 = vsel %vm3246, %v3248, %v3244
        %v3250 = vmul.f32 1.0, %v3249
        %v3251 = vtanh.pop %v3231
        %v3252 = vmul.f32 %v3250, %v3130
        %3254 = vrot.lane.b32.xlu0 %v3251, 64
        %v3255 = vpop.permute.xlu0 %3254
        %v3257 = vmul.f32 %v3250, %v3255
        %3259 = vrot.lane.b32.xlu0 %v3257, 32
        %v3260 = vpop.permute.xlu0 %3259
        %v3262 = vadd.f32 %v3252, %v3260
        %v3263 = vtanh.pop %v3262
        %3265 = vrot.lane.b32.xlu0 %v3263, 64
        %v3266 = vpop.permute.xlu0 %3265
        %v3268 = vmul.f32 %v3250, %v3266
        %3270 = vrot.lane.b32.xlu0 %v3207, 32
        %v3271 = vpop.permute.xlu0 %3270
        %3273 = vst.msk [vmem:[#allocation3 + $0xf] sm:$0x1] %vm1292, %v3271
        %3275 = vrot.lane.b32.xlu0 %v3268, 32
        %v3276 = vpop.permute.xlu0 %3275
        %3278 = vst.msk [vmem:[#allocation4] sm:$0x1] %vm1292, %v3276
        %v3279 = vld [vmem:[#allocation3] sm:$0xff]
        %v3280 = vld [vmem:[#allocation3 + $0x8] sm:$0xff]
        %v3281 = vld [vmem:[#allocation4] sm:$0xff]
        %v3282 = vld [vmem:[#allocation4 + $0x8] sm:$0xff]
        %3285 = vrot.lane.b32.xlu0 %v3281, 32
        %v3286 = vpop.permute.xlu0 %3285
        %3287 = vrot.lane.b32.xlu0 %v3282, 32
        %v3288 = vpop.permute.xlu0 %3287
        %v3291 = vsel %vm1022, %v3279, %v3286
        %v3292 = vsel %vm1022, %v3280, %v3288
        %v3293 = vld [vmem:[%s13] sm:$0xff]
        %v3294 = vld [vmem:[%s13 + $0x8] sm:$0xff]
        %v3295 = vld [vmem:[%s13 + $0x10] sm:$0xff]
        %v3296 = vld [vmem:[%s13 + $0x18] sm:$0xff]
        %v3297 = vld [vmem:[%s13 + $0x20] sm:$0xff]
        %v3298 = vld [vmem:[%s13 + $0x28] sm:$0xff]
        %v3299 = vld [vmem:[%s13 + $0x30] sm:$0xff]
        %v3300 = vld [vmem:[%s13 + $0x38] sm:$0xff]
        %v3301 = vld [vmem:[%s13 + $0x40] sm:$0xff]
        %v3302 = vld [vmem:[%s13 + $0x48] sm:$0xff]
        %v3303 = vld [vmem:[%s13 + $0x50] sm:$0xff]
        %v3304 = vld [vmem:[%s13 + $0x58] sm:$0xff]
        %v3305 = vld [vmem:[%s13 + $0x60] sm:$0xff]
        %v3306 = vld [vmem:[%s13 + $0x68] sm:$0xff]
        %v3307 = vld [vmem:[%s13 + $0x70] sm:$0xff]
        %v3308 = vld [vmem:[%s13 + $0x78] sm:$0xff]
        %v3309 = vld [vmem:[%s14] sm:$0x3]
        %v3311 = vperm.slane %v3309, 0
        %v3312 = vperm.slane %v3309, 1
        %v3316 = vsel %vm1028, %v3291, 0
        %v3319 = vsel %vm1028, %v3292, 0
        %3321 = vmatpush.msra.mxu0 0.0
        %3322 = vmatpush.msra.mxu0 0.0
        %3323 = vmatpush.msra.mxu0 0.0
        %3324 = vmatpush.msra.mxu0 0.0
        %3325 = vmatpush.msra.mxu0 0.0
        %3326 = vmatpush.msra.mxu0 0.0
        %3327 = vmatpush.msra.mxu0 0.0
        %3328 = vmatpush.msra.mxu0 0.0
        %3329 = vmatpush.msra.mxu0 %v3307
        %3330 = vmatpush.msra.mxu0 %v3305
        %3331 = vmatpush.msra.mxu0 %v3303
        %3332 = vmatpush.msra.mxu0 %v3301
        %3333 = vmatpush.msra.mxu0 %v3299
        %3334 = vmatpush.msra.mxu0 %v3297
        %3335 = vmatpush.msra.mxu0 %v3295
        %3336 = vmatpush.msra.mxu0 %v3293
        %3337 = vmatmul.f32.gmra.mxu0 %v3316
        %v3338 = vpop.f32.mrf.mxu0
        %v3339 = vadd.f32 %v3311, %v3338
        %3340 = vmatmul.f32.gmra.mxu0 %v3319
        %v3341 = vpop.f32.mrf.mxu0
        %v3342 = vadd.f32 %v3311, %v3341
        %3343 = vdwg.mxu0
        %3344 = vmatpush.msra.mxu0 0.0
        %3345 = vmatpush.msra.mxu0 0.0
        %3346 = vmatpush.msra.mxu0 0.0
        %3347 = vmatpush.msra.mxu0 0.0
        %3348 = vmatpush.msra.mxu0 0.0
        %3349 = vmatpush.msra.mxu0 0.0
        %3350 = vmatpush.msra.mxu0 0.0
        %3351 = vmatpush.msra.mxu0 0.0
        %3352 = vmatpush.msra.mxu0 %v3308
        %3353 = vmatpush.msra.mxu0 %v3306
        %3354 = vmatpush.msra.mxu0 %v3304
        %3355 = vmatpush.msra.mxu0 %v3302
        %3356 = vmatpush.msra.mxu0 %v3300
        %3357 = vmatpush.msra.mxu0 %v3298
        %3358 = vmatpush.msra.mxu0 %v3296
        %3359 = vmatpush.msra.mxu0 %v3294
        %3360 = vmatmul.f32.gmra.mxu0 %v3316
        %v3361 = vpop.f32.mrf.mxu0
        %v3362 = vadd.f32 %v3312, %v3361
        %3363 = vmatmul.f32.gmra.mxu0 %v3319
        %v3364 = vpop.f32.mrf.mxu0
        %v3365 = vadd.f32 %v3312, %v3364
        %3366 = vdwg.mxu0
        %3367 = vst [vmem:[#allocation2] sm:$0xff] %v3339
        %3368 = vst [vmem:[#allocation2 + $0x8] sm:$0xff] %v3362
        %3369 = vst [vmem:[#allocation2 + $0x10] sm:$0xff] %v3342
        %3370 = vst [vmem:[#allocation2 + $0x18] sm:$0xff] %v3365
        %v3371 = vld [vmem:[#allocation12] sm:$0xff]
        %v3372 = vld [vmem:[#allocation12 + $0x8] sm:$0xff]
        %v3373 = vld [vmem:[#allocation12 + $0x10] sm:$0xff]
        %v3374 = vld [vmem:[#allocation12 + $0x18] sm:$0xff]
        %v3375 = vld [vmem:[#allocation14] sm:$0xff]
        %v3376 = vld [vmem:[#allocation14 + $0x8] sm:$0xff]
        %v3377 = vld [vmem:[#allocation14 + $0x10] sm:$0xff]
        %v3378 = vld [vmem:[#allocation14 + $0x18] sm:$0xff]
        %v3379 = vld [vmem:[#allocation2] ss:$0 sm:$0xff]
        %3380 = vmatpush.msra.mxu0 0.0
        %3381 = vmatpush.msra.mxu0 0.0
        %3382 = vmatpush.msra.mxu0 0.0
        %3383 = vmatpush.msra.mxu0 0.0
        %3384 = vmatpush.msra.mxu0 0.0
        %3385 = vmatpush.msra.mxu0 0.0
        %3386 = vmatpush.msra.mxu0 0.0
        %3387 = vmatpush.msra.mxu0 0.0
        %3388 = vmatpush.msra.mxu0 0.0
        %3389 = vmatpush.msra.mxu0 0.0
        %3390 = vmatpush.msra.mxu0 0.0
        %3391 = vmatpush.msra.mxu0 0.0
        %3392 = vmatpush.msra.mxu0 %v3374
        %3393 = vmatpush.msra.mxu0 %v3373
        %3394 = vmatpush.msra.mxu0 %v3372
        %3395 = vmatpush.msra.mxu0 %v3371
        %3396 = vmatmul.f32.gmra.mxu0 %v1169
        %v3397 = vpop.f32.mrf.mxu0
        %v3398 = vadd.f32 0.0, %v3397
        %3399 = vdwg.mxu0
        %v3400 = vadd.f32 %v3379, %v3398
        %v3401 = vxor.u32 %v3400, 2147483648
        %v3402 = vmul.f32 %v3401, 1.442695
        %v3403 = vpow.pop %v3402
        %v3404 = vadd.f32 %v3403, 1.0
        %v3405 = vrcp.pop %v3404
        %v3406 = vmul.f32 %v3404, %v3405
        %v3407 = vsub.f32 1.0, %v3406
        %v3408 = vmul.f32 %v3405, %v3407
        %v3409 = vadd.f32 %v3405, %v3408
        %vm3410 = vweird.f32 %v3404
        %vm3411 = vweird.f32 %v3405
        %vm3412 = vmor %vm3410, %vm3411
        %v3413 = vsel %vm3412, %v3405, %v3409
        %v3414 = vand.u32 2147483647, %v3404
        %vm3415 = vcmp.eq.f32.partialorder %v3414, 8.507059e+37
        %v3416 = vand.u32 %v3404, 2147483648
        %v3417 = vor.u32 1.1754944e-38, %v3416
        %v3418 = vsel %vm3415, %v3417, %v3413
        %v3419 = vmul.f32 1.0, %v3418
        %v3420 = vtanh.pop %v3400
        %v3421 = vmul.f32 %v3419, 0.0
        %3423 = vrot.lane.b32.xlu0 %v3420, 64
        %v3424 = vpop.permute.xlu0 %3423
        %v3426 = vmul.f32 %v3419, %v3424
        %3428 = vrot.lane.b32.xlu0 %v3426, 32
        %v3429 = vpop.permute.xlu0 %3428
        %v3431 = vadd.f32 %v3421, %v3429
        %v3432 = vtanh.pop %v3431
        %3434 = vrot.lane.b32.xlu0 %v3432, 64
        %v3435 = vpop.permute.xlu0 %3434
        %v3437 = vmul.f32 %v3419, %v3435
        %v3438 = vld [vmem:[#allocation2 + $0x1f] ss:$0 sm:$0xff]
        %3439 = vmatpush.msra.mxu0 0.0
        %3440 = vmatpush.msra.mxu0 0.0
        %3441 = vmatpush.msra.mxu0 0.0
        %3442 = vmatpush.msra.mxu0 0.0
        %3443 = vmatpush.msra.mxu0 0.0
        %3444 = vmatpush.msra.mxu0 0.0
        %3445 = vmatpush.msra.mxu0 0.0
        %3446 = vmatpush.msra.mxu0 0.0
        %3447 = vmatpush.msra.mxu0 0.0
        %3448 = vmatpush.msra.mxu0 0.0
        %3449 = vmatpush.msra.mxu0 0.0
        %3450 = vmatpush.msra.mxu0 0.0
        %3451 = vmatpush.msra.mxu0 %v3378
        %3452 = vmatpush.msra.mxu0 %v3377
        %3453 = vmatpush.msra.mxu0 %v3376
        %3454 = vmatpush.msra.mxu0 %v3375
        %3455 = vmatmul.f32.gmra.mxu0 %v1169
        %v3456 = vpop.f32.mrf.mxu0
        %v3457 = vadd.f32 0.0, %v3456
        %3458 = vdwg.mxu0
        %v3459 = vadd.f32 %v3438, %v3457
        %v3460 = vxor.u32 %v3459, 2147483648
        %v3461 = vmul.f32 %v3460, 1.442695
        %v3462 = vpow.pop %v3461
        %v3463 = vadd.f32 %v3462, 1.0
        %v3464 = vrcp.pop %v3463
        %v3465 = vmul.f32 %v3463, %v3464
        %v3466 = vsub.f32 1.0, %v3465
        %v3467 = vmul.f32 %v3464, %v3466
        %v3468 = vadd.f32 %v3464, %v3467
        %vm3469 = vweird.f32 %v3463
        %vm3470 = vweird.f32 %v3464
        %vm3471 = vmor %vm3469, %vm3470
        %v3472 = vsel %vm3471, %v3464, %v3468
        %v3473 = vand.u32 2147483647, %v3463
        %vm3474 = vcmp.eq.f32.partialorder %v3473, 8.507059e+37
        %v3475 = vand.u32 %v3463, 2147483648
        %v3476 = vor.u32 1.1754944e-38, %v3475
        %v3477 = vsel %vm3474, %v3476, %v3472
        %v3478 = vmul.f32 1.0, %v3477
        %v3479 = vtanh.pop %v3459
        %v3480 = vmul.f32 %v3478, 0.0
        %3482 = vrot.lane.b32.xlu0 %v3479, 64
        %v3483 = vpop.permute.xlu0 %3482
        %v3485 = vmul.f32 %v3478, %v3483
        %3487 = vrot.lane.b32.xlu0 %v3485, 32
        %v3488 = vpop.permute.xlu0 %3487
        %v3490 = vadd.f32 %v3480, %v3488
        %v3491 = vtanh.pop %v3490
        %3493 = vrot.lane.b32.xlu0 %v3491, 64
        %v3494 = vpop.permute.xlu0 %3493
        %v3496 = vmul.f32 %v3478, %v3494
        %3498 = vrot.lane.b32.xlu0 %v3437, 32
        %v3499 = vpop.permute.xlu0 %3498
        %3501 = vst.msk [vmem:[#allocation3] sm:$0x1] %vm1292, %v3499
        %3503 = vrot.lane.b32.xlu0 %v3496, 32
        %v3504 = vpop.permute.xlu0 %3503
        %3506 = vst.msk [vmem:[#allocation4 + $0xf] sm:$0x1] %vm1292, %v3504
        %v3507 = vld [vmem:[#allocation2 + $0x1] ss:$0 sm:$0xff]
        %v3508 = vsel %vm1022, %v3499, 0
        %3510 = vmatpush.msra.mxu0 0.0
        %3511 = vmatpush.msra.mxu0 0.0
        %3512 = vmatpush.msra.mxu0 0.0
        %3513 = vmatpush.msra.mxu0 0.0
        %3514 = vmatpush.msra.mxu0 0.0
        %3515 = vmatpush.msra.mxu0 0.0
        %3516 = vmatpush.msra.mxu0 0.0
        %3517 = vmatpush.msra.mxu0 0.0
        %3518 = vmatpush.msra.mxu0 0.0
        %3519 = vmatpush.msra.mxu0 0.0
        %3520 = vmatpush.msra.mxu0 0.0
        %3521 = vmatpush.msra.mxu0 0.0
        %3522 = vmatpush.msra.mxu0 %v3374
        %3523 = vmatpush.msra.mxu0 %v3373
        %3524 = vmatpush.msra.mxu0 %v3372
        %3525 = vmatpush.msra.mxu0 %v3371
        %3526 = vmatmul.f32.gmra.mxu0 %v3508
        %v3527 = vpop.f32.mrf.mxu0
        %v3528 = vadd.f32 0.0, %v3527
        %3529 = vdwg.mxu0
        %v3530 = vadd.f32 %v3507, %v3528
        %v3531 = vxor.u32 %v3530, 2147483648
        %v3532 = vmul.f32 %v3531, 1.442695
        %v3533 = vpow.pop %v3532
        %v3534 = vadd.f32 %v3533, 1.0
        %v3535 = vrcp.pop %v3534
        %v3536 = vmul.f32 %v3534, %v3535
        %v3537 = vsub.f32 1.0, %v3536
        %v3538 = vmul.f32 %v3535, %v3537
        %v3539 = vadd.f32 %v3535, %v3538
        %vm3540 = vweird.f32 %v3534
        %vm3541 = vweird.f32 %v3535
        %vm3542 = vmor %vm3540, %vm3541
        %v3543 = vsel %vm3542, %v3535, %v3539
        %v3544 = vand.u32 2147483647, %v3534
        %vm3545 = vcmp.eq.f32.partialorder %v3544, 8.507059e+37
        %v3546 = vand.u32 %v3534, 2147483648
        %v3547 = vor.u32 1.1754944e-38, %v3546
        %v3548 = vsel %vm3545, %v3547, %v3543
        %v3549 = vmul.f32 1.0, %v3548
        %v3550 = vtanh.pop %v3530
        %v3551 = vmul.f32 %v3549, %v3431
        %3553 = vrot.lane.b32.xlu0 %v3550, 64
        %v3554 = vpop.permute.xlu0 %3553
        %v3556 = vmul.f32 %v3549, %v3554
        %3558 = vrot.lane.b32.xlu0 %v3556, 32
        %v3559 = vpop.permute.xlu0 %3558
        %v3561 = vadd.f32 %v3551, %v3559
        %v3562 = vtanh.pop %v3561
        %3564 = vrot.lane.b32.xlu0 %v3562, 64
        %v3565 = vpop.permute.xlu0 %3564
        %v3567 = vmul.f32 %v3549, %v3565
        %v3568 = vld [vmem:[#allocation2 + $0x1e] ss:$0 sm:$0xff]
        %v3569 = vsel %vm1022, %v3504, 0
        %3571 = vmatpush.msra.mxu0 0.0
        %3572 = vmatpush.msra.mxu0 0.0
        %3573 = vmatpush.msra.mxu0 0.0
        %3574 = vmatpush.msra.mxu0 0.0
        %3575 = vmatpush.msra.mxu0 0.0
        %3576 = vmatpush.msra.mxu0 0.0
        %3577 = vmatpush.msra.mxu0 0.0
        %3578 = vmatpush.msra.mxu0 0.0
        %3579 = vmatpush.msra.mxu0 0.0
        %3580 = vmatpush.msra.mxu0 0.0
        %3581 = vmatpush.msra.mxu0 0.0
        %3582 = vmatpush.msra.mxu0 0.0
        %3583 = vmatpush.msra.mxu0 %v3378
        %3584 = vmatpush.msra.mxu0 %v3377
        %3585 = vmatpush.msra.mxu0 %v3376
        %3586 = vmatpush.msra.mxu0 %v3375
        %3587 = vmatmul.f32.gmra.mxu0 %v3569
        %v3588 = vpop.f32.mrf.mxu0
        %v3589 = vadd.f32 0.0, %v3588
        %3590 = vdwg.mxu0
        %v3591 = vadd.f32 %v3568, %v3589
        %v3592 = vxor.u32 %v3591, 2147483648
        %v3593 = vmul.f32 %v3592, 1.442695
        %v3594 = vpow.pop %v3593
        %v3595 = vadd.f32 %v3594, 1.0
        %v3596 = vrcp.pop %v3595
        %v3597 = vmul.f32 %v3595, %v3596
        %v3598 = vsub.f32 1.0, %v3597
        %v3599 = vmul.f32 %v3596, %v3598
        %v3600 = vadd.f32 %v3596, %v3599
        %vm3601 = vweird.f32 %v3595
        %vm3602 = vweird.f32 %v3596
        %vm3603 = vmor %vm3601, %vm3602
        %v3604 = vsel %vm3603, %v3596, %v3600
        %v3605 = vand.u32 2147483647, %v3595
        %vm3606 = vcmp.eq.f32.partialorder %v3605, 8.507059e+37
        %v3607 = vand.u32 %v3595, 2147483648
        %v3608 = vor.u32 1.1754944e-38, %v3607
        %v3609 = vsel %vm3606, %v3608, %v3604
        %v3610 = vmul.f32 1.0, %v3609
        %v3611 = vtanh.pop %v3591
        %v3612 = vmul.f32 %v3610, %v3490
        %3614 = vrot.lane.b32.xlu0 %v3611, 64
        %v3615 = vpop.permute.xlu0 %3614
        %v3617 = vmul.f32 %v3610, %v3615
        %3619 = vrot.lane.b32.xlu0 %v3617, 32
        %v3620 = vpop.permute.xlu0 %3619
        %v3622 = vadd.f32 %v3612, %v3620
        %v3623 = vtanh.pop %v3622
        %3625 = vrot.lane.b32.xlu0 %v3623, 64
        %v3626 = vpop.permute.xlu0 %3625
        %v3628 = vmul.f32 %v3610, %v3626
        %3630 = vrot.lane.b32.xlu0 %v3567, 32
        %v3631 = vpop.permute.xlu0 %3630
        %3633 = vst.msk [vmem:[#allocation3 + $0x1] sm:$0x1] %vm1292, %v3631
        %3635 = vrot.lane.b32.xlu0 %v3628, 32
        %v3636 = vpop.permute.xlu0 %3635
        %3638 = vst.msk [vmem:[#allocation4 + $0xe] sm:$0x1] %vm1292, %v3636
        %v3639 = vld [vmem:[#allocation2 + $0x2] ss:$0 sm:$0xff]
        %v3640 = vsel %vm1022, %v3631, 0
        %3642 = vmatpush.msra.mxu0 0.0
        %3643 = vmatpush.msra.mxu0 0.0
        %3644 = vmatpush.msra.mxu0 0.0
        %3645 = vmatpush.msra.mxu0 0.0
        %3646 = vmatpush.msra.mxu0 0.0
        %3647 = vmatpush.msra.mxu0 0.0
        %3648 = vmatpush.msra.mxu0 0.0
        %3649 = vmatpush.msra.mxu0 0.0
        %3650 = vmatpush.msra.mxu0 0.0
        %3651 = vmatpush.msra.mxu0 0.0
        %3652 = vmatpush.msra.mxu0 0.0
        %3653 = vmatpush.msra.mxu0 0.0
        %3654 = vmatpush.msra.mxu0 %v3374
        %3655 = vmatpush.msra.mxu0 %v3373
        %3656 = vmatpush.msra.mxu0 %v3372
        %3657 = vmatpush.msra.mxu0 %v3371
        %3658 = vmatmul.f32.gmra.mxu0 %v3640
        %v3659 = vpop.f32.mrf.mxu0
        %v3660 = vadd.f32 0.0, %v3659
        %3661 = vdwg.mxu0
        %v3662 = vadd.f32 %v3639, %v3660
        %v3663 = vxor.u32 %v3662, 2147483648
        %v3664 = vmul.f32 %v3663, 1.442695
        %v3665 = vpow.pop %v3664
        %v3666 = vadd.f32 %v3665, 1.0
        %v3667 = vrcp.pop %v3666
        %v3668 = vmul.f32 %v3666, %v3667
        %v3669 = vsub.f32 1.0, %v3668
        %v3670 = vmul.f32 %v3667, %v3669
        %v3671 = vadd.f32 %v3667, %v3670
        %vm3672 = vweird.f32 %v3666
        %vm3673 = vweird.f32 %v3667
        %vm3674 = vmor %vm3672, %vm3673
        %v3675 = vsel %vm3674, %v3667, %v3671
        %v3676 = vand.u32 2147483647, %v3666
        %vm3677 = vcmp.eq.f32.partialorder %v3676, 8.507059e+37
        %v3678 = vand.u32 %v3666, 2147483648
        %v3679 = vor.u32 1.1754944e-38, %v3678
        %v3680 = vsel %vm3677, %v3679, %v3675
        %v3681 = vmul.f32 1.0, %v3680
        %v3682 = vtanh.pop %v3662
        %v3683 = vmul.f32 %v3681, %v3561
        %3685 = vrot.lane.b32.xlu0 %v3682, 64
        %v3686 = vpop.permute.xlu0 %3685
        %v3688 = vmul.f32 %v3681, %v3686
        %3690 = vrot.lane.b32.xlu0 %v3688, 32
        %v3691 = vpop.permute.xlu0 %3690
        %v3693 = vadd.f32 %v3683, %v3691
        %v3694 = vtanh.pop %v3693
        %3696 = vrot.lane.b32.xlu0 %v3694, 64
        %v3697 = vpop.permute.xlu0 %3696
        %v3699 = vmul.f32 %v3681, %v3697
        %v3700 = vld [vmem:[#allocation2 + $0x1d] ss:$0 sm:$0xff]
        %v3701 = vsel %vm1022, %v3636, 0
        %3703 = vmatpush.msra.mxu0 0.0
        %3704 = vmatpush.msra.mxu0 0.0
        %3705 = vmatpush.msra.mxu0 0.0
        %3706 = vmatpush.msra.mxu0 0.0
        %3707 = vmatpush.msra.mxu0 0.0
        %3708 = vmatpush.msra.mxu0 0.0
        %3709 = vmatpush.msra.mxu0 0.0
        %3710 = vmatpush.msra.mxu0 0.0
        %3711 = vmatpush.msra.mxu0 0.0
        %3712 = vmatpush.msra.mxu0 0.0
        %3713 = vmatpush.msra.mxu0 0.0
        %3714 = vmatpush.msra.mxu0 0.0
        %3715 = vmatpush.msra.mxu0 %v3378
        %3716 = vmatpush.msra.mxu0 %v3377
        %3717 = vmatpush.msra.mxu0 %v3376
        %3718 = vmatpush.msra.mxu0 %v3375
        %3719 = vmatmul.f32.gmra.mxu0 %v3701
        %v3720 = vpop.f32.mrf.mxu0
        %v3721 = vadd.f32 0.0, %v3720
        %3722 = vdwg.mxu0
        %v3723 = vadd.f32 %v3700, %v3721
        %v3724 = vxor.u32 %v3723, 2147483648
        %v3725 = vmul.f32 %v3724, 1.442695
        %v3726 = vpow.pop %v3725
        %v3727 = vadd.f32 %v3726, 1.0
        %v3728 = vrcp.pop %v3727
        %v3729 = vmul.f32 %v3727, %v3728
        %v3730 = vsub.f32 1.0, %v3729
        %v3731 = vmul.f32 %v3728, %v3730
        %v3732 = vadd.f32 %v3728, %v3731
        %vm3733 = vweird.f32 %v3727
        %vm3734 = vweird.f32 %v3728
        %vm3735 = vmor %vm3733, %vm3734
        %v3736 = vsel %vm3735, %v3728, %v3732
        %v3737 = vand.u32 2147483647, %v3727
        %vm3738 = vcmp.eq.f32.partialorder %v3737, 8.507059e+37
        %v3739 = vand.u32 %v3727, 2147483648
        %v3740 = vor.u32 1.1754944e-38, %v3739
        %v3741 = vsel %vm3738, %v3740, %v3736
        %v3742 = vmul.f32 1.0, %v3741
        %v3743 = vtanh.pop %v3723
        %v3744 = vmul.f32 %v3742, %v3622
        %3746 = vrot.lane.b32.xlu0 %v3743, 64
        %v3747 = vpop.permute.xlu0 %3746
        %v3749 = vmul.f32 %v3742, %v3747
        %3751 = vrot.lane.b32.xlu0 %v3749, 32
        %v3752 = vpop.permute.xlu0 %3751
        %v3754 = vadd.f32 %v3744, %v3752
        %v3755 = vtanh.pop %v3754
        %3757 = vrot.lane.b32.xlu0 %v3755, 64
        %v3758 = vpop.permute.xlu0 %3757
        %v3760 = vmul.f32 %v3742, %v3758
        %3762 = vrot.lane.b32.xlu0 %v3699, 32
        %v3763 = vpop.permute.xlu0 %3762
        %3765 = vst.msk [vmem:[#allocation3 + $0x2] sm:$0x1] %vm1292, %v3763
        %3767 = vrot.lane.b32.xlu0 %v3760, 32
        %v3768 = vpop.permute.xlu0 %3767
        %3770 = vst.msk [vmem:[#allocation4 + $0xd] sm:$0x1] %vm1292, %v3768
        %v3771 = vld [vmem:[#allocation2 + $0x3] ss:$0 sm:$0xff]
        %v3772 = vsel %vm1022, %v3763, 0
        %3774 = vmatpush.msra.mxu0 0.0
        %3775 = vmatpush.msra.mxu0 0.0
        %3776 = vmatpush.msra.mxu0 0.0
        %3777 = vmatpush.msra.mxu0 0.0
        %3778 = vmatpush.msra.mxu0 0.0
        %3779 = vmatpush.msra.mxu0 0.0
        %3780 = vmatpush.msra.mxu0 0.0
        %3781 = vmatpush.msra.mxu0 0.0
        %3782 = vmatpush.msra.mxu0 0.0
        %3783 = vmatpush.msra.mxu0 0.0
        %3784 = vmatpush.msra.mxu0 0.0
        %3785 = vmatpush.msra.mxu0 0.0
        %3786 = vmatpush.msra.mxu0 %v3374
        %3787 = vmatpush.msra.mxu0 %v3373
        %3788 = vmatpush.msra.mxu0 %v3372
        %3789 = vmatpush.msra.mxu0 %v3371
        %3790 = vmatmul.f32.gmra.mxu0 %v3772
        %v3791 = vpop.f32.mrf.mxu0
        %v3792 = vadd.f32 0.0, %v3791
        %3793 = vdwg.mxu0
        %v3794 = vadd.f32 %v3771, %v3792
        %v3795 = vxor.u32 %v3794, 2147483648
        %v3796 = vmul.f32 %v3795, 1.442695
        %v3797 = vpow.pop %v3796
        %v3798 = vadd.f32 %v3797, 1.0
        %v3799 = vrcp.pop %v3798
        %v3800 = vmul.f32 %v3798, %v3799
        %v3801 = vsub.f32 1.0, %v3800
        %v3802 = vmul.f32 %v3799, %v3801
        %v3803 = vadd.f32 %v3799, %v3802
        %vm3804 = vweird.f32 %v3798
        %vm3805 = vweird.f32 %v3799
        %vm3806 = vmor %vm3804, %vm3805
        %v3807 = vsel %vm3806, %v3799, %v3803
        %v3808 = vand.u32 2147483647, %v3798
        %vm3809 = vcmp.eq.f32.partialorder %v3808, 8.507059e+37
        %v3810 = vand.u32 %v3798, 2147483648
        %v3811 = vor.u32 1.1754944e-38, %v3810
        %v3812 = vsel %vm3809, %v3811, %v3807
        %v3813 = vmul.f32 1.0, %v3812
        %v3814 = vtanh.pop %v3794
        %v3815 = vmul.f32 %v3813, %v3693
        %3817 = vrot.lane.b32.xlu0 %v3814, 64
        %v3818 = vpop.permute.xlu0 %3817
        %v3820 = vmul.f32 %v3813, %v3818
        %3822 = vrot.lane.b32.xlu0 %v3820, 32
        %v3823 = vpop.permute.xlu0 %3822
        %v3825 = vadd.f32 %v3815, %v3823
        %v3826 = vtanh.pop %v3825
        %3828 = vrot.lane.b32.xlu0 %v3826, 64
        %v3829 = vpop.permute.xlu0 %3828
        %v3831 = vmul.f32 %v3813, %v3829
        %v3832 = vld [vmem:[#allocation2 + $0x1c] ss:$0 sm:$0xff]
        %v3833 = vsel %vm1022, %v3768, 0
        %3835 = vmatpush.msra.mxu0 0.0
        %3836 = vmatpush.msra.mxu0 0.0
        %3837 = vmatpush.msra.mxu0 0.0
        %3838 = vmatpush.msra.mxu0 0.0
        %3839 = vmatpush.msra.mxu0 0.0
        %3840 = vmatpush.msra.mxu0 0.0
        %3841 = vmatpush.msra.mxu0 0.0
        %3842 = vmatpush.msra.mxu0 0.0
        %3843 = vmatpush.msra.mxu0 0.0
        %3844 = vmatpush.msra.mxu0 0.0
        %3845 = vmatpush.msra.mxu0 0.0
        %3846 = vmatpush.msra.mxu0 0.0
        %3847 = vmatpush.msra.mxu0 %v3378
        %3848 = vmatpush.msra.mxu0 %v3377
        %3849 = vmatpush.msra.mxu0 %v3376
        %3850 = vmatpush.msra.mxu0 %v3375
        %3851 = vmatmul.f32.gmra.mxu0 %v3833
        %v3852 = vpop.f32.mrf.mxu0
        %v3853 = vadd.f32 0.0, %v3852
        %3854 = vdwg.mxu0
        %v3855 = vadd.f32 %v3832, %v3853
        %v3856 = vxor.u32 %v3855, 2147483648
        %v3857 = vmul.f32 %v3856, 1.442695
        %v3858 = vpow.pop %v3857
        %v3859 = vadd.f32 %v3858, 1.0
        %v3860 = vrcp.pop %v3859
        %v3861 = vmul.f32 %v3859, %v3860
        %v3862 = vsub.f32 1.0, %v3861
        %v3863 = vmul.f32 %v3860, %v3862
        %v3864 = vadd.f32 %v3860, %v3863
        %vm3865 = vweird.f32 %v3859
        %vm3866 = vweird.f32 %v3860
        %vm3867 = vmor %vm3865, %vm3866
        %v3868 = vsel %vm3867, %v3860, %v3864
        %v3869 = vand.u32 2147483647, %v3859
        %vm3870 = vcmp.eq.f32.partialorder %v3869, 8.507059e+37
        %v3871 = vand.u32 %v3859, 2147483648
        %v3872 = vor.u32 1.1754944e-38, %v3871
        %v3873 = vsel %vm3870, %v3872, %v3868
        %v3874 = vmul.f32 1.0, %v3873
        %v3875 = vtanh.pop %v3855
        %v3876 = vmul.f32 %v3874, %v3754
        %3878 = vrot.lane.b32.xlu0 %v3875, 64
        %v3879 = vpop.permute.xlu0 %3878
        %v3881 = vmul.f32 %v3874, %v3879
        %3883 = vrot.lane.b32.xlu0 %v3881, 32
        %v3884 = vpop.permute.xlu0 %3883
        %v3886 = vadd.f32 %v3876, %v3884
        %v3887 = vtanh.pop %v3886
        %3889 = vrot.lane.b32.xlu0 %v3887, 64
        %v3890 = vpop.permute.xlu0 %3889
        %v3892 = vmul.f32 %v3874, %v3890
        %3894 = vrot.lane.b32.xlu0 %v3831, 32
        %v3895 = vpop.permute.xlu0 %3894
        %3897 = vst.msk [vmem:[#allocation3 + $0x3] sm:$0x1] %vm1292, %v3895
        %3899 = vrot.lane.b32.xlu0 %v3892, 32
        %v3900 = vpop.permute.xlu0 %3899
        %3902 = vst.msk [vmem:[#allocation4 + $0xc] sm:$0x1] %vm1292, %v3900
        %v3903 = vld [vmem:[#allocation2 + $0x4] ss:$0 sm:$0xff]
        %v3904 = vsel %vm1022, %v3895, 0
        %3906 = vmatpush.msra.mxu0 0.0
        %3907 = vmatpush.msra.mxu0 0.0
        %3908 = vmatpush.msra.mxu0 0.0
        %3909 = vmatpush.msra.mxu0 0.0
        %3910 = vmatpush.msra.mxu0 0.0
        %3911 = vmatpush.msra.mxu0 0.0
        %3912 = vmatpush.msra.mxu0 0.0
        %3913 = vmatpush.msra.mxu0 0.0
        %3914 = vmatpush.msra.mxu0 0.0
        %3915 = vmatpush.msra.mxu0 0.0
        %3916 = vmatpush.msra.mxu0 0.0
        %3917 = vmatpush.msra.mxu0 0.0
        %3918 = vmatpush.msra.mxu0 %v3374
        %3919 = vmatpush.msra.mxu0 %v3373
        %3920 = vmatpush.msra.mxu0 %v3372
        %3921 = vmatpush.msra.mxu0 %v3371
        %3922 = vmatmul.f32.gmra.mxu0 %v3904
        %v3923 = vpop.f32.mrf.mxu0
        %v3924 = vadd.f32 0.0, %v3923
        %3925 = vdwg.mxu0
        %v3926 = vadd.f32 %v3903, %v3924
        %v3927 = vxor.u32 %v3926, 2147483648
        %v3928 = vmul.f32 %v3927, 1.442695
        %v3929 = vpow.pop %v3928
        %v3930 = vadd.f32 %v3929, 1.0
        %v3931 = vrcp.pop %v3930
        %v3932 = vmul.f32 %v3930, %v3931
        %v3933 = vsub.f32 1.0, %v3932
        %v3934 = vmul.f32 %v3931, %v3933
        %v3935 = vadd.f32 %v3931, %v3934
        %vm3936 = vweird.f32 %v3930
        %vm3937 = vweird.f32 %v3931
        %vm3938 = vmor %vm3936, %vm3937
        %v3939 = vsel %vm3938, %v3931, %v3935
        %v3940 = vand.u32 2147483647, %v3930
        %vm3941 = vcmp.eq.f32.partialorder %v3940, 8.507059e+37
        %v3942 = vand.u32 %v3930, 2147483648
        %v3943 = vor.u32 1.1754944e-38, %v3942
        %v3944 = vsel %vm3941, %v3943, %v3939
        %v3945 = vmul.f32 1.0, %v3944
        %v3946 = vtanh.pop %v3926
        %v3947 = vmul.f32 %v3945, %v3825
        %3949 = vrot.lane.b32.xlu0 %v3946, 64
        %v3950 = vpop.permute.xlu0 %3949
        %v3952 = vmul.f32 %v3945, %v3950
        %3954 = vrot.lane.b32.xlu0 %v3952, 32
        %v3955 = vpop.permute.xlu0 %3954
        %v3957 = vadd.f32 %v3947, %v3955
        %v3958 = vtanh.pop %v3957
        %3960 = vrot.lane.b32.xlu0 %v3958, 64
        %v3961 = vpop.permute.xlu0 %3960
        %v3963 = vmul.f32 %v3945, %v3961
        %v3964 = vld [vmem:[#allocation2 + $0x1b] ss:$0 sm:$0xff]
        %v3965 = vsel %vm1022, %v3900, 0
        %3967 = vmatpush.msra.mxu0 0.0
        %3968 = vmatpush.msra.mxu0 0.0
        %3969 = vmatpush.msra.mxu0 0.0
        %3970 = vmatpush.msra.mxu0 0.0
        %3971 = vmatpush.msra.mxu0 0.0
        %3972 = vmatpush.msra.mxu0 0.0
        %3973 = vmatpush.msra.mxu0 0.0
        %3974 = vmatpush.msra.mxu0 0.0
        %3975 = vmatpush.msra.mxu0 0.0
        %3976 = vmatpush.msra.mxu0 0.0
        %3977 = vmatpush.msra.mxu0 0.0
        %3978 = vmatpush.msra.mxu0 0.0
        %3979 = vmatpush.msra.mxu0 %v3378
        %3980 = vmatpush.msra.mxu0 %v3377
        %3981 = vmatpush.msra.mxu0 %v3376
        %3982 = vmatpush.msra.mxu0 %v3375
        %3983 = vmatmul.f32.gmra.mxu0 %v3965
        %v3984 = vpop.f32.mrf.mxu0
        %v3985 = vadd.f32 0.0, %v3984
        %3986 = vdwg.mxu0
        %v3987 = vadd.f32 %v3964, %v3985
        %v3988 = vxor.u32 %v3987, 2147483648
        %v3989 = vmul.f32 %v3988, 1.442695
        %v3990 = vpow.pop %v3989
        %v3991 = vadd.f32 %v3990, 1.0
        %v3992 = vrcp.pop %v3991
        %v3993 = vmul.f32 %v3991, %v3992
        %v3994 = vsub.f32 1.0, %v3993
        %v3995 = vmul.f32 %v3992, %v3994
        %v3996 = vadd.f32 %v3992, %v3995
        %vm3997 = vweird.f32 %v3991
        %vm3998 = vweird.f32 %v3992
        %vm3999 = vmor %vm3997, %vm3998
        %v4000 = vsel %vm3999, %v3992, %v3996
        %v4001 = vand.u32 2147483647, %v3991
        %vm4002 = vcmp.eq.f32.partialorder %v4001, 8.507059e+37
        %v4003 = vand.u32 %v3991, 2147483648
        %v4004 = vor.u32 1.1754944e-38, %v4003
        %v4005 = vsel %vm4002, %v4004, %v4000
        %v4006 = vmul.f32 1.0, %v4005
        %v4007 = vtanh.pop %v3987
        %v4008 = vmul.f32 %v4006, %v3886
        %4010 = vrot.lane.b32.xlu0 %v4007, 64
        %v4011 = vpop.permute.xlu0 %4010
        %v4013 = vmul.f32 %v4006, %v4011
        %4015 = vrot.lane.b32.xlu0 %v4013, 32
        %v4016 = vpop.permute.xlu0 %4015
        %v4018 = vadd.f32 %v4008, %v4016
        %v4019 = vtanh.pop %v4018
        %4021 = vrot.lane.b32.xlu0 %v4019, 64
        %v4022 = vpop.permute.xlu0 %4021
        %v4024 = vmul.f32 %v4006, %v4022
        %4026 = vrot.lane.b32.xlu0 %v3963, 32
        %v4027 = vpop.permute.xlu0 %4026
        %4029 = vst.msk [vmem:[#allocation3 + $0x4] sm:$0x1] %vm1292, %v4027
        %4031 = vrot.lane.b32.xlu0 %v4024, 32
        %v4032 = vpop.permute.xlu0 %4031
        %4034 = vst.msk [vmem:[#allocation4 + $0xb] sm:$0x1] %vm1292, %v4032
        %v4035 = vld [vmem:[#allocation2 + $0x5] ss:$0 sm:$0xff]
        %v4036 = vsel %vm1022, %v4027, 0
        %4038 = vmatpush.msra.mxu0 0.0
        %4039 = vmatpush.msra.mxu0 0.0
        %4040 = vmatpush.msra.mxu0 0.0
        %4041 = vmatpush.msra.mxu0 0.0
        %4042 = vmatpush.msra.mxu0 0.0
        %4043 = vmatpush.msra.mxu0 0.0
        %4044 = vmatpush.msra.mxu0 0.0
        %4045 = vmatpush.msra.mxu0 0.0
        %4046 = vmatpush.msra.mxu0 0.0
        %4047 = vmatpush.msra.mxu0 0.0
        %4048 = vmatpush.msra.mxu0 0.0
        %4049 = vmatpush.msra.mxu0 0.0
        %4050 = vmatpush.msra.mxu0 %v3374
        %4051 = vmatpush.msra.mxu0 %v3373
        %4052 = vmatpush.msra.mxu0 %v3372
        %4053 = vmatpush.msra.mxu0 %v3371
        %4054 = vmatmul.f32.gmra.mxu0 %v4036
        %v4055 = vpop.f32.mrf.mxu0
        %v4056 = vadd.f32 0.0, %v4055
        %4057 = vdwg.mxu0
        %v4058 = vadd.f32 %v4035, %v4056
        %v4059 = vxor.u32 %v4058, 2147483648
        %v4060 = vmul.f32 %v4059, 1.442695
        %v4061 = vpow.pop %v4060
        %v4062 = vadd.f32 %v4061, 1.0
        %v4063 = vrcp.pop %v4062
        %v4064 = vmul.f32 %v4062, %v4063
        %v4065 = vsub.f32 1.0, %v4064
        %v4066 = vmul.f32 %v4063, %v4065
        %v4067 = vadd.f32 %v4063, %v4066
        %vm4068 = vweird.f32 %v4062
        %vm4069 = vweird.f32 %v4063
        %vm4070 = vmor %vm4068, %vm4069
        %v4071 = vsel %vm4070, %v4063, %v4067
        %v4072 = vand.u32 2147483647, %v4062
        %vm4073 = vcmp.eq.f32.partialorder %v4072, 8.507059e+37
        %v4074 = vand.u32 %v4062, 2147483648
        %v4075 = vor.u32 1.1754944e-38, %v4074
        %v4076 = vsel %vm4073, %v4075, %v4071
        %v4077 = vmul.f32 1.0, %v4076
        %v4078 = vtanh.pop %v4058
        %v4079 = vmul.f32 %v4077, %v3957
        %4081 = vrot.lane.b32.xlu0 %v4078, 64
        %v4082 = vpop.permute.xlu0 %4081
        %v4084 = vmul.f32 %v4077, %v4082
        %4086 = vrot.lane.b32.xlu0 %v4084, 32
        %v4087 = vpop.permute.xlu0 %4086
        %v4089 = vadd.f32 %v4079, %v4087
        %v4090 = vtanh.pop %v4089
        %4092 = vrot.lane.b32.xlu0 %v4090, 64
        %v4093 = vpop.permute.xlu0 %4092
        %v4095 = vmul.f32 %v4077, %v4093
        %v4096 = vld [vmem:[#allocation2 + $0x1a] ss:$0 sm:$0xff]
        %v4097 = vsel %vm1022, %v4032, 0
        %4099 = vmatpush.msra.mxu0 0.0
        %4100 = vmatpush.msra.mxu0 0.0
        %4101 = vmatpush.msra.mxu0 0.0
        %4102 = vmatpush.msra.mxu0 0.0
        %4103 = vmatpush.msra.mxu0 0.0
        %4104 = vmatpush.msra.mxu0 0.0
        %4105 = vmatpush.msra.mxu0 0.0
        %4106 = vmatpush.msra.mxu0 0.0
        %4107 = vmatpush.msra.mxu0 0.0
        %4108 = vmatpush.msra.mxu0 0.0
        %4109 = vmatpush.msra.mxu0 0.0
        %4110 = vmatpush.msra.mxu0 0.0
        %4111 = vmatpush.msra.mxu0 %v3378
        %4112 = vmatpush.msra.mxu0 %v3377
        %4113 = vmatpush.msra.mxu0 %v3376
        %4114 = vmatpush.msra.mxu0 %v3375
        %4115 = vmatmul.f32.gmra.mxu0 %v4097
        %v4116 = vpop.f32.mrf.mxu0
        %v4117 = vadd.f32 0.0, %v4116
        %4118 = vdwg.mxu0
        %v4119 = vadd.f32 %v4096, %v4117
        %v4120 = vxor.u32 %v4119, 2147483648
        %v4121 = vmul.f32 %v4120, 1.442695
        %v4122 = vpow.pop %v4121
        %v4123 = vadd.f32 %v4122, 1.0
        %v4124 = vrcp.pop %v4123
        %v4125 = vmul.f32 %v4123, %v4124
        %v4126 = vsub.f32 1.0, %v4125
        %v4127 = vmul.f32 %v4124, %v4126
        %v4128 = vadd.f32 %v4124, %v4127
        %vm4129 = vweird.f32 %v4123
        %vm4130 = vweird.f32 %v4124
        %vm4131 = vmor %vm4129, %vm4130
        %v4132 = vsel %vm4131, %v4124, %v4128
        %v4133 = vand.u32 2147483647, %v4123
        %vm4134 = vcmp.eq.f32.partialorder %v4133, 8.507059e+37
        %v4135 = vand.u32 %v4123, 2147483648
        %v4136 = vor.u32 1.1754944e-38, %v4135
        %v4137 = vsel %vm4134, %v4136, %v4132
        %v4138 = vmul.f32 1.0, %v4137
        %v4139 = vtanh.pop %v4119
        %v4140 = vmul.f32 %v4138, %v4018
        %4142 = vrot.lane.b32.xlu0 %v4139, 64
        %v4143 = vpop.permute.xlu0 %4142
        %v4145 = vmul.f32 %v4138, %v4143
        %4147 = vrot.lane.b32.xlu0 %v4145, 32
        %v4148 = vpop.permute.xlu0 %4147
        %v4150 = vadd.f32 %v4140, %v4148
        %v4151 = vtanh.pop %v4150
        %4153 = vrot.lane.b32.xlu0 %v4151, 64
        %v4154 = vpop.permute.xlu0 %4153
        %v4156 = vmul.f32 %v4138, %v4154
        %4158 = vrot.lane.b32.xlu0 %v4095, 32
        %v4159 = vpop.permute.xlu0 %4158
        %4161 = vst.msk [vmem:[#allocation3 + $0x5] sm:$0x1] %vm1292, %v4159
        %4163 = vrot.lane.b32.xlu0 %v4156, 32
        %v4164 = vpop.permute.xlu0 %4163
        %4166 = vst.msk [vmem:[#allocation4 + $0xa] sm:$0x1] %vm1292, %v4164
        %v4167 = vld [vmem:[#allocation2 + $0x6] ss:$0 sm:$0xff]
        %v4168 = vsel %vm1022, %v4159, 0
        %4170 = vmatpush.msra.mxu0 0.0
        %4171 = vmatpush.msra.mxu0 0.0
        %4172 = vmatpush.msra.mxu0 0.0
        %4173 = vmatpush.msra.mxu0 0.0
        %4174 = vmatpush.msra.mxu0 0.0
        %4175 = vmatpush.msra.mxu0 0.0
        %4176 = vmatpush.msra.mxu0 0.0
        %4177 = vmatpush.msra.mxu0 0.0
        %4178 = vmatpush.msra.mxu0 0.0
        %4179 = vmatpush.msra.mxu0 0.0
        %4180 = vmatpush.msra.mxu0 0.0
        %4181 = vmatpush.msra.mxu0 0.0
        %4182 = vmatpush.msra.mxu0 %v3374
        %4183 = vmatpush.msra.mxu0 %v3373
        %4184 = vmatpush.msra.mxu0 %v3372
        %4185 = vmatpush.msra.mxu0 %v3371
        %4186 = vmatmul.f32.gmra.mxu0 %v4168
        %v4187 = vpop.f32.mrf.mxu0
        %v4188 = vadd.f32 0.0, %v4187
        %4189 = vdwg.mxu0
        %v4190 = vadd.f32 %v4167, %v4188
        %v4191 = vxor.u32 %v4190, 2147483648
        %v4192 = vmul.f32 %v4191, 1.442695
        %v4193 = vpow.pop %v4192
        %v4194 = vadd.f32 %v4193, 1.0
        %v4195 = vrcp.pop %v4194
        %v4196 = vmul.f32 %v4194, %v4195
        %v4197 = vsub.f32 1.0, %v4196
        %v4198 = vmul.f32 %v4195, %v4197
        %v4199 = vadd.f32 %v4195, %v4198
        %vm4200 = vweird.f32 %v4194
        %vm4201 = vweird.f32 %v4195
        %vm4202 = vmor %vm4200, %vm4201
        %v4203 = vsel %vm4202, %v4195, %v4199
        %v4204 = vand.u32 2147483647, %v4194
        %vm4205 = vcmp.eq.f32.partialorder %v4204, 8.507059e+37
        %v4206 = vand.u32 %v4194, 2147483648
        %v4207 = vor.u32 1.1754944e-38, %v4206
        %v4208 = vsel %vm4205, %v4207, %v4203
        %v4209 = vmul.f32 1.0, %v4208
        %v4210 = vtanh.pop %v4190
        %v4211 = vmul.f32 %v4209, %v4089
        %4213 = vrot.lane.b32.xlu0 %v4210, 64
        %v4214 = vpop.permute.xlu0 %4213
        %v4216 = vmul.f32 %v4209, %v4214
        %4218 = vrot.lane.b32.xlu0 %v4216, 32
        %v4219 = vpop.permute.xlu0 %4218
        %v4221 = vadd.f32 %v4211, %v4219
        %v4222 = vtanh.pop %v4221
        %4224 = vrot.lane.b32.xlu0 %v4222, 64
        %v4225 = vpop.permute.xlu0 %4224
        %v4227 = vmul.f32 %v4209, %v4225
        %v4228 = vld [vmem:[#allocation2 + $0x19] ss:$0 sm:$0xff]
        %v4229 = vsel %vm1022, %v4164, 0
        %4231 = vmatpush.msra.mxu0 0.0
        %4232 = vmatpush.msra.mxu0 0.0
        %4233 = vmatpush.msra.mxu0 0.0
        %4234 = vmatpush.msra.mxu0 0.0
        %4235 = vmatpush.msra.mxu0 0.0
        %4236 = vmatpush.msra.mxu0 0.0
        %4237 = vmatpush.msra.mxu0 0.0
        %4238 = vmatpush.msra.mxu0 0.0
        %4239 = vmatpush.msra.mxu0 0.0
        %4240 = vmatpush.msra.mxu0 0.0
        %4241 = vmatpush.msra.mxu0 0.0
        %4242 = vmatpush.msra.mxu0 0.0
        %4243 = vmatpush.msra.mxu0 %v3378
        %4244 = vmatpush.msra.mxu0 %v3377
        %4245 = vmatpush.msra.mxu0 %v3376
        %4246 = vmatpush.msra.mxu0 %v3375
        %4247 = vmatmul.f32.gmra.mxu0 %v4229
        %v4248 = vpop.f32.mrf.mxu0
        %v4249 = vadd.f32 0.0, %v4248
        %4250 = vdwg.mxu0
        %v4251 = vadd.f32 %v4228, %v4249
        %v4252 = vxor.u32 %v4251, 2147483648
        %v4253 = vmul.f32 %v4252, 1.442695
        %v4254 = vpow.pop %v4253
        %v4255 = vadd.f32 %v4254, 1.0
        %v4256 = vrcp.pop %v4255
        %v4257 = vmul.f32 %v4255, %v4256
        %v4258 = vsub.f32 1.0, %v4257
        %v4259 = vmul.f32 %v4256, %v4258
        %v4260 = vadd.f32 %v4256, %v4259
        %vm4261 = vweird.f32 %v4255
        %vm4262 = vweird.f32 %v4256
        %vm4263 = vmor %vm4261, %vm4262
        %v4264 = vsel %vm4263, %v4256, %v4260
        %v4265 = vand.u32 2147483647, %v4255
        %vm4266 = vcmp.eq.f32.partialorder %v4265, 8.507059e+37
        %v4267 = vand.u32 %v4255, 2147483648
        %v4268 = vor.u32 1.1754944e-38, %v4267
        %v4269 = vsel %vm4266, %v4268, %v4264
        %v4270 = vmul.f32 1.0, %v4269
        %v4271 = vtanh.pop %v4251
        %v4272 = vmul.f32 %v4270, %v4150
        %4274 = vrot.lane.b32.xlu0 %v4271, 64
        %v4275 = vpop.permute.xlu0 %4274
        %v4277 = vmul.f32 %v4270, %v4275
        %4279 = vrot.lane.b32.xlu0 %v4277, 32
        %v4280 = vpop.permute.xlu0 %4279
        %v4282 = vadd.f32 %v4272, %v4280
        %v4283 = vtanh.pop %v4282
        %4285 = vrot.lane.b32.xlu0 %v4283, 64
        %v4286 = vpop.permute.xlu0 %4285
        %v4288 = vmul.f32 %v4270, %v4286
        %4290 = vrot.lane.b32.xlu0 %v4227, 32
        %v4291 = vpop.permute.xlu0 %4290
        %4293 = vst.msk [vmem:[#allocation3 + $0x6] sm:$0x1] %vm1292, %v4291
        %4295 = vrot.lane.b32.xlu0 %v4288, 32
        %v4296 = vpop.permute.xlu0 %4295
        %4298 = vst.msk [vmem:[#allocation4 + $0x9] sm:$0x1] %vm1292, %v4296
        %v4299 = vld [vmem:[#allocation2 + $0x7] ss:$0 sm:$0xff]
        %v4300 = vsel %vm1022, %v4291, 0
        %4302 = vmatpush.msra.mxu0 0.0
        %4303 = vmatpush.msra.mxu0 0.0
        %4304 = vmatpush.msra.mxu0 0.0
        %4305 = vmatpush.msra.mxu0 0.0
        %4306 = vmatpush.msra.mxu0 0.0
        %4307 = vmatpush.msra.mxu0 0.0
        %4308 = vmatpush.msra.mxu0 0.0
        %4309 = vmatpush.msra.mxu0 0.0
        %4310 = vmatpush.msra.mxu0 0.0
        %4311 = vmatpush.msra.mxu0 0.0
        %4312 = vmatpush.msra.mxu0 0.0
        %4313 = vmatpush.msra.mxu0 0.0
        %4314 = vmatpush.msra.mxu0 %v3374
        %4315 = vmatpush.msra.mxu0 %v3373
        %4316 = vmatpush.msra.mxu0 %v3372
        %4317 = vmatpush.msra.mxu0 %v3371
        %4318 = vmatmul.f32.gmra.mxu0 %v4300
        %v4319 = vpop.f32.mrf.mxu0
        %v4320 = vadd.f32 0.0, %v4319
        %4321 = vdwg.mxu0
        %v4322 = vadd.f32 %v4299, %v4320
        %v4323 = vxor.u32 %v4322, 2147483648
        %v4324 = vmul.f32 %v4323, 1.442695
        %v4325 = vpow.pop %v4324
        %v4326 = vadd.f32 %v4325, 1.0
        %v4327 = vrcp.pop %v4326
        %v4328 = vmul.f32 %v4326, %v4327
        %v4329 = vsub.f32 1.0, %v4328
        %v4330 = vmul.f32 %v4327, %v4329
        %v4331 = vadd.f32 %v4327, %v4330
        %vm4332 = vweird.f32 %v4326
        %vm4333 = vweird.f32 %v4327
        %vm4334 = vmor %vm4332, %vm4333
        %v4335 = vsel %vm4334, %v4327, %v4331
        %v4336 = vand.u32 2147483647, %v4326
        %vm4337 = vcmp.eq.f32.partialorder %v4336, 8.507059e+37
        %v4338 = vand.u32 %v4326, 2147483648
        %v4339 = vor.u32 1.1754944e-38, %v4338
        %v4340 = vsel %vm4337, %v4339, %v4335
        %v4341 = vmul.f32 1.0, %v4340
        %v4342 = vtanh.pop %v4322
        %v4343 = vmul.f32 %v4341, %v4221
        %4345 = vrot.lane.b32.xlu0 %v4342, 64
        %v4346 = vpop.permute.xlu0 %4345
        %v4348 = vmul.f32 %v4341, %v4346
        %4350 = vrot.lane.b32.xlu0 %v4348, 32
        %v4351 = vpop.permute.xlu0 %4350
        %v4353 = vadd.f32 %v4343, %v4351
        %v4354 = vtanh.pop %v4353
        %4356 = vrot.lane.b32.xlu0 %v4354, 64
        %v4357 = vpop.permute.xlu0 %4356
        %v4359 = vmul.f32 %v4341, %v4357
        %v4360 = vld [vmem:[#allocation2 + $0x18] ss:$0 sm:$0xff]
        %v4361 = vsel %vm1022, %v4296, 0
        %4363 = vmatpush.msra.mxu0 0.0
        %4364 = vmatpush.msra.mxu0 0.0
        %4365 = vmatpush.msra.mxu0 0.0
        %4366 = vmatpush.msra.mxu0 0.0
        %4367 = vmatpush.msra.mxu0 0.0
        %4368 = vmatpush.msra.mxu0 0.0
        %4369 = vmatpush.msra.mxu0 0.0
        %4370 = vmatpush.msra.mxu0 0.0
        %4371 = vmatpush.msra.mxu0 0.0
        %4372 = vmatpush.msra.mxu0 0.0
        %4373 = vmatpush.msra.mxu0 0.0
        %4374 = vmatpush.msra.mxu0 0.0
        %4375 = vmatpush.msra.mxu0 %v3378
        %4376 = vmatpush.msra.mxu0 %v3377
        %4377 = vmatpush.msra.mxu0 %v3376
        %4378 = vmatpush.msra.mxu0 %v3375
        %4379 = vmatmul.f32.gmra.mxu0 %v4361
        %v4380 = vpop.f32.mrf.mxu0
        %v4381 = vadd.f32 0.0, %v4380
        %4382 = vdwg.mxu0
        %v4383 = vadd.f32 %v4360, %v4381
        %v4384 = vxor.u32 %v4383, 2147483648
        %v4385 = vmul.f32 %v4384, 1.442695
        %v4386 = vpow.pop %v4385
        %v4387 = vadd.f32 %v4386, 1.0
        %v4388 = vrcp.pop %v4387
        %v4389 = vmul.f32 %v4387, %v4388
        %v4390 = vsub.f32 1.0, %v4389
        %v4391 = vmul.f32 %v4388, %v4390
        %v4392 = vadd.f32 %v4388, %v4391
        %vm4393 = vweird.f32 %v4387
        %vm4394 = vweird.f32 %v4388
        %vm4395 = vmor %vm4393, %vm4394
        %v4396 = vsel %vm4395, %v4388, %v4392
        %v4397 = vand.u32 2147483647, %v4387
        %vm4398 = vcmp.eq.f32.partialorder %v4397, 8.507059e+37
        %v4399 = vand.u32 %v4387, 2147483648
        %v4400 = vor.u32 1.1754944e-38, %v4399
        %v4401 = vsel %vm4398, %v4400, %v4396
        %v4402 = vmul.f32 1.0, %v4401
        %v4403 = vtanh.pop %v4383
        %v4404 = vmul.f32 %v4402, %v4282
        %4406 = vrot.lane.b32.xlu0 %v4403, 64
        %v4407 = vpop.permute.xlu0 %4406
        %v4409 = vmul.f32 %v4402, %v4407
        %4411 = vrot.lane.b32.xlu0 %v4409, 32
        %v4412 = vpop.permute.xlu0 %4411
        %v4414 = vadd.f32 %v4404, %v4412
        %v4415 = vtanh.pop %v4414
        %4417 = vrot.lane.b32.xlu0 %v4415, 64
        %v4418 = vpop.permute.xlu0 %4417
        %v4420 = vmul.f32 %v4402, %v4418
        %4422 = vrot.lane.b32.xlu0 %v4359, 32
        %v4423 = vpop.permute.xlu0 %4422
        %4425 = vst.msk [vmem:[#allocation3 + $0x7] sm:$0x1] %vm1292, %v4423
        %4427 = vrot.lane.b32.xlu0 %v4420, 32
        %v4428 = vpop.permute.xlu0 %4427
        %4430 = vst.msk [vmem:[#allocation4 + $0x8] sm:$0x1] %vm1292, %v4428
        %v4431 = vld [vmem:[#allocation2 + $0x10] ss:$0 sm:$0xff]
        %v4432 = vsel %vm1022, %v4423, 0
        %4434 = vmatpush.msra.mxu0 0.0
        %4435 = vmatpush.msra.mxu0 0.0
        %4436 = vmatpush.msra.mxu0 0.0
        %4437 = vmatpush.msra.mxu0 0.0
        %4438 = vmatpush.msra.mxu0 0.0
        %4439 = vmatpush.msra.mxu0 0.0
        %4440 = vmatpush.msra.mxu0 0.0
        %4441 = vmatpush.msra.mxu0 0.0
        %4442 = vmatpush.msra.mxu0 0.0
        %4443 = vmatpush.msra.mxu0 0.0
        %4444 = vmatpush.msra.mxu0 0.0
        %4445 = vmatpush.msra.mxu0 0.0
        %4446 = vmatpush.msra.mxu0 %v3374
        %4447 = vmatpush.msra.mxu0 %v3373
        %4448 = vmatpush.msra.mxu0 %v3372
        %4449 = vmatpush.msra.mxu0 %v3371
        %4450 = vmatmul.f32.gmra.mxu0 %v4432
        %v4451 = vpop.f32.mrf.mxu0
        %v4452 = vadd.f32 0.0, %v4451
        %4453 = vdwg.mxu0
        %v4454 = vadd.f32 %v4431, %v4452
        %v4455 = vxor.u32 %v4454, 2147483648
        %v4456 = vmul.f32 %v4455, 1.442695
        %v4457 = vpow.pop %v4456
        %v4458 = vadd.f32 %v4457, 1.0
        %v4459 = vrcp.pop %v4458
        %v4460 = vmul.f32 %v4458, %v4459
        %v4461 = vsub.f32 1.0, %v4460
        %v4462 = vmul.f32 %v4459, %v4461
        %v4463 = vadd.f32 %v4459, %v4462
        %vm4464 = vweird.f32 %v4458
        %vm4465 = vweird.f32 %v4459
        %vm4466 = vmor %vm4464, %vm4465
        %v4467 = vsel %vm4466, %v4459, %v4463
        %v4468 = vand.u32 2147483647, %v4458
        %vm4469 = vcmp.eq.f32.partialorder %v4468, 8.507059e+37
        %v4470 = vand.u32 %v4458, 2147483648
        %v4471 = vor.u32 1.1754944e-38, %v4470
        %v4472 = vsel %vm4469, %v4471, %v4467
        %v4473 = vmul.f32 1.0, %v4472
        %v4474 = vtanh.pop %v4454
        %v4475 = vmul.f32 %v4473, %v4353
        %4477 = vrot.lane.b32.xlu0 %v4474, 64
        %v4478 = vpop.permute.xlu0 %4477
        %v4480 = vmul.f32 %v4473, %v4478
        %4482 = vrot.lane.b32.xlu0 %v4480, 32
        %v4483 = vpop.permute.xlu0 %4482
        %v4485 = vadd.f32 %v4475, %v4483
        %v4486 = vtanh.pop %v4485
        %4488 = vrot.lane.b32.xlu0 %v4486, 64
        %v4489 = vpop.permute.xlu0 %4488
        %v4491 = vmul.f32 %v4473, %v4489
        %v4492 = vld [vmem:[#allocation2 + $0xf] ss:$0 sm:$0xff]
        %v4493 = vsel %vm1022, %v4428, 0
        %4495 = vmatpush.msra.mxu0 0.0
        %4496 = vmatpush.msra.mxu0 0.0
        %4497 = vmatpush.msra.mxu0 0.0
        %4498 = vmatpush.msra.mxu0 0.0
        %4499 = vmatpush.msra.mxu0 0.0
        %4500 = vmatpush.msra.mxu0 0.0
        %4501 = vmatpush.msra.mxu0 0.0
        %4502 = vmatpush.msra.mxu0 0.0
        %4503 = vmatpush.msra.mxu0 0.0
        %4504 = vmatpush.msra.mxu0 0.0
        %4505 = vmatpush.msra.mxu0 0.0
        %4506 = vmatpush.msra.mxu0 0.0
        %4507 = vmatpush.msra.mxu0 %v3378
        %4508 = vmatpush.msra.mxu0 %v3377
        %4509 = vmatpush.msra.mxu0 %v3376
        %4510 = vmatpush.msra.mxu0 %v3375
        %4511 = vmatmul.f32.gmra.mxu0 %v4493
        %v4512 = vpop.f32.mrf.mxu0
        %v4513 = vadd.f32 0.0, %v4512
        %4514 = vdwg.mxu0
        %v4515 = vadd.f32 %v4492, %v4513
        %v4516 = vxor.u32 %v4515, 2147483648
        %v4517 = vmul.f32 %v4516, 1.442695
        %v4518 = vpow.pop %v4517
        %v4519 = vadd.f32 %v4518, 1.0
        %v4520 = vrcp.pop %v4519
        %v4521 = vmul.f32 %v4519, %v4520
        %v4522 = vsub.f32 1.0, %v4521
        %v4523 = vmul.f32 %v4520, %v4522
        %v4524 = vadd.f32 %v4520, %v4523
        %vm4525 = vweird.f32 %v4519
        %vm4526 = vweird.f32 %v4520
        %vm4527 = vmor %vm4525, %vm4526
        %v4528 = vsel %vm4527, %v4520, %v4524
        %v4529 = vand.u32 2147483647, %v4519
        %vm4530 = vcmp.eq.f32.partialorder %v4529, 8.507059e+37
        %v4531 = vand.u32 %v4519, 2147483648
        %v4532 = vor.u32 1.1754944e-38, %v4531
        %v4533 = vsel %vm4530, %v4532, %v4528
        %v4534 = vmul.f32 1.0, %v4533
        %v4535 = vtanh.pop %v4515
        %v4536 = vmul.f32 %v4534, %v4414
        %4538 = vrot.lane.b32.xlu0 %v4535, 64
        %v4539 = vpop.permute.xlu0 %4538
        %v4541 = vmul.f32 %v4534, %v4539
        %4543 = vrot.lane.b32.xlu0 %v4541, 32
        %v4544 = vpop.permute.xlu0 %4543
        %v4546 = vadd.f32 %v4536, %v4544
        %v4547 = vtanh.pop %v4546
        %4549 = vrot.lane.b32.xlu0 %v4547, 64
        %v4550 = vpop.permute.xlu0 %4549
        %v4552 = vmul.f32 %v4534, %v4550
        %4554 = vrot.lane.b32.xlu0 %v4491, 32
        %v4555 = vpop.permute.xlu0 %4554
        %4557 = vst.msk [vmem:[#allocation3 + $0x8] sm:$0x1] %vm1292, %v4555
        %4559 = vrot.lane.b32.xlu0 %v4552, 32
        %v4560 = vpop.permute.xlu0 %4559
        %4562 = vst.msk [vmem:[#allocation4 + $0x7] sm:$0x1] %vm1292, %v4560
        %v4563 = vld [vmem:[#allocation2 + $0x11] ss:$0 sm:$0xff]
        %v4564 = vsel %vm1022, %v4555, 0
        %4566 = vmatpush.msra.mxu0 0.0
        %4567 = vmatpush.msra.mxu0 0.0
        %4568 = vmatpush.msra.mxu0 0.0
        %4569 = vmatpush.msra.mxu0 0.0
        %4570 = vmatpush.msra.mxu0 0.0
        %4571 = vmatpush.msra.mxu0 0.0
        %4572 = vmatpush.msra.mxu0 0.0
        %4573 = vmatpush.msra.mxu0 0.0
        %4574 = vmatpush.msra.mxu0 0.0
        %4575 = vmatpush.msra.mxu0 0.0
        %4576 = vmatpush.msra.mxu0 0.0
        %4577 = vmatpush.msra.mxu0 0.0
        %4578 = vmatpush.msra.mxu0 %v3374
        %4579 = vmatpush.msra.mxu0 %v3373
        %4580 = vmatpush.msra.mxu0 %v3372
        %4581 = vmatpush.msra.mxu0 %v3371
        %4582 = vmatmul.f32.gmra.mxu0 %v4564
        %v4583 = vpop.f32.mrf.mxu0
        %v4584 = vadd.f32 0.0, %v4583
        %4585 = vdwg.mxu0
        %v4586 = vadd.f32 %v4563, %v4584
        %v4587 = vxor.u32 %v4586, 2147483648
        %v4588 = vmul.f32 %v4587, 1.442695
        %v4589 = vpow.pop %v4588
        %v4590 = vadd.f32 %v4589, 1.0
        %v4591 = vrcp.pop %v4590
        %v4592 = vmul.f32 %v4590, %v4591
        %v4593 = vsub.f32 1.0, %v4592
        %v4594 = vmul.f32 %v4591, %v4593
        %v4595 = vadd.f32 %v4591, %v4594
        %vm4596 = vweird.f32 %v4590
        %vm4597 = vweird.f32 %v4591
        %vm4598 = vmor %vm4596, %vm4597
        %v4599 = vsel %vm4598, %v4591, %v4595
        %v4600 = vand.u32 2147483647, %v4590
        %vm4601 = vcmp.eq.f32.partialorder %v4600, 8.507059e+37
        %v4602 = vand.u32 %v4590, 2147483648
        %v4603 = vor.u32 1.1754944e-38, %v4602
        %v4604 = vsel %vm4601, %v4603, %v4599
        %v4605 = vmul.f32 1.0, %v4604
        %v4606 = vtanh.pop %v4586
        %v4607 = vmul.f32 %v4605, %v4485
        %4609 = vrot.lane.b32.xlu0 %v4606, 64
        %v4610 = vpop.permute.xlu0 %4609
        %v4612 = vmul.f32 %v4605, %v4610
        %4614 = vrot.lane.b32.xlu0 %v4612, 32
        %v4615 = vpop.permute.xlu0 %4614
        %v4617 = vadd.f32 %v4607, %v4615
        %v4618 = vtanh.pop %v4617
        %4620 = vrot.lane.b32.xlu0 %v4618, 64
        %v4621 = vpop.permute.xlu0 %4620
        %v4623 = vmul.f32 %v4605, %v4621
        %v4624 = vld [vmem:[#allocation2 + $0xe] ss:$0 sm:$0xff]
        %v4625 = vsel %vm1022, %v4560, 0
        %4627 = vmatpush.msra.mxu0 0.0
        %4628 = vmatpush.msra.mxu0 0.0
        %4629 = vmatpush.msra.mxu0 0.0
        %4630 = vmatpush.msra.mxu0 0.0
        %4631 = vmatpush.msra.mxu0 0.0
        %4632 = vmatpush.msra.mxu0 0.0
        %4633 = vmatpush.msra.mxu0 0.0
        %4634 = vmatpush.msra.mxu0 0.0
        %4635 = vmatpush.msra.mxu0 0.0
        %4636 = vmatpush.msra.mxu0 0.0
        %4637 = vmatpush.msra.mxu0 0.0
        %4638 = vmatpush.msra.mxu0 0.0
        %4639 = vmatpush.msra.mxu0 %v3378
        %4640 = vmatpush.msra.mxu0 %v3377
        %4641 = vmatpush.msra.mxu0 %v3376
        %4642 = vmatpush.msra.mxu0 %v3375
        %4643 = vmatmul.f32.gmra.mxu0 %v4625
        %v4644 = vpop.f32.mrf.mxu0
        %v4645 = vadd.f32 0.0, %v4644
        %4646 = vdwg.mxu0
        %v4647 = vadd.f32 %v4624, %v4645
        %v4648 = vxor.u32 %v4647, 2147483648
        %v4649 = vmul.f32 %v4648, 1.442695
        %v4650 = vpow.pop %v4649
        %v4651 = vadd.f32 %v4650, 1.0
        %v4652 = vrcp.pop %v4651
        %v4653 = vmul.f32 %v4651, %v4652
        %v4654 = vsub.f32 1.0, %v4653
        %v4655 = vmul.f32 %v4652, %v4654
        %v4656 = vadd.f32 %v4652, %v4655
        %vm4657 = vweird.f32 %v4651
        %vm4658 = vweird.f32 %v4652
        %vm4659 = vmor %vm4657, %vm4658
        %v4660 = vsel %vm4659, %v4652, %v4656
        %v4661 = vand.u32 2147483647, %v4651
        %vm4662 = vcmp.eq.f32.partialorder %v4661, 8.507059e+37
        %v4663 = vand.u32 %v4651, 2147483648
        %v4664 = vor.u32 1.1754944e-38, %v4663
        %v4665 = vsel %vm4662, %v4664, %v4660
        %v4666 = vmul.f32 1.0, %v4665
        %v4667 = vtanh.pop %v4647
        %v4668 = vmul.f32 %v4666, %v4546
        %4670 = vrot.lane.b32.xlu0 %v4667, 64
        %v4671 = vpop.permute.xlu0 %4670
        %v4673 = vmul.f32 %v4666, %v4671
        %4675 = vrot.lane.b32.xlu0 %v4673, 32
        %v4676 = vpop.permute.xlu0 %4675
        %v4678 = vadd.f32 %v4668, %v4676
        %v4679 = vtanh.pop %v4678
        %4681 = vrot.lane.b32.xlu0 %v4679, 64
        %v4682 = vpop.permute.xlu0 %4681
        %v4684 = vmul.f32 %v4666, %v4682
        %4686 = vrot.lane.b32.xlu0 %v4623, 32
        %v4687 = vpop.permute.xlu0 %4686
        %4689 = vst.msk [vmem:[#allocation3 + $0x9] sm:$0x1] %vm1292, %v4687
        %4691 = vrot.lane.b32.xlu0 %v4684, 32
        %v4692 = vpop.permute.xlu0 %4691
        %4694 = vst.msk [vmem:[#allocation4 + $0x6] sm:$0x1] %vm1292, %v4692
        %v4695 = vld [vmem:[#allocation2 + $0x12] ss:$0 sm:$0xff]
        %v4696 = vsel %vm1022, %v4687, 0
        %4698 = vmatpush.msra.mxu0 0.0
        %4699 = vmatpush.msra.mxu0 0.0
        %4700 = vmatpush.msra.mxu0 0.0
        %4701 = vmatpush.msra.mxu0 0.0
        %4702 = vmatpush.msra.mxu0 0.0
        %4703 = vmatpush.msra.mxu0 0.0
        %4704 = vmatpush.msra.mxu0 0.0
        %4705 = vmatpush.msra.mxu0 0.0
        %4706 = vmatpush.msra.mxu0 0.0
        %4707 = vmatpush.msra.mxu0 0.0
        %4708 = vmatpush.msra.mxu0 0.0
        %4709 = vmatpush.msra.mxu0 0.0
        %4710 = vmatpush.msra.mxu0 %v3374
        %4711 = vmatpush.msra.mxu0 %v3373
        %4712 = vmatpush.msra.mxu0 %v3372
        %4713 = vmatpush.msra.mxu0 %v3371
        %4714 = vmatmul.f32.gmra.mxu0 %v4696
        %v4715 = vpop.f32.mrf.mxu0
        %v4716 = vadd.f32 0.0, %v4715
        %4717 = vdwg.mxu0
        %v4718 = vadd.f32 %v4695, %v4716
        %v4719 = vxor.u32 %v4718, 2147483648
        %v4720 = vmul.f32 %v4719, 1.442695
        %v4721 = vpow.pop %v4720
        %v4722 = vadd.f32 %v4721, 1.0
        %v4723 = vrcp.pop %v4722
        %v4724 = vmul.f32 %v4722, %v4723
        %v4725 = vsub.f32 1.0, %v4724
        %v4726 = vmul.f32 %v4723, %v4725
        %v4727 = vadd.f32 %v4723, %v4726
        %vm4728 = vweird.f32 %v4722
        %vm4729 = vweird.f32 %v4723
        %vm4730 = vmor %vm4728, %vm4729
        %v4731 = vsel %vm4730, %v4723, %v4727
        %v4732 = vand.u32 2147483647, %v4722
        %vm4733 = vcmp.eq.f32.partialorder %v4732, 8.507059e+37
        %v4734 = vand.u32 %v4722, 2147483648
        %v4735 = vor.u32 1.1754944e-38, %v4734
        %v4736 = vsel %vm4733, %v4735, %v4731
        %v4737 = vmul.f32 1.0, %v4736
        %v4738 = vtanh.pop %v4718
        %v4739 = vmul.f32 %v4737, %v4617
        %4741 = vrot.lane.b32.xlu0 %v4738, 64
        %v4742 = vpop.permute.xlu0 %4741
        %v4744 = vmul.f32 %v4737, %v4742
        %4746 = vrot.lane.b32.xlu0 %v4744, 32
        %v4747 = vpop.permute.xlu0 %4746
        %v4749 = vadd.f32 %v4739, %v4747
        %v4750 = vtanh.pop %v4749
        %4752 = vrot.lane.b32.xlu0 %v4750, 64
        %v4753 = vpop.permute.xlu0 %4752
        %v4755 = vmul.f32 %v4737, %v4753
        %v4756 = vld [vmem:[#allocation2 + $0xd] ss:$0 sm:$0xff]
        %v4757 = vsel %vm1022, %v4692, 0
        %4759 = vmatpush.msra.mxu0 0.0
        %4760 = vmatpush.msra.mxu0 0.0
        %4761 = vmatpush.msra.mxu0 0.0
        %4762 = vmatpush.msra.mxu0 0.0
        %4763 = vmatpush.msra.mxu0 0.0
        %4764 = vmatpush.msra.mxu0 0.0
        %4765 = vmatpush.msra.mxu0 0.0
        %4766 = vmatpush.msra.mxu0 0.0
        %4767 = vmatpush.msra.mxu0 0.0
        %4768 = vmatpush.msra.mxu0 0.0
        %4769 = vmatpush.msra.mxu0 0.0
        %4770 = vmatpush.msra.mxu0 0.0
        %4771 = vmatpush.msra.mxu0 %v3378
        %4772 = vmatpush.msra.mxu0 %v3377
        %4773 = vmatpush.msra.mxu0 %v3376
        %4774 = vmatpush.msra.mxu0 %v3375
        %4775 = vmatmul.f32.gmra.mxu0 %v4757
        %v4776 = vpop.f32.mrf.mxu0
        %v4777 = vadd.f32 0.0, %v4776
        %4778 = vdwg.mxu0
        %v4779 = vadd.f32 %v4756, %v4777
        %v4780 = vxor.u32 %v4779, 2147483648
        %v4781 = vmul.f32 %v4780, 1.442695
        %v4782 = vpow.pop %v4781
        %v4783 = vadd.f32 %v4782, 1.0
        %v4784 = vrcp.pop %v4783
        %v4785 = vmul.f32 %v4783, %v4784
        %v4786 = vsub.f32 1.0, %v4785
        %v4787 = vmul.f32 %v4784, %v4786
        %v4788 = vadd.f32 %v4784, %v4787
        %vm4789 = vweird.f32 %v4783
        %vm4790 = vweird.f32 %v4784
        %vm4791 = vmor %vm4789, %vm4790
        %v4792 = vsel %vm4791, %v4784, %v4788
        %v4793 = vand.u32 2147483647, %v4783
        %vm4794 = vcmp.eq.f32.partialorder %v4793, 8.507059e+37
        %v4795 = vand.u32 %v4783, 2147483648
        %v4796 = vor.u32 1.1754944e-38, %v4795
        %v4797 = vsel %vm4794, %v4796, %v4792
        %v4798 = vmul.f32 1.0, %v4797
        %v4799 = vtanh.pop %v4779
        %v4800 = vmul.f32 %v4798, %v4678
        %4802 = vrot.lane.b32.xlu0 %v4799, 64
        %v4803 = vpop.permute.xlu0 %4802
        %v4805 = vmul.f32 %v4798, %v4803
        %4807 = vrot.lane.b32.xlu0 %v4805, 32
        %v4808 = vpop.permute.xlu0 %4807
        %v4810 = vadd.f32 %v4800, %v4808
        %v4811 = vtanh.pop %v4810
        %4813 = vrot.lane.b32.xlu0 %v4811, 64
        %v4814 = vpop.permute.xlu0 %4813
        %v4816 = vmul.f32 %v4798, %v4814
        %4818 = vrot.lane.b32.xlu0 %v4755, 32
        %v4819 = vpop.permute.xlu0 %4818
        %4821 = vst.msk [vmem:[#allocation3 + $0xa] sm:$0x1] %vm1292, %v4819
        %4823 = vrot.lane.b32.xlu0 %v4816, 32
        %v4824 = vpop.permute.xlu0 %4823
        %4826 = vst.msk [vmem:[#allocation4 + $0x5] sm:$0x1] %vm1292, %v4824
        %v4827 = vld [vmem:[#allocation2 + $0x13] ss:$0 sm:$0xff]
        %v4828 = vsel %vm1022, %v4819, 0
        %4830 = vmatpush.msra.mxu0 0.0
        %4831 = vmatpush.msra.mxu0 0.0
        %4832 = vmatpush.msra.mxu0 0.0
        %4833 = vmatpush.msra.mxu0 0.0
        %4834 = vmatpush.msra.mxu0 0.0
        %4835 = vmatpush.msra.mxu0 0.0
        %4836 = vmatpush.msra.mxu0 0.0
        %4837 = vmatpush.msra.mxu0 0.0
        %4838 = vmatpush.msra.mxu0 0.0
        %4839 = vmatpush.msra.mxu0 0.0
        %4840 = vmatpush.msra.mxu0 0.0
        %4841 = vmatpush.msra.mxu0 0.0
        %4842 = vmatpush.msra.mxu0 %v3374
        %4843 = vmatpush.msra.mxu0 %v3373
        %4844 = vmatpush.msra.mxu0 %v3372
        %4845 = vmatpush.msra.mxu0 %v3371
        %4846 = vmatmul.f32.gmra.mxu0 %v4828
        %v4847 = vpop.f32.mrf.mxu0
        %v4848 = vadd.f32 0.0, %v4847
        %4849 = vdwg.mxu0
        %v4850 = vadd.f32 %v4827, %v4848
        %v4851 = vxor.u32 %v4850, 2147483648
        %v4852 = vmul.f32 %v4851, 1.442695
        %v4853 = vpow.pop %v4852
        %v4854 = vadd.f32 %v4853, 1.0
        %v4855 = vrcp.pop %v4854
        %v4856 = vmul.f32 %v4854, %v4855
        %v4857 = vsub.f32 1.0, %v4856
        %v4858 = vmul.f32 %v4855, %v4857
        %v4859 = vadd.f32 %v4855, %v4858
        %vm4860 = vweird.f32 %v4854
        %vm4861 = vweird.f32 %v4855
        %vm4862 = vmor %vm4860, %vm4861
        %v4863 = vsel %vm4862, %v4855, %v4859
        %v4864 = vand.u32 2147483647, %v4854
        %vm4865 = vcmp.eq.f32.partialorder %v4864, 8.507059e+37
        %v4866 = vand.u32 %v4854, 2147483648
        %v4867 = vor.u32 1.1754944e-38, %v4866
        %v4868 = vsel %vm4865, %v4867, %v4863
        %v4869 = vmul.f32 1.0, %v4868
        %v4870 = vtanh.pop %v4850
        %v4871 = vmul.f32 %v4869, %v4749
        %4873 = vrot.lane.b32.xlu0 %v4870, 64
        %v4874 = vpop.permute.xlu0 %4873
        %v4876 = vmul.f32 %v4869, %v4874
        %4878 = vrot.lane.b32.xlu0 %v4876, 32
        %v4879 = vpop.permute.xlu0 %4878
        %v4881 = vadd.f32 %v4871, %v4879
        %v4882 = vtanh.pop %v4881
        %4884 = vrot.lane.b32.xlu0 %v4882, 64
        %v4885 = vpop.permute.xlu0 %4884
        %v4887 = vmul.f32 %v4869, %v4885
        %v4888 = vld [vmem:[#allocation2 + $0xc] ss:$0 sm:$0xff]
        %v4889 = vsel %vm1022, %v4824, 0
        %4891 = vmatpush.msra.mxu0 0.0
        %4892 = vmatpush.msra.mxu0 0.0
        %4893 = vmatpush.msra.mxu0 0.0
        %4894 = vmatpush.msra.mxu0 0.0
        %4895 = vmatpush.msra.mxu0 0.0
        %4896 = vmatpush.msra.mxu0 0.0
        %4897 = vmatpush.msra.mxu0 0.0
        %4898 = vmatpush.msra.mxu0 0.0
        %4899 = vmatpush.msra.mxu0 0.0
        %4900 = vmatpush.msra.mxu0 0.0
        %4901 = vmatpush.msra.mxu0 0.0
        %4902 = vmatpush.msra.mxu0 0.0
        %4903 = vmatpush.msra.mxu0 %v3378
        %4904 = vmatpush.msra.mxu0 %v3377
        %4905 = vmatpush.msra.mxu0 %v3376
        %4906 = vmatpush.msra.mxu0 %v3375
        %4907 = vmatmul.f32.gmra.mxu0 %v4889
        %v4908 = vpop.f32.mrf.mxu0
        %v4909 = vadd.f32 0.0, %v4908
        %4910 = vdwg.mxu0
        %v4911 = vadd.f32 %v4888, %v4909
        %v4912 = vxor.u32 %v4911, 2147483648
        %v4913 = vmul.f32 %v4912, 1.442695
        %v4914 = vpow.pop %v4913
        %v4915 = vadd.f32 %v4914, 1.0
        %v4916 = vrcp.pop %v4915
        %v4917 = vmul.f32 %v4915, %v4916
        %v4918 = vsub.f32 1.0, %v4917
        %v4919 = vmul.f32 %v4916, %v4918
        %v4920 = vadd.f32 %v4916, %v4919
        %vm4921 = vweird.f32 %v4915
        %vm4922 = vweird.f32 %v4916
        %vm4923 = vmor %vm4921, %vm4922
        %v4924 = vsel %vm4923, %v4916, %v4920
        %v4925 = vand.u32 2147483647, %v4915
        %vm4926 = vcmp.eq.f32.partialorder %v4925, 8.507059e+37
        %v4927 = vand.u32 %v4915, 2147483648
        %v4928 = vor.u32 1.1754944e-38, %v4927
        %v4929 = vsel %vm4926, %v4928, %v4924
        %v4930 = vmul.f32 1.0, %v4929
        %v4931 = vtanh.pop %v4911
        %v4932 = vmul.f32 %v4930, %v4810
        %4934 = vrot.lane.b32.xlu0 %v4931, 64
        %v4935 = vpop.permute.xlu0 %4934
        %v4937 = vmul.f32 %v4930, %v4935
        %4939 = vrot.lane.b32.xlu0 %v4937, 32
        %v4940 = vpop.permute.xlu0 %4939
        %v4942 = vadd.f32 %v4932, %v4940
        %v4943 = vtanh.pop %v4942
        %4945 = vrot.lane.b32.xlu0 %v4943, 64
        %v4946 = vpop.permute.xlu0 %4945
        %v4948 = vmul.f32 %v4930, %v4946
        %4950 = vrot.lane.b32.xlu0 %v4887, 32
        %v4951 = vpop.permute.xlu0 %4950
        %4953 = vst.msk [vmem:[#allocation3 + $0xb] sm:$0x1] %vm1292, %v4951
        %4955 = vrot.lane.b32.xlu0 %v4948, 32
        %v4956 = vpop.permute.xlu0 %4955
        %4958 = vst.msk [vmem:[#allocation4 + $0x4] sm:$0x1] %vm1292, %v4956
        %v4959 = vld [vmem:[#allocation2 + $0x14] ss:$0 sm:$0xff]
        %v4960 = vsel %vm1022, %v4951, 0
        %4962 = vmatpush.msra.mxu0 0.0
        %4963 = vmatpush.msra.mxu0 0.0
        %4964 = vmatpush.msra.mxu0 0.0
        %4965 = vmatpush.msra.mxu0 0.0
        %4966 = vmatpush.msra.mxu0 0.0
        %4967 = vmatpush.msra.mxu0 0.0
        %4968 = vmatpush.msra.mxu0 0.0
        %4969 = vmatpush.msra.mxu0 0.0
        %4970 = vmatpush.msra.mxu0 0.0
        %4971 = vmatpush.msra.mxu0 0.0
        %4972 = vmatpush.msra.mxu0 0.0
        %4973 = vmatpush.msra.mxu0 0.0
        %4974 = vmatpush.msra.mxu0 %v3374
        %4975 = vmatpush.msra.mxu0 %v3373
        %4976 = vmatpush.msra.mxu0 %v3372
        %4977 = vmatpush.msra.mxu0 %v3371
        %4978 = vmatmul.f32.gmra.mxu0 %v4960
        %v4979 = vpop.f32.mrf.mxu0
        %v4980 = vadd.f32 0.0, %v4979
        %4981 = vdwg.mxu0
        %v4982 = vadd.f32 %v4959, %v4980
        %v4983 = vxor.u32 %v4982, 2147483648
        %v4984 = vmul.f32 %v4983, 1.442695
        %v4985 = vpow.pop %v4984
        %v4986 = vadd.f32 %v4985, 1.0
        %v4987 = vrcp.pop %v4986
        %v4988 = vmul.f32 %v4986, %v4987
        %v4989 = vsub.f32 1.0, %v4988
        %v4990 = vmul.f32 %v4987, %v4989
        %v4991 = vadd.f32 %v4987, %v4990
        %vm4992 = vweird.f32 %v4986
        %vm4993 = vweird.f32 %v4987
        %vm4994 = vmor %vm4992, %vm4993
        %v4995 = vsel %vm4994, %v4987, %v4991
        %v4996 = vand.u32 2147483647, %v4986
        %vm4997 = vcmp.eq.f32.partialorder %v4996, 8.507059e+37
        %v4998 = vand.u32 %v4986, 2147483648
        %v4999 = vor.u32 1.1754944e-38, %v4998
        %v5000 = vsel %vm4997, %v4999, %v4995
        %v5001 = vmul.f32 1.0, %v5000
        %v5002 = vtanh.pop %v4982
        %v5003 = vmul.f32 %v5001, %v4881
        %5005 = vrot.lane.b32.xlu0 %v5002, 64
        %v5006 = vpop.permute.xlu0 %5005
        %v5008 = vmul.f32 %v5001, %v5006
        %5010 = vrot.lane.b32.xlu0 %v5008, 32
        %v5011 = vpop.permute.xlu0 %5010
        %v5013 = vadd.f32 %v5003, %v5011
        %v5014 = vtanh.pop %v5013
        %5016 = vrot.lane.b32.xlu0 %v5014, 64
        %v5017 = vpop.permute.xlu0 %5016
        %v5019 = vmul.f32 %v5001, %v5017
        %v5020 = vld [vmem:[#allocation2 + $0xb] ss:$0 sm:$0xff]
        %v5021 = vsel %vm1022, %v4956, 0
        %5023 = vmatpush.msra.mxu0 0.0
        %5024 = vmatpush.msra.mxu0 0.0
        %5025 = vmatpush.msra.mxu0 0.0
        %5026 = vmatpush.msra.mxu0 0.0
        %5027 = vmatpush.msra.mxu0 0.0
        %5028 = vmatpush.msra.mxu0 0.0
        %5029 = vmatpush.msra.mxu0 0.0
        %5030 = vmatpush.msra.mxu0 0.0
        %5031 = vmatpush.msra.mxu0 0.0
        %5032 = vmatpush.msra.mxu0 0.0
        %5033 = vmatpush.msra.mxu0 0.0
        %5034 = vmatpush.msra.mxu0 0.0
        %5035 = vmatpush.msra.mxu0 %v3378
        %5036 = vmatpush.msra.mxu0 %v3377
        %5037 = vmatpush.msra.mxu0 %v3376
        %5038 = vmatpush.msra.mxu0 %v3375
        %5039 = vmatmul.f32.gmra.mxu0 %v5021
        %v5040 = vpop.f32.mrf.mxu0
        %v5041 = vadd.f32 0.0, %v5040
        %5042 = vdwg.mxu0
        %v5043 = vadd.f32 %v5020, %v5041
        %v5044 = vxor.u32 %v5043, 2147483648
        %v5045 = vmul.f32 %v5044, 1.442695
        %v5046 = vpow.pop %v5045
        %v5047 = vadd.f32 %v5046, 1.0
        %v5048 = vrcp.pop %v5047
        %v5049 = vmul.f32 %v5047, %v5048
        %v5050 = vsub.f32 1.0, %v5049
        %v5051 = vmul.f32 %v5048, %v5050
        %v5052 = vadd.f32 %v5048, %v5051
        %vm5053 = vweird.f32 %v5047
        %vm5054 = vweird.f32 %v5048
        %vm5055 = vmor %vm5053, %vm5054
        %v5056 = vsel %vm5055, %v5048, %v5052
        %v5057 = vand.u32 2147483647, %v5047
        %vm5058 = vcmp.eq.f32.partialorder %v5057, 8.507059e+37
        %v5059 = vand.u32 %v5047, 2147483648
        %v5060 = vor.u32 1.1754944e-38, %v5059
        %v5061 = vsel %vm5058, %v5060, %v5056
        %v5062 = vmul.f32 1.0, %v5061
        %v5063 = vtanh.pop %v5043
        %v5064 = vmul.f32 %v5062, %v4942
        %5066 = vrot.lane.b32.xlu0 %v5063, 64
        %v5067 = vpop.permute.xlu0 %5066
        %v5069 = vmul.f32 %v5062, %v5067
        %5071 = vrot.lane.b32.xlu0 %v5069, 32
        %v5072 = vpop.permute.xlu0 %5071
        %v5074 = vadd.f32 %v5064, %v5072
        %v5075 = vtanh.pop %v5074
        %5077 = vrot.lane.b32.xlu0 %v5075, 64
        %v5078 = vpop.permute.xlu0 %5077
        %v5080 = vmul.f32 %v5062, %v5078
        %5082 = vrot.lane.b32.xlu0 %v5019, 32
        %v5083 = vpop.permute.xlu0 %5082
        %5085 = vst.msk [vmem:[#allocation3 + $0xc] sm:$0x1] %vm1292, %v5083
        %5087 = vrot.lane.b32.xlu0 %v5080, 32
        %v5088 = vpop.permute.xlu0 %5087
        %5090 = vst.msk [vmem:[#allocation4 + $0x3] sm:$0x1] %vm1292, %v5088
        %v5091 = vld [vmem:[#allocation2 + $0x15] ss:$0 sm:$0xff]
        %v5092 = vsel %vm1022, %v5083, 0
        %5094 = vmatpush.msra.mxu0 0.0
        %5095 = vmatpush.msra.mxu0 0.0
        %5096 = vmatpush.msra.mxu0 0.0
        %5097 = vmatpush.msra.mxu0 0.0
        %5098 = vmatpush.msra.mxu0 0.0
        %5099 = vmatpush.msra.mxu0 0.0
        %5100 = vmatpush.msra.mxu0 0.0
        %5101 = vmatpush.msra.mxu0 0.0
        %5102 = vmatpush.msra.mxu0 0.0
        %5103 = vmatpush.msra.mxu0 0.0
        %5104 = vmatpush.msra.mxu0 0.0
        %5105 = vmatpush.msra.mxu0 0.0
        %5106 = vmatpush.msra.mxu0 %v3374
        %5107 = vmatpush.msra.mxu0 %v3373
        %5108 = vmatpush.msra.mxu0 %v3372
        %5109 = vmatpush.msra.mxu0 %v3371
        %5110 = vmatmul.f32.gmra.mxu0 %v5092
        %v5111 = vpop.f32.mrf.mxu0
        %v5112 = vadd.f32 0.0, %v5111
        %5113 = vdwg.mxu0
        %v5114 = vadd.f32 %v5091, %v5112
        %v5115 = vxor.u32 %v5114, 2147483648
        %v5116 = vmul.f32 %v5115, 1.442695
        %v5117 = vpow.pop %v5116
        %v5118 = vadd.f32 %v5117, 1.0
        %v5119 = vrcp.pop %v5118
        %v5120 = vmul.f32 %v5118, %v5119
        %v5121 = vsub.f32 1.0, %v5120
        %v5122 = vmul.f32 %v5119, %v5121
        %v5123 = vadd.f32 %v5119, %v5122
        %vm5124 = vweird.f32 %v5118
        %vm5125 = vweird.f32 %v5119
        %vm5126 = vmor %vm5124, %vm5125
        %v5127 = vsel %vm5126, %v5119, %v5123
        %v5128 = vand.u32 2147483647, %v5118
        %vm5129 = vcmp.eq.f32.partialorder %v5128, 8.507059e+37
        %v5130 = vand.u32 %v5118, 2147483648
        %v5131 = vor.u32 1.1754944e-38, %v5130
        %v5132 = vsel %vm5129, %v5131, %v5127
        %v5133 = vmul.f32 1.0, %v5132
        %v5134 = vtanh.pop %v5114
        %v5135 = vmul.f32 %v5133, %v5013
        %5137 = vrot.lane.b32.xlu0 %v5134, 64
        %v5138 = vpop.permute.xlu0 %5137
        %v5140 = vmul.f32 %v5133, %v5138
        %5142 = vrot.lane.b32.xlu0 %v5140, 32
        %v5143 = vpop.permute.xlu0 %5142
        %v5145 = vadd.f32 %v5135, %v5143
        %v5146 = vtanh.pop %v5145
        %5148 = vrot.lane.b32.xlu0 %v5146, 64
        %v5149 = vpop.permute.xlu0 %5148
        %v5151 = vmul.f32 %v5133, %v5149
        %v5152 = vld [vmem:[#allocation2 + $0xa] ss:$0 sm:$0xff]
        %v5153 = vsel %vm1022, %v5088, 0
        %5155 = vmatpush.msra.mxu0 0.0
        %5156 = vmatpush.msra.mxu0 0.0
        %5157 = vmatpush.msra.mxu0 0.0
        %5158 = vmatpush.msra.mxu0 0.0
        %5159 = vmatpush.msra.mxu0 0.0
        %5160 = vmatpush.msra.mxu0 0.0
        %5161 = vmatpush.msra.mxu0 0.0
        %5162 = vmatpush.msra.mxu0 0.0
        %5163 = vmatpush.msra.mxu0 0.0
        %5164 = vmatpush.msra.mxu0 0.0
        %5165 = vmatpush.msra.mxu0 0.0
        %5166 = vmatpush.msra.mxu0 0.0
        %5167 = vmatpush.msra.mxu0 %v3378
        %5168 = vmatpush.msra.mxu0 %v3377
        %5169 = vmatpush.msra.mxu0 %v3376
        %5170 = vmatpush.msra.mxu0 %v3375
        %5171 = vmatmul.f32.gmra.mxu0 %v5153
        %v5172 = vpop.f32.mrf.mxu0
        %v5173 = vadd.f32 0.0, %v5172
        %5174 = vdwg.mxu0
        %v5175 = vadd.f32 %v5152, %v5173
        %v5176 = vxor.u32 %v5175, 2147483648
        %v5177 = vmul.f32 %v5176, 1.442695
        %v5178 = vpow.pop %v5177
        %v5179 = vadd.f32 %v5178, 1.0
        %v5180 = vrcp.pop %v5179
        %v5181 = vmul.f32 %v5179, %v5180
        %v5182 = vsub.f32 1.0, %v5181
        %v5183 = vmul.f32 %v5180, %v5182
        %v5184 = vadd.f32 %v5180, %v5183
        %vm5185 = vweird.f32 %v5179
        %vm5186 = vweird.f32 %v5180
        %vm5187 = vmor %vm5185, %vm5186
        %v5188 = vsel %vm5187, %v5180, %v5184
        %v5189 = vand.u32 2147483647, %v5179
        %vm5190 = vcmp.eq.f32.partialorder %v5189, 8.507059e+37
        %v5191 = vand.u32 %v5179, 2147483648
        %v5192 = vor.u32 1.1754944e-38, %v5191
        %v5193 = vsel %vm5190, %v5192, %v5188
        %v5194 = vmul.f32 1.0, %v5193
        %v5195 = vtanh.pop %v5175
        %v5196 = vmul.f32 %v5194, %v5074
        %5198 = vrot.lane.b32.xlu0 %v5195, 64
        %v5199 = vpop.permute.xlu0 %5198
        %v5201 = vmul.f32 %v5194, %v5199
        %5203 = vrot.lane.b32.xlu0 %v5201, 32
        %v5204 = vpop.permute.xlu0 %5203
        %v5206 = vadd.f32 %v5196, %v5204
        %v5207 = vtanh.pop %v5206
        %5209 = vrot.lane.b32.xlu0 %v5207, 64
        %v5210 = vpop.permute.xlu0 %5209
        %v5212 = vmul.f32 %v5194, %v5210
        %5214 = vrot.lane.b32.xlu0 %v5151, 32
        %v5215 = vpop.permute.xlu0 %5214
        %5217 = vst.msk [vmem:[#allocation3 + $0xd] sm:$0x1] %vm1292, %v5215
        %5219 = vrot.lane.b32.xlu0 %v5212, 32
        %v5220 = vpop.permute.xlu0 %5219
        %5222 = vst.msk [vmem:[#allocation4 + $0x2] sm:$0x1] %vm1292, %v5220
        %v5223 = vld [vmem:[#allocation2 + $0x16] ss:$0 sm:$0xff]
        %v5224 = vsel %vm1022, %v5215, 0
        %5226 = vmatpush.msra.mxu0 0.0
        %5227 = vmatpush.msra.mxu0 0.0
        %5228 = vmatpush.msra.mxu0 0.0
        %5229 = vmatpush.msra.mxu0 0.0
        %5230 = vmatpush.msra.mxu0 0.0
        %5231 = vmatpush.msra.mxu0 0.0
        %5232 = vmatpush.msra.mxu0 0.0
        %5233 = vmatpush.msra.mxu0 0.0
        %5234 = vmatpush.msra.mxu0 0.0
        %5235 = vmatpush.msra.mxu0 0.0
        %5236 = vmatpush.msra.mxu0 0.0
        %5237 = vmatpush.msra.mxu0 0.0
        %5238 = vmatpush.msra.mxu0 %v3374
        %5239 = vmatpush.msra.mxu0 %v3373
        %5240 = vmatpush.msra.mxu0 %v3372
        %5241 = vmatpush.msra.mxu0 %v3371
        %5242 = vmatmul.f32.gmra.mxu0 %v5224
        %v5243 = vpop.f32.mrf.mxu0
        %v5244 = vadd.f32 0.0, %v5243
        %5245 = vdwg.mxu0
        %v5246 = vadd.f32 %v5223, %v5244
        %v5247 = vxor.u32 %v5246, 2147483648
        %v5248 = vmul.f32 %v5247, 1.442695
        %v5249 = vpow.pop %v5248
        %v5250 = vadd.f32 %v5249, 1.0
        %v5251 = vrcp.pop %v5250
        %v5252 = vmul.f32 %v5250, %v5251
        %v5253 = vsub.f32 1.0, %v5252
        %v5254 = vmul.f32 %v5251, %v5253
        %v5255 = vadd.f32 %v5251, %v5254
        %vm5256 = vweird.f32 %v5250
        %vm5257 = vweird.f32 %v5251
        %vm5258 = vmor %vm5256, %vm5257
        %v5259 = vsel %vm5258, %v5251, %v5255
        %v5260 = vand.u32 2147483647, %v5250
        %vm5261 = vcmp.eq.f32.partialorder %v5260, 8.507059e+37
        %v5262 = vand.u32 %v5250, 2147483648
        %v5263 = vor.u32 1.1754944e-38, %v5262
        %v5264 = vsel %vm5261, %v5263, %v5259
        %v5265 = vmul.f32 1.0, %v5264
        %v5266 = vtanh.pop %v5246
        %v5267 = vmul.f32 %v5265, %v5145
        %5269 = vrot.lane.b32.xlu0 %v5266, 64
        %v5270 = vpop.permute.xlu0 %5269
        %v5272 = vmul.f32 %v5265, %v5270
        %5274 = vrot.lane.b32.xlu0 %v5272, 32
        %v5275 = vpop.permute.xlu0 %5274
        %v5277 = vadd.f32 %v5267, %v5275
        %v5278 = vtanh.pop %v5277
        %5280 = vrot.lane.b32.xlu0 %v5278, 64
        %v5281 = vpop.permute.xlu0 %5280
        %v5283 = vmul.f32 %v5265, %v5281
        %v5284 = vld [vmem:[#allocation2 + $0x9] ss:$0 sm:$0xff]
        %v5285 = vsel %vm1022, %v5220, 0
        %5287 = vmatpush.msra.mxu0 0.0
        %5288 = vmatpush.msra.mxu0 0.0
        %5289 = vmatpush.msra.mxu0 0.0
        %5290 = vmatpush.msra.mxu0 0.0
        %5291 = vmatpush.msra.mxu0 0.0
        %5292 = vmatpush.msra.mxu0 0.0
        %5293 = vmatpush.msra.mxu0 0.0
        %5294 = vmatpush.msra.mxu0 0.0
        %5295 = vmatpush.msra.mxu0 0.0
        %5296 = vmatpush.msra.mxu0 0.0
        %5297 = vmatpush.msra.mxu0 0.0
        %5298 = vmatpush.msra.mxu0 0.0
        %5299 = vmatpush.msra.mxu0 %v3378
        %5300 = vmatpush.msra.mxu0 %v3377
        %5301 = vmatpush.msra.mxu0 %v3376
        %5302 = vmatpush.msra.mxu0 %v3375
        %5303 = vmatmul.f32.gmra.mxu0 %v5285
        %v5304 = vpop.f32.mrf.mxu0
        %v5305 = vadd.f32 0.0, %v5304
        %5306 = vdwg.mxu0
        %v5307 = vadd.f32 %v5284, %v5305
        %v5308 = vxor.u32 %v5307, 2147483648
        %v5309 = vmul.f32 %v5308, 1.442695
        %v5310 = vpow.pop %v5309
        %v5311 = vadd.f32 %v5310, 1.0
        %v5312 = vrcp.pop %v5311
        %v5313 = vmul.f32 %v5311, %v5312
        %v5314 = vsub.f32 1.0, %v5313
        %v5315 = vmul.f32 %v5312, %v5314
        %v5316 = vadd.f32 %v5312, %v5315
        %vm5317 = vweird.f32 %v5311
        %vm5318 = vweird.f32 %v5312
        %vm5319 = vmor %vm5317, %vm5318
        %v5320 = vsel %vm5319, %v5312, %v5316
        %v5321 = vand.u32 2147483647, %v5311
        %vm5322 = vcmp.eq.f32.partialorder %v5321, 8.507059e+37
        %v5323 = vand.u32 %v5311, 2147483648
        %v5324 = vor.u32 1.1754944e-38, %v5323
        %v5325 = vsel %vm5322, %v5324, %v5320
        %v5326 = vmul.f32 1.0, %v5325
        %v5327 = vtanh.pop %v5307
        %v5328 = vmul.f32 %v5326, %v5206
        %5330 = vrot.lane.b32.xlu0 %v5327, 64
        %v5331 = vpop.permute.xlu0 %5330
        %v5333 = vmul.f32 %v5326, %v5331
        %5335 = vrot.lane.b32.xlu0 %v5333, 32
        %v5336 = vpop.permute.xlu0 %5335
        %v5338 = vadd.f32 %v5328, %v5336
        %v5339 = vtanh.pop %v5338
        %5341 = vrot.lane.b32.xlu0 %v5339, 64
        %v5342 = vpop.permute.xlu0 %5341
        %v5344 = vmul.f32 %v5326, %v5342
        %5346 = vrot.lane.b32.xlu0 %v5283, 32
        %v5347 = vpop.permute.xlu0 %5346
        %5349 = vst.msk [vmem:[#allocation3 + $0xe] sm:$0x1] %vm1292, %v5347
        %5351 = vrot.lane.b32.xlu0 %v5344, 32
        %v5352 = vpop.permute.xlu0 %5351
        %5354 = vst.msk [vmem:[#allocation4 + $0x1] sm:$0x1] %vm1292, %v5352
        %v5355 = vld [vmem:[#allocation2 + $0x17] ss:$0 sm:$0xff]
        %v5356 = vsel %vm1022, %v5347, 0
        %5358 = vmatpush.msra.mxu0 0.0
        %5359 = vmatpush.msra.mxu0 0.0
        %5360 = vmatpush.msra.mxu0 0.0
        %5361 = vmatpush.msra.mxu0 0.0
        %5362 = vmatpush.msra.mxu0 0.0
        %5363 = vmatpush.msra.mxu0 0.0
        %5364 = vmatpush.msra.mxu0 0.0
        %5365 = vmatpush.msra.mxu0 0.0
        %5366 = vmatpush.msra.mxu0 0.0
        %5367 = vmatpush.msra.mxu0 0.0
        %5368 = vmatpush.msra.mxu0 0.0
        %5369 = vmatpush.msra.mxu0 0.0
        %5370 = vmatpush.msra.mxu0 %v3374
        %5371 = vmatpush.msra.mxu0 %v3373
        %5372 = vmatpush.msra.mxu0 %v3372
        %5373 = vmatpush.msra.mxu0 %v3371
        %5374 = vmatmul.f32.gmra.mxu0 %v5356
        %v5375 = vpop.f32.mrf.mxu0
        %v5376 = vadd.f32 0.0, %v5375
        %5377 = vdwg.mxu0
        %v5378 = vadd.f32 %v5355, %v5376
        %v5379 = vxor.u32 %v5378, 2147483648
        %v5380 = vmul.f32 %v5379, 1.442695
        %v5381 = vpow.pop %v5380
        %v5382 = vadd.f32 %v5381, 1.0
        %v5383 = vrcp.pop %v5382
        %v5384 = vmul.f32 %v5382, %v5383
        %v5385 = vsub.f32 1.0, %v5384
        %v5386 = vmul.f32 %v5383, %v5385
        %v5387 = vadd.f32 %v5383, %v5386
        %vm5388 = vweird.f32 %v5382
        %vm5389 = vweird.f32 %v5383
        %vm5390 = vmor %vm5388, %vm5389
        %v5391 = vsel %vm5390, %v5383, %v5387
        %v5392 = vand.u32 2147483647, %v5382
        %vm5393 = vcmp.eq.f32.partialorder %v5392, 8.507059e+37
        %v5394 = vand.u32 %v5382, 2147483648
        %v5395 = vor.u32 1.1754944e-38, %v5394
        %v5396 = vsel %vm5393, %v5395, %v5391
        %v5397 = vmul.f32 1.0, %v5396
        %v5398 = vtanh.pop %v5378
        %v5399 = vmul.f32 %v5397, %v5277
        %5401 = vrot.lane.b32.xlu0 %v5398, 64
        %v5402 = vpop.permute.xlu0 %5401
        %v5404 = vmul.f32 %v5397, %v5402
        %5406 = vrot.lane.b32.xlu0 %v5404, 32
        %v5407 = vpop.permute.xlu0 %5406
        %v5409 = vadd.f32 %v5399, %v5407
        %v5410 = vtanh.pop %v5409
        %5412 = vrot.lane.b32.xlu0 %v5410, 64
        %v5413 = vpop.permute.xlu0 %5412
        %v5415 = vmul.f32 %v5397, %v5413
        %v5416 = vld [vmem:[#allocation2 + $0x8] ss:$0 sm:$0xff]
        %v5417 = vsel %vm1022, %v5352, 0
        %5419 = vmatpush.msra.mxu0 0.0
        %5420 = vmatpush.msra.mxu0 0.0
        %5421 = vmatpush.msra.mxu0 0.0
        %5422 = vmatpush.msra.mxu0 0.0
        %5423 = vmatpush.msra.mxu0 0.0
        %5424 = vmatpush.msra.mxu0 0.0
        %5425 = vmatpush.msra.mxu0 0.0
        %5426 = vmatpush.msra.mxu0 0.0
        %5427 = vmatpush.msra.mxu0 0.0
        %5428 = vmatpush.msra.mxu0 0.0
        %5429 = vmatpush.msra.mxu0 0.0
        %5430 = vmatpush.msra.mxu0 0.0
        %5431 = vmatpush.msra.mxu0 %v3378
        %5432 = vmatpush.msra.mxu0 %v3377
        %5433 = vmatpush.msra.mxu0 %v3376
        %5434 = vmatpush.msra.mxu0 %v3375
        %5435 = vmatmul.f32.gmra.mxu0 %v5417
        %v5436 = vpop.f32.mrf.mxu0
        %v5437 = vadd.f32 0.0, %v5436
        %5438 = vdwg.mxu0
        %v5439 = vadd.f32 %v5416, %v5437
        %v5440 = vxor.u32 %v5439, 2147483648
        %v5441 = vmul.f32 %v5440, 1.442695
        %v5442 = vpow.pop %v5441
        %v5443 = vadd.f32 %v5442, 1.0
        %v5444 = vrcp.pop %v5443
        %v5445 = vmul.f32 %v5443, %v5444
        %v5446 = vsub.f32 1.0, %v5445
        %v5447 = vmul.f32 %v5444, %v5446
        %v5448 = vadd.f32 %v5444, %v5447
        %vm5449 = vweird.f32 %v5443
        %vm5450 = vweird.f32 %v5444
        %vm5451 = vmor %vm5449, %vm5450
        %v5452 = vsel %vm5451, %v5444, %v5448
        %v5453 = vand.u32 2147483647, %v5443
        %vm5454 = vcmp.eq.f32.partialorder %v5453, 8.507059e+37
        %v5455 = vand.u32 %v5443, 2147483648
        %v5456 = vor.u32 1.1754944e-38, %v5455
        %v5457 = vsel %vm5454, %v5456, %v5452
        %v5458 = vmul.f32 1.0, %v5457
        %v5459 = vtanh.pop %v5439
        %v5460 = vmul.f32 %v5458, %v5338
        %5462 = vrot.lane.b32.xlu0 %v5459, 64
        %v5463 = vpop.permute.xlu0 %5462
        %v5465 = vmul.f32 %v5458, %v5463
        %5467 = vrot.lane.b32.xlu0 %v5465, 32
        %v5468 = vpop.permute.xlu0 %5467
        %v5470 = vadd.f32 %v5460, %v5468
        %v5471 = vtanh.pop %v5470
        %5473 = vrot.lane.b32.xlu0 %v5471, 64
        %v5474 = vpop.permute.xlu0 %5473
        %v5476 = vmul.f32 %v5458, %v5474
        %5478 = vrot.lane.b32.xlu0 %v5415, 32
        %v5479 = vpop.permute.xlu0 %5478
        %5481 = vst.msk [vmem:[#allocation3 + $0xf] sm:$0x1] %vm1292, %v5479
        %5483 = vrot.lane.b32.xlu0 %v5476, 32
        %v5484 = vpop.permute.xlu0 %5483
        %5486 = vst.msk [vmem:[#allocation4] sm:$0x1] %vm1292, %v5484
        %v5487 = vld [vmem:[#allocation3] sm:$0xff]
        %v5488 = vld [vmem:[#allocation3 + $0x8] sm:$0xff]
        %v5489 = vld [vmem:[#allocation4] sm:$0xff]
        %v5490 = vld [vmem:[#allocation4 + $0x8] sm:$0xff]
        %5493 = vrot.lane.b32.xlu0 %v5489, 32
        %v5494 = vpop.permute.xlu0 %5493
        %5495 = vrot.lane.b32.xlu0 %v5490, 32
        %v5496 = vpop.permute.xlu0 %5495
        %v5499 = vsel %vm1022, %v5487, %v5494
        %v5500 = vsel %vm1022, %v5488, %v5496
        %v5501 = vld [vmem:[%s17] sm:$0xff]
        %v5502 = vld [vmem:[%s17 + $0x8] sm:$0xff]
        %v5503 = vld [vmem:[%s17 + $0x10] sm:$0xff]
        %v5504 = vld [vmem:[%s17 + $0x18] sm:$0xff]
        %v5505 = vld [vmem:[%s17 + $0x20] sm:$0xff]
        %v5506 = vld [vmem:[%s17 + $0x28] sm:$0xff]
        %v5507 = vld [vmem:[%s17 + $0x30] sm:$0xff]
        %v5508 = vld [vmem:[%s17 + $0x38] sm:$0xff]
        %v5509 = vld [vmem:[#allocation15] sm:$0x1]
        %v5511 = vperm.slane %v5509, 0
        %v5514 = vsel %vm1028, %v5499, 0
        %v5517 = vsel %vm1028, %v5500, 0
        %5519 = vmatpush.msra.mxu0 0.0
        %5520 = vmatpush.msra.mxu0 0.0
        %5521 = vmatpush.msra.mxu0 0.0
        %5522 = vmatpush.msra.mxu0 0.0
        %5523 = vmatpush.msra.mxu0 0.0
        %5524 = vmatpush.msra.mxu0 0.0
        %5525 = vmatpush.msra.mxu0 0.0
        %5526 = vmatpush.msra.mxu0 0.0
        %5527 = vmatpush.msra.mxu0 %v5508
        %5528 = vmatpush.msra.mxu0 %v5507
        %5529 = vmatpush.msra.mxu0 %v5506
        %5530 = vmatpush.msra.mxu0 %v5505
        %5531 = vmatpush.msra.mxu0 %v5504
        %5532 = vmatpush.msra.mxu0 %v5503
        %5533 = vmatpush.msra.mxu0 %v5502
        %5534 = vmatpush.msra.mxu0 %v5501
        %5535 = vmatmul.f32.gmra.mxu0 %v5514
        %v5536 = vpop.f32.mrf.mxu0
        %v5537 = vadd.f32 %v5511, %v5536
        %5538 = vmatmul.f32.gmra.mxu0 %v5517
        %v5539 = vpop.f32.mrf.mxu0
        %v5540 = vadd.f32 %v5511, %v5539
        %5541 = vdwg.mxu0
        %vm5542 = vcmp.gt.f32.partialorder %v5537, 0.0
        %vm5543 = vcmp.gt.f32.partialorder %v5540, 0.0
        %v5544 = vmul.f32 %v5537, 0.1
        %v5545 = vmul.f32 %v5540, 0.1
        %v5546 = vsel %vm5542, %v5537, %v5544
        %v5547 = vsel %vm5543, %v5540, %v5545
        %v5548 = vld [vmem:[#allocation17] sm:$0xff]
        %v5549 = vld [vmem:[#allocation17 + $0x8] sm:$0xff]
        %v5550 = vld [vmem:[#allocation17 + $0x10] sm:$0xff]
        %v5551 = vld [vmem:[#allocation17 + $0x18] sm:$0xff]
        %v5552 = vld [vmem:[#allocation18] sm:$0x1]
        %v5554 = vperm.slane %v5552, 0
        %v5557 = vsel %vm1022, %v5546, 0
        %v5560 = vsel %vm1022, %v5547, 0
        %5562 = vmatpush.msra.mxu0 0.0
        %5563 = vmatpush.msra.mxu0 0.0
        %5564 = vmatpush.msra.mxu0 0.0
        %5565 = vmatpush.msra.mxu0 0.0
        %5566 = vmatpush.msra.mxu0 0.0
        %5567 = vmatpush.msra.mxu0 0.0
        %5568 = vmatpush.msra.mxu0 0.0
        %5569 = vmatpush.msra.mxu0 0.0
        %5570 = vmatpush.msra.mxu0 0.0
        %5571 = vmatpush.msra.mxu0 0.0
        %5572 = vmatpush.msra.mxu0 0.0
        %5573 = vmatpush.msra.mxu0 0.0
        %5574 = vmatpush.msra.mxu0 %v5551
        %5575 = vmatpush.msra.mxu0 %v5550
        %5576 = vmatpush.msra.mxu0 %v5549
        %5577 = vmatpush.msra.mxu0 %v5548
        %5578 = vmatmul.f32.gmra.mxu0 %v5557
        %v5579 = vpop.f32.mrf.mxu0
        %v5580 = vadd.f32 %v5554, %v5579
        %5581 = vmatmul.f32.gmra.mxu0 %v5560
        %v5582 = vpop.f32.mrf.mxu0
        %v5583 = vadd.f32 %v5554, %v5582
        %5584 = vdwg.mxu0
        %vm5585 = vcmp.gt.f32.partialorder %v5580, 0.0
        %vm5586 = vcmp.gt.f32.partialorder %v5583, 0.0
        %v5587 = vmul.f32 %v5580, 0.1
        %v5588 = vmul.f32 %v5583, 0.1
        %v5589 = vsel %vm5585, %v5580, %v5587
        %v5590 = vsel %vm5586, %v5583, %v5588
        %v5591 = vld [vmem:[%s21] sm:$0x1]
        %v5592 = vld [vmem:[#allocation5] sm:$0x1]
        %5594 = vset.pattern.permute.xlu0 0
        %5595 = vperm.xlu0 %5594, %v5592
        %v5596 = vpop.permute.xlu0 %5595
        %v5598 = vperm.slane %v5596, 0
        %v5600 = vsel %vm1028, %v5591, 0
        %v5603 = vsel %vm1028, %v5589, 0
        %v5606 = vsel %vm1028, %v5590, 0
        %5608 = vmatpush.xpose.msra.mxu0 0.0
        %5609 = vmatpush.xpose.msra.mxu0 0.0
        %5610 = vmatpush.xpose.msra.mxu0 0.0
        %5611 = vmatpush.xpose.msra.mxu0 0.0
        %5612 = vmatpush.xpose.msra.mxu0 0.0
        %5613 = vmatpush.xpose.msra.mxu0 0.0
        %5614 = vmatpush.xpose.msra.mxu0 0.0
        %5615 = vmatpush.xpose.msra.mxu0 0.0
        %5616 = vmatpush.xpose.msra.mxu0 0.0
        %5617 = vmatpush.xpose.msra.mxu0 0.0
        %5618 = vmatpush.xpose.msra.mxu0 0.0
        %5619 = vmatpush.xpose.msra.mxu0 0.0
        %5620 = vmatpush.xpose.msra.mxu0 0.0
        %5621 = vmatpush.xpose.msra.mxu0 0.0
        %5622 = vmatpush.xpose.msra.mxu0 %v5606
        %5623 = vmatpush.xpose.msra.mxu0 %v5603
        %5624 = vmatmul.f32.gmra.mxu0 %v5600
        %v5625 = vpop.f32.mrf.mxu0
        %v5626 = vadd.f32 %v5598, %v5625
        %5627 = vdwg.mxu0
        %v5628 = vxor.u32 %v5626, 2147483648
        %v5629 = vmul.f32 %v5628, 1.442695
        %v5630 = vpow.pop %v5629
        %v5631 = vadd.f32 %v5630, 1.0
        %v5632 = vrcp.pop %v5631
        %v5633 = vmul.f32 %v5631, %v5632
        %v5634 = vsub.f32 1.0, %v5633
        %v5635 = vmul.f32 %v5632, %v5634
        %v5636 = vadd.f32 %v5632, %v5635
        %vm5637 = vweird.f32 %v5631
        %vm5638 = vweird.f32 %v5632
        %vm5639 = vmor %vm5637, %vm5638
        %v5640 = vsel %vm5639, %v5632, %v5636
        %v5641 = vand.u32 2147483647, %v5631
        %vm5642 = vcmp.eq.f32.partialorder %v5641, 8.507059e+37
        %v5643 = vand.u32 %v5631, 2147483648
        %v5644 = vor.u32 1.1754944e-38, %v5643
        %v5645 = vsel %vm5642, %v5644, %v5640
        %v5646 = vmul.f32 1.0, %v5645
        %vm5647 = vcmask 122880
        %5648 = vst.msk [vmem:[%s833] sm:$0x1] %vm5647, %v5646
        %s5649 = sand.u32 %s540, 1
        %s5650 = scalar_lea.sflag [#allocation8], %s5649
        %s5651 = sand.u32 %s540, 1
        %s5652 = scalar_lea.vmem [#allocation20], %s5651
        // Predicated region
        $region145: #{cnn_lstm_forward.1} parent=111 // pred_check
          %p5653 = pneg %p550
        $region146: #{cnn_lstm_forward.1} parent=111 // pred_check_branch
          %5655 = sbr.rel (%p5653) target = $region148
        $region147: #{cnn_lstm_forward.1} parent=111 // pred_region
          %5657 = vsyncadd %s5650, 0
          %s5658 = scalar_lea.hbm %s23, %s44
          %s5660 = sshll.u32 %s5652, 4
          %s5661 = int_to_ptr.vmem [resolvable:$true] %s5660
          %s5662 = sshll.u32 %s5658, 4
          %s5663 = int_to_ptr.hbm [resolvable:$true] %s5662
          %5665 = dma.vmem_to_hbm [thread:$0]  %s5661, 16, %s5663, %s5650
        $region148: #{cnn_lstm_forward.1} parent=111 // pred_fallthru
          _
      $region112: #{cnn_lstm_forward.1} parent=5 // pred_fallthru
        _
      %p5666 = scmp.le.s32.totalorder 2, %s39
      // Predicated region
      $region149: #{cnn_lstm_forward.1} parent=5 // pred_check
        %p5667 = pneg %p5666
      $region150: #{cnn_lstm_forward.1} parent=5 // pred_check_branch
        %5669 = sbr.rel (%p5667) target = $region152
      $region151: #{cnn_lstm_forward.1} parent=5 // pred_region
        %s5670 = ssub.s32 %s39, 2
        // Predicated region
        $region153: #{cnn_lstm_forward.1} parent=151 // pred_check
          %p5671 = pneg %p556
        $region154: #{cnn_lstm_forward.1} parent=151 // pred_check_branch
          %5673 = sbr.rel (%p5671) target = $region156
        $region155: #{cnn_lstm_forward.1} parent=151 // pred_region
          %s5674 = sand.u32 %s541, 1
          %s5675 = scalar_lea.sflag [#allocation8], %s5674
          %s5676 = sand.u32 %s541, 1
          %s5677 = scalar_lea.vmem [#allocation20], %s5676
          %5679 = dma.done %s5675, 16
        $region156: #{cnn_lstm_forward.1} parent=151 // pred_fallthru
          _
      $region152: #{cnn_lstm_forward.1} parent=5 // pred_fallthru
        _
    $region6: #{cnn_lstm_forward.1} parent=1 // loop_footer
      %s43 = sadd.s32 1, %s39
    $region7: #{cnn_lstm_forward.1} parent=1 // loop_footer_branch
      %38 = sbr.rel target = $region3
    $region8: #{cnn_lstm_forward.1} parent=1 // loop_exit
      _
    %5680 = vsyncpa [#allocation7], 1
    %s5681 = scalar_lea.sflag [#allocation7], 1
    %5682 = vsyncpa %s5681, 1
    %5683 = vsyncpa [#allocation10], 1
    %5684 = vsyncpa [#allocation13], 1
    %5685 = vsyncpa [#allocation16], 1
    %5686 = vsyncpa [#allocation19], 1
    %5687 = vsyncpa [#allocation8], 1
    %s5688 = scalar_lea.sflag [#allocation8], 1
    %5689 = vsyncpa %s5688, 1

</llo_original>
